<compile_context>
chip_gen: v7x
topology: tpu7x:2x2x1
jax: 0.10.0
libtpu: 0.0.40
codegen_flags: <defaults>
</compile_context>

<pallas_src>
import functools

import jax
import jax.numpy as jnp
from jax.experimental import pallas as pl
from jax.experimental.pallas import tpu as pltpu

BN_EPS = 1e-5


def _round_up(x, m):
    return (x + m - 1) // m * m


# ----------------------------- Pallas kernel ------------------------------- #
def _conv_bn_act_kernel(x_ref, w_ref, o_ref, acc_ref, *, inv_p, apply_sigmoid):
    # x_ref : (K_slab, P_pad)   bf16   one kernel-depth slab of im2col columns
    # w_ref : (Cout_pad, K_slab) bf16
    # o_ref : (Cout_pad, P_pad) f32
    # acc_ref: (Cout_pad, P_pad) f32 VMEM accumulator (persists across the grid)
    z = pl.program_id(0)

    @pl.when(z == 0)
    def _():
        acc_ref[...] = jnp.zeros_like(acc_ref)

    # One depth-slab of the 3D conv: [Cout, K] @ [K, P] accumulated in f32.
    acc_ref[...] += jnp.dot(w_ref[...], x_ref[...],
                            preferred_element_type=jnp.float32)

    @pl.when(z == pl.num_programs(0) - 1)
    def _():
        x = acc_ref[...]
        # Training-mode BatchNorm3d (gamma=1, beta=0, biased variance), one-pass
        # stats.  Padded P lanes hold exact zeros and padded Cout rows are
        # discarded by the caller, so dividing by the *true* P is exact.
        mean = jnp.sum(x, axis=1, keepdims=True) * inv_p
        mean_sq = jnp.sum(x * x, axis=1, keepdims=True) * inv_p
        var = jnp.maximum(mean_sq - mean * mean, 0.0)
        y = (x - mean) * jax.lax.rsqrt(var + BN_EPS)
        y = jnp.maximum(y, 0.0)                      # ReLU
        if apply_sigmoid:
            y = jax.nn.sigmoid(y)                    # final decoder layer only
        o_ref[...] = y


# ------------------------------ JAX glue ----------------------------------- #
def _extract_taps(x, kd, kh, kw, pad):
    """x: (C, N, D, H, W) -> (taps, (Do, Ho, Wo)).

    taps[t, c, p] = x_padded[c, n, d+dz, h+dy, w+dx] for tap t=(dz, dy, dx)
    (row-major) and output position p=(n, d, h, w), with `pad` implicit zeros on
    every spatial side (pad=0 -> valid conv, pad=k-1 -> 'full' conv used for the
    stride-1 ConvTranspose3d).  The zero border is built per tap with clipped
    slices, so no halo-inflated copy of x is materialized.
    """
    C, N, D, H, W = x.shape
    Do = D + 2 * pad - kd + 1
    Ho = H + 2 * pad - kh + 1
    Wo = W + 2 * pad - kw + 1

    def clip(off, out_size, full):
        lo = off - pad
        hi = lo + out_size
        s, e = max(lo, 0), min(hi, full)
        return s, e, s - lo, hi - e            # slice start/end, pad lo/hi

    taps = []
    for dz in range(kd):
        d0, d1, pdl, pdh = clip(dz, Do, D)
        for dy in range(kh):
            h0, h1, phl, phh = clip(dy, Ho, H)
            for dx in range(kw):
                w0, w1, pwl, pwh = clip(dx, Wo, W)
                win = x[:, :, d0:d1, h0:h1, w0:w1]
                if pad:
                    win = jnp.pad(win, ((0, 0), (0, 0), (pdl, pdh),
                                        (phl, phh), (pwl, pwh)))
                taps.append(win.reshape(C, N * Do * Ho * Wo))
    return jnp.stack(taps, axis=0), (Do, Ho, Wo)


def _conv_bn_act_layer(x, w, *, pad=0, apply_sigmoid=False):
    """Fused Conv3d(stride=1) + training-mode BatchNorm3d + ReLU (+ Sigmoid).

    x: (Cin, N, D, H, W) channel-major activation (f32).
    w: (Cout, Cin, kd, kh, kw) correlation weights (already flipped / swapped
       for the ConvTranspose3d layers).
    Returns (Cout, N, Do, Ho, Wo) f32.  No bias: it is exactly cancelled by the
    training-mode BN mean subtraction.
    """
    Cout, Cin, kd, kh, kw = w.shape
    C, N, D, H, W = x.shape
    assert C == Cin
    khw = kh * kw
    T = kd * khw

    # bf16 tap extraction (halves the materialized im2col bytes).
    taps, (Do, Ho, Wo) = _extract_taps(x.astype(jnp.bfloat16), kd, kh, kw, pad)

    P = N * Do * Ho * Wo
    P_pad = _round_up(P, 128)            # lane axis: multiple of 128
    Cin_pad = _round_up(Cin, 16)         # bf16 sublane tile
    Cout_pad = _round_up(Cout, 8)

    # (T, Cin_pad, P_pad) zero-padded taps, grouped into kd depth-slabs so each
    # grid step runs one larger matmul with contraction K = kh*kw*Cin_pad.
    taps = jnp.pad(taps, ((0, 0), (0, Cin_pad - Cin), (0, P_pad - P)))
    x_slabs = taps.reshape(kd, khw * Cin_pad, P_pad)

    # Weights, same tap ordering, same per-tap Cin padding, same slab grouping.
    w_taps = jnp.transpose(w.reshape(Cout, Cin, T), (2, 0, 1))      # (T, Cout, Cin)
    w_taps = jnp.pad(w_taps, ((0, 0), (0, Cout_pad - Cout), (0, Cin_pad - Cin)))
    w_slabs = jnp.transpose(w_taps.reshape(kd, khw, Cout_pad, Cin_pad),
                            (0, 2, 1, 3)).reshape(kd, Cout_pad, khw * Cin_pad)
    w_slabs = w_slabs.astype(jnp.bfloat16)

    kernel = functools.partial(_conv_bn_act_kernel,
                               inv_p=1.0 / float(P),
                               apply_sigmoid=apply_sigmoid)
    out = pl.pallas_call(
        kernel,
        out_shape=jax.ShapeDtypeStruct((Cout_pad, P_pad), jnp.float32),
        grid=(kd,),
        in_specs=[
            pl.BlockSpec((None, khw * Cin_pad, P_pad), lambda z: (z, 0, 0)),
            pl.BlockSpec((None, Cout_pad, khw * Cin_pad), lambda z: (z, 0, 0)),
        ],
        out_specs=pl.BlockSpec((Cout_pad, P_pad), lambda z: (0, 0)),
        scratch_shapes=[pltpu.VMEM((Cout_pad, P_pad), jnp.float32)],
        compiler_params=pltpu.CompilerParams(
            dimension_semantics=("arbitrary",),      # slab axis is a reduction
            vmem_limit_bytes=32 * 1024 * 1024,
        ),
    )(x_slabs, w_slabs)

    # Drop channel/lane padding; result is already channel-major (no transpose).
    return out[:Cout, :P].reshape(Cout, N, Do, Ho, Wo)


def _as_corr_weight(w_t):
    # ConvTranspose3d(stride=1, pad=0) weight (Cin, Cout, kd, kh, kw) ==
    # full-padding correlation with the spatially flipped, (Cin,Cout)-swapped kernel.
    return jnp.transpose(w_t[:, :, ::-1, ::-1, ::-1], (1, 0, 2, 3, 4))


# --------------------------- parameters / model ----------------------------- #
def _uniform(key, shape, bound):
    return jax.random.uniform(key, shape, jnp.float32, -bound, bound)


def init_params(key):
    # Biases are generated to mirror the PyTorch module's parameters, but they
    # are mathematically no-ops under the training-mode BatchNorm that follows
    # every conv, so the forward pass does not use them.
    def conv_p(k, cout, cin, ks):
        k1, k2 = jax.random.split(k)
        bound = 1.0 / float(cin * ks * ks * ks) ** 0.5
        return (_uniform(k1, (cout, cin, ks, ks, ks), bound),
                _uniform(k2, (cout,), bound))

    def convT_p(k, cin, cout, ks):
        k1, k2 = jax.random.split(k)
        bound = 1.0 / float(cout * ks * ks * ks) ** 0.5
        return (_uniform(k1, (cin, cout, ks, ks, ks), bound),
                _uniform(k2, (cout,), bound))

    ks = jax.random.split(key, 8)
    return {
        "encode1": conv_p(ks[0], 8, 1, 4),
        "encode2": conv_p(ks[1], 16, 8, 3),
        "encode3": conv_p(ks[2], 32, 16, 3),
        "encode4": conv_p(ks[3], 64, 32, 3),
        "decode1": convT_p(ks[4], 64, 32, 3),
        "decode2": convT_p(ks[5], 32, 16, 3),
        "decode3": convT_p(ks[6], 16, 8, 3),
        "decode4": convT_p(ks[7], 8, 1, 4),
    }


def ae_forward(params, x):
    # x: (N, 1, D, H, W) NCDHW -> internal channel-major (C, N, D, H, W); every
    # layer keeps this layout so no per-layer transposes are needed.
    h = jnp.transpose(x, (1, 0, 2, 3, 4))

    h = _conv_bn_act_layer(h, params["encode1"][0])
    h = _conv_bn_act_layer(h, params["encode2"][0])
    h = _conv_bn_act_layer(h, params["encode3"][0])
    h = _conv_bn_act_layer(h, params["encode4"][0])
    # latent here is (64, N, D-9, H-9, W-9) channel-major — this corresponds to
    # the `print(latent.size())` debug print in the reference forward.

    def decode(a, w_t, **kw):
        k = w_t.shape[-1]
        return _conv_bn_act_layer(a, _as_corr_weight(w_t), pad=k - 1, **kw)

    y = decode(h, params["decode1"][0])
    y = decode(y, params["decode2"][0])
    y = decode(y, params["decode3"][0])
    y = decode(y, params["decode4"][0], apply_sigmoid=True)   # ReLU then Sigmoid

    return jnp.transpose(y, (1, 0, 2, 3, 4))                  # back to NCDHW


if __name__ == "__main__":
    key = jax.random.PRNGKey(0)
    pkey, xkey = jax.random.split(key)
    params = init_params(pkey)
    # Spatial size must be >= 10 so the encoder (shrinks D/H/W by 9) is valid.
    x = jax.random.uniform(xkey, (2, 1, 12, 12, 12), jnp.float32)

    y = jax.jit(ae_forward)(params, x)
    y = jax.block_until_ready(y)

    assert y.shape == (2, 1, 12, 12, 12), y.shape
    assert y.dtype == jnp.float32
    assert bool(jnp.all(jnp.isfinite(y)))
    # Reference ends with ReLU then Sigmoid, so outputs lie in [0.5, 1].
    assert bool(jnp.all((y >= 0.5) & (y <= 1.0)))
    print("KERNEL_OK")
</pallas_src>

<mosaic_0001>
module attributes {stable_mosaic.version = 11 : i64} {
  func.func @_conv_bn_act_kernel(%arg0: i32, %arg1: memref<1x256x1536xbf16, #tpu.memory_space<vmem>>, %arg2: memref<1x8x256xbf16, #tpu.memory_space<vmem>>, %arg3: memref<8x1536xf32, #tpu.memory_space<vmem>>, %arg4: memref<8x1536xf32, #tpu.memory_space<vmem>>) attributes {dimension_semantics = [#tpu.dimension_semantics<arbitrary>], iteration_bounds = array<i64: 4>, scalar_prefetch = 0 : i64, scratch_operands = 1 : i64, tpu.core_type = #tpu.core_type<tc>, window_params = [{transform_indices = @transform_0, window_bounds = array<i64: 1, 256, 1536>}, {transform_indices = @transform_1, window_bounds = array<i64: 1, 8, 256>}, {pipeline_mode = #tpu.pipeline_mode<synchronous>, transform_indices = @transform_2, window_bounds = array<i64: 8, 1536>}]} {
    %c0_i32 = arith.constant 0 : i32
    %0 = arith.cmpi eq, %arg0, %c0_i32 : i32
    %1 = arith.extui %0 : i1 to i32
    %c0_i32_0 = arith.constant 0 : i32
    %2 = arith.cmpi ne, %1, %c0_i32_0 : i32
    scf.if %2 {
      %cst_11 = arith.constant 0.000000e+00 : f32
      %14 = vector.broadcast %cst_11 : f32 to vector<8x1536xf32>
      %c0_12 = arith.constant 0 : index
      %c0_13 = arith.constant 0 : index
      %15 = vector.load %arg4[%c0_12, %c0_13] : memref<8x1536xf32, #tpu.memory_space<vmem>>, vector<8x1536xf32>
      tpu.vector_store %arg4[%c0_12, %c0_13], %14 {strides = array<i32>} : memref<8x1536xf32, #tpu.memory_space<vmem>>, vector<8x1536xf32>,
    } else {
    }
    %c0 = arith.constant 0 : index
    %c0_1 = arith.constant 0 : index
    %3 = vector.load %arg4[%c0, %c0_1] : memref<8x1536xf32, #tpu.memory_space<vmem>>, vector<8x1536xf32>
    %c0_2 = arith.constant 0 : index
    %c0_3 = arith.constant 0 : index
    %c0_4 = arith.constant 0 : index
    %4 = vector.load %arg2[%c0_2, %c0_3, %c0_4] : memref<1x8x256xbf16, #tpu.memory_space<vmem>>, vector<1x8x256xbf16>
    %5 = vector.shape_cast %4 : vector<1x8x256xbf16> to vector<8x256xbf16>
    %c0_5 = arith.constant 0 : index
    %c0_6 = arith.constant 0 : index
    %c0_7 = arith.constant 0 : index
    %6 = vector.load %arg1[%c0_5, %c0_6, %c0_7] : memref<1x256x1536xbf16, #tpu.memory_space<vmem>>, vector<1x256x1536xbf16>
    %7 = vector.shape_cast %6 : vector<1x256x1536xbf16> to vector<256x1536xbf16>
    %cst = arith.constant dense<0.000000e+00> : vector<8x1536xf32>
    %8 = tpu.matmul %5, %7, %cst {dimension_numbers = #tpu.dot_dimension_numbers<[1], [0], [0], [1], [0, 0, 1, 1], [], []>} : vector<8x256xbf16>, vector<256x1536xbf16>, vector<8x1536xf32> -> vector<8x1536xf32>
    %9 = arith.addf %3, %8 : vector<8x1536xf32>
    %c0_8 = arith.constant 0 : index
    %c0_9 = arith.constant 0 : index
    %10 = vector.load %arg4[%c0_8, %c0_9] : memref<8x1536xf32, #tpu.memory_space<vmem>>, vector<8x1536xf32>
    tpu.vector_store %arg4[%c0_8, %c0_9], %9 {strides = array<i32>} : memref<8x1536xf32, #tpu.memory_space<vmem>>, vector<8x1536xf32>,
    %c3_i32 = arith.constant 3 : i32
    %11 = arith.cmpi eq, %arg0, %c3_i32 : i32
    %12 = arith.extui %11 : i1 to i32
    %c0_i32_10 = arith.constant 0 : i32
    %13 = arith.cmpi ne, %12, %c0_i32_10 : i32
    scf.if %13 {
      %c0_11 = arith.constant 0 : index
      %c0_12 = arith.constant 0 : index
      %14 = vector.load %arg4[%c0_11, %c0_12] : memref<8x1536xf32, #tpu.memory_space<vmem>>, vector<8x1536xf32>
      %cst_13 = arith.constant dense<0.000000e+00> : vector<8xf32>
      %15 = vector.multi_reduction <add>, %14, %cst_13 [1] : vector<8x1536xf32> to vector<8xf32>
      %16 = vector.shape_cast %15 : vector<8xf32> to vector<8x1xf32>
      %cst_14 = arith.constant 6.85871055E-4 : f32
      %17 = vector.broadcast %cst_14 : f32 to vector<8x1xf32>
      %18 = arith.mulf %16, %17 : vector<8x1xf32>
      %19 = arith.mulf %14, %14 : vector<8x1536xf32>
      %cst_15 = arith.constant dense<0.000000e+00> : vector<8xf32>
      %20 = vector.multi_reduction <add>, %19, %cst_15 [1] : vector<8x1536xf32> to vector<8xf32>
      %21 = vector.shape_cast %20 : vector<8xf32> to vector<8x1xf32>
      %cst_16 = arith.constant 6.85871055E-4 : f32
      %22 = vector.broadcast %cst_16 : f32 to vector<8x1xf32>
      %23 = arith.mulf %21, %22 : vector<8x1xf32>
      %24 = arith.mulf %18, %18 : vector<8x1xf32>
      %25 = arith.subf %23, %24 : vector<8x1xf32>
      %cst_17 = arith.constant 0.000000e+00 : f32
      %26 = vector.broadcast %cst_17 : f32 to vector<8x1xf32>
      %27 = arith.maximumf %25, %26 : vector<8x1xf32>
      %28 = vector.broadcast %18 : vector<8x1xf32> to vector<8x1536xf32>
      %29 = arith.subf %14, %28 : vector<8x1536xf32>
      %cst_18 = arith.constant 9.99999974E-6 : f32
      %30 = vector.broadcast %cst_18 : f32 to vector<8x1xf32>
      %31 = arith.addf %27, %30 : vector<8x1xf32>
      %32 = math.rsqrt %31 : vector<8x1xf32>
      %33 = vector.broadcast %32 : vector<8x1xf32> to vector<8x1536xf32>
      %34 = arith.mulf %29, %33 : vector<8x1536xf32>
      %cst_19 = arith.constant 0.000000e+00 : f32
      %35 = vector.broadcast %cst_19 : f32 to vector<8x1536xf32>
      %36 = arith.maximumf %34, %35 : vector<8x1536xf32>
      %c0_20 = arith.constant 0 : index
      %c0_21 = arith.constant 0 : index
      %37 = vector.load %arg3[%c0_20, %c0_21] : memref<8x1536xf32, #tpu.memory_space<vmem>>, vector<8x1536xf32>
      tpu.vector_store %arg3[%c0_20, %c0_21], %36 {strides = array<i32>} : memref<8x1536xf32, #tpu.memory_space<vmem>>, vector<8x1536xf32>,
    } else {
    }
    return
  }
  func.func @transform_0(%arg0: i32) -> (i32, i32, i32) {
    %c0_i32 = arith.constant 0 : i32
    %c0_i32_0 = arith.constant 0 : i32
    %c0_i32_1 = arith.constant 0 : i32
    return %arg0, %c0_i32, %c0_i32_0 : i32, i32, i32
  }
  func.func @transform_1(%arg0: i32) -> (i32, i32, i32) {
    %c0_i32 = arith.constant 0 : i32
    %c0_i32_0 = arith.constant 0 : i32
    %c0_i32_1 = arith.constant 0 : i32
    return %arg0, %c0_i32, %c0_i32_0 : i32, i32, i32
  }
  func.func @transform_2(%arg0: i32) -> (i32, i32) {
    %c0_i32 = arith.constant 0 : i32
    %c0_i32_0 = arith.constant 0 : i32
    %c0_i32_1 = arith.constant 0 : i32
    return %c0_i32, %c0_i32_0 : i32, i32
  }
}

module attributes {stable_mosaic.version = 11 : i64} {
  func.func @_conv_bn_act_kernel(%arg0: i32, %arg1: memref<1x144x768xbf16, #tpu.memory_space<vmem>>, %arg2: memref<1x16x144xbf16, #tpu.memory_space<vmem>>, %arg3: memref<16x768xf32, #tpu.memory_space<vmem>>, %arg4: memref<16x768xf32, #tpu.memory_space<vmem>>) attributes {dimension_semantics = [#tpu.dimension_semantics<arbitrary>], iteration_bounds = array<i64: 3>, scalar_prefetch = 0 : i64, scratch_operands = 1 : i64, tpu.core_type = #tpu.core_type<tc>, window_params = [{transform_indices = @transform_0, window_bounds = array<i64: 1, 144, 768>}, {transform_indices = @transform_1, window_bounds = array<i64: 1, 16, 144>}, {pipeline_mode = #tpu.pipeline_mode<synchronous>, transform_indices = @transform_2, window_bounds = array<i64: 16, 768>}]} {
    %c0_i32 = arith.constant 0 : i32
    %0 = arith.cmpi eq, %arg0, %c0_i32 : i32
    %1 = arith.extui %0 : i1 to i32
    %c0_i32_0 = arith.constant 0 : i32
    %2 = arith.cmpi ne, %1, %c0_i32_0 : i32
    scf.if %2 {
      %cst_11 = arith.constant 0.000000e+00 : f32
      %14 = vector.broadcast %cst_11 : f32 to vector<16x768xf32>
      %c0_12 = arith.constant 0 : index
      %c0_13 = arith.constant 0 : index
      %15 = vector.load %arg4[%c0_12, %c0_13] : memref<16x768xf32, #tpu.memory_space<vmem>>, vector<16x768xf32>
      tpu.vector_store %arg4[%c0_12, %c0_13], %14 {strides = array<i32>} : memref<16x768xf32, #tpu.memory_space<vmem>>, vector<16x768xf32>,
    } else {
    }
    %c0 = arith.constant 0 : index
    %c0_1 = arith.constant 0 : index
    %3 = vector.load %arg4[%c0, %c0_1] : memref<16x768xf32, #tpu.memory_space<vmem>>, vector<16x768xf32>
    %c0_2 = arith.constant 0 : index
    %c0_3 = arith.constant 0 : index
    %c0_4 = arith.constant 0 : index
    %4 = vector.load %arg2[%c0_2, %c0_3, %c0_4] : memref<1x16x144xbf16, #tpu.memory_space<vmem>>, vector<1x16x144xbf16>
    %5 = vector.shape_cast %4 : vector<1x16x144xbf16> to vector<16x144xbf16>
    %c0_5 = arith.constant 0 : index
    %c0_6 = arith.constant 0 : index
    %c0_7 = arith.constant 0 : index
    %6 = vector.load %arg1[%c0_5, %c0_6, %c0_7] : memref<1x144x768xbf16, #tpu.memory_space<vmem>>, vector<1x144x768xbf16>
    %7 = vector.shape_cast %6 : vector<1x144x768xbf16> to vector<144x768xbf16>
    %cst = arith.constant dense<0.000000e+00> : vector<16x768xf32>
    %8 = tpu.matmul %5, %7, %cst {dimension_numbers = #tpu.dot_dimension_numbers<[1], [0], [0], [1], [0, 0, 1, 1], [], []>} : vector<16x144xbf16>, vector<144x768xbf16>, vector<16x768xf32> -> vector<16x768xf32>
    %9 = arith.addf %3, %8 : vector<16x768xf32>
    %c0_8 = arith.constant 0 : index
    %c0_9 = arith.constant 0 : index
    %10 = vector.load %arg4[%c0_8, %c0_9] : memref<16x768xf32, #tpu.memory_space<vmem>>, vector<16x768xf32>
    tpu.vector_store %arg4[%c0_8, %c0_9], %9 {strides = array<i32>} : memref<16x768xf32, #tpu.memory_space<vmem>>, vector<16x768xf32>,
    %c2_i32 = arith.constant 2 : i32
    %11 = arith.cmpi eq, %arg0, %c2_i32 : i32
    %12 = arith.extui %11 : i1 to i32
    %c0_i32_10 = arith.constant 0 : i32
    %13 = arith.cmpi ne, %12, %c0_i32_10 : i32
    scf.if %13 {
      %c0_11 = arith.constant 0 : index
      %c0_12 = arith.constant 0 : index
      %14 = vector.load %arg4[%c0_11, %c0_12] : memref<16x768xf32, #tpu.memory_space<vmem>>, vector<16x768xf32>
      %cst_13 = arith.constant dense<0.000000e+00> : vector<16xf32>
      %15 = vector.multi_reduction <add>, %14, %cst_13 [1] : vector<16x768xf32> to vector<16xf32>
      %16 = vector.shape_cast %15 : vector<16xf32> to vector<16x1xf32>
      %cst_14 = arith.constant 0.001457726 : f32
      %17 = vector.broadcast %cst_14 : f32 to vector<16x1xf32>
      %18 = arith.mulf %16, %17 : vector<16x1xf32>
      %19 = arith.mulf %14, %14 : vector<16x768xf32>
      %cst_15 = arith.constant dense<0.000000e+00> : vector<16xf32>
      %20 = vector.multi_reduction <add>, %19, %cst_15 [1] : vector<16x768xf32> to vector<16xf32>
      %21 = vector.shape_cast %20 : vector<16xf32> to vector<16x1xf32>
      %cst_16 = arith.constant 0.001457726 : f32
      %22 = vector.broadcast %cst_16 : f32 to vector<16x1xf32>
      %23 = arith.mulf %21, %22 : vector<16x1xf32>
      %24 = arith.mulf %18, %18 : vector<16x1xf32>
      %25 = arith.subf %23, %24 : vector<16x1xf32>
      %cst_17 = arith.constant 0.000000e+00 : f32
      %26 = vector.broadcast %cst_17 : f32 to vector<16x1xf32>
      %27 = arith.maximumf %25, %26 : vector<16x1xf32>
      %28 = vector.broadcast %18 : vector<16x1xf32> to vector<16x768xf32>
      %29 = arith.subf %14, %28 : vector<16x768xf32>
      %cst_18 = arith.constant 9.99999974E-6 : f32
      %30 = vector.broadcast %cst_18 : f32 to vector<16x1xf32>
      %31 = arith.addf %27, %30 : vector<16x1xf32>
      %32 = math.rsqrt %31 : vector<16x1xf32>
      %33 = vector.broadcast %32 : vector<16x1xf32> to vector<16x768xf32>
      %34 = arith.mulf %29, %33 : vector<16x768xf32>
      %cst_19 = arith.constant 0.000000e+00 : f32
      %35 = vector.broadcast %cst_19 : f32 to vector<16x768xf32>
      %36 = arith.maximumf %34, %35 : vector<16x768xf32>
      %c0_20 = arith.constant 0 : index
      %c0_21 = arith.constant 0 : index
      %37 = vector.load %arg3[%c0_20, %c0_21] : memref<16x768xf32, #tpu.memory_space<vmem>>, vector<16x768xf32>
      tpu.vector_store %arg3[%c0_20, %c0_21], %36 {strides = array<i32>} : memref<16x768xf32, #tpu.memory_space<vmem>>, vector<16x768xf32>,
    } else {
    }
    return
  }
  func.func @transform_0(%arg0: i32) -> (i32, i32, i32) {
    %c0_i32 = arith.constant 0 : i32
    %c0_i32_0 = arith.constant 0 : i32
    %c0_i32_1 = arith.constant 0 : i32
    return %arg0, %c0_i32, %c0_i32_0 : i32, i32, i32
  }
  func.func @transform_1(%arg0: i32) -> (i32, i32, i32) {
    %c0_i32 = arith.constant 0 : i32
    %c0_i32_0 = arith.constant 0 : i32
    %c0_i32_1 = arith.constant 0 : i32
    return %arg0, %c0_i32, %c0_i32_0 : i32, i32, i32
  }
  func.func @transform_2(%arg0: i32) -> (i32, i32) {
    %c0_i32 = arith.constant 0 : i32
    %c0_i32_0 = arith.constant 0 : i32
    %c0_i32_1 = arith.constant 0 : i32
    return %c0_i32, %c0_i32_0 : i32, i32
  }
}

module attributes {stable_mosaic.version = 11 : i64} {
  func.func @_conv_bn_act_kernel(%arg0: i32, %arg1: memref<1x144x256xbf16, #tpu.memory_space<vmem>>, %arg2: memref<1x32x144xbf16, #tpu.memory_space<vmem>>, %arg3: memref<32x256xf32, #tpu.memory_space<vmem>>, %arg4: memref<32x256xf32, #tpu.memory_space<vmem>>) attributes {dimension_semantics = [#tpu.dimension_semantics<arbitrary>], iteration_bounds = array<i64: 3>, scalar_prefetch = 0 : i64, scratch_operands = 1 : i64, tpu.core_type = #tpu.core_type<tc>, window_params = [{transform_indices = @transform_0, window_bounds = array<i64: 1, 144, 256>}, {transform_indices = @transform_1, window_bounds = array<i64: 1, 32, 144>}, {pipeline_mode = #tpu.pipeline_mode<synchronous>, transform_indices = @transform_2, window_bounds = array<i64: 32, 256>}]} {
    %c0_i32 = arith.constant 0 : i32
    %0 = arith.cmpi eq, %arg0, %c0_i32 : i32
    %1 = arith.extui %0 : i1 to i32
    %c0_i32_0 = arith.constant 0 : i32
    %2 = arith.cmpi ne, %1, %c0_i32_0 : i32
    scf.if %2 {
      %cst_11 = arith.constant 0.000000e+00 : f32
      %14 = vector.broadcast %cst_11 : f32 to vector<32x256xf32>
      %c0_12 = arith.constant 0 : index
      %c0_13 = arith.constant 0 : index
      %15 = vector.load %arg4[%c0_12, %c0_13] : memref<32x256xf32, #tpu.memory_space<vmem>>, vector<32x256xf32>
      tpu.vector_store %arg4[%c0_12, %c0_13], %14 {strides = array<i32>} : memref<32x256xf32, #tpu.memory_space<vmem>>, vector<32x256xf32>,
    } else {
    }
    %c0 = arith.constant 0 : index
    %c0_1 = arith.constant 0 : index
    %3 = vector.load %arg4[%c0, %c0_1] : memref<32x256xf32, #tpu.memory_space<vmem>>, vector<32x256xf32>
    %c0_2 = arith.constant 0 : index
    %c0_3 = arith.constant 0 : index
    %c0_4 = arith.constant 0 : index
    %4 = vector.load %arg2[%c0_2, %c0_3, %c0_4] : memref<1x32x144xbf16, #tpu.memory_space<vmem>>, vector<1x32x144xbf16>
    %5 = vector.shape_cast %4 : vector<1x32x144xbf16> to vector<32x144xbf16>
    %c0_5 = arith.constant 0 : index
    %c0_6 = arith.constant 0 : index
    %c0_7 = arith.constant 0 : index
    %6 = vector.load %arg1[%c0_5, %c0_6, %c0_7] : memref<1x144x256xbf16, #tpu.memory_space<vmem>>, vector<1x144x256xbf16>
    %7 = vector.shape_cast %6 : vector<1x144x256xbf16> to vector<144x256xbf16>
    %cst = arith.constant dense<0.000000e+00> : vector<32x256xf32>
    %8 = tpu.matmul %5, %7, %cst {dimension_numbers = #tpu.dot_dimension_numbers<[1], [0], [0], [1], [0, 0, 1, 1], [], []>} : vector<32x144xbf16>, vector<144x256xbf16>, vector<32x256xf32> -> vector<32x256xf32>
    %9 = arith.addf %3, %8 : vector<32x256xf32>
    %c0_8 = arith.constant 0 : index
    %c0_9 = arith.constant 0 : index
    %10 = vector.load %arg4[%c0_8, %c0_9] : memref<32x256xf32, #tpu.memory_space<vmem>>, vector<32x256xf32>
    tpu.vector_store %arg4[%c0_8, %c0_9], %9 {strides = array<i32>} : memref<32x256xf32, #tpu.memory_space<vmem>>, vector<32x256xf32>,
    %c2_i32 = arith.constant 2 : i32
    %11 = arith.cmpi eq, %arg0, %c2_i32 : i32
    %12 = arith.extui %11 : i1 to i32
    %c0_i32_10 = arith.constant 0 : i32
    %13 = arith.cmpi ne, %12, %c0_i32_10 : i32
    scf.if %13 {
      %c0_11 = arith.constant 0 : index
      %c0_12 = arith.constant 0 : index
      %14 = vector.load %arg4[%c0_11, %c0_12] : memref<32x256xf32, #tpu.memory_space<vmem>>, vector<32x256xf32>
      %cst_13 = arith.constant dense<0.000000e+00> : vector<32xf32>
      %15 = vector.multi_reduction <add>, %14, %cst_13 [1] : vector<32x256xf32> to vector<32xf32>
      %16 = vector.shape_cast %15 : vector<32xf32> to vector<32x1xf32>
      %cst_14 = arith.constant 4.000000e-03 : f32
      %17 = vector.broadcast %cst_14 : f32 to vector<32x1xf32>
      %18 = arith.mulf %16, %17 : vector<32x1xf32>
      %19 = arith.mulf %14, %14 : vector<32x256xf32>
      %cst_15 = arith.constant dense<0.000000e+00> : vector<32xf32>
      %20 = vector.multi_reduction <add>, %19, %cst_15 [1] : vector<32x256xf32> to vector<32xf32>
      %21 = vector.shape_cast %20 : vector<32xf32> to vector<32x1xf32>
      %cst_16 = arith.constant 4.000000e-03 : f32
      %22 = vector.broadcast %cst_16 : f32 to vector<32x1xf32>
      %23 = arith.mulf %21, %22 : vector<32x1xf32>
      %24 = arith.mulf %18, %18 : vector<32x1xf32>
      %25 = arith.subf %23, %24 : vector<32x1xf32>
      %cst_17 = arith.constant 0.000000e+00 : f32
      %26 = vector.broadcast %cst_17 : f32 to vector<32x1xf32>
      %27 = arith.maximumf %25, %26 : vector<32x1xf32>
      %28 = vector.broadcast %18 : vector<32x1xf32> to vector<32x256xf32>
      %29 = arith.subf %14, %28 : vector<32x256xf32>
      %cst_18 = arith.constant 9.99999974E-6 : f32
      %30 = vector.broadcast %cst_18 : f32 to vector<32x1xf32>
      %31 = arith.addf %27, %30 : vector<32x1xf32>
      %32 = math.rsqrt %31 : vector<32x1xf32>
      %33 = vector.broadcast %32 : vector<32x1xf32> to vector<32x256xf32>
      %34 = arith.mulf %29, %33 : vector<32x256xf32>
      %cst_19 = arith.constant 0.000000e+00 : f32
      %35 = vector.broadcast %cst_19 : f32 to vector<32x256xf32>
      %36 = arith.maximumf %34, %35 : vector<32x256xf32>
      %c0_20 = arith.constant 0 : index
      %c0_21 = arith.constant 0 : index
      %37 = vector.load %arg3[%c0_20, %c0_21] : memref<32x256xf32, #tpu.memory_space<vmem>>, vector<32x256xf32>
      tpu.vector_store %arg3[%c0_20, %c0_21], %36 {strides = array<i32>} : memref<32x256xf32, #tpu.memory_space<vmem>>, vector<32x256xf32>,
    } else {
    }
    return
  }
  func.func @transform_0(%arg0: i32) -> (i32, i32, i32) {
    %c0_i32 = arith.constant 0 : i32
    %c0_i32_0 = arith.constant 0 : i32
    %c0_i32_1 = arith.constant 0 : i32
    return %arg0, %c0_i32, %c0_i32_0 : i32, i32, i32
  }
  func.func @transform_1(%arg0: i32) -> (i32, i32, i32) {
    %c0_i32 = arith.constant 0 : i32
    %c0_i32_0 = arith.constant 0 : i32
    %c0_i32_1 = arith.constant 0 : i32
    return %arg0, %c0_i32, %c0_i32_0 : i32, i32, i32
  }
  func.func @transform_2(%arg0: i32) -> (i32, i32) {
    %c0_i32 = arith.constant 0 : i32
    %c0_i32_0 = arith.constant 0 : i32
    %c0_i32_1 = arith.constant 0 : i32
    return %c0_i32, %c0_i32_0 : i32, i32
  }
}

module attributes {stable_mosaic.version = 11 : i64} {
  func.func @_conv_bn_act_kernel(%arg0: i32, %arg1: memref<1x288x128xbf16, #tpu.memory_space<vmem>>, %arg2: memref<1x64x288xbf16, #tpu.memory_space<vmem>>, %arg3: memref<64x128xf32, #tpu.memory_space<vmem>>, %arg4: memref<64x128xf32, #tpu.memory_space<vmem>>) attributes {dimension_semantics = [#tpu.dimension_semantics<arbitrary>], iteration_bounds = array<i64: 3>, scalar_prefetch = 0 : i64, scratch_operands = 1 : i64, tpu.core_type = #tpu.core_type<tc>, window_params = [{transform_indices = @transform_0, window_bounds = array<i64: 1, 288, 128>}, {transform_indices = @transform_1, window_bounds = array<i64: 1, 64, 288>}, {pipeline_mode = #tpu.pipeline_mode<synchronous>, transform_indices = @transform_2, window_bounds = array<i64: 64, 128>}]} {
    %c0_i32 = arith.constant 0 : i32
    %0 = arith.cmpi eq, %arg0, %c0_i32 : i32
    %1 = arith.extui %0 : i1 to i32
    %c0_i32_0 = arith.constant 0 : i32
    %2 = arith.cmpi ne, %1, %c0_i32_0 : i32
    scf.if %2 {
      %cst_11 = arith.constant 0.000000e+00 : f32
      %14 = vector.broadcast %cst_11 : f32 to vector<64x128xf32>
      %c0_12 = arith.constant 0 : index
      %c0_13 = arith.constant 0 : index
      %15 = vector.load %arg4[%c0_12, %c0_13] : memref<64x128xf32, #tpu.memory_space<vmem>>, vector<64x128xf32>
      tpu.vector_store %arg4[%c0_12, %c0_13], %14 {strides = array<i32>} : memref<64x128xf32, #tpu.memory_space<vmem>>, vector<64x128xf32>,
    } else {
    }
    %c0 = arith.constant 0 : index
    %c0_1 = arith.constant 0 : index
    %3 = vector.load %arg4[%c0, %c0_1] : memref<64x128xf32, #tpu.memory_space<vmem>>, vector<64x128xf32>
    %c0_2 = arith.constant 0 : index
    %c0_3 = arith.constant 0 : index
    %c0_4 = arith.constant 0 : index
    %4 = vector.load %arg2[%c0_2, %c0_3, %c0_4] : memref<1x64x288xbf16, #tpu.memory_space<vmem>>, vector<1x64x288xbf16>
    %5 = vector.shape_cast %4 : vector<1x64x288xbf16> to vector<64x288xbf16>
    %c0_5 = arith.constant 0 : index
    %c0_6 = arith.constant 0 : index
    %c0_7 = arith.constant 0 : index
    %6 = vector.load %arg1[%c0_5, %c0_6, %c0_7] : memref<1x288x128xbf16, #tpu.memory_space<vmem>>, vector<1x288x128xbf16>
    %7 = vector.shape_cast %6 : vector<1x288x128xbf16> to vector<288x128xbf16>
    %cst = arith.constant dense<0.000000e+00> : vector<64x128xf32>
    %8 = tpu.matmul %5, %7, %cst {dimension_numbers = #tpu.dot_dimension_numbers<[1], [0], [0], [1], [0, 0, 1, 1], [], []>} : vector<64x288xbf16>, vector<288x128xbf16>, vector<64x128xf32> -> vector<64x128xf32>
    %9 = arith.addf %3, %8 : vector<64x128xf32>
    %c0_8 = arith.constant 0 : index
    %c0_9 = arith.constant 0 : index
    %10 = vector.load %arg4[%c0_8, %c0_9] : memref<64x128xf32, #tpu.memory_space<vmem>>, vector<64x128xf32>
    tpu.vector_store %arg4[%c0_8, %c0_9], %9 {strides = array<i32>} : memref<64x128xf32, #tpu.memory_space<vmem>>, vector<64x128xf32>,
    %c2_i32 = arith.constant 2 : i32
    %11 = arith.cmpi eq, %arg0, %c2_i32 : i32
    %12 = arith.extui %11 : i1 to i32
    %c0_i32_10 = arith.constant 0 : i32
    %13 = arith.cmpi ne, %12, %c0_i32_10 : i32
    scf.if %13 {
      %c0_11 = arith.constant 0 : index
      %c0_12 = arith.constant 0 : index
      %14 = vector.load %arg4[%c0_11, %c0_12] : memref<64x128xf32, #tpu.memory_space<vmem>>, vector<64x128xf32>
      %cst_13 = arith.constant dense<0.000000e+00> : vector<64xf32>
      %15 = vector.multi_reduction <add>, %14, %cst_13 [1] : vector<64x128xf32> to vector<64xf32>
      %16 = vector.shape_cast %15 : vector<64xf32> to vector<64x1xf32>
      %cst_14 = arith.constant 0.0185185187 : f32
      %17 = vector.broadcast %cst_14 : f32 to vector<64x1xf32>
      %18 = arith.mulf %16, %17 : vector<64x1xf32>
      %19 = arith.mulf %14, %14 : vector<64x128xf32>
      %cst_15 = arith.constant dense<0.000000e+00> : vector<64xf32>
      %20 = vector.multi_reduction <add>, %19, %cst_15 [1] : vector<64x128xf32> to vector<64xf32>
      %21 = vector.shape_cast %20 : vector<64xf32> to vector<64x1xf32>
      %cst_16 = arith.constant 0.0185185187 : f32
      %22 = vector.broadcast %cst_16 : f32 to vector<64x1xf32>
      %23 = arith.mulf %21, %22 : vector<64x1xf32>
      %24 = arith.mulf %18, %18 : vector<64x1xf32>
      %25 = arith.subf %23, %24 : vector<64x1xf32>
      %cst_17 = arith.constant 0.000000e+00 : f32
      %26 = vector.broadcast %cst_17 : f32 to vector<64x1xf32>
      %27 = arith.maximumf %25, %26 : vector<64x1xf32>
      %28 = vector.broadcast %18 : vector<64x1xf32> to vector<64x128xf32>
      %29 = arith.subf %14, %28 : vector<64x128xf32>
      %cst_18 = arith.constant 9.99999974E-6 : f32
      %30 = vector.broadcast %cst_18 : f32 to vector<64x1xf32>
      %31 = arith.addf %27, %30 : vector<64x1xf32>
      %32 = math.rsqrt %31 : vector<64x1xf32>
      %33 = vector.broadcast %32 : vector<64x1xf32> to vector<64x128xf32>
      %34 = arith.mulf %29, %33 : vector<64x128xf32>
      %cst_19 = arith.constant 0.000000e+00 : f32
      %35 = vector.broadcast %cst_19 : f32 to vector<64x128xf32>
      %36 = arith.maximumf %34, %35 : vector<64x128xf32>
      %c0_20 = arith.constant 0 : index
      %c0_21 = arith.constant 0 : index
      %37 = vector.load %arg3[%c0_20, %c0_21] : memref<64x128xf32, #tpu.memory_space<vmem>>, vector<64x128xf32>
      tpu.vector_store %arg3[%c0_20, %c0_21], %36 {strides = array<i32>} : memref<64x128xf32, #tpu.memory_space<vmem>>, vector<64x128xf32>,
    } else {
    }
    return
  }
  func.func @transform_0(%arg0: i32) -> (i32, i32, i32) {
    %c0_i32 = arith.constant 0 : i32
    %c0_i32_0 = arith.constant 0 : i32
    %c0_i32_1 = arith.constant 0 : i32
    return %arg0, %c0_i32, %c0_i32_0 : i32, i32, i32
  }
  func.func @transform_1(%arg0: i32) -> (i32, i32, i32) {
    %c0_i32 = arith.constant 0 : i32
    %c0_i32_0 = arith.constant 0 : i32
    %c0_i32_1 = arith.constant 0 : i32
    return %arg0, %c0_i32, %c0_i32_0 : i32, i32, i32
  }
  func.func @transform_2(%arg0: i32) -> (i32, i32) {
    %c0_i32 = arith.constant 0 : i32
    %c0_i32_0 = arith.constant 0 : i32
    %c0_i32_1 = arith.constant 0 : i32
    return %c0_i32, %c0_i32_0 : i32, i32
  }
}

module attributes {stable_mosaic.version = 11 : i64} {
  func.func @_conv_bn_act_kernel(%arg0: i32, %arg1: memref<1x576x256xbf16, #tpu.memory_space<vmem>>, %arg2: memref<1x32x576xbf16, #tpu.memory_space<vmem>>, %arg3: memref<32x256xf32, #tpu.memory_space<vmem>>, %arg4: memref<32x256xf32, #tpu.memory_space<vmem>>) attributes {dimension_semantics = [#tpu.dimension_semantics<arbitrary>], iteration_bounds = array<i64: 3>, scalar_prefetch = 0 : i64, scratch_operands = 1 : i64, tpu.core_type = #tpu.core_type<tc>, window_params = [{transform_indices = @transform_0, window_bounds = array<i64: 1, 576, 256>}, {transform_indices = @transform_1, window_bounds = array<i64: 1, 32, 576>}, {pipeline_mode = #tpu.pipeline_mode<synchronous>, transform_indices = @transform_2, window_bounds = array<i64: 32, 256>}]} {
    %c0_i32 = arith.constant 0 : i32
    %0 = arith.cmpi eq, %arg0, %c0_i32 : i32
    %1 = arith.extui %0 : i1 to i32
    %c0_i32_0 = arith.constant 0 : i32
    %2 = arith.cmpi ne, %1, %c0_i32_0 : i32
    scf.if %2 {
      %cst_11 = arith.constant 0.000000e+00 : f32
      %14 = vector.broadcast %cst_11 : f32 to vector<32x256xf32>
      %c0_12 = arith.constant 0 : index
      %c0_13 = arith.constant 0 : index
      %15 = vector.load %arg4[%c0_12, %c0_13] : memref<32x256xf32, #tpu.memory_space<vmem>>, vector<32x256xf32>
      tpu.vector_store %arg4[%c0_12, %c0_13], %14 {strides = array<i32>} : memref<32x256xf32, #tpu.memory_space<vmem>>, vector<32x256xf32>,
    } else {
    }
    %c0 = arith.constant 0 : index
    %c0_1 = arith.constant 0 : index
    %3 = vector.load %arg4[%c0, %c0_1] : memref<32x256xf32, #tpu.memory_space<vmem>>, vector<32x256xf32>
    %c0_2 = arith.constant 0 : index
    %c0_3 = arith.constant 0 : index
    %c0_4 = arith.constant 0 : index
    %4 = vector.load %arg2[%c0_2, %c0_3, %c0_4] : memref<1x32x576xbf16, #tpu.memory_space<vmem>>, vector<1x32x576xbf16>
    %5 = vector.shape_cast %4 : vector<1x32x576xbf16> to vector<32x576xbf16>
    %c0_5 = arith.constant 0 : index
    %c0_6 = arith.constant 0 : index
    %c0_7 = arith.constant 0 : index
    %6 = vector.load %arg1[%c0_5, %c0_6, %c0_7] : memref<1x576x256xbf16, #tpu.memory_space<vmem>>, vector<1x576x256xbf16>
    %7 = vector.shape_cast %6 : vector<1x576x256xbf16> to vector<576x256xbf16>
    %cst = arith.constant dense<0.000000e+00> : vector<32x256xf32>
    %8 = tpu.matmul %5, %7, %cst {dimension_numbers = #tpu.dot_dimension_numbers<[1], [0], [0], [1], [0, 0, 1, 1], [], []>} : vector<32x576xbf16>, vector<576x256xbf16>, vector<32x256xf32> -> vector<32x256xf32>
    %9 = arith.addf %3, %8 : vector<32x256xf32>
    %c0_8 = arith.constant 0 : index
    %c0_9 = arith.constant 0 : index
    %10 = vector.load %arg4[%c0_8, %c0_9] : memref<32x256xf32, #tpu.memory_space<vmem>>, vector<32x256xf32>
    tpu.vector_store %arg4[%c0_8, %c0_9], %9 {strides = array<i32>} : memref<32x256xf32, #tpu.memory_space<vmem>>, vector<32x256xf32>,
    %c2_i32 = arith.constant 2 : i32
    %11 = arith.cmpi eq, %arg0, %c2_i32 : i32
    %12 = arith.extui %11 : i1 to i32
    %c0_i32_10 = arith.constant 0 : i32
    %13 = arith.cmpi ne, %12, %c0_i32_10 : i32
    scf.if %13 {
      %c0_11 = arith.constant 0 : index
      %c0_12 = arith.constant 0 : index
      %14 = vector.load %arg4[%c0_11, %c0_12] : memref<32x256xf32, #tpu.memory_space<vmem>>, vector<32x256xf32>
      %cst_13 = arith.constant dense<0.000000e+00> : vector<32xf32>
      %15 = vector.multi_reduction <add>, %14, %cst_13 [1] : vector<32x256xf32> to vector<32xf32>
      %16 = vector.shape_cast %15 : vector<32xf32> to vector<32x1xf32>
      %cst_14 = arith.constant 4.000000e-03 : f32
      %17 = vector.broadcast %cst_14 : f32 to vector<32x1xf32>
      %18 = arith.mulf %16, %17 : vector<32x1xf32>
      %19 = arith.mulf %14, %14 : vector<32x256xf32>
      %cst_15 = arith.constant dense<0.000000e+00> : vector<32xf32>
      %20 = vector.multi_reduction <add>, %19, %cst_15 [1] : vector<32x256xf32> to vector<32xf32>
      %21 = vector.shape_cast %20 : vector<32xf32> to vector<32x1xf32>
      %cst_16 = arith.constant 4.000000e-03 : f32
      %22 = vector.broadcast %cst_16 : f32 to vector<32x1xf32>
      %23 = arith.mulf %21, %22 : vector<32x1xf32>
      %24 = arith.mulf %18, %18 : vector<32x1xf32>
      %25 = arith.subf %23, %24 : vector<32x1xf32>
      %cst_17 = arith.constant 0.000000e+00 : f32
      %26 = vector.broadcast %cst_17 : f32 to vector<32x1xf32>
      %27 = arith.maximumf %25, %26 : vector<32x1xf32>
      %28 = vector.broadcast %18 : vector<32x1xf32> to vector<32x256xf32>
      %29 = arith.subf %14, %28 : vector<32x256xf32>
      %cst_18 = arith.constant 9.99999974E-6 : f32
      %30 = vector.broadcast %cst_18 : f32 to vector<32x1xf32>
      %31 = arith.addf %27, %30 : vector<32x1xf32>
      %32 = math.rsqrt %31 : vector<32x1xf32>
      %33 = vector.broadcast %32 : vector<32x1xf32> to vector<32x256xf32>
      %34 = arith.mulf %29, %33 : vector<32x256xf32>
      %cst_19 = arith.constant 0.000000e+00 : f32
      %35 = vector.broadcast %cst_19 : f32 to vector<32x256xf32>
      %36 = arith.maximumf %34, %35 : vector<32x256xf32>
      %c0_20 = arith.constant 0 : index
      %c0_21 = arith.constant 0 : index
      %37 = vector.load %arg3[%c0_20, %c0_21] : memref<32x256xf32, #tpu.memory_space<vmem>>, vector<32x256xf32>
      tpu.vector_store %arg3[%c0_20, %c0_21], %36 {strides = array<i32>} : memref<32x256xf32, #tpu.memory_space<vmem>>, vector<32x256xf32>,
    } else {
    }
    return
  }
  func.func @transform_0(%arg0: i32) -> (i32, i32, i32) {
    %c0_i32 = arith.constant 0 : i32
    %c0_i32_0 = arith.constant 0 : i32
    %c0_i32_1 = arith.constant 0 : i32
    return %arg0, %c0_i32, %c0_i32_0 : i32, i32, i32
  }
  func.func @transform_1(%arg0: i32) -> (i32, i32, i32) {
    %c0_i32 = arith.constant 0 : i32
    %c0_i32_0 = arith.constant 0 : i32
    %c0_i32_1 = arith.constant 0 : i32
    return %arg0, %c0_i32, %c0_i32_0 : i32, i32, i32
  }
  func.func @transform_2(%arg0: i32) -> (i32, i32) {
    %c0_i32 = arith.constant 0 : i32
    %c0_i32_0 = arith.constant 0 : i32
    %c0_i32_1 = arith.constant 0 : i32
    return %c0_i32, %c0_i32_0 : i32, i32
  }
}

module attributes {stable_mosaic.version = 11 : i64} {
  func.func @_conv_bn_act_kernel(%arg0: i32, %arg1: memref<1x288x768xbf16, #tpu.memory_space<vmem>>, %arg2: memref<1x16x288xbf16, #tpu.memory_space<vmem>>, %arg3: memref<16x768xf32, #tpu.memory_space<vmem>>, %arg4: memref<16x768xf32, #tpu.memory_space<vmem>>) attributes {dimension_semantics = [#tpu.dimension_semantics<arbitrary>], iteration_bounds = array<i64: 3>, scalar_prefetch = 0 : i64, scratch_operands = 1 : i64, tpu.core_type = #tpu.core_type<tc>, window_params = [{transform_indices = @transform_0, window_bounds = array<i64: 1, 288, 768>}, {transform_indices = @transform_1, window_bounds = array<i64: 1, 16, 288>}, {pipeline_mode = #tpu.pipeline_mode<synchronous>, transform_indices = @transform_2, window_bounds = array<i64: 16, 768>}]} {
    %c0_i32 = arith.constant 0 : i32
    %0 = arith.cmpi eq, %arg0, %c0_i32 : i32
    %1 = arith.extui %0 : i1 to i32
    %c0_i32_0 = arith.constant 0 : i32
    %2 = arith.cmpi ne, %1, %c0_i32_0 : i32
    scf.if %2 {
      %cst_11 = arith.constant 0.000000e+00 : f32
      %14 = vector.broadcast %cst_11 : f32 to vector<16x768xf32>
      %c0_12 = arith.constant 0 : index
      %c0_13 = arith.constant 0 : index
      %15 = vector.load %arg4[%c0_12, %c0_13] : memref<16x768xf32, #tpu.memory_space<vmem>>, vector<16x768xf32>
      tpu.vector_store %arg4[%c0_12, %c0_13], %14 {strides = array<i32>} : memref<16x768xf32, #tpu.memory_space<vmem>>, vector<16x768xf32>,
    } else {
    }
    %c0 = arith.constant 0 : index
    %c0_1 = arith.constant 0 : index
    %3 = vector.load %arg4[%c0, %c0_1] : memref<16x768xf32, #tpu.memory_space<vmem>>, vector<16x768xf32>
    %c0_2 = arith.constant 0 : index
    %c0_3 = arith.constant 0 : index
    %c0_4 = arith.constant 0 : index
    %4 = vector.load %arg2[%c0_2, %c0_3, %c0_4] : memref<1x16x288xbf16, #tpu.memory_space<vmem>>, vector<1x16x288xbf16>
    %5 = vector.shape_cast %4 : vector<1x16x288xbf16> to vector<16x288xbf16>
    %c0_5 = arith.constant 0 : index
    %c0_6 = arith.constant 0 : index
    %c0_7 = arith.constant 0 : index
    %6 = vector.load %arg1[%c0_5, %c0_6, %c0_7] : memref<1x288x768xbf16, #tpu.memory_space<vmem>>, vector<1x288x768xbf16>
    %7 = vector.shape_cast %6 : vector<1x288x768xbf16> to vector<288x768xbf16>
    %cst = arith.constant dense<0.000000e+00> : vector<16x768xf32>
    %8 = tpu.matmul %5, %7, %cst {dimension_numbers = #tpu.dot_dimension_numbers<[1], [0], [0], [1], [0, 0, 1, 1], [], []>} : vector<16x288xbf16>, vector<288x768xbf16>, vector<16x768xf32> -> vector<16x768xf32>
    %9 = arith.addf %3, %8 : vector<16x768xf32>
    %c0_8 = arith.constant 0 : index
    %c0_9 = arith.constant 0 : index
    %10 = vector.load %arg4[%c0_8, %c0_9] : memref<16x768xf32, #tpu.memory_space<vmem>>, vector<16x768xf32>
    tpu.vector_store %arg4[%c0_8, %c0_9], %9 {strides = array<i32>} : memref<16x768xf32, #tpu.memory_space<vmem>>, vector<16x768xf32>,
    %c2_i32 = arith.constant 2 : i32
    %11 = arith.cmpi eq, %arg0, %c2_i32 : i32
    %12 = arith.extui %11 : i1 to i32
    %c0_i32_10 = arith.constant 0 : i32
    %13 = arith.cmpi ne, %12, %c0_i32_10 : i32
    scf.if %13 {
      %c0_11 = arith.constant 0 : index
      %c0_12 = arith.constant 0 : index
      %14 = vector.load %arg4[%c0_11, %c0_12] : memref<16x768xf32, #tpu.memory_space<vmem>>, vector<16x768xf32>
      %cst_13 = arith.constant dense<0.000000e+00> : vector<16xf32>
      %15 = vector.multi_reduction <add>, %14, %cst_13 [1] : vector<16x768xf32> to vector<16xf32>
      %16 = vector.shape_cast %15 : vector<16xf32> to vector<16x1xf32>
      %cst_14 = arith.constant 0.001457726 : f32
      %17 = vector.broadcast %cst_14 : f32 to vector<16x1xf32>
      %18 = arith.mulf %16, %17 : vector<16x1xf32>
      %19 = arith.mulf %14, %14 : vector<16x768xf32>
      %cst_15 = arith.constant dense<0.000000e+00> : vector<16xf32>
      %20 = vector.multi_reduction <add>, %19, %cst_15 [1] : vector<16x768xf32> to vector<16xf32>
      %21 = vector.shape_cast %20 : vector<16xf32> to vector<16x1xf32>
      %cst_16 = arith.constant 0.001457726 : f32
      %22 = vector.broadcast %cst_16 : f32 to vector<16x1xf32>
      %23 = arith.mulf %21, %22 : vector<16x1xf32>
      %24 = arith.mulf %18, %18 : vector<16x1xf32>
      %25 = arith.subf %23, %24 : vector<16x1xf32>
      %cst_17 = arith.constant 0.000000e+00 : f32
      %26 = vector.broadcast %cst_17 : f32 to vector<16x1xf32>
      %27 = arith.maximumf %25, %26 : vector<16x1xf32>
      %28 = vector.broadcast %18 : vector<16x1xf32> to vector<16x768xf32>
      %29 = arith.subf %14, %28 : vector<16x768xf32>
      %cst_18 = arith.constant 9.99999974E-6 : f32
      %30 = vector.broadcast %cst_18 : f32 to vector<16x1xf32>
      %31 = arith.addf %27, %30 : vector<16x1xf32>
      %32 = math.rsqrt %31 : vector<16x1xf32>
      %33 = vector.broadcast %32 : vector<16x1xf32> to vector<16x768xf32>
      %34 = arith.mulf %29, %33 : vector<16x768xf32>
      %cst_19 = arith.constant 0.000000e+00 : f32
      %35 = vector.broadcast %cst_19 : f32 to vector<16x768xf32>
      %36 = arith.maximumf %34, %35 : vector<16x768xf32>
      %c0_20 = arith.constant 0 : index
      %c0_21 = arith.constant 0 : index
      %37 = vector.load %arg3[%c0_20, %c0_21] : memref<16x768xf32, #tpu.memory_space<vmem>>, vector<16x768xf32>
      tpu.vector_store %arg3[%c0_20, %c0_21], %36 {strides = array<i32>} : memref<16x768xf32, #tpu.memory_space<vmem>>, vector<16x768xf32>,
    } else {
    }
    return
  }
  func.func @transform_0(%arg0: i32) -> (i32, i32, i32) {
    %c0_i32 = arith.constant 0 : i32
    %c0_i32_0 = arith.constant 0 : i32
    %c0_i32_1 = arith.constant 0 : i32
    return %arg0, %c0_i32, %c0_i32_0 : i32, i32, i32
  }
  func.func @transform_1(%arg0: i32) -> (i32, i32, i32) {
    %c0_i32 = arith.constant 0 : i32
    %c0_i32_0 = arith.constant 0 : i32
    %c0_i32_1 = arith.constant 0 : i32
    return %arg0, %c0_i32, %c0_i32_0 : i32, i32, i32
  }
  func.func @transform_2(%arg0: i32) -> (i32, i32) {
    %c0_i32 = arith.constant 0 : i32
    %c0_i32_0 = arith.constant 0 : i32
    %c0_i32_1 = arith.constant 0 : i32
    return %c0_i32, %c0_i32_0 : i32, i32
  }
}

module attributes {stable_mosaic.version = 11 : i64} {
  func.func @_conv_bn_act_kernel(%arg0: i32, %arg1: memref<1x144x1536xbf16, #tpu.memory_space<vmem>>, %arg2: memref<1x8x144xbf16, #tpu.memory_space<vmem>>, %arg3: memref<8x1536xf32, #tpu.memory_space<vmem>>, %arg4: memref<8x1536xf32, #tpu.memory_space<vmem>>) attributes {dimension_semantics = [#tpu.dimension_semantics<arbitrary>], iteration_bounds = array<i64: 3>, scalar_prefetch = 0 : i64, scratch_operands = 1 : i64, tpu.core_type = #tpu.core_type<tc>, window_params = [{transform_indices = @transform_0, window_bounds = array<i64: 1, 144, 1536>}, {transform_indices = @transform_1, window_bounds = array<i64: 1, 8, 144>}, {pipeline_mode = #tpu.pipeline_mode<synchronous>, transform_indices = @transform_2, window_bounds = array<i64: 8, 1536>}]} {
    %c0_i32 = arith.constant 0 : i32
    %0 = arith.cmpi eq, %arg0, %c0_i32 : i32
    %1 = arith.extui %0 : i1 to i32
    %c0_i32_0 = arith.constant 0 : i32
    %2 = arith.cmpi ne, %1, %c0_i32_0 : i32
    scf.if %2 {
      %cst_11 = arith.constant 0.000000e+00 : f32
      %14 = vector.broadcast %cst_11 : f32 to vector<8x1536xf32>
      %c0_12 = arith.constant 0 : index
      %c0_13 = arith.constant 0 : index
      %15 = vector.load %arg4[%c0_12, %c0_13] : memref<8x1536xf32, #tpu.memory_space<vmem>>, vector<8x1536xf32>
      tpu.vector_store %arg4[%c0_12, %c0_13], %14 {strides = array<i32>} : memref<8x1536xf32, #tpu.memory_space<vmem>>, vector<8x1536xf32>,
    } else {
    }
    %c0 = arith.constant 0 : index
    %c0_1 = arith.constant 0 : index
    %3 = vector.load %arg4[%c0, %c0_1] : memref<8x1536xf32, #tpu.memory_space<vmem>>, vector<8x1536xf32>
    %c0_2 = arith.constant 0 : index
    %c0_3 = arith.constant 0 : index
    %c0_4 = arith.constant 0 : index
    %4 = vector.load %arg2[%c0_2, %c0_3, %c0_4] : memref<1x8x144xbf16, #tpu.memory_space<vmem>>, vector<1x8x144xbf16>
    %5 = vector.shape_cast %4 : vector<1x8x144xbf16> to vector<8x144xbf16>
    %c0_5 = arith.constant 0 : index
    %c0_6 = arith.constant 0 : index
    %c0_7 = arith.constant 0 : index
    %6 = vector.load %arg1[%c0_5, %c0_6, %c0_7] : memref<1x144x1536xbf16, #tpu.memory_space<vmem>>, vector<1x144x1536xbf16>
    %7 = vector.shape_cast %6 : vector<1x144x1536xbf16> to vector<144x1536xbf16>
    %cst = arith.constant dense<0.000000e+00> : vector<8x1536xf32>
    %8 = tpu.matmul %5, %7, %cst {dimension_numbers = #tpu.dot_dimension_numbers<[1], [0], [0], [1], [0, 0, 1, 1], [], []>} : vector<8x144xbf16>, vector<144x1536xbf16>, vector<8x1536xf32> -> vector<8x1536xf32>
    %9 = arith.addf %3, %8 : vector<8x1536xf32>
    %c0_8 = arith.constant 0 : index
    %c0_9 = arith.constant 0 : index
    %10 = vector.load %arg4[%c0_8, %c0_9] : memref<8x1536xf32, #tpu.memory_space<vmem>>, vector<8x1536xf32>
    tpu.vector_store %arg4[%c0_8, %c0_9], %9 {strides = array<i32>} : memref<8x1536xf32, #tpu.memory_space<vmem>>, vector<8x1536xf32>,
    %c2_i32 = arith.constant 2 : i32
    %11 = arith.cmpi eq, %arg0, %c2_i32 : i32
    %12 = arith.extui %11 : i1 to i32
    %c0_i32_10 = arith.constant 0 : i32
    %13 = arith.cmpi ne, %12, %c0_i32_10 : i32
    scf.if %13 {
      %c0_11 = arith.constant 0 : index
      %c0_12 = arith.constant 0 : index
      %14 = vector.load %arg4[%c0_11, %c0_12] : memref<8x1536xf32, #tpu.memory_space<vmem>>, vector<8x1536xf32>
      %cst_13 = arith.constant dense<0.000000e+00> : vector<8xf32>
      %15 = vector.multi_reduction <add>, %14, %cst_13 [1] : vector<8x1536xf32> to vector<8xf32>
      %16 = vector.shape_cast %15 : vector<8xf32> to vector<8x1xf32>
      %cst_14 = arith.constant 6.85871055E-4 : f32
      %17 = vector.broadcast %cst_14 : f32 to vector<8x1xf32>
      %18 = arith.mulf %16, %17 : vector<8x1xf32>
      %19 = arith.mulf %14, %14 : vector<8x1536xf32>
      %cst_15 = arith.constant dense<0.000000e+00> : vector<8xf32>
      %20 = vector.multi_reduction <add>, %19, %cst_15 [1] : vector<8x1536xf32> to vector<8xf32>
      %21 = vector.shape_cast %20 : vector<8xf32> to vector<8x1xf32>
      %cst_16 = arith.constant 6.85871055E-4 : f32
      %22 = vector.broadcast %cst_16 : f32 to vector<8x1xf32>
      %23 = arith.mulf %21, %22 : vector<8x1xf32>
      %24 = arith.mulf %18, %18 : vector<8x1xf32>
      %25 = arith.subf %23, %24 : vector<8x1xf32>
      %cst_17 = arith.constant 0.000000e+00 : f32
      %26 = vector.broadcast %cst_17 : f32 to vector<8x1xf32>
      %27 = arith.maximumf %25, %26 : vector<8x1xf32>
      %28 = vector.broadcast %18 : vector<8x1xf32> to vector<8x1536xf32>
      %29 = arith.subf %14, %28 : vector<8x1536xf32>
      %cst_18 = arith.constant 9.99999974E-6 : f32
      %30 = vector.broadcast %cst_18 : f32 to vector<8x1xf32>
      %31 = arith.addf %27, %30 : vector<8x1xf32>
      %32 = math.rsqrt %31 : vector<8x1xf32>
      %33 = vector.broadcast %32 : vector<8x1xf32> to vector<8x1536xf32>
      %34 = arith.mulf %29, %33 : vector<8x1536xf32>
      %cst_19 = arith.constant 0.000000e+00 : f32
      %35 = vector.broadcast %cst_19 : f32 to vector<8x1536xf32>
      %36 = arith.maximumf %34, %35 : vector<8x1536xf32>
      %c0_20 = arith.constant 0 : index
      %c0_21 = arith.constant 0 : index
      %37 = vector.load %arg3[%c0_20, %c0_21] : memref<8x1536xf32, #tpu.memory_space<vmem>>, vector<8x1536xf32>
      tpu.vector_store %arg3[%c0_20, %c0_21], %36 {strides = array<i32>} : memref<8x1536xf32, #tpu.memory_space<vmem>>, vector<8x1536xf32>,
    } else {
    }
    return
  }
  func.func @transform_0(%arg0: i32) -> (i32, i32, i32) {
    %c0_i32 = arith.constant 0 : i32
    %c0_i32_0 = arith.constant 0 : i32
    %c0_i32_1 = arith.constant 0 : i32
    return %arg0, %c0_i32, %c0_i32_0 : i32, i32, i32
  }
  func.func @transform_1(%arg0: i32) -> (i32, i32, i32) {
    %c0_i32 = arith.constant 0 : i32
    %c0_i32_0 = arith.constant 0 : i32
    %c0_i32_1 = arith.constant 0 : i32
    return %arg0, %c0_i32, %c0_i32_0 : i32, i32, i32
  }
  func.func @transform_2(%arg0: i32) -> (i32, i32) {
    %c0_i32 = arith.constant 0 : i32
    %c0_i32_0 = arith.constant 0 : i32
    %c0_i32_1 = arith.constant 0 : i32
    return %c0_i32, %c0_i32_0 : i32, i32
  }
}

module attributes {stable_mosaic.version = 11 : i64} {
  func.func @_conv_bn_act_kernel(%arg0: i32, %arg1: memref<1x256x3456xbf16, #tpu.memory_space<vmem>>, %arg2: memref<1x8x256xbf16, #tpu.memory_space<vmem>>, %arg3: memref<8x3456xf32, #tpu.memory_space<vmem>>, %arg4: memref<8x3456xf32, #tpu.memory_space<vmem>>) attributes {dimension_semantics = [#tpu.dimension_semantics<arbitrary>], iteration_bounds = array<i64: 4>, scalar_prefetch = 0 : i64, scratch_operands = 1 : i64, tpu.core_type = #tpu.core_type<tc>, window_params = [{transform_indices = @transform_0, window_bounds = array<i64: 1, 256, 3456>}, {transform_indices = @transform_1, window_bounds = array<i64: 1, 8, 256>}, {pipeline_mode = #tpu.pipeline_mode<synchronous>, transform_indices = @transform_2, window_bounds = array<i64: 8, 3456>}]} {
    %c0_i32 = arith.constant 0 : i32
    %0 = arith.cmpi eq, %arg0, %c0_i32 : i32
    %1 = arith.extui %0 : i1 to i32
    %c0_i32_0 = arith.constant 0 : i32
    %2 = arith.cmpi ne, %1, %c0_i32_0 : i32
    scf.if %2 {
      %cst_11 = arith.constant 0.000000e+00 : f32
      %14 = vector.broadcast %cst_11 : f32 to vector<8x3456xf32>
      %c0_12 = arith.constant 0 : index
      %c0_13 = arith.constant 0 : index
      %15 = vector.load %arg4[%c0_12, %c0_13] : memref<8x3456xf32, #tpu.memory_space<vmem>>, vector<8x3456xf32>
      tpu.vector_store %arg4[%c0_12, %c0_13], %14 {strides = array<i32>} : memref<8x3456xf32, #tpu.memory_space<vmem>>, vector<8x3456xf32>,
    } else {
    }
    %c0 = arith.constant 0 : index
    %c0_1 = arith.constant 0 : index
    %3 = vector.load %arg4[%c0, %c0_1] : memref<8x3456xf32, #tpu.memory_space<vmem>>, vector<8x3456xf32>
    %c0_2 = arith.constant 0 : index
    %c0_3 = arith.constant 0 : index
    %c0_4 = arith.constant 0 : index
    %4 = vector.load %arg2[%c0_2, %c0_3, %c0_4] : memref<1x8x256xbf16, #tpu.memory_space<vmem>>, vector<1x8x256xbf16>
    %5 = vector.shape_cast %4 : vector<1x8x256xbf16> to vector<8x256xbf16>
    %c0_5 = arith.constant 0 : index
    %c0_6 = arith.constant 0 : index
    %c0_7 = arith.constant 0 : index
    %6 = vector.load %arg1[%c0_5, %c0_6, %c0_7] : memref<1x256x3456xbf16, #tpu.memory_space<vmem>>, vector<1x256x3456xbf16>
    %7 = vector.shape_cast %6 : vector<1x256x3456xbf16> to vector<256x3456xbf16>
    %cst = arith.constant dense<0.000000e+00> : vector<8x3456xf32>
    %8 = tpu.matmul %5, %7, %cst {dimension_numbers = #tpu.dot_dimension_numbers<[1], [0], [0], [1], [0, 0, 1, 1], [], []>} : vector<8x256xbf16>, vector<256x3456xbf16>, vector<8x3456xf32> -> vector<8x3456xf32>
    %9 = arith.addf %3, %8 : vector<8x3456xf32>
    %c0_8 = arith.constant 0 : index
    %c0_9 = arith.constant 0 : index
    %10 = vector.load %arg4[%c0_8, %c0_9] : memref<8x3456xf32, #tpu.memory_space<vmem>>, vector<8x3456xf32>
    tpu.vector_store %arg4[%c0_8, %c0_9], %9 {strides = array<i32>} : memref<8x3456xf32, #tpu.memory_space<vmem>>, vector<8x3456xf32>,
    %c3_i32 = arith.constant 3 : i32
    %11 = arith.cmpi eq, %arg0, %c3_i32 : i32
    %12 = arith.extui %11 : i1 to i32
    %c0_i32_10 = arith.constant 0 : i32
    %13 = arith.cmpi ne, %12, %c0_i32_10 : i32
    scf.if %13 {
      %c0_11 = arith.constant 0 : index
      %c0_12 = arith.constant 0 : index
      %14 = vector.load %arg4[%c0_11, %c0_12] : memref<8x3456xf32, #tpu.memory_space<vmem>>, vector<8x3456xf32>
      %cst_13 = arith.constant dense<0.000000e+00> : vector<8xf32>
      %15 = vector.multi_reduction <add>, %14, %cst_13 [1] : vector<8x3456xf32> to vector<8xf32>
      %16 = vector.shape_cast %15 : vector<8xf32> to vector<8x1xf32>
      %cst_14 = arith.constant 2.89351854E-4 : f32
      %17 = vector.broadcast %cst_14 : f32 to vector<8x1xf32>
      %18 = arith.mulf %16, %17 : vector<8x1xf32>
      %19 = arith.mulf %14, %14 : vector<8x3456xf32>
      %cst_15 = arith.constant dense<0.000000e+00> : vector<8xf32>
      %20 = vector.multi_reduction <add>, %19, %cst_15 [1] : vector<8x3456xf32> to vector<8xf32>
      %21 = vector.shape_cast %20 : vector<8xf32> to vector<8x1xf32>
      %cst_16 = arith.constant 2.89351854E-4 : f32
      %22 = vector.broadcast %cst_16 : f32 to vector<8x1xf32>
      %23 = arith.mulf %21, %22 : vector<8x1xf32>
      %24 = arith.mulf %18, %18 : vector<8x1xf32>
      %25 = arith.subf %23, %24 : vector<8x1xf32>
      %cst_17 = arith.constant 0.000000e+00 : f32
      %26 = vector.broadcast %cst_17 : f32 to vector<8x1xf32>
      %27 = arith.maximumf %25, %26 : vector<8x1xf32>
      %28 = vector.broadcast %18 : vector<8x1xf32> to vector<8x3456xf32>
      %29 = arith.subf %14, %28 : vector<8x3456xf32>
      %cst_18 = arith.constant 9.99999974E-6 : f32
      %30 = vector.broadcast %cst_18 : f32 to vector<8x1xf32>
      %31 = arith.addf %27, %30 : vector<8x1xf32>
      %32 = math.rsqrt %31 : vector<8x1xf32>
      %33 = vector.broadcast %32 : vector<8x1xf32> to vector<8x3456xf32>
      %34 = arith.mulf %29, %33 : vector<8x3456xf32>
      %cst_19 = arith.constant 0.000000e+00 : f32
      %35 = vector.broadcast %cst_19 : f32 to vector<8x3456xf32>
      %36 = arith.maximumf %34, %35 : vector<8x3456xf32>
      %37 = arith.negf %36 : vector<8x3456xf32>
      %38 = math.exp %37 : vector<8x3456xf32>
      %cst_20 = arith.constant 1.000000e+00 : f32
      %39 = vector.broadcast %cst_20 : f32 to vector<8x3456xf32>
      %40 = arith.addf %39, %38 : vector<8x3456xf32>
      %41 = arith.divf %39, %40 : vector<8x3456xf32>
      %c0_21 = arith.constant 0 : index
      %c0_22 = arith.constant 0 : index
      %42 = vector.load %arg3[%c0_21, %c0_22] : memref<8x3456xf32, #tpu.memory_space<vmem>>, vector<8x3456xf32>
      tpu.vector_store %arg3[%c0_21, %c0_22], %41 {strides = array<i32>} : memref<8x3456xf32, #tpu.memory_space<vmem>>, vector<8x3456xf32>,
    } else {
    }
    return
  }
  func.func @transform_0(%arg0: i32) -> (i32, i32, i32) {
    %c0_i32 = arith.constant 0 : i32
    %c0_i32_0 = arith.constant 0 : i32
    %c0_i32_1 = arith.constant 0 : i32
    return %arg0, %c0_i32, %c0_i32_0 : i32, i32, i32
  }
  func.func @transform_1(%arg0: i32) -> (i32, i32, i32) {
    %c0_i32 = arith.constant 0 : i32
    %c0_i32_0 = arith.constant 0 : i32
    %c0_i32_1 = arith.constant 0 : i32
    return %arg0, %c0_i32, %c0_i32_0 : i32, i32, i32
  }
  func.func @transform_2(%arg0: i32) -> (i32, i32) {
    %c0_i32 = arith.constant 0 : i32
    %c0_i32_0 = arith.constant 0 : i32
    %c0_i32_1 = arith.constant 0 : i32
    return %c0_i32, %c0_i32_0 : i32, i32
  }
}

</mosaic_0001>

<llo_original>
// kernel: ae_forward.8
$region0: #{ae_forward.8}
  #allocation0 [shape = 'u32[]', space=smem, size = 0x4, offset = 0x4, fixed_abs, tag = 'smem constant byte address 0x4 - core index']
  #allocation1 [shape = 'u32[144,128]{1,0:T(1,128)}', space=vmem, size = 0x12000, scoped, tag = 'internal scratch']
  #allocation2 [shape = 'f32[8,1536]{1,0:T(8,128)}', space=vmem, size = 0xc000, scoped, tag = 'scratch operand']
  %s0 = inlined_call_operand.vmem [shape: bf16[4,256,1536], index: 0, kind: input, shape index: {}]
  %s1 = inlined_call_operand.vmem [shape: bf16[4,8,256], index: 1, kind: input, shape index: {}]
  %s2 = inlined_call_operand.vmem [shape: f32[8,1536], index: 2, kind: output, shape index: {}]
  %s3 = sld [smem:[#allocation0]]
  $region49: #{ae_forward.8} parent=0
    _
  %s5 = ssub.s32 1, %s3
  %s6 = scalar_select 0, %s5, %s3
  loop: start=0, step=1, limit=6
  $region2: #{ae_forward.8} parent=0 // loop_pre_header
    _
  $region3: #{ae_forward.8} parent=0 // loop_header
    %s8 = sphi 0, %s12
    %p9 = scmp.ge.s32.totalorder %s8, 6
    %s18 = sphi 0, %s20
    %s21 = sphi 0, %s18
    %s22 = sphi 0, %s21
    %s38 = sphi 0, %s22
    %s44 = sphi 0, %s46
    %s47 = sphi 0, %s44
    %s48 = sphi 0, %s47
    %s64 = sphi 0, %s48
    %s68 = sphi 0, %s68
    %s70 = sphi 0, %s68
    %s71 = sphi 0, %s70
    %s85 = sphi 0, %s71
  $region4: #{ae_forward.8} parent=0 // loop_header_branch
    %11 = sbr.rel (%p9) target = $region8
  $region5: #{ae_forward.8} parent=0 // loop_body
    %s13 = ssub.s32 %s8, 1
    %s14 = ssub.s32 %s8, 2
    %s15 = sadd.s32 %s8, 1
    %s16 = ssub.s32 %s8, %s15
    %p17 = scmp.eq.s32.totalorder %s16, 0
    %s19 = sadd.s32 %s18, 1
    %s20 = scalar_select %p17, %s18, %s19
    %p23 = pneg %p17
    %p24 = scmp.eq.s32.totalorder %s8, 3
    %p25 = por %p23, %p24
    %p26 = scmp.ne.s32.totalorder %s18, %s21
    %p27 = scmp.eq.s32.totalorder %s8, 0
    %p28 = por %p26, %p27
    %p29 = scmp.ne.s32.totalorder %s18, %s21
    %p30 = scmp.eq.s32.totalorder %s13, 3
    %p31 = por %p29, %p30
    %p32 = scmp.ne.s32.totalorder %s21, %s22
    %p33 = scmp.eq.s32.totalorder %s13, 0
    %p34 = por %p32, %p33
    %p35 = scmp.ne.s32.totalorder %s21, %s22
    %p36 = scmp.eq.s32.totalorder %s14, 3
    %p37 = por %p35, %p36
    %p39 = scmp.ne.s32.totalorder %s22, %s38
    %p40 = scmp.eq.s32.totalorder %s14, 0
    %p41 = por %p39, %p40
    %s42 = ssub.s32 %s8, %s15
    %p43 = scmp.eq.s32.totalorder %s42, 0
    %s45 = sadd.s32 %s44, 1
    %s46 = scalar_select %p43, %s44, %s45
    %p49 = pneg %p43
    %p50 = scmp.eq.s32.totalorder %s8, 3
    %p51 = por %p49, %p50
    %p52 = scmp.ne.s32.totalorder %s44, %s47
    %p53 = scmp.eq.s32.totalorder %s8, 0
    %p54 = por %p52, %p53
    %p55 = scmp.ne.s32.totalorder %s44, %s47
    %p56 = scmp.eq.s32.totalorder %s13, 3
    %p57 = por %p55, %p56
    %p58 = scmp.ne.s32.totalorder %s47, %s48
    %p59 = scmp.eq.s32.totalorder %s13, 0
    %p60 = por %p58, %p59
    %p61 = scmp.ne.s32.totalorder %s47, %s48
    %p62 = scmp.eq.s32.totalorder %s14, 3
    %p63 = por %p61, %p62
    %p65 = scmp.ne.s32.totalorder %s48, %s64
    %p66 = scmp.eq.s32.totalorder %s14, 0
    %p67 = por %p65, %p66
    %s69 = sadd.s32 %s68, 1
    %p72 = scmp.eq.s32.totalorder %s8, 3
    %p73 = scmp.ne.s32.totalorder %s68, %s70
    %p74 = scmp.eq.s32.totalorder %s8, 0
    %p75 = por %p73, %p74
    %p76 = scmp.ne.s32.totalorder %s68, %s70
    %p77 = scmp.eq.s32.totalorder %s13, 3
    %p78 = por %p76, %p77
    %p79 = scmp.ne.s32.totalorder %s70, %s71
    %p80 = scmp.eq.s32.totalorder %s13, 0
    %p81 = por %p79, %p80
    %p82 = scmp.ne.s32.totalorder %s70, %s71
    %p83 = scmp.eq.s32.totalorder %s14, 3
    %p84 = por %p82, %p83
    %p86 = scmp.ne.s32.totalorder %s71, %s85
    %p87 = scmp.eq.s32.totalorder %s14, 0
    %p88 = por %p86, %p87
    %p89 = scmp.le.s32.totalorder 1, %s8
    %p90 = scmp.lt.s32.totalorder %s8, 5
    %p91 = pnand %p89, %p90
    %p92 = pneg %p91
    // Predicated region
    $region9: #{ae_forward.8} parent=5 // pred_check
      _
    $region10: #{ae_forward.8} parent=5 // pred_check_branch
      %94 = sbr.rel (%p91) target = $region12
    $region11: #{ae_forward.8} parent=5 // pred_region
      %s95 = ssub.s32 %s8, 1
    $region12: #{ae_forward.8} parent=5 // pred_fallthru
      _
    %p96 = scmp.lt.s32.totalorder %s8, 4
    // Predicated region
    $region13: #{ae_forward.8} parent=5 // pred_check
      %p97 = pneg %p96
    $region14: #{ae_forward.8} parent=5 // pred_check_branch
      %99 = sbr.rel (%p97) target = $region16
    $region15: #{ae_forward.8} parent=5 // pred_region
      // Predicated region
      $region17: #{ae_forward.8} parent=15 // pred_check
        %p100 = pneg %p28
      $region18: #{ae_forward.8} parent=15 // pred_check_branch
        %102 = sbr.rel (%p100) target = $region20
      $region19: #{ae_forward.8} parent=15 // pred_region
        %p103 = scmp.lt.s32.totalorder %s8, 3
        %s104 = scalar_select %p103, %s8, 3
        %s105 = smul.addr %s104, 384
        %s106 = smul.addr %s105, 4
        %s107 = scalar_lea.vmem %s0, %s106
      $region20: #{ae_forward.8} parent=15 // pred_fallthru
        _
      // Predicated region
      $region21: #{ae_forward.8} parent=15 // pred_check
        %p108 = pneg %p54
      $region22: #{ae_forward.8} parent=15 // pred_check_branch
        %110 = sbr.rel (%p108) target = $region24
      $region23: #{ae_forward.8} parent=15 // pred_region
        %p111 = scmp.lt.s32.totalorder %s8, 3
        %s112 = scalar_select %p111, %s8, 3
        %s113 = smul.addr %s112, 2
        %s114 = smul.addr %s113, 4
        %s115 = scalar_lea.vmem %s1, %s114
      $region24: #{ae_forward.8} parent=15 // pred_fallthru
        _
    $region16: #{ae_forward.8} parent=5 // pred_fallthru
      _
    %p116 = scmp.le.s32.totalorder 1, %s8
    %p117 = scmp.lt.s32.totalorder %s8, 5
    %p118 = pnand %p116, %p117
    %p119 = pneg %p118
    // Predicated region
    $region25: #{ae_forward.8} parent=5 // pred_check
      _
    $region26: #{ae_forward.8} parent=5 // pred_check_branch
      %121 = sbr.rel (%p118) target = $region28
    $region27: #{ae_forward.8} parent=5 // pred_region
      %s122 = ssub.s32 %s8, 1
      %p123 = scmp.lt.s32.totalorder %s13, 3
      %s124 = scalar_select %p123, %s13, 3
      %s125 = smul.addr %s124, 384
      %s126 = smul.addr %s125, 4
      %s127 = scalar_lea.vmem %s0, %s126
      %p128 = pneg %p34
      %p129 = pneg %p31
      %p130 = scmp.lt.s32.totalorder %s13, 3
      %s131 = scalar_select %p130, %s13, 3
      %s132 = smul.addr %s131, 2
      %s133 = smul.addr %s132, 4
      %s134 = scalar_lea.vmem %s1, %s133
      %p135 = pneg %p60
      %p136 = pneg %p57
      %p137 = pneg %p81
      %p138 = pneg %p78
      %p139 = scmp.lt.s32.totalorder %s13, 3
      %s140 = scalar_select %p139, %s13, 3
      %s141 = smul.addr %s140, 384
      %s142 = smul.addr %s141, 4
      %s143 = scalar_lea.vmem %s0, %s142
      %p144 = scmp.lt.s32.totalorder %s13, 3
      %s145 = scalar_select %p144, %s13, 3
      %s146 = smul.addr %s145, 2
      %s147 = smul.addr %s146, 4
      %s148 = scalar_lea.vmem %s1, %s147
      %p149 = scmp.eq.s32.totalorder %s13, 0
      // Predicated region
      $region29: #{ae_forward.8} parent=27 // pred_check
        %p150 = pneg %p149
      $region30: #{ae_forward.8} parent=27 // pred_check_branch
        %152 = sbr.rel (%p150) target = $region32
      $region31: #{ae_forward.8} parent=27 // pred_region
        %153 = vst [vmem:[#allocation2] sm:$0xff] 0.0
        %154 = vst [vmem:[#allocation2 + $0x8] sm:$0xff] 0.0
        %155 = vst [vmem:[#allocation2 + $0x10] sm:$0xff] 0.0
        %156 = vst [vmem:[#allocation2 + $0x18] sm:$0xff] 0.0
        %157 = vst [vmem:[#allocation2 + $0x20] sm:$0xff] 0.0
        %158 = vst [vmem:[#allocation2 + $0x28] sm:$0xff] 0.0
        %159 = vst [vmem:[#allocation2 + $0x30] sm:$0xff] 0.0
        %160 = vst [vmem:[#allocation2 + $0x38] sm:$0xff] 0.0
        %161 = vst [vmem:[#allocation2 + $0x40] sm:$0xff] 0.0
        %162 = vst [vmem:[#allocation2 + $0x48] sm:$0xff] 0.0
        %163 = vst [vmem:[#allocation2 + $0x50] sm:$0xff] 0.0
        %164 = vst [vmem:[#allocation2 + $0x58] sm:$0xff] 0.0
      $region32: #{ae_forward.8} parent=27 // pred_fallthru
        _
      %v165 = vld [vmem:[#allocation2] sm:$0xff]
      %v166 = vld [vmem:[#allocation2 + $0x8] sm:$0xff]
      %v167 = vld [vmem:[#allocation2 + $0x10] sm:$0xff]
      %v168 = vld [vmem:[#allocation2 + $0x18] sm:$0xff]
      %v169 = vld [vmem:[#allocation2 + $0x20] sm:$0xff]
      %v170 = vld [vmem:[#allocation2 + $0x28] sm:$0xff]
      %v171 = vld [vmem:[#allocation2 + $0x30] sm:$0xff]
      %v172 = vld [vmem:[#allocation2 + $0x38] sm:$0xff]
      %v173 = vld [vmem:[#allocation2 + $0x40] sm:$0xff]
      %v174 = vld [vmem:[#allocation2 + $0x48] sm:$0xff]
      %v175 = vld [vmem:[#allocation2 + $0x50] sm:$0xff]
      %v176 = vld [vmem:[#allocation2 + $0x58] sm:$0xff]
      %v177 = vld [vmem:[%s148] sm:$0xff]
      %v178 = vld [vmem:[%s143] sm:$0xff]
      %v179 = vld [vmem:[%s143 + $0x8] sm:$0xff]
      %v180 = vld [vmem:[%s143 + $0x10] sm:$0xff]
      %v181 = vld [vmem:[%s143 + $0x18] sm:$0xff]
      %v182 = vld [vmem:[%s143 + $0x20] sm:$0xff]
      %v183 = vld [vmem:[%s143 + $0x28] sm:$0xff]
      %v184 = vld [vmem:[%s143 + $0x30] sm:$0xff]
      %v185 = vld [vmem:[%s143 + $0x38] sm:$0xff]
      %v186 = vld [vmem:[%s143 + $0x40] sm:$0xff]
      %v187 = vld [vmem:[%s143 + $0x48] sm:$0xff]
      %v188 = vld [vmem:[%s143 + $0x50] sm:$0xff]
      %v189 = vld [vmem:[%s143 + $0x58] sm:$0xff]
      %v190 = vld [vmem:[%s143 + $0x60] sm:$0xff]
      %v191 = vld [vmem:[%s143 + $0x68] sm:$0xff]
      %v192 = vld [vmem:[%s143 + $0x70] sm:$0xff]
      %v193 = vld [vmem:[%s143 + $0x78] sm:$0xff]
      %v194 = vld [vmem:[%s143 + $0x80] sm:$0xff]
      %v195 = vld [vmem:[%s143 + $0x88] sm:$0xff]
      %v196 = vld [vmem:[%s143 + $0x90] sm:$0xff]
      %v197 = vld [vmem:[%s143 + $0x98] sm:$0xff]
      %v198 = vld [vmem:[%s143 + $0xa0] sm:$0xff]
      %v199 = vld [vmem:[%s143 + $0xa8] sm:$0xff]
      %v200 = vld [vmem:[%s143 + $0xb0] sm:$0xff]
      %v201 = vld [vmem:[%s143 + $0xb8] sm:$0xff]
      %v202 = vld [vmem:[%s143 + $0xc0] sm:$0xff]
      %v203 = vld [vmem:[%s143 + $0xc8] sm:$0xff]
      %v204 = vld [vmem:[%s143 + $0xd0] sm:$0xff]
      %v205 = vld [vmem:[%s143 + $0xd8] sm:$0xff]
      %v206 = vld [vmem:[%s143 + $0xe0] sm:$0xff]
      %v207 = vld [vmem:[%s143 + $0xe8] sm:$0xff]
      %v208 = vld [vmem:[%s143 + $0xf0] sm:$0xff]
      %v209 = vld [vmem:[%s143 + $0xf8] sm:$0xff]
      %v210 = vld [vmem:[%s143 + $0x100] sm:$0xff]
      %v211 = vld [vmem:[%s143 + $0x108] sm:$0xff]
      %v212 = vld [vmem:[%s143 + $0x110] sm:$0xff]
      %v213 = vld [vmem:[%s143 + $0x118] sm:$0xff]
      %v214 = vld [vmem:[%s143 + $0x120] sm:$0xff]
      %v215 = vld [vmem:[%s143 + $0x128] sm:$0xff]
      %v216 = vld [vmem:[%s143 + $0x130] sm:$0xff]
      %v217 = vld [vmem:[%s143 + $0x138] sm:$0xff]
      %v218 = vld [vmem:[%s143 + $0x140] sm:$0xff]
      %v219 = vld [vmem:[%s143 + $0x148] sm:$0xff]
      %v220 = vld [vmem:[%s143 + $0x150] sm:$0xff]
      %v221 = vld [vmem:[%s143 + $0x158] sm:$0xff]
      %v222 = vld [vmem:[%s143 + $0x160] sm:$0xff]
      %v223 = vld [vmem:[%s143 + $0x168] sm:$0xff]
      %v224 = vld [vmem:[%s143 + $0x170] sm:$0xff]
      %v225 = vld [vmem:[%s143 + $0x178] sm:$0xff]
      %v226 = vld [vmem:[%s143 + $0x180] sm:$0xff]
      %v227 = vld [vmem:[%s143 + $0x188] sm:$0xff]
      %v228 = vld [vmem:[%s143 + $0x190] sm:$0xff]
      %v229 = vld [vmem:[%s143 + $0x198] sm:$0xff]
      %v230 = vld [vmem:[%s143 + $0x1a0] sm:$0xff]
      %v231 = vld [vmem:[%s143 + $0x1a8] sm:$0xff]
      %v232 = vld [vmem:[%s143 + $0x1b0] sm:$0xff]
      %v233 = vld [vmem:[%s143 + $0x1b8] sm:$0xff]
      %v234 = vld [vmem:[%s143 + $0x1c0] sm:$0xff]
      %v235 = vld [vmem:[%s143 + $0x1c8] sm:$0xff]
      %v236 = vld [vmem:[%s143 + $0x1d0] sm:$0xff]
      %v237 = vld [vmem:[%s143 + $0x1d8] sm:$0xff]
      %v238 = vld [vmem:[%s143 + $0x1e0] sm:$0xff]
      %v239 = vld [vmem:[%s143 + $0x1e8] sm:$0xff]
      %v240 = vld [vmem:[%s143 + $0x1f0] sm:$0xff]
      %v241 = vld [vmem:[%s143 + $0x1f8] sm:$0xff]
      %v242 = vld [vmem:[%s143 + $0x200] sm:$0xff]
      %v243 = vld [vmem:[%s143 + $0x208] sm:$0xff]
      %v244 = vld [vmem:[%s143 + $0x210] sm:$0xff]
      %v245 = vld [vmem:[%s143 + $0x218] sm:$0xff]
      %v246 = vld [vmem:[%s143 + $0x220] sm:$0xff]
      %v247 = vld [vmem:[%s143 + $0x228] sm:$0xff]
      %v248 = vld [vmem:[%s143 + $0x230] sm:$0xff]
      %v249 = vld [vmem:[%s143 + $0x238] sm:$0xff]
      %v250 = vld [vmem:[%s143 + $0x240] sm:$0xff]
      %v251 = vld [vmem:[%s143 + $0x248] sm:$0xff]
      %v252 = vld [vmem:[%s143 + $0x250] sm:$0xff]
      %v253 = vld [vmem:[%s143 + $0x258] sm:$0xff]
      %v254 = vld [vmem:[%s143 + $0x260] sm:$0xff]
      %v255 = vld [vmem:[%s143 + $0x268] sm:$0xff]
      %v256 = vld [vmem:[%s143 + $0x270] sm:$0xff]
      %v257 = vld [vmem:[%s143 + $0x278] sm:$0xff]
      %v258 = vld [vmem:[%s143 + $0x280] sm:$0xff]
      %v259 = vld [vmem:[%s143 + $0x288] sm:$0xff]
      %v260 = vld [vmem:[%s143 + $0x290] sm:$0xff]
      %v261 = vld [vmem:[%s143 + $0x298] sm:$0xff]
      %v262 = vld [vmem:[%s143 + $0x2a0] sm:$0xff]
      %v263 = vld [vmem:[%s143 + $0x2a8] sm:$0xff]
      %v264 = vld [vmem:[%s143 + $0x2b0] sm:$0xff]
      %v265 = vld [vmem:[%s143 + $0x2b8] sm:$0xff]
      %v266 = vld [vmem:[%s143 + $0x2c0] sm:$0xff]
      %v267 = vld [vmem:[%s143 + $0x2c8] sm:$0xff]
      %v268 = vld [vmem:[%s143 + $0x2d0] sm:$0xff]
      %v269 = vld [vmem:[%s143 + $0x2d8] sm:$0xff]
      %v270 = vld [vmem:[%s143 + $0x2e0] sm:$0xff]
      %v271 = vld [vmem:[%s143 + $0x2e8] sm:$0xff]
      %v272 = vld [vmem:[%s143 + $0x2f0] sm:$0xff]
      %v273 = vld [vmem:[%s143 + $0x2f8] sm:$0xff]
      %v274 = vld [vmem:[%s143 + $0x300] sm:$0xff]
      %v275 = vld [vmem:[%s143 + $0x308] sm:$0xff]
      %v276 = vld [vmem:[%s143 + $0x310] sm:$0xff]
      %v277 = vld [vmem:[%s143 + $0x318] sm:$0xff]
      %v278 = vld [vmem:[%s143 + $0x320] sm:$0xff]
      %v279 = vld [vmem:[%s143 + $0x328] sm:$0xff]
      %v280 = vld [vmem:[%s143 + $0x330] sm:$0xff]
      %v281 = vld [vmem:[%s143 + $0x338] sm:$0xff]
      %v282 = vld [vmem:[%s143 + $0x340] sm:$0xff]
      %v283 = vld [vmem:[%s143 + $0x348] sm:$0xff]
      %v284 = vld [vmem:[%s143 + $0x350] sm:$0xff]
      %v285 = vld [vmem:[%s143 + $0x358] sm:$0xff]
      %v286 = vld [vmem:[%s143 + $0x360] sm:$0xff]
      %v287 = vld [vmem:[%s143 + $0x368] sm:$0xff]
      %v288 = vld [vmem:[%s143 + $0x370] sm:$0xff]
      %v289 = vld [vmem:[%s143 + $0x378] sm:$0xff]
      %v290 = vld [vmem:[%s143 + $0x380] sm:$0xff]
      %v291 = vld [vmem:[%s143 + $0x388] sm:$0xff]
      %v292 = vld [vmem:[%s143 + $0x390] sm:$0xff]
      %v293 = vld [vmem:[%s143 + $0x398] sm:$0xff]
      %v294 = vld [vmem:[%s143 + $0x3a0] sm:$0xff]
      %v295 = vld [vmem:[%s143 + $0x3a8] sm:$0xff]
      %v296 = vld [vmem:[%s143 + $0x3b0] sm:$0xff]
      %v297 = vld [vmem:[%s143 + $0x3b8] sm:$0xff]
      %v298 = vld [vmem:[%s143 + $0x3c0] sm:$0xff]
      %v299 = vld [vmem:[%s143 + $0x3c8] sm:$0xff]
      %v300 = vld [vmem:[%s143 + $0x3d0] sm:$0xff]
      %v301 = vld [vmem:[%s143 + $0x3d8] sm:$0xff]
      %v302 = vld [vmem:[%s143 + $0x3e0] sm:$0xff]
      %v303 = vld [vmem:[%s143 + $0x3e8] sm:$0xff]
      %v304 = vld [vmem:[%s143 + $0x3f0] sm:$0xff]
      %v305 = vld [vmem:[%s143 + $0x3f8] sm:$0xff]
      %v306 = vld [vmem:[%s143 + $0x400] sm:$0xff]
      %v307 = vld [vmem:[%s143 + $0x408] sm:$0xff]
      %v308 = vld [vmem:[%s143 + $0x410] sm:$0xff]
      %v309 = vld [vmem:[%s143 + $0x418] sm:$0xff]
      %v310 = vld [vmem:[%s143 + $0x420] sm:$0xff]
      %v311 = vld [vmem:[%s143 + $0x428] sm:$0xff]
      %v312 = vld [vmem:[%s143 + $0x430] sm:$0xff]
      %v313 = vld [vmem:[%s143 + $0x438] sm:$0xff]
      %v314 = vld [vmem:[%s143 + $0x440] sm:$0xff]
      %v315 = vld [vmem:[%s143 + $0x448] sm:$0xff]
      %v316 = vld [vmem:[%s143 + $0x450] sm:$0xff]
      %v317 = vld [vmem:[%s143 + $0x458] sm:$0xff]
      %v318 = vld [vmem:[%s143 + $0x460] sm:$0xff]
      %v319 = vld [vmem:[%s143 + $0x468] sm:$0xff]
      %v320 = vld [vmem:[%s143 + $0x470] sm:$0xff]
      %v321 = vld [vmem:[%s143 + $0x478] sm:$0xff]
      %v322 = vld [vmem:[%s143 + $0x480] sm:$0xff]
      %v323 = vld [vmem:[%s143 + $0x488] sm:$0xff]
      %v324 = vld [vmem:[%s143 + $0x490] sm:$0xff]
      %v325 = vld [vmem:[%s143 + $0x498] sm:$0xff]
      %v326 = vld [vmem:[%s143 + $0x4a0] sm:$0xff]
      %v327 = vld [vmem:[%s143 + $0x4a8] sm:$0xff]
      %v328 = vld [vmem:[%s143 + $0x4b0] sm:$0xff]
      %v329 = vld [vmem:[%s143 + $0x4b8] sm:$0xff]
      %v330 = vld [vmem:[%s143 + $0x4c0] sm:$0xff]
      %v331 = vld [vmem:[%s143 + $0x4c8] sm:$0xff]
      %v332 = vld [vmem:[%s143 + $0x4d0] sm:$0xff]
      %v333 = vld [vmem:[%s143 + $0x4d8] sm:$0xff]
      %v334 = vld [vmem:[%s143 + $0x4e0] sm:$0xff]
      %v335 = vld [vmem:[%s143 + $0x4e8] sm:$0xff]
      %v336 = vld [vmem:[%s143 + $0x4f0] sm:$0xff]
      %v337 = vld [vmem:[%s143 + $0x4f8] sm:$0xff]
      %v338 = vld [vmem:[%s143 + $0x500] sm:$0xff]
      %v339 = vld [vmem:[%s143 + $0x508] sm:$0xff]
      %v340 = vld [vmem:[%s143 + $0x510] sm:$0xff]
      %v341 = vld [vmem:[%s143 + $0x518] sm:$0xff]
      %v342 = vld [vmem:[%s143 + $0x520] sm:$0xff]
      %v343 = vld [vmem:[%s143 + $0x528] sm:$0xff]
      %v344 = vld [vmem:[%s143 + $0x530] sm:$0xff]
      %v345 = vld [vmem:[%s143 + $0x538] sm:$0xff]
      %v346 = vld [vmem:[%s143 + $0x540] sm:$0xff]
      %v347 = vld [vmem:[%s143 + $0x548] sm:$0xff]
      %v348 = vld [vmem:[%s143 + $0x550] sm:$0xff]
      %v349 = vld [vmem:[%s143 + $0x558] sm:$0xff]
      %v350 = vld [vmem:[%s143 + $0x560] sm:$0xff]
      %v351 = vld [vmem:[%s143 + $0x568] sm:$0xff]
      %v352 = vld [vmem:[%s143 + $0x570] sm:$0xff]
      %v353 = vld [vmem:[%s143 + $0x578] sm:$0xff]
      %v354 = vld [vmem:[%s143 + $0x580] sm:$0xff]
      %v355 = vld [vmem:[%s143 + $0x588] sm:$0xff]
      %v356 = vld [vmem:[%s143 + $0x590] sm:$0xff]
      %v357 = vld [vmem:[%s143 + $0x598] sm:$0xff]
      %v358 = vld [vmem:[%s143 + $0x5a0] sm:$0xff]
      %v359 = vld [vmem:[%s143 + $0x5a8] sm:$0xff]
      %v360 = vld [vmem:[%s143 + $0x5b0] sm:$0xff]
      %v361 = vld [vmem:[%s143 + $0x5b8] sm:$0xff]
      %v362 = vld [vmem:[%s143 + $0x5c0] sm:$0xff]
      %v363 = vld [vmem:[%s143 + $0x5c8] sm:$0xff]
      %v364 = vld [vmem:[%s143 + $0x5d0] sm:$0xff]
      %v365 = vld [vmem:[%s143 + $0x5d8] sm:$0xff]
      %v366 = vld [vmem:[%s143 + $0x5e0] sm:$0xff]
      %v367 = vld [vmem:[%s143 + $0x5e8] sm:$0xff]
      %v368 = vld [vmem:[%s143 + $0x5f0] sm:$0xff]
      %v369 = vld [vmem:[%s143 + $0x5f8] sm:$0xff]
      %v371 = vunpack.c.l.b16 %v177
      %v372 = vunpack.c.h.b16 %v177
      %v373 = vpack.c.b16 %v371, %v371
      %v374 = vpack.c.b16 %v372, %v372
      %v569 = vunpack.c.l.b16 %v178
      %v570 = vunpack.c.h.b16 %v178
      %v571 = vunpack.c.l.b16 %v179
      %v572 = vunpack.c.h.b16 %v179
      %v573 = vunpack.c.l.b16 %v180
      %v574 = vunpack.c.h.b16 %v180
      %v575 = vunpack.c.l.b16 %v181
      %v576 = vunpack.c.h.b16 %v181
      %v577 = vunpack.c.l.b16 %v182
      %v578 = vunpack.c.h.b16 %v182
      %v579 = vunpack.c.l.b16 %v183
      %v580 = vunpack.c.h.b16 %v183
      %v581 = vunpack.c.l.b16 %v184
      %v582 = vunpack.c.h.b16 %v184
      %v583 = vunpack.c.l.b16 %v185
      %v584 = vunpack.c.h.b16 %v185
      %v585 = vunpack.c.l.b16 %v186
      %v586 = vunpack.c.h.b16 %v186
      %v587 = vunpack.c.l.b16 %v187
      %v588 = vunpack.c.h.b16 %v187
      %v589 = vunpack.c.l.b16 %v188
      %v590 = vunpack.c.h.b16 %v188
      %v591 = vunpack.c.l.b16 %v189
      %v592 = vunpack.c.h.b16 %v189
      %v593 = vunpack.c.l.b16 %v190
      %v594 = vunpack.c.h.b16 %v190
      %v595 = vunpack.c.l.b16 %v191
      %v596 = vunpack.c.h.b16 %v191
      %v597 = vunpack.c.l.b16 %v192
      %v598 = vunpack.c.h.b16 %v192
      %v599 = vunpack.c.l.b16 %v193
      %v600 = vunpack.c.h.b16 %v193
      %v601 = vunpack.c.l.b16 %v194
      %v602 = vunpack.c.h.b16 %v194
      %v603 = vunpack.c.l.b16 %v195
      %v604 = vunpack.c.h.b16 %v195
      %v605 = vunpack.c.l.b16 %v196
      %v606 = vunpack.c.h.b16 %v196
      %v607 = vunpack.c.l.b16 %v197
      %v608 = vunpack.c.h.b16 %v197
      %v609 = vunpack.c.l.b16 %v198
      %v610 = vunpack.c.h.b16 %v198
      %v611 = vunpack.c.l.b16 %v199
      %v612 = vunpack.c.h.b16 %v199
      %v613 = vunpack.c.l.b16 %v200
      %v614 = vunpack.c.h.b16 %v200
      %v615 = vunpack.c.l.b16 %v201
      %v616 = vunpack.c.h.b16 %v201
      %v617 = vunpack.c.l.b16 %v202
      %v618 = vunpack.c.h.b16 %v202
      %v619 = vunpack.c.l.b16 %v203
      %v620 = vunpack.c.h.b16 %v203
      %v621 = vunpack.c.l.b16 %v204
      %v622 = vunpack.c.h.b16 %v204
      %v623 = vunpack.c.l.b16 %v205
      %v624 = vunpack.c.h.b16 %v205
      %v625 = vunpack.c.l.b16 %v206
      %v626 = vunpack.c.h.b16 %v206
      %v627 = vunpack.c.l.b16 %v207
      %v628 = vunpack.c.h.b16 %v207
      %v629 = vunpack.c.l.b16 %v208
      %v630 = vunpack.c.h.b16 %v208
      %v631 = vunpack.c.l.b16 %v209
      %v632 = vunpack.c.h.b16 %v209
      %v633 = vunpack.c.l.b16 %v210
      %v634 = vunpack.c.h.b16 %v210
      %v635 = vunpack.c.l.b16 %v211
      %v636 = vunpack.c.h.b16 %v211
      %v637 = vunpack.c.l.b16 %v212
      %v638 = vunpack.c.h.b16 %v212
      %v639 = vunpack.c.l.b16 %v213
      %v640 = vunpack.c.h.b16 %v213
      %v641 = vunpack.c.l.b16 %v214
      %v642 = vunpack.c.h.b16 %v214
      %v643 = vunpack.c.l.b16 %v215
      %v644 = vunpack.c.h.b16 %v215
      %v645 = vunpack.c.l.b16 %v216
      %v646 = vunpack.c.h.b16 %v216
      %v647 = vunpack.c.l.b16 %v217
      %v648 = vunpack.c.h.b16 %v217
      %v649 = vunpack.c.l.b16 %v218
      %v650 = vunpack.c.h.b16 %v218
      %v651 = vunpack.c.l.b16 %v219
      %v652 = vunpack.c.h.b16 %v219
      %v653 = vunpack.c.l.b16 %v220
      %v654 = vunpack.c.h.b16 %v220
      %v655 = vunpack.c.l.b16 %v221
      %v656 = vunpack.c.h.b16 %v221
      %v657 = vunpack.c.l.b16 %v222
      %v658 = vunpack.c.h.b16 %v222
      %v659 = vunpack.c.l.b16 %v223
      %v660 = vunpack.c.h.b16 %v223
      %v661 = vunpack.c.l.b16 %v224
      %v662 = vunpack.c.h.b16 %v224
      %v663 = vunpack.c.l.b16 %v225
      %v664 = vunpack.c.h.b16 %v225
      %v665 = vunpack.c.l.b16 %v226
      %v666 = vunpack.c.h.b16 %v226
      %v667 = vunpack.c.l.b16 %v227
      %v668 = vunpack.c.h.b16 %v227
      %v669 = vunpack.c.l.b16 %v228
      %v670 = vunpack.c.h.b16 %v228
      %v671 = vunpack.c.l.b16 %v229
      %v672 = vunpack.c.h.b16 %v229
      %v673 = vunpack.c.l.b16 %v230
      %v674 = vunpack.c.h.b16 %v230
      %v675 = vunpack.c.l.b16 %v231
      %v676 = vunpack.c.h.b16 %v231
      %v677 = vunpack.c.l.b16 %v232
      %v678 = vunpack.c.h.b16 %v232
      %v679 = vunpack.c.l.b16 %v233
      %v680 = vunpack.c.h.b16 %v233
      %v681 = vunpack.c.l.b16 %v234
      %v682 = vunpack.c.h.b16 %v234
      %v683 = vunpack.c.l.b16 %v235
      %v684 = vunpack.c.h.b16 %v235
      %v685 = vunpack.c.l.b16 %v236
      %v686 = vunpack.c.h.b16 %v236
      %v687 = vunpack.c.l.b16 %v237
      %v688 = vunpack.c.h.b16 %v237
      %v689 = vunpack.c.l.b16 %v238
      %v690 = vunpack.c.h.b16 %v238
      %v691 = vunpack.c.l.b16 %v239
      %v692 = vunpack.c.h.b16 %v239
      %v693 = vunpack.c.l.b16 %v240
      %v694 = vunpack.c.h.b16 %v240
      %v695 = vunpack.c.l.b16 %v241
      %v696 = vunpack.c.h.b16 %v241
      %v697 = vunpack.c.l.b16 %v242
      %v698 = vunpack.c.h.b16 %v242
      %v699 = vunpack.c.l.b16 %v243
      %v700 = vunpack.c.h.b16 %v243
      %v701 = vunpack.c.l.b16 %v244
      %v702 = vunpack.c.h.b16 %v244
      %v703 = vunpack.c.l.b16 %v245
      %v704 = vunpack.c.h.b16 %v245
      %v705 = vunpack.c.l.b16 %v246
      %v706 = vunpack.c.h.b16 %v246
      %v707 = vunpack.c.l.b16 %v247
      %v708 = vunpack.c.h.b16 %v247
      %v709 = vunpack.c.l.b16 %v248
      %v710 = vunpack.c.h.b16 %v248
      %v711 = vunpack.c.l.b16 %v249
      %v712 = vunpack.c.h.b16 %v249
      %v713 = vunpack.c.l.b16 %v250
      %v714 = vunpack.c.h.b16 %v250
      %v715 = vunpack.c.l.b16 %v251
      %v716 = vunpack.c.h.b16 %v251
      %v717 = vunpack.c.l.b16 %v252
      %v718 = vunpack.c.h.b16 %v252
      %v719 = vunpack.c.l.b16 %v253
      %v720 = vunpack.c.h.b16 %v253
      %v721 = vunpack.c.l.b16 %v254
      %v722 = vunpack.c.h.b16 %v254
      %v723 = vunpack.c.l.b16 %v255
      %v724 = vunpack.c.h.b16 %v255
      %v725 = vunpack.c.l.b16 %v256
      %v726 = vunpack.c.h.b16 %v256
      %v727 = vunpack.c.l.b16 %v257
      %v728 = vunpack.c.h.b16 %v257
      %v729 = vunpack.c.l.b16 %v258
      %v730 = vunpack.c.h.b16 %v258
      %v731 = vunpack.c.l.b16 %v259
      %v732 = vunpack.c.h.b16 %v259
      %v733 = vunpack.c.l.b16 %v260
      %v734 = vunpack.c.h.b16 %v260
      %v735 = vunpack.c.l.b16 %v261
      %v736 = vunpack.c.h.b16 %v261
      %v737 = vunpack.c.l.b16 %v262
      %v738 = vunpack.c.h.b16 %v262
      %v739 = vunpack.c.l.b16 %v263
      %v740 = vunpack.c.h.b16 %v263
      %v741 = vunpack.c.l.b16 %v264
      %v742 = vunpack.c.h.b16 %v264
      %v743 = vunpack.c.l.b16 %v265
      %v744 = vunpack.c.h.b16 %v265
      %v745 = vunpack.c.l.b16 %v266
      %v746 = vunpack.c.h.b16 %v266
      %v747 = vunpack.c.l.b16 %v267
      %v748 = vunpack.c.h.b16 %v267
      %v749 = vunpack.c.l.b16 %v268
      %v750 = vunpack.c.h.b16 %v268
      %v751 = vunpack.c.l.b16 %v269
      %v752 = vunpack.c.h.b16 %v269
      %v753 = vunpack.c.l.b16 %v270
      %v754 = vunpack.c.h.b16 %v270
      %v755 = vunpack.c.l.b16 %v271
      %v756 = vunpack.c.h.b16 %v271
      %v757 = vunpack.c.l.b16 %v272
      %v758 = vunpack.c.h.b16 %v272
      %v759 = vunpack.c.l.b16 %v273
      %v760 = vunpack.c.h.b16 %v273
      %v761 = vunpack.c.l.b16 %v274
      %v762 = vunpack.c.h.b16 %v274
      %v763 = vunpack.c.l.b16 %v275
      %v764 = vunpack.c.h.b16 %v275
      %v765 = vunpack.c.l.b16 %v276
      %v766 = vunpack.c.h.b16 %v276
      %v767 = vunpack.c.l.b16 %v277
      %v768 = vunpack.c.h.b16 %v277
      %v769 = vunpack.c.l.b16 %v278
      %v770 = vunpack.c.h.b16 %v278
      %v771 = vunpack.c.l.b16 %v279
      %v772 = vunpack.c.h.b16 %v279
      %v773 = vunpack.c.l.b16 %v280
      %v774 = vunpack.c.h.b16 %v280
      %v775 = vunpack.c.l.b16 %v281
      %v776 = vunpack.c.h.b16 %v281
      %v777 = vunpack.c.l.b16 %v282
      %v778 = vunpack.c.h.b16 %v282
      %v779 = vunpack.c.l.b16 %v283
      %v780 = vunpack.c.h.b16 %v283
      %v781 = vunpack.c.l.b16 %v284
      %v782 = vunpack.c.h.b16 %v284
      %v783 = vunpack.c.l.b16 %v285
      %v784 = vunpack.c.h.b16 %v285
      %v785 = vunpack.c.l.b16 %v286
      %v786 = vunpack.c.h.b16 %v286
      %v787 = vunpack.c.l.b16 %v287
      %v788 = vunpack.c.h.b16 %v287
      %v789 = vunpack.c.l.b16 %v288
      %v790 = vunpack.c.h.b16 %v288
      %v791 = vunpack.c.l.b16 %v289
      %v792 = vunpack.c.h.b16 %v289
      %v793 = vunpack.c.l.b16 %v290
      %v794 = vunpack.c.h.b16 %v290
      %v795 = vunpack.c.l.b16 %v291
      %v796 = vunpack.c.h.b16 %v291
      %v797 = vunpack.c.l.b16 %v292
      %v798 = vunpack.c.h.b16 %v292
      %v799 = vunpack.c.l.b16 %v293
      %v800 = vunpack.c.h.b16 %v293
      %v801 = vunpack.c.l.b16 %v294
      %v802 = vunpack.c.h.b16 %v294
      %v803 = vunpack.c.l.b16 %v295
      %v804 = vunpack.c.h.b16 %v295
      %v805 = vunpack.c.l.b16 %v296
      %v806 = vunpack.c.h.b16 %v296
      %v807 = vunpack.c.l.b16 %v297
      %v808 = vunpack.c.h.b16 %v297
      %v809 = vunpack.c.l.b16 %v298
      %v810 = vunpack.c.h.b16 %v298
      %v811 = vunpack.c.l.b16 %v299
      %v812 = vunpack.c.h.b16 %v299
      %v813 = vunpack.c.l.b16 %v300
      %v814 = vunpack.c.h.b16 %v300
      %v815 = vunpack.c.l.b16 %v301
      %v816 = vunpack.c.h.b16 %v301
      %v817 = vunpack.c.l.b16 %v302
      %v818 = vunpack.c.h.b16 %v302
      %v819 = vunpack.c.l.b16 %v303
      %v820 = vunpack.c.h.b16 %v303
      %v821 = vunpack.c.l.b16 %v304
      %v822 = vunpack.c.h.b16 %v304
      %v823 = vunpack.c.l.b16 %v305
      %v824 = vunpack.c.h.b16 %v305
      %v825 = vunpack.c.l.b16 %v306
      %v826 = vunpack.c.h.b16 %v306
      %v827 = vunpack.c.l.b16 %v307
      %v828 = vunpack.c.h.b16 %v307
      %v829 = vunpack.c.l.b16 %v308
      %v830 = vunpack.c.h.b16 %v308
      %v831 = vunpack.c.l.b16 %v309
      %v832 = vunpack.c.h.b16 %v309
      %v833 = vunpack.c.l.b16 %v310
      %v834 = vunpack.c.h.b16 %v310
      %v835 = vunpack.c.l.b16 %v311
      %v836 = vunpack.c.h.b16 %v311
      %v837 = vunpack.c.l.b16 %v312
      %v838 = vunpack.c.h.b16 %v312
      %v839 = vunpack.c.l.b16 %v313
      %v840 = vunpack.c.h.b16 %v313
      %v841 = vunpack.c.l.b16 %v314
      %v842 = vunpack.c.h.b16 %v314
      %v843 = vunpack.c.l.b16 %v315
      %v844 = vunpack.c.h.b16 %v315
      %v845 = vunpack.c.l.b16 %v316
      %v846 = vunpack.c.h.b16 %v316
      %v847 = vunpack.c.l.b16 %v317
      %v848 = vunpack.c.h.b16 %v317
      %v849 = vunpack.c.l.b16 %v318
      %v850 = vunpack.c.h.b16 %v318
      %v851 = vunpack.c.l.b16 %v319
      %v852 = vunpack.c.h.b16 %v319
      %v853 = vunpack.c.l.b16 %v320
      %v854 = vunpack.c.h.b16 %v320
      %v855 = vunpack.c.l.b16 %v321
      %v856 = vunpack.c.h.b16 %v321
      %v857 = vunpack.c.l.b16 %v322
      %v858 = vunpack.c.h.b16 %v322
      %v859 = vunpack.c.l.b16 %v323
      %v860 = vunpack.c.h.b16 %v323
      %v861 = vunpack.c.l.b16 %v324
      %v862 = vunpack.c.h.b16 %v324
      %v863 = vunpack.c.l.b16 %v325
      %v864 = vunpack.c.h.b16 %v325
      %v865 = vunpack.c.l.b16 %v326
      %v866 = vunpack.c.h.b16 %v326
      %v867 = vunpack.c.l.b16 %v327
      %v868 = vunpack.c.h.b16 %v327
      %v869 = vunpack.c.l.b16 %v328
      %v870 = vunpack.c.h.b16 %v328
      %v871 = vunpack.c.l.b16 %v329
      %v872 = vunpack.c.h.b16 %v329
      %v873 = vunpack.c.l.b16 %v330
      %v874 = vunpack.c.h.b16 %v330
      %v875 = vunpack.c.l.b16 %v331
      %v876 = vunpack.c.h.b16 %v331
      %v877 = vunpack.c.l.b16 %v332
      %v878 = vunpack.c.h.b16 %v332
      %v879 = vunpack.c.l.b16 %v333
      %v880 = vunpack.c.h.b16 %v333
      %v881 = vunpack.c.l.b16 %v334
      %v882 = vunpack.c.h.b16 %v334
      %v883 = vunpack.c.l.b16 %v335
      %v884 = vunpack.c.h.b16 %v335
      %v885 = vunpack.c.l.b16 %v336
      %v886 = vunpack.c.h.b16 %v336
      %v887 = vunpack.c.l.b16 %v337
      %v888 = vunpack.c.h.b16 %v337
      %v889 = vunpack.c.l.b16 %v338
      %v890 = vunpack.c.h.b16 %v338
      %v891 = vunpack.c.l.b16 %v339
      %v892 = vunpack.c.h.b16 %v339
      %v893 = vunpack.c.l.b16 %v340
      %v894 = vunpack.c.h.b16 %v340
      %v895 = vunpack.c.l.b16 %v341
      %v896 = vunpack.c.h.b16 %v341
      %v897 = vunpack.c.l.b16 %v342
      %v898 = vunpack.c.h.b16 %v342
      %v899 = vunpack.c.l.b16 %v343
      %v900 = vunpack.c.h.b16 %v343
      %v901 = vunpack.c.l.b16 %v344
      %v902 = vunpack.c.h.b16 %v344
      %v903 = vunpack.c.l.b16 %v345
      %v904 = vunpack.c.h.b16 %v345
      %v905 = vunpack.c.l.b16 %v346
      %v906 = vunpack.c.h.b16 %v346
      %v907 = vunpack.c.l.b16 %v347
      %v908 = vunpack.c.h.b16 %v347
      %v909 = vunpack.c.l.b16 %v348
      %v910 = vunpack.c.h.b16 %v348
      %v911 = vunpack.c.l.b16 %v349
      %v912 = vunpack.c.h.b16 %v349
      %v913 = vunpack.c.l.b16 %v350
      %v914 = vunpack.c.h.b16 %v350
      %v915 = vunpack.c.l.b16 %v351
      %v916 = vunpack.c.h.b16 %v351
      %v917 = vunpack.c.l.b16 %v352
      %v918 = vunpack.c.h.b16 %v352
      %v919 = vunpack.c.l.b16 %v353
      %v920 = vunpack.c.h.b16 %v353
      %v921 = vunpack.c.l.b16 %v354
      %v922 = vunpack.c.h.b16 %v354
      %v923 = vunpack.c.l.b16 %v355
      %v924 = vunpack.c.h.b16 %v355
      %v925 = vunpack.c.l.b16 %v356
      %v926 = vunpack.c.h.b16 %v356
      %v927 = vunpack.c.l.b16 %v357
      %v928 = vunpack.c.h.b16 %v357
      %v929 = vunpack.c.l.b16 %v358
      %v930 = vunpack.c.h.b16 %v358
      %v931 = vunpack.c.l.b16 %v359
      %v932 = vunpack.c.h.b16 %v359
      %v933 = vunpack.c.l.b16 %v360
      %v934 = vunpack.c.h.b16 %v360
      %v935 = vunpack.c.l.b16 %v361
      %v936 = vunpack.c.h.b16 %v361
      %v937 = vunpack.c.l.b16 %v362
      %v938 = vunpack.c.h.b16 %v362
      %v939 = vunpack.c.l.b16 %v363
      %v940 = vunpack.c.h.b16 %v363
      %v941 = vunpack.c.l.b16 %v364
      %v942 = vunpack.c.h.b16 %v364
      %v943 = vunpack.c.l.b16 %v365
      %v944 = vunpack.c.h.b16 %v365
      %v945 = vunpack.c.l.b16 %v366
      %v946 = vunpack.c.h.b16 %v366
      %v947 = vunpack.c.l.b16 %v367
      %v948 = vunpack.c.h.b16 %v367
      %v949 = vunpack.c.l.b16 %v368
      %v950 = vunpack.c.h.b16 %v368
      %v951 = vunpack.c.l.b16 %v369
      %v952 = vunpack.c.h.b16 %v369
      %v953 = vpack.c.b16 %v581, %v569
      %v954 = vpack.c.b16 %v582, %v570
      %v955 = vpack.c.b16 %v583, %v571
      %v956 = vpack.c.b16 %v584, %v572
      %v957 = vpack.c.b16 %v585, %v573
      %v958 = vpack.c.b16 %v586, %v574
      %v959 = vpack.c.b16 %v587, %v575
      %v960 = vpack.c.b16 %v588, %v576
      %v961 = vpack.c.b16 %v589, %v577
      %v962 = vpack.c.b16 %v590, %v578
      %v963 = vpack.c.b16 %v591, %v579
      %v964 = vpack.c.b16 %v592, %v580
      %v965 = vpack.c.b16 %v605, %v593
      %v966 = vpack.c.b16 %v606, %v594
      %v967 = vpack.c.b16 %v607, %v595
      %v968 = vpack.c.b16 %v608, %v596
      %v969 = vpack.c.b16 %v609, %v597
      %v970 = vpack.c.b16 %v610, %v598
      %v971 = vpack.c.b16 %v611, %v599
      %v972 = vpack.c.b16 %v612, %v600
      %v973 = vpack.c.b16 %v613, %v601
      %v974 = vpack.c.b16 %v614, %v602
      %v975 = vpack.c.b16 %v615, %v603
      %v976 = vpack.c.b16 %v616, %v604
      %v977 = vpack.c.b16 %v629, %v617
      %v978 = vpack.c.b16 %v630, %v618
      %v979 = vpack.c.b16 %v631, %v619
      %v980 = vpack.c.b16 %v632, %v620
      %v981 = vpack.c.b16 %v633, %v621
      %v982 = vpack.c.b16 %v634, %v622
      %v983 = vpack.c.b16 %v635, %v623
      %v984 = vpack.c.b16 %v636, %v624
      %v985 = vpack.c.b16 %v637, %v625
      %v986 = vpack.c.b16 %v638, %v626
      %v987 = vpack.c.b16 %v639, %v627
      %v988 = vpack.c.b16 %v640, %v628
      %v989 = vpack.c.b16 %v653, %v641
      %v990 = vpack.c.b16 %v654, %v642
      %v991 = vpack.c.b16 %v655, %v643
      %v992 = vpack.c.b16 %v656, %v644
      %v993 = vpack.c.b16 %v657, %v645
      %v994 = vpack.c.b16 %v658, %v646
      %v995 = vpack.c.b16 %v659, %v647
      %v996 = vpack.c.b16 %v660, %v648
      %v997 = vpack.c.b16 %v661, %v649
      %v998 = vpack.c.b16 %v662, %v650
      %v999 = vpack.c.b16 %v663, %v651
      %v1000 = vpack.c.b16 %v664, %v652
      %v1001 = vpack.c.b16 %v677, %v665
      %v1002 = vpack.c.b16 %v678, %v666
      %v1003 = vpack.c.b16 %v679, %v667
      %v1004 = vpack.c.b16 %v680, %v668
      %v1005 = vpack.c.b16 %v681, %v669
      %v1006 = vpack.c.b16 %v682, %v670
      %v1007 = vpack.c.b16 %v683, %v671
      %v1008 = vpack.c.b16 %v684, %v672
      %v1009 = vpack.c.b16 %v685, %v673
      %v1010 = vpack.c.b16 %v686, %v674
      %v1011 = vpack.c.b16 %v687, %v675
      %v1012 = vpack.c.b16 %v688, %v676
      %v1013 = vpack.c.b16 %v701, %v689
      %v1014 = vpack.c.b16 %v702, %v690
      %v1015 = vpack.c.b16 %v703, %v691
      %v1016 = vpack.c.b16 %v704, %v692
      %v1017 = vpack.c.b16 %v705, %v693
      %v1018 = vpack.c.b16 %v706, %v694
      %v1019 = vpack.c.b16 %v707, %v695
      %v1020 = vpack.c.b16 %v708, %v696
      %v1021 = vpack.c.b16 %v709, %v697
      %v1022 = vpack.c.b16 %v710, %v698
      %v1023 = vpack.c.b16 %v711, %v699
      %v1024 = vpack.c.b16 %v712, %v700
      %v1025 = vpack.c.b16 %v725, %v713
      %v1026 = vpack.c.b16 %v726, %v714
      %v1027 = vpack.c.b16 %v727, %v715
      %v1028 = vpack.c.b16 %v728, %v716
      %v1029 = vpack.c.b16 %v729, %v717
      %v1030 = vpack.c.b16 %v730, %v718
      %v1031 = vpack.c.b16 %v731, %v719
      %v1032 = vpack.c.b16 %v732, %v720
      %v1033 = vpack.c.b16 %v733, %v721
      %v1034 = vpack.c.b16 %v734, %v722
      %v1035 = vpack.c.b16 %v735, %v723
      %v1036 = vpack.c.b16 %v736, %v724
      %v1037 = vpack.c.b16 %v749, %v737
      %v1038 = vpack.c.b16 %v750, %v738
      %v1039 = vpack.c.b16 %v751, %v739
      %v1040 = vpack.c.b16 %v752, %v740
      %v1041 = vpack.c.b16 %v753, %v741
      %v1042 = vpack.c.b16 %v754, %v742
      %v1043 = vpack.c.b16 %v755, %v743
      %v1044 = vpack.c.b16 %v756, %v744
      %v1045 = vpack.c.b16 %v757, %v745
      %v1046 = vpack.c.b16 %v758, %v746
      %v1047 = vpack.c.b16 %v759, %v747
      %v1048 = vpack.c.b16 %v760, %v748
      %v1049 = vpack.c.b16 %v773, %v761
      %v1050 = vpack.c.b16 %v774, %v762
      %v1051 = vpack.c.b16 %v775, %v763
      %v1052 = vpack.c.b16 %v776, %v764
      %v1053 = vpack.c.b16 %v777, %v765
      %v1054 = vpack.c.b16 %v778, %v766
      %v1055 = vpack.c.b16 %v779, %v767
      %v1056 = vpack.c.b16 %v780, %v768
      %v1057 = vpack.c.b16 %v781, %v769
      %v1058 = vpack.c.b16 %v782, %v770
      %v1059 = vpack.c.b16 %v783, %v771
      %v1060 = vpack.c.b16 %v784, %v772
      %v1061 = vpack.c.b16 %v797, %v785
      %v1062 = vpack.c.b16 %v798, %v786
      %v1063 = vpack.c.b16 %v799, %v787
      %v1064 = vpack.c.b16 %v800, %v788
      %v1065 = vpack.c.b16 %v801, %v789
      %v1066 = vpack.c.b16 %v802, %v790
      %v1067 = vpack.c.b16 %v803, %v791
      %v1068 = vpack.c.b16 %v804, %v792
      %v1069 = vpack.c.b16 %v805, %v793
      %v1070 = vpack.c.b16 %v806, %v794
      %v1071 = vpack.c.b16 %v807, %v795
      %v1072 = vpack.c.b16 %v808, %v796
      %v1073 = vpack.c.b16 %v821, %v809
      %v1074 = vpack.c.b16 %v822, %v810
      %v1075 = vpack.c.b16 %v823, %v811
      %v1076 = vpack.c.b16 %v824, %v812
      %v1077 = vpack.c.b16 %v825, %v813
      %v1078 = vpack.c.b16 %v826, %v814
      %v1079 = vpack.c.b16 %v827, %v815
      %v1080 = vpack.c.b16 %v828, %v816
      %v1081 = vpack.c.b16 %v829, %v817
      %v1082 = vpack.c.b16 %v830, %v818
      %v1083 = vpack.c.b16 %v831, %v819
      %v1084 = vpack.c.b16 %v832, %v820
      %v1085 = vpack.c.b16 %v845, %v833
      %v1086 = vpack.c.b16 %v846, %v834
      %v1087 = vpack.c.b16 %v847, %v835
      %v1088 = vpack.c.b16 %v848, %v836
      %v1089 = vpack.c.b16 %v849, %v837
      %v1090 = vpack.c.b16 %v850, %v838
      %v1091 = vpack.c.b16 %v851, %v839
      %v1092 = vpack.c.b16 %v852, %v840
      %v1093 = vpack.c.b16 %v853, %v841
      %v1094 = vpack.c.b16 %v854, %v842
      %v1095 = vpack.c.b16 %v855, %v843
      %v1096 = vpack.c.b16 %v856, %v844
      %v1097 = vpack.c.b16 %v869, %v857
      %v1098 = vpack.c.b16 %v870, %v858
      %v1099 = vpack.c.b16 %v871, %v859
      %v1100 = vpack.c.b16 %v872, %v860
      %v1101 = vpack.c.b16 %v873, %v861
      %v1102 = vpack.c.b16 %v874, %v862
      %v1103 = vpack.c.b16 %v875, %v863
      %v1104 = vpack.c.b16 %v876, %v864
      %v1105 = vpack.c.b16 %v877, %v865
      %v1106 = vpack.c.b16 %v878, %v866
      %v1107 = vpack.c.b16 %v879, %v867
      %v1108 = vpack.c.b16 %v880, %v868
      %v1109 = vpack.c.b16 %v893, %v881
      %v1110 = vpack.c.b16 %v894, %v882
      %v1111 = vpack.c.b16 %v895, %v883
      %v1112 = vpack.c.b16 %v896, %v884
      %v1113 = vpack.c.b16 %v897, %v885
      %v1114 = vpack.c.b16 %v898, %v886
      %v1115 = vpack.c.b16 %v899, %v887
      %v1116 = vpack.c.b16 %v900, %v888
      %v1117 = vpack.c.b16 %v901, %v889
      %v1118 = vpack.c.b16 %v902, %v890
      %v1119 = vpack.c.b16 %v903, %v891
      %v1120 = vpack.c.b16 %v904, %v892
      %v1121 = vpack.c.b16 %v917, %v905
      %v1122 = vpack.c.b16 %v918, %v906
      %v1123 = vpack.c.b16 %v919, %v907
      %v1124 = vpack.c.b16 %v920, %v908
      %v1125 = vpack.c.b16 %v921, %v909
      %v1126 = vpack.c.b16 %v922, %v910
      %v1127 = vpack.c.b16 %v923, %v911
      %v1128 = vpack.c.b16 %v924, %v912
      %v1129 = vpack.c.b16 %v925, %v913
      %v1130 = vpack.c.b16 %v926, %v914
      %v1131 = vpack.c.b16 %v927, %v915
      %v1132 = vpack.c.b16 %v928, %v916
      %v1133 = vpack.c.b16 %v941, %v929
      %v1134 = vpack.c.b16 %v942, %v930
      %v1135 = vpack.c.b16 %v943, %v931
      %v1136 = vpack.c.b16 %v944, %v932
      %v1137 = vpack.c.b16 %v945, %v933
      %v1138 = vpack.c.b16 %v946, %v934
      %v1139 = vpack.c.b16 %v947, %v935
      %v1140 = vpack.c.b16 %v948, %v936
      %v1141 = vpack.c.b16 %v949, %v937
      %v1142 = vpack.c.b16 %v950, %v938
      %v1143 = vpack.c.b16 %v951, %v939
      %v1144 = vpack.c.b16 %v952, %v940
      %1337 = vmatprep.subr.bf16.mxu0 %v954
      %1338 = vmatpush1.bf16.msra.mxu0 %v953
      %1339 = vmatprep.subr.bf16.mxu0 %v966
      %1340 = vmatpush1.bf16.msra.mxu0 %v965
      %1341 = vmatprep.subr.bf16.mxu0 %v978
      %1342 = vmatpush1.bf16.msra.mxu0 %v977
      %1343 = vmatprep.subr.bf16.mxu0 %v990
      %1344 = vmatpush1.bf16.msra.mxu0 %v989
      %1345 = vmatprep.subr.bf16.mxu0 %v1002
      %1346 = vmatpush1.bf16.msra.mxu0 %v1001
      %1347 = vmatprep.subr.bf16.mxu0 %v1014
      %1348 = vmatpush1.bf16.msra.mxu0 %v1013
      %1349 = vmatprep.subr.bf16.mxu0 %v1026
      %1350 = vmatpush1.bf16.msra.mxu0 %v1025
      %1351 = vmatprep.subr.bf16.mxu0 %v1038
      %1352 = vmatpush1.bf16.msra.mxu0 %v1037
      %1353 = vmatprep.subr.bf16.mxu0 %v1050
      %1354 = vmatpush1.bf16.msra.mxu0 %v1049
      %1355 = vmatprep.subr.bf16.mxu0 %v1062
      %1356 = vmatpush1.bf16.msra.mxu0 %v1061
      %1357 = vmatprep.subr.bf16.mxu0 %v1074
      %1358 = vmatpush1.bf16.msra.mxu0 %v1073
      %1359 = vmatprep.subr.bf16.mxu0 %v1086
      %1360 = vmatpush1.bf16.msra.mxu0 %v1085
      %1361 = vmatprep.subr.bf16.mxu0 %v1098
      %1362 = vmatpush1.bf16.msra.mxu0 %v1097
      %1363 = vmatprep.subr.bf16.mxu0 %v1110
      %1364 = vmatpush1.bf16.msra.mxu0 %v1109
      %1365 = vmatprep.subr.bf16.mxu0 %v1122
      %1366 = vmatpush1.bf16.msra.mxu0 %v1121
      %1367 = vmatprep.subr.bf16.mxu0 %v1134
      %1368 = vmatpush1.bf16.msra.mxu0 %v1133
      %1369 = vmatprep.mubr.bf16.mxu0 %v374
      %1370 = vmatmul.mubr.bf16.gmra.mrb[0].mxu0 %v373
      %v1371 = vpop.f32.mrb[0].mxu0
      %v1372 = vadd.f32 0.0, %v1371
      %v1373 = vpop.f32.mrb[0].mxu0
      %v1374 = vadd.f32 0.0, %v1373
      %v1375 = vpop.f32.mrb[0].mxu0
      %v1376 = vpop.f32.mrb[0].mxu0
      %1377 = vdwg.mxu0
      %1378 = vmatprep.subr.bf16.mxu0 %v956
      %1379 = vmatpush1.bf16.msra.mxu0 %v955
      %1380 = vmatprep.subr.bf16.mxu0 %v968
      %1381 = vmatpush1.bf16.msra.mxu0 %v967
      %1382 = vmatprep.subr.bf16.mxu0 %v980
      %1383 = vmatpush1.bf16.msra.mxu0 %v979
      %1384 = vmatprep.subr.bf16.mxu0 %v992
      %1385 = vmatpush1.bf16.msra.mxu0 %v991
      %1386 = vmatprep.subr.bf16.mxu0 %v1004
      %1387 = vmatpush1.bf16.msra.mxu0 %v1003
      %1388 = vmatprep.subr.bf16.mxu0 %v1016
      %1389 = vmatpush1.bf16.msra.mxu0 %v1015
      %1390 = vmatprep.subr.bf16.mxu0 %v1028
      %1391 = vmatpush1.bf16.msra.mxu0 %v1027
      %1392 = vmatprep.subr.bf16.mxu0 %v1040
      %1393 = vmatpush1.bf16.msra.mxu0 %v1039
      %1394 = vmatprep.subr.bf16.mxu0 %v1052
      %1395 = vmatpush1.bf16.msra.mxu0 %v1051
      %1396 = vmatprep.subr.bf16.mxu0 %v1064
      %1397 = vmatpush1.bf16.msra.mxu0 %v1063
      %1398 = vmatprep.subr.bf16.mxu0 %v1076
      %1399 = vmatpush1.bf16.msra.mxu0 %v1075
      %1400 = vmatprep.subr.bf16.mxu0 %v1088
      %1401 = vmatpush1.bf16.msra.mxu0 %v1087
      %1402 = vmatprep.subr.bf16.mxu0 %v1100
      %1403 = vmatpush1.bf16.msra.mxu0 %v1099
      %1404 = vmatprep.subr.bf16.mxu0 %v1112
      %1405 = vmatpush1.bf16.msra.mxu0 %v1111
      %1406 = vmatprep.subr.bf16.mxu0 %v1124
      %1407 = vmatpush1.bf16.msra.mxu0 %v1123
      %1408 = vmatprep.subr.bf16.mxu0 %v1136
      %1409 = vmatpush1.bf16.msra.mxu0 %v1135
      %1410 = vmatprep.mubr.bf16.mxu0 %v374
      %1411 = vmatmul.mubr.bf16.gmra.mrb[0].mxu0 %v373
      %v1412 = vpop.f32.mrb[0].mxu0
      %v1413 = vadd.f32 0.0, %v1412
      %v1414 = vpop.f32.mrb[0].mxu0
      %v1415 = vadd.f32 0.0, %v1414
      %v1416 = vpop.f32.mrb[0].mxu0
      %v1417 = vpop.f32.mrb[0].mxu0
      %1418 = vdwg.mxu0
      %1419 = vmatprep.subr.bf16.mxu0 %v958
      %1420 = vmatpush1.bf16.msra.mxu0 %v957
      %1421 = vmatprep.subr.bf16.mxu0 %v970
      %1422 = vmatpush1.bf16.msra.mxu0 %v969
      %1423 = vmatprep.subr.bf16.mxu0 %v982
      %1424 = vmatpush1.bf16.msra.mxu0 %v981
      %1425 = vmatprep.subr.bf16.mxu0 %v994
      %1426 = vmatpush1.bf16.msra.mxu0 %v993
      %1427 = vmatprep.subr.bf16.mxu0 %v1006
      %1428 = vmatpush1.bf16.msra.mxu0 %v1005
      %1429 = vmatprep.subr.bf16.mxu0 %v1018
      %1430 = vmatpush1.bf16.msra.mxu0 %v1017
      %1431 = vmatprep.subr.bf16.mxu0 %v1030
      %1432 = vmatpush1.bf16.msra.mxu0 %v1029
      %1433 = vmatprep.subr.bf16.mxu0 %v1042
      %1434 = vmatpush1.bf16.msra.mxu0 %v1041
      %1435 = vmatprep.subr.bf16.mxu0 %v1054
      %1436 = vmatpush1.bf16.msra.mxu0 %v1053
      %1437 = vmatprep.subr.bf16.mxu0 %v1066
      %1438 = vmatpush1.bf16.msra.mxu0 %v1065
      %1439 = vmatprep.subr.bf16.mxu0 %v1078
      %1440 = vmatpush1.bf16.msra.mxu0 %v1077
      %1441 = vmatprep.subr.bf16.mxu0 %v1090
      %1442 = vmatpush1.bf16.msra.mxu0 %v1089
      %1443 = vmatprep.subr.bf16.mxu0 %v1102
      %1444 = vmatpush1.bf16.msra.mxu0 %v1101
      %1445 = vmatprep.subr.bf16.mxu0 %v1114
      %1446 = vmatpush1.bf16.msra.mxu0 %v1113
      %1447 = vmatprep.subr.bf16.mxu0 %v1126
      %1448 = vmatpush1.bf16.msra.mxu0 %v1125
      %1449 = vmatprep.subr.bf16.mxu0 %v1138
      %1450 = vmatpush1.bf16.msra.mxu0 %v1137
      %1451 = vmatprep.mubr.bf16.mxu0 %v374
      %1452 = vmatmul.mubr.bf16.gmra.mrb[0].mxu0 %v373
      %v1453 = vpop.f32.mrb[0].mxu0
      %v1454 = vadd.f32 0.0, %v1453
      %v1455 = vpop.f32.mrb[0].mxu0
      %v1456 = vadd.f32 0.0, %v1455
      %v1457 = vpop.f32.mrb[0].mxu0
      %v1458 = vpop.f32.mrb[0].mxu0
      %1459 = vdwg.mxu0
      %1460 = vmatprep.subr.bf16.mxu0 %v960
      %1461 = vmatpush1.bf16.msra.mxu0 %v959
      %1462 = vmatprep.subr.bf16.mxu0 %v972
      %1463 = vmatpush1.bf16.msra.mxu0 %v971
      %1464 = vmatprep.subr.bf16.mxu0 %v984
      %1465 = vmatpush1.bf16.msra.mxu0 %v983
      %1466 = vmatprep.subr.bf16.mxu0 %v996
      %1467 = vmatpush1.bf16.msra.mxu0 %v995
      %1468 = vmatprep.subr.bf16.mxu0 %v1008
      %1469 = vmatpush1.bf16.msra.mxu0 %v1007
      %1470 = vmatprep.subr.bf16.mxu0 %v1020
      %1471 = vmatpush1.bf16.msra.mxu0 %v1019
      %1472 = vmatprep.subr.bf16.mxu0 %v1032
      %1473 = vmatpush1.bf16.msra.mxu0 %v1031
      %1474 = vmatprep.subr.bf16.mxu0 %v1044
      %1475 = vmatpush1.bf16.msra.mxu0 %v1043
      %1476 = vmatprep.subr.bf16.mxu0 %v1056
      %1477 = vmatpush1.bf16.msra.mxu0 %v1055
      %1478 = vmatprep.subr.bf16.mxu0 %v1068
      %1479 = vmatpush1.bf16.msra.mxu0 %v1067
      %1480 = vmatprep.subr.bf16.mxu0 %v1080
      %1481 = vmatpush1.bf16.msra.mxu0 %v1079
      %1482 = vmatprep.subr.bf16.mxu0 %v1092
      %1483 = vmatpush1.bf16.msra.mxu0 %v1091
      %1484 = vmatprep.subr.bf16.mxu0 %v1104
      %1485 = vmatpush1.bf16.msra.mxu0 %v1103
      %1486 = vmatprep.subr.bf16.mxu0 %v1116
      %1487 = vmatpush1.bf16.msra.mxu0 %v1115
      %1488 = vmatprep.subr.bf16.mxu0 %v1128
      %1489 = vmatpush1.bf16.msra.mxu0 %v1127
      %1490 = vmatprep.subr.bf16.mxu0 %v1140
      %1491 = vmatpush1.bf16.msra.mxu0 %v1139
      %1492 = vmatprep.mubr.bf16.mxu0 %v374
      %1493 = vmatmul.mubr.bf16.gmra.mrb[0].mxu0 %v373
      %v1494 = vpop.f32.mrb[0].mxu0
      %v1495 = vadd.f32 0.0, %v1494
      %v1496 = vpop.f32.mrb[0].mxu0
      %v1497 = vadd.f32 0.0, %v1496
      %v1498 = vpop.f32.mrb[0].mxu0
      %v1499 = vpop.f32.mrb[0].mxu0
      %1500 = vdwg.mxu0
      %1501 = vmatprep.subr.bf16.mxu0 %v962
      %1502 = vmatpush1.bf16.msra.mxu0 %v961
      %1503 = vmatprep.subr.bf16.mxu0 %v974
      %1504 = vmatpush1.bf16.msra.mxu0 %v973
      %1505 = vmatprep.subr.bf16.mxu0 %v986
      %1506 = vmatpush1.bf16.msra.mxu0 %v985
      %1507 = vmatprep.subr.bf16.mxu0 %v998
      %1508 = vmatpush1.bf16.msra.mxu0 %v997
      %1509 = vmatprep.subr.bf16.mxu0 %v1010
      %1510 = vmatpush1.bf16.msra.mxu0 %v1009
      %1511 = vmatprep.subr.bf16.mxu0 %v1022
      %1512 = vmatpush1.bf16.msra.mxu0 %v1021
      %1513 = vmatprep.subr.bf16.mxu0 %v1034
      %1514 = vmatpush1.bf16.msra.mxu0 %v1033
      %1515 = vmatprep.subr.bf16.mxu0 %v1046
      %1516 = vmatpush1.bf16.msra.mxu0 %v1045
      %1517 = vmatprep.subr.bf16.mxu0 %v1058
      %1518 = vmatpush1.bf16.msra.mxu0 %v1057
      %1519 = vmatprep.subr.bf16.mxu0 %v1070
      %1520 = vmatpush1.bf16.msra.mxu0 %v1069
      %1521 = vmatprep.subr.bf16.mxu0 %v1082
      %1522 = vmatpush1.bf16.msra.mxu0 %v1081
      %1523 = vmatprep.subr.bf16.mxu0 %v1094
      %1524 = vmatpush1.bf16.msra.mxu0 %v1093
      %1525 = vmatprep.subr.bf16.mxu0 %v1106
      %1526 = vmatpush1.bf16.msra.mxu0 %v1105
      %1527 = vmatprep.subr.bf16.mxu0 %v1118
      %1528 = vmatpush1.bf16.msra.mxu0 %v1117
      %1529 = vmatprep.subr.bf16.mxu0 %v1130
      %1530 = vmatpush1.bf16.msra.mxu0 %v1129
      %1531 = vmatprep.subr.bf16.mxu0 %v1142
      %1532 = vmatpush1.bf16.msra.mxu0 %v1141
      %1533 = vmatprep.mubr.bf16.mxu0 %v374
      %1534 = vmatmul.mubr.bf16.gmra.mrb[0].mxu0 %v373
      %v1535 = vpop.f32.mrb[0].mxu0
      %v1536 = vadd.f32 0.0, %v1535
      %v1537 = vpop.f32.mrb[0].mxu0
      %v1538 = vadd.f32 0.0, %v1537
      %v1539 = vpop.f32.mrb[0].mxu0
      %v1540 = vpop.f32.mrb[0].mxu0
      %1541 = vdwg.mxu0
      %1542 = vmatprep.subr.bf16.mxu0 %v964
      %1543 = vmatpush1.bf16.msra.mxu0 %v963
      %1544 = vmatprep.subr.bf16.mxu0 %v976
      %1545 = vmatpush1.bf16.msra.mxu0 %v975
      %1546 = vmatprep.subr.bf16.mxu0 %v988
      %1547 = vmatpush1.bf16.msra.mxu0 %v987
      %1548 = vmatprep.subr.bf16.mxu0 %v1000
      %1549 = vmatpush1.bf16.msra.mxu0 %v999
      %1550 = vmatprep.subr.bf16.mxu0 %v1012
      %1551 = vmatpush1.bf16.msra.mxu0 %v1011
      %1552 = vmatprep.subr.bf16.mxu0 %v1024
      %1553 = vmatpush1.bf16.msra.mxu0 %v1023
      %1554 = vmatprep.subr.bf16.mxu0 %v1036
      %1555 = vmatpush1.bf16.msra.mxu0 %v1035
      %1556 = vmatprep.subr.bf16.mxu0 %v1048
      %1557 = vmatpush1.bf16.msra.mxu0 %v1047
      %1558 = vmatprep.subr.bf16.mxu0 %v1060
      %1559 = vmatpush1.bf16.msra.mxu0 %v1059
      %1560 = vmatprep.subr.bf16.mxu0 %v1072
      %1561 = vmatpush1.bf16.msra.mxu0 %v1071
      %1562 = vmatprep.subr.bf16.mxu0 %v1084
      %1563 = vmatpush1.bf16.msra.mxu0 %v1083
      %1564 = vmatprep.subr.bf16.mxu0 %v1096
      %1565 = vmatpush1.bf16.msra.mxu0 %v1095
      %1566 = vmatprep.subr.bf16.mxu0 %v1108
      %1567 = vmatpush1.bf16.msra.mxu0 %v1107
      %1568 = vmatprep.subr.bf16.mxu0 %v1120
      %1569 = vmatpush1.bf16.msra.mxu0 %v1119
      %1570 = vmatprep.subr.bf16.mxu0 %v1132
      %1571 = vmatpush1.bf16.msra.mxu0 %v1131
      %1572 = vmatprep.subr.bf16.mxu0 %v1144
      %1573 = vmatpush1.bf16.msra.mxu0 %v1143
      %1574 = vmatprep.mubr.bf16.mxu0 %v374
      %1575 = vmatmul.mubr.bf16.gmra.mrb[0].mxu0 %v373
      %v1576 = vpop.f32.mrb[0].mxu0
      %v1577 = vadd.f32 0.0, %v1576
      %v1578 = vpop.f32.mrb[0].mxu0
      %v1579 = vadd.f32 0.0, %v1578
      %v1580 = vpop.f32.mrb[0].mxu0
      %v1581 = vpop.f32.mrb[0].mxu0
      %1582 = vdwg.mxu0
      %v1583 = vadd.f32 %v165, %v1372
      %v1584 = vadd.f32 %v166, %v1374
      %v1585 = vadd.f32 %v167, %v1413
      %v1586 = vadd.f32 %v168, %v1415
      %v1587 = vadd.f32 %v169, %v1454
      %v1588 = vadd.f32 %v170, %v1456
      %v1589 = vadd.f32 %v171, %v1495
      %v1590 = vadd.f32 %v172, %v1497
      %v1591 = vadd.f32 %v173, %v1536
      %v1592 = vadd.f32 %v174, %v1538
      %v1593 = vadd.f32 %v175, %v1577
      %v1594 = vadd.f32 %v176, %v1579
      %1595 = vst [vmem:[#allocation2] sm:$0xff] %v1583
      %1596 = vst [vmem:[#allocation2 + $0x8] sm:$0xff] %v1584
      %1597 = vst [vmem:[#allocation2 + $0x10] sm:$0xff] %v1585
      %1598 = vst [vmem:[#allocation2 + $0x18] sm:$0xff] %v1586
      %1599 = vst [vmem:[#allocation2 + $0x20] sm:$0xff] %v1587
      %1600 = vst [vmem:[#allocation2 + $0x28] sm:$0xff] %v1588
      %1601 = vst [vmem:[#allocation2 + $0x30] sm:$0xff] %v1589
      %1602 = vst [vmem:[#allocation2 + $0x38] sm:$0xff] %v1590
      %1603 = vst [vmem:[#allocation2 + $0x40] sm:$0xff] %v1591
      %1604 = vst [vmem:[#allocation2 + $0x48] sm:$0xff] %v1592
      %1605 = vst [vmem:[#allocation2 + $0x50] sm:$0xff] %v1593
      %1606 = vst [vmem:[#allocation2 + $0x58] sm:$0xff] %v1594
      %p1607 = scmp.eq.s32.totalorder %s13, 3
      // Predicated region
      $region33: #{ae_forward.8} parent=27 // pred_check
        %p1608 = pneg %p1607
      $region34: #{ae_forward.8} parent=27 // pred_check_branch
        %1610 = sbr.rel (%p1608) target = $region36
      $region35: #{ae_forward.8} parent=27 // pred_region
        %v1611 = vld [vmem:[#allocation2] sm:$0xff]
        %v1612 = vld [vmem:[#allocation2 + $0x8] sm:$0xff]
        %v1613 = vld [vmem:[#allocation2 + $0x10] sm:$0xff]
        %v1614 = vld [vmem:[#allocation2 + $0x18] sm:$0xff]
        %v1615 = vld [vmem:[#allocation2 + $0x20] sm:$0xff]
        %v1616 = vld [vmem:[#allocation2 + $0x28] sm:$0xff]
        %v1617 = vld [vmem:[#allocation2 + $0x30] sm:$0xff]
        %v1618 = vld [vmem:[#allocation2 + $0x38] sm:$0xff]
        %v1619 = vld [vmem:[#allocation2 + $0x40] sm:$0xff]
        %v1620 = vld [vmem:[#allocation2 + $0x48] sm:$0xff]
        %v1621 = vld [vmem:[#allocation2 + $0x50] sm:$0xff]
        %v1622 = vld [vmem:[#allocation2 + $0x58] sm:$0xff]
        %v1623 = vadd.f32 %v1611, %v1612
        %v1624 = vadd.f32 %v1623, %v1613
        %v1625 = vadd.f32 %v1624, %v1614
        %v1626 = vadd.f32 %v1625, %v1615
        %v1627 = vadd.f32 %v1626, %v1616
        %v1628 = vadd.f32 %v1627, %v1617
        %v1629 = vadd.f32 %v1628, %v1618
        %v1630 = vadd.f32 %v1629, %v1619
        %v1631 = vadd.f32 %v1630, %v1620
        %v1632 = vadd.f32 %v1631, %v1621
        %v1633 = vadd.f32 %v1632, %v1622
        %1634 = vadd.xlane.f32.xlu0 %v1633
        %v1635 = vpop.xlane.xlu0 %1634
        %v1636 = vmul.f32 %v1635, 0.00068587105
        %v1637 = vmul.f32 %v1611, %v1611
        %v1638 = vmul.f32 %v1612, %v1612
        %v1639 = vmul.f32 %v1613, %v1613
        %v1640 = vmul.f32 %v1614, %v1614
        %v1641 = vmul.f32 %v1615, %v1615
        %v1642 = vmul.f32 %v1616, %v1616
        %v1643 = vmul.f32 %v1617, %v1617
        %v1644 = vmul.f32 %v1618, %v1618
        %v1645 = vmul.f32 %v1619, %v1619
        %v1646 = vmul.f32 %v1620, %v1620
        %v1647 = vmul.f32 %v1621, %v1621
        %v1648 = vmul.f32 %v1622, %v1622
        %v1649 = vadd.f32 %v1637, %v1638
        %v1650 = vadd.f32 %v1649, %v1639
        %v1651 = vadd.f32 %v1650, %v1640
        %v1652 = vadd.f32 %v1651, %v1641
        %v1653 = vadd.f32 %v1652, %v1642
        %v1654 = vadd.f32 %v1653, %v1643
        %v1655 = vadd.f32 %v1654, %v1644
        %v1656 = vadd.f32 %v1655, %v1645
        %v1657 = vadd.f32 %v1656, %v1646
        %v1658 = vadd.f32 %v1657, %v1647
        %v1659 = vadd.f32 %v1658, %v1648
        %1660 = vadd.xlane.f32.xlu0 %v1659
        %v1661 = vpop.xlane.xlu0 %1660
        %v1662 = vmul.f32 %v1661, 0.00068587105
        %v1663 = vmul.f32 %v1636, %v1636
        %v1664 = vsub.f32 %v1662, %v1663
        %v1665 = vmax.f32 %v1664, 0.0
        %v1666 = vsub.f32 %v1611, %v1636
        %v1667 = vsub.f32 %v1612, %v1636
        %v1668 = vsub.f32 %v1613, %v1636
        %v1669 = vsub.f32 %v1614, %v1636
        %v1670 = vsub.f32 %v1615, %v1636
        %v1671 = vsub.f32 %v1616, %v1636
        %v1672 = vsub.f32 %v1617, %v1636
        %v1673 = vsub.f32 %v1618, %v1636
        %v1674 = vsub.f32 %v1619, %v1636
        %v1675 = vsub.f32 %v1620, %v1636
        %v1676 = vsub.f32 %v1621, %v1636
        %v1677 = vsub.f32 %v1622, %v1636
        %v1678 = vadd.f32 %v1665, 1e-05
        %v1679 = vrsqrt.pop %v1678
        %v1680 = vmul.f32 %v1666, %v1679
        %v1681 = vmul.f32 %v1667, %v1679
        %v1682 = vmul.f32 %v1668, %v1679
        %v1683 = vmul.f32 %v1669, %v1679
        %v1684 = vmul.f32 %v1670, %v1679
        %v1685 = vmul.f32 %v1671, %v1679
        %v1686 = vmul.f32 %v1672, %v1679
        %v1687 = vmul.f32 %v1673, %v1679
        %v1688 = vmul.f32 %v1674, %v1679
        %v1689 = vmul.f32 %v1675, %v1679
        %v1690 = vmul.f32 %v1676, %v1679
        %v1691 = vmul.f32 %v1677, %v1679
        %v1692 = vmax.f32 %v1680, 0.0
        %v1693 = vmax.f32 %v1681, 0.0
        %v1694 = vmax.f32 %v1682, 0.0
        %v1695 = vmax.f32 %v1683, 0.0
        %v1696 = vmax.f32 %v1684, 0.0
        %v1697 = vmax.f32 %v1685, 0.0
        %v1698 = vmax.f32 %v1686, 0.0
        %v1699 = vmax.f32 %v1687, 0.0
        %v1700 = vmax.f32 %v1688, 0.0
        %v1701 = vmax.f32 %v1689, 0.0
        %v1702 = vmax.f32 %v1690, 0.0
        %v1703 = vmax.f32 %v1691, 0.0
        %1704 = vst [vmem:[%s2] sm:$0xff] %v1692
        %1705 = vst [vmem:[%s2 + $0x8] sm:$0xff] %v1693
        %1706 = vst [vmem:[%s2 + $0x10] sm:$0xff] %v1694
        %1707 = vst [vmem:[%s2 + $0x18] sm:$0xff] %v1695
        %1708 = vst [vmem:[%s2 + $0x20] sm:$0xff] %v1696
        %1709 = vst [vmem:[%s2 + $0x28] sm:$0xff] %v1697
        %1710 = vst [vmem:[%s2 + $0x30] sm:$0xff] %v1698
        %1711 = vst [vmem:[%s2 + $0x38] sm:$0xff] %v1699
        %1712 = vst [vmem:[%s2 + $0x40] sm:$0xff] %v1700
        %1713 = vst [vmem:[%s2 + $0x48] sm:$0xff] %v1701
        %1714 = vst [vmem:[%s2 + $0x50] sm:$0xff] %v1702
        %1715 = vst [vmem:[%s2 + $0x58] sm:$0xff] %v1703
      $region36: #{ae_forward.8} parent=27 // pred_fallthru
        _
      // Predicated region
      $region37: #{ae_forward.8} parent=27 // pred_check
        %p1716 = pneg %p78
      $region38: #{ae_forward.8} parent=27 // pred_check_branch
        %1718 = sbr.rel (%p1716) target = $region40
      $region39: #{ae_forward.8} parent=27 // pred_region
        _
      $region40: #{ae_forward.8} parent=27 // pred_fallthru
        _
      // Predicated region
      $region41: #{ae_forward.8} parent=27 // pred_check
        %p1719 = pneg %p78
      $region42: #{ae_forward.8} parent=27 // pred_check_branch
        %1721 = sbr.rel (%p1719) target = $region44
      $region43: #{ae_forward.8} parent=27 // pred_region
        _
      $region44: #{ae_forward.8} parent=27 // pred_fallthru
        _
    $region28: #{ae_forward.8} parent=5 // pred_fallthru
      _
    %p1722 = scmp.le.s32.totalorder 2, %s8
    // Predicated region
    $region45: #{ae_forward.8} parent=5 // pred_check
      %p1723 = pneg %p1722
    $region46: #{ae_forward.8} parent=5 // pred_check_branch
      %1725 = sbr.rel (%p1723) target = $region48
    $region47: #{ae_forward.8} parent=5 // pred_region
      %s1726 = ssub.s32 %s8, 2
    $region48: #{ae_forward.8} parent=5 // pred_fallthru
      _
  $region6: #{ae_forward.8} parent=0 // loop_footer
    %s12 = sadd.s32 1, %s8
  $region7: #{ae_forward.8} parent=0 // loop_footer_branch
    %7 = sbr.rel target = $region3
  $region8: #{ae_forward.8} parent=0 // loop_exit
    _

// kernel: ae_forward.9
$region0: #{ae_forward.9}
  #allocation0 [shape = 'u32[]', space=smem, size = 0x4, offset = 0x4, fixed_abs, tag = 'smem constant byte address 0x4 - core index']
  #allocation1 [shape = 'u32[144,128]{1,0:T(1,128)}', space=vmem, size = 0x12000, scoped, tag = 'internal scratch']
  #allocation2 [shape = 'f32[16,768]{1,0:T(8,128)}', space=vmem, size = 0xc000, scoped, tag = 'scratch operand']
  %s0 = inlined_call_operand.vmem [shape: bf16[3,144,768], index: 0, kind: input, shape index: {}]
  %s1 = inlined_call_operand.vmem [shape: bf16[3,16,144], index: 1, kind: input, shape index: {}]
  %s2 = inlined_call_operand.vmem [shape: f32[16,768], index: 2, kind: output, shape index: {}]
  %s3 = sld [smem:[#allocation0]]
  $region49: #{ae_forward.9} parent=0
    _
  %s5 = ssub.s32 1, %s3
  %s6 = scalar_select 0, %s5, %s3
  loop: start=0, step=1, limit=5
  $region2: #{ae_forward.9} parent=0 // loop_pre_header
    _
  $region3: #{ae_forward.9} parent=0 // loop_header
    %s8 = sphi 0, %s12
    %p9 = scmp.ge.s32.totalorder %s8, 5
    %s18 = sphi 0, %s20
    %s21 = sphi 0, %s18
    %s22 = sphi 0, %s21
    %s38 = sphi 0, %s22
    %s44 = sphi 0, %s46
    %s47 = sphi 0, %s44
    %s48 = sphi 0, %s47
    %s64 = sphi 0, %s48
    %s68 = sphi 0, %s68
    %s70 = sphi 0, %s68
    %s71 = sphi 0, %s70
    %s85 = sphi 0, %s71
  $region4: #{ae_forward.9} parent=0 // loop_header_branch
    %11 = sbr.rel (%p9) target = $region8
  $region5: #{ae_forward.9} parent=0 // loop_body
    %s13 = ssub.s32 %s8, 1
    %s14 = ssub.s32 %s8, 2
    %s15 = sadd.s32 %s8, 1
    %s16 = ssub.s32 %s8, %s15
    %p17 = scmp.eq.s32.totalorder %s16, 0
    %s19 = sadd.s32 %s18, 1
    %s20 = scalar_select %p17, %s18, %s19
    %p23 = pneg %p17
    %p24 = scmp.eq.s32.totalorder %s8, 2
    %p25 = por %p23, %p24
    %p26 = scmp.ne.s32.totalorder %s18, %s21
    %p27 = scmp.eq.s32.totalorder %s8, 0
    %p28 = por %p26, %p27
    %p29 = scmp.ne.s32.totalorder %s18, %s21
    %p30 = scmp.eq.s32.totalorder %s13, 2
    %p31 = por %p29, %p30
    %p32 = scmp.ne.s32.totalorder %s21, %s22
    %p33 = scmp.eq.s32.totalorder %s13, 0
    %p34 = por %p32, %p33
    %p35 = scmp.ne.s32.totalorder %s21, %s22
    %p36 = scmp.eq.s32.totalorder %s14, 2
    %p37 = por %p35, %p36
    %p39 = scmp.ne.s32.totalorder %s22, %s38
    %p40 = scmp.eq.s32.totalorder %s14, 0
    %p41 = por %p39, %p40
    %s42 = ssub.s32 %s8, %s15
    %p43 = scmp.eq.s32.totalorder %s42, 0
    %s45 = sadd.s32 %s44, 1
    %s46 = scalar_select %p43, %s44, %s45
    %p49 = pneg %p43
    %p50 = scmp.eq.s32.totalorder %s8, 2
    %p51 = por %p49, %p50
    %p52 = scmp.ne.s32.totalorder %s44, %s47
    %p53 = scmp.eq.s32.totalorder %s8, 0
    %p54 = por %p52, %p53
    %p55 = scmp.ne.s32.totalorder %s44, %s47
    %p56 = scmp.eq.s32.totalorder %s13, 2
    %p57 = por %p55, %p56
    %p58 = scmp.ne.s32.totalorder %s47, %s48
    %p59 = scmp.eq.s32.totalorder %s13, 0
    %p60 = por %p58, %p59
    %p61 = scmp.ne.s32.totalorder %s47, %s48
    %p62 = scmp.eq.s32.totalorder %s14, 2
    %p63 = por %p61, %p62
    %p65 = scmp.ne.s32.totalorder %s48, %s64
    %p66 = scmp.eq.s32.totalorder %s14, 0
    %p67 = por %p65, %p66
    %s69 = sadd.s32 %s68, 1
    %p72 = scmp.eq.s32.totalorder %s8, 2
    %p73 = scmp.ne.s32.totalorder %s68, %s70
    %p74 = scmp.eq.s32.totalorder %s8, 0
    %p75 = por %p73, %p74
    %p76 = scmp.ne.s32.totalorder %s68, %s70
    %p77 = scmp.eq.s32.totalorder %s13, 2
    %p78 = por %p76, %p77
    %p79 = scmp.ne.s32.totalorder %s70, %s71
    %p80 = scmp.eq.s32.totalorder %s13, 0
    %p81 = por %p79, %p80
    %p82 = scmp.ne.s32.totalorder %s70, %s71
    %p83 = scmp.eq.s32.totalorder %s14, 2
    %p84 = por %p82, %p83
    %p86 = scmp.ne.s32.totalorder %s71, %s85
    %p87 = scmp.eq.s32.totalorder %s14, 0
    %p88 = por %p86, %p87
    %p89 = scmp.le.s32.totalorder 1, %s8
    %p90 = scmp.lt.s32.totalorder %s8, 4
    %p91 = pnand %p89, %p90
    %p92 = pneg %p91
    // Predicated region
    $region9: #{ae_forward.9} parent=5 // pred_check
      _
    $region10: #{ae_forward.9} parent=5 // pred_check_branch
      %94 = sbr.rel (%p91) target = $region12
    $region11: #{ae_forward.9} parent=5 // pred_region
      %s95 = ssub.s32 %s8, 1
    $region12: #{ae_forward.9} parent=5 // pred_fallthru
      _
    %p96 = scmp.lt.s32.totalorder %s8, 3
    // Predicated region
    $region13: #{ae_forward.9} parent=5 // pred_check
      %p97 = pneg %p96
    $region14: #{ae_forward.9} parent=5 // pred_check_branch
      %99 = sbr.rel (%p97) target = $region16
    $region15: #{ae_forward.9} parent=5 // pred_region
      // Predicated region
      $region17: #{ae_forward.9} parent=15 // pred_check
        %p100 = pneg %p28
      $region18: #{ae_forward.9} parent=15 // pred_check_branch
        %102 = sbr.rel (%p100) target = $region20
      $region19: #{ae_forward.9} parent=15 // pred_region
        %p103 = scmp.lt.s32.totalorder %s8, 2
        %s104 = scalar_select %p103, %s8, 2
        %s105 = smul.addr %s104, 108
        %s106 = smul.addr %s105, 4
        %s107 = scalar_lea.vmem %s0, %s106
      $region20: #{ae_forward.9} parent=15 // pred_fallthru
        _
      // Predicated region
      $region21: #{ae_forward.9} parent=15 // pred_check
        %p108 = pneg %p54
      $region22: #{ae_forward.9} parent=15 // pred_check_branch
        %110 = sbr.rel (%p108) target = $region24
      $region23: #{ae_forward.9} parent=15 // pred_region
        %p111 = scmp.lt.s32.totalorder %s8, 2
        %s112 = scalar_select %p111, %s8, 2
        %s113 = smul.addr %s112, 4
        %s114 = smul.addr %s113, 4
        %s115 = scalar_lea.vmem %s1, %s114
      $region24: #{ae_forward.9} parent=15 // pred_fallthru
        _
    $region16: #{ae_forward.9} parent=5 // pred_fallthru
      _
    %p116 = scmp.le.s32.totalorder 1, %s8
    %p117 = scmp.lt.s32.totalorder %s8, 4
    %p118 = pnand %p116, %p117
    %p119 = pneg %p118
    // Predicated region
    $region25: #{ae_forward.9} parent=5 // pred_check
      _
    $region26: #{ae_forward.9} parent=5 // pred_check_branch
      %121 = sbr.rel (%p118) target = $region28
    $region27: #{ae_forward.9} parent=5 // pred_region
      %s122 = ssub.s32 %s8, 1
      %p123 = scmp.lt.s32.totalorder %s13, 2
      %s124 = scalar_select %p123, %s13, 2
      %s125 = smul.addr %s124, 108
      %s126 = smul.addr %s125, 4
      %s127 = scalar_lea.vmem %s0, %s126
      %p128 = pneg %p34
      %p129 = pneg %p31
      %p130 = scmp.lt.s32.totalorder %s13, 2
      %s131 = scalar_select %p130, %s13, 2
      %s132 = smul.addr %s131, 4
      %s133 = smul.addr %s132, 4
      %s134 = scalar_lea.vmem %s1, %s133
      %p135 = pneg %p60
      %p136 = pneg %p57
      %p137 = pneg %p81
      %p138 = pneg %p78
      %p139 = scmp.lt.s32.totalorder %s13, 2
      %s140 = scalar_select %p139, %s13, 2
      %s141 = smul.addr %s140, 108
      %s142 = smul.addr %s141, 4
      %s143 = scalar_lea.vmem %s0, %s142
      %p144 = scmp.lt.s32.totalorder %s13, 2
      %s145 = scalar_select %p144, %s13, 2
      %s146 = smul.addr %s145, 4
      %s147 = smul.addr %s146, 4
      %s148 = scalar_lea.vmem %s1, %s147
      %p150 = scmp.eq.s32.totalorder %s13, 0
      // Predicated region
      $region29: #{ae_forward.9} parent=27 // pred_check
        %p151 = pneg %p150
      $region30: #{ae_forward.9} parent=27 // pred_check_branch
        %153 = sbr.rel (%p151) target = $region32
      $region31: #{ae_forward.9} parent=27 // pred_region
        %154 = vst [vmem:[#allocation2] sm:$0xff] 0.0
        %155 = vst [vmem:[#allocation2 + $0x8] sm:$0xff] 0.0
        %156 = vst [vmem:[#allocation2 + $0x10] sm:$0xff] 0.0
        %157 = vst [vmem:[#allocation2 + $0x18] sm:$0xff] 0.0
        %158 = vst [vmem:[#allocation2 + $0x20] sm:$0xff] 0.0
        %159 = vst [vmem:[#allocation2 + $0x28] sm:$0xff] 0.0
        %160 = vst [vmem:[#allocation2 + $0x30] sm:$0xff] 0.0
        %161 = vst [vmem:[#allocation2 + $0x38] sm:$0xff] 0.0
        %162 = vst [vmem:[#allocation2 + $0x40] sm:$0xff] 0.0
        %163 = vst [vmem:[#allocation2 + $0x48] sm:$0xff] 0.0
        %164 = vst [vmem:[#allocation2 + $0x50] sm:$0xff] 0.0
        %165 = vst [vmem:[#allocation2 + $0x58] sm:$0xff] 0.0
      $region32: #{ae_forward.9} parent=27 // pred_fallthru
        _
      %v166 = vld [vmem:[#allocation2] sm:$0xff]
      %v167 = vld [vmem:[#allocation2 + $0x8] sm:$0xff]
      %v168 = vld [vmem:[#allocation2 + $0x10] sm:$0xff]
      %v169 = vld [vmem:[#allocation2 + $0x18] sm:$0xff]
      %v170 = vld [vmem:[#allocation2 + $0x20] sm:$0xff]
      %v171 = vld [vmem:[#allocation2 + $0x28] sm:$0xff]
      %v172 = vld [vmem:[#allocation2 + $0x30] sm:$0xff]
      %v173 = vld [vmem:[#allocation2 + $0x38] sm:$0xff]
      %v174 = vld [vmem:[#allocation2 + $0x40] sm:$0xff]
      %v175 = vld [vmem:[#allocation2 + $0x48] sm:$0xff]
      %v176 = vld [vmem:[#allocation2 + $0x50] sm:$0xff]
      %v177 = vld [vmem:[#allocation2 + $0x58] sm:$0xff]
      %v178 = vld [vmem:[%s148] sm:$0xff]
      %v179 = vld [vmem:[%s148 + $0x8] sm:$0xff]
      %v180 = vld [vmem:[%s143] sm:$0xff]
      %v181 = vld [vmem:[%s143 + $0x8] sm:$0xff]
      %v182 = vld [vmem:[%s143 + $0x10] sm:$0xff]
      %v183 = vld [vmem:[%s143 + $0x18] sm:$0xff]
      %v184 = vld [vmem:[%s143 + $0x20] sm:$0xff]
      %v185 = vld [vmem:[%s143 + $0x28] sm:$0xff]
      %v186 = vld [vmem:[%s143 + $0x30] sm:$0xff]
      %v187 = vld [vmem:[%s143 + $0x38] sm:$0xff]
      %v188 = vld [vmem:[%s143 + $0x40] sm:$0xff]
      %v189 = vld [vmem:[%s143 + $0x48] sm:$0xff]
      %v190 = vld [vmem:[%s143 + $0x50] sm:$0xff]
      %v191 = vld [vmem:[%s143 + $0x58] sm:$0xff]
      %v192 = vld [vmem:[%s143 + $0x60] sm:$0xff]
      %v193 = vld [vmem:[%s143 + $0x68] sm:$0xff]
      %v194 = vld [vmem:[%s143 + $0x70] sm:$0xff]
      %v195 = vld [vmem:[%s143 + $0x78] sm:$0xff]
      %v196 = vld [vmem:[%s143 + $0x80] sm:$0xff]
      %v197 = vld [vmem:[%s143 + $0x88] sm:$0xff]
      %v198 = vld [vmem:[%s143 + $0x90] sm:$0xff]
      %v199 = vld [vmem:[%s143 + $0x98] sm:$0xff]
      %v200 = vld [vmem:[%s143 + $0xa0] sm:$0xff]
      %v201 = vld [vmem:[%s143 + $0xa8] sm:$0xff]
      %v202 = vld [vmem:[%s143 + $0xb0] sm:$0xff]
      %v203 = vld [vmem:[%s143 + $0xb8] sm:$0xff]
      %v204 = vld [vmem:[%s143 + $0xc0] sm:$0xff]
      %v205 = vld [vmem:[%s143 + $0xc8] sm:$0xff]
      %v206 = vld [vmem:[%s143 + $0xd0] sm:$0xff]
      %v207 = vld [vmem:[%s143 + $0xd8] sm:$0xff]
      %v208 = vld [vmem:[%s143 + $0xe0] sm:$0xff]
      %v209 = vld [vmem:[%s143 + $0xe8] sm:$0xff]
      %v210 = vld [vmem:[%s143 + $0xf0] sm:$0xff]
      %v211 = vld [vmem:[%s143 + $0xf8] sm:$0xff]
      %v212 = vld [vmem:[%s143 + $0x100] sm:$0xff]
      %v213 = vld [vmem:[%s143 + $0x108] sm:$0xff]
      %v214 = vld [vmem:[%s143 + $0x110] sm:$0xff]
      %v215 = vld [vmem:[%s143 + $0x118] sm:$0xff]
      %v216 = vld [vmem:[%s143 + $0x120] sm:$0xff]
      %v217 = vld [vmem:[%s143 + $0x128] sm:$0xff]
      %v218 = vld [vmem:[%s143 + $0x130] sm:$0xff]
      %v219 = vld [vmem:[%s143 + $0x138] sm:$0xff]
      %v220 = vld [vmem:[%s143 + $0x140] sm:$0xff]
      %v221 = vld [vmem:[%s143 + $0x148] sm:$0xff]
      %v222 = vld [vmem:[%s143 + $0x150] sm:$0xff]
      %v223 = vld [vmem:[%s143 + $0x158] sm:$0xff]
      %v224 = vld [vmem:[%s143 + $0x160] sm:$0xff]
      %v225 = vld [vmem:[%s143 + $0x168] sm:$0xff]
      %v226 = vld [vmem:[%s143 + $0x170] sm:$0xff]
      %v227 = vld [vmem:[%s143 + $0x178] sm:$0xff]
      %v228 = vld [vmem:[%s143 + $0x180] sm:$0xff]
      %v229 = vld [vmem:[%s143 + $0x188] sm:$0xff]
      %v230 = vld [vmem:[%s143 + $0x190] sm:$0xff]
      %v231 = vld [vmem:[%s143 + $0x198] sm:$0xff]
      %v232 = vld [vmem:[%s143 + $0x1a0] sm:$0xff]
      %v233 = vld [vmem:[%s143 + $0x1a8] sm:$0xff]
      %v236 = vunpack.c.l.b16 %v178
      %v237 = vunpack.c.h.b16 %v178
      %v238 = vunpack.c.l.b16 %v179
      %v239 = vunpack.c.h.b16 %v179
      %v240 = vpack.c.b16 %v238, %v236
      %v241 = vpack.c.b16 %v239, %v237
      %v297 = vunpack.c.l.b16 %v180
      %v298 = vunpack.c.h.b16 %v180
      %v299 = vunpack.c.l.b16 %v181
      %v300 = vunpack.c.h.b16 %v181
      %v301 = vunpack.c.l.b16 %v182
      %v302 = vunpack.c.h.b16 %v182
      %v303 = vunpack.c.l.b16 %v183
      %v304 = vunpack.c.h.b16 %v183
      %v305 = vunpack.c.l.b16 %v184
      %v306 = vunpack.c.h.b16 %v184
      %v307 = vunpack.c.l.b16 %v185
      %v308 = vunpack.c.h.b16 %v185
      %v309 = vunpack.c.l.b16 %v186
      %v310 = vunpack.c.h.b16 %v186
      %v311 = vunpack.c.l.b16 %v187
      %v312 = vunpack.c.h.b16 %v187
      %v313 = vunpack.c.l.b16 %v188
      %v314 = vunpack.c.h.b16 %v188
      %v315 = vunpack.c.l.b16 %v189
      %v316 = vunpack.c.h.b16 %v189
      %v317 = vunpack.c.l.b16 %v190
      %v318 = vunpack.c.h.b16 %v190
      %v319 = vunpack.c.l.b16 %v191
      %v320 = vunpack.c.h.b16 %v191
      %v321 = vunpack.c.l.b16 %v192
      %v322 = vunpack.c.h.b16 %v192
      %v323 = vunpack.c.l.b16 %v193
      %v324 = vunpack.c.h.b16 %v193
      %v325 = vunpack.c.l.b16 %v194
      %v326 = vunpack.c.h.b16 %v194
      %v327 = vunpack.c.l.b16 %v195
      %v328 = vunpack.c.h.b16 %v195
      %v329 = vunpack.c.l.b16 %v196
      %v330 = vunpack.c.h.b16 %v196
      %v331 = vunpack.c.l.b16 %v197
      %v332 = vunpack.c.h.b16 %v197
      %v333 = vunpack.c.l.b16 %v198
      %v334 = vunpack.c.h.b16 %v198
      %v335 = vunpack.c.l.b16 %v199
      %v336 = vunpack.c.h.b16 %v199
      %v337 = vunpack.c.l.b16 %v200
      %v338 = vunpack.c.h.b16 %v200
      %v339 = vunpack.c.l.b16 %v201
      %v340 = vunpack.c.h.b16 %v201
      %v341 = vunpack.c.l.b16 %v202
      %v342 = vunpack.c.h.b16 %v202
      %v343 = vunpack.c.l.b16 %v203
      %v344 = vunpack.c.h.b16 %v203
      %v345 = vunpack.c.l.b16 %v204
      %v346 = vunpack.c.h.b16 %v204
      %v347 = vunpack.c.l.b16 %v205
      %v348 = vunpack.c.h.b16 %v205
      %v349 = vunpack.c.l.b16 %v206
      %v350 = vunpack.c.h.b16 %v206
      %v351 = vunpack.c.l.b16 %v207
      %v352 = vunpack.c.h.b16 %v207
      %v353 = vunpack.c.l.b16 %v208
      %v354 = vunpack.c.h.b16 %v208
      %v355 = vunpack.c.l.b16 %v209
      %v356 = vunpack.c.h.b16 %v209
      %v357 = vunpack.c.l.b16 %v210
      %v358 = vunpack.c.h.b16 %v210
      %v359 = vunpack.c.l.b16 %v211
      %v360 = vunpack.c.h.b16 %v211
      %v361 = vunpack.c.l.b16 %v212
      %v362 = vunpack.c.h.b16 %v212
      %v363 = vunpack.c.l.b16 %v213
      %v364 = vunpack.c.h.b16 %v213
      %v365 = vunpack.c.l.b16 %v214
      %v366 = vunpack.c.h.b16 %v214
      %v367 = vunpack.c.l.b16 %v215
      %v368 = vunpack.c.h.b16 %v215
      %v369 = vunpack.c.l.b16 %v216
      %v370 = vunpack.c.h.b16 %v216
      %v371 = vunpack.c.l.b16 %v217
      %v372 = vunpack.c.h.b16 %v217
      %v373 = vunpack.c.l.b16 %v218
      %v374 = vunpack.c.h.b16 %v218
      %v375 = vunpack.c.l.b16 %v219
      %v376 = vunpack.c.h.b16 %v219
      %v377 = vunpack.c.l.b16 %v220
      %v378 = vunpack.c.h.b16 %v220
      %v379 = vunpack.c.l.b16 %v221
      %v380 = vunpack.c.h.b16 %v221
      %v381 = vunpack.c.l.b16 %v222
      %v382 = vunpack.c.h.b16 %v222
      %v383 = vunpack.c.l.b16 %v223
      %v384 = vunpack.c.h.b16 %v223
      %v385 = vunpack.c.l.b16 %v224
      %v386 = vunpack.c.h.b16 %v224
      %v387 = vunpack.c.l.b16 %v225
      %v388 = vunpack.c.h.b16 %v225
      %v389 = vunpack.c.l.b16 %v226
      %v390 = vunpack.c.h.b16 %v226
      %v391 = vunpack.c.l.b16 %v227
      %v392 = vunpack.c.h.b16 %v227
      %v393 = vunpack.c.l.b16 %v228
      %v394 = vunpack.c.h.b16 %v228
      %v395 = vunpack.c.l.b16 %v229
      %v396 = vunpack.c.h.b16 %v229
      %v397 = vunpack.c.l.b16 %v230
      %v398 = vunpack.c.h.b16 %v230
      %v399 = vunpack.c.l.b16 %v231
      %v400 = vunpack.c.h.b16 %v231
      %v401 = vunpack.c.l.b16 %v232
      %v402 = vunpack.c.h.b16 %v232
      %v403 = vunpack.c.l.b16 %v233
      %v404 = vunpack.c.h.b16 %v233
      %v405 = vpack.c.b16 %v303, %v297
      %v406 = vpack.c.b16 %v304, %v298
      %v407 = vpack.c.b16 %v305, %v299
      %v408 = vpack.c.b16 %v306, %v300
      %v409 = vpack.c.b16 %v307, %v301
      %v410 = vpack.c.b16 %v308, %v302
      %v411 = vpack.c.b16 %v315, %v309
      %v412 = vpack.c.b16 %v316, %v310
      %v413 = vpack.c.b16 %v317, %v311
      %v414 = vpack.c.b16 %v318, %v312
      %v415 = vpack.c.b16 %v319, %v313
      %v416 = vpack.c.b16 %v320, %v314
      %v417 = vpack.c.b16 %v327, %v321
      %v418 = vpack.c.b16 %v328, %v322
      %v419 = vpack.c.b16 %v329, %v323
      %v420 = vpack.c.b16 %v330, %v324
      %v421 = vpack.c.b16 %v331, %v325
      %v422 = vpack.c.b16 %v332, %v326
      %v423 = vpack.c.b16 %v339, %v333
      %v424 = vpack.c.b16 %v340, %v334
      %v425 = vpack.c.b16 %v341, %v335
      %v426 = vpack.c.b16 %v342, %v336
      %v427 = vpack.c.b16 %v343, %v337
      %v428 = vpack.c.b16 %v344, %v338
      %v429 = vpack.c.b16 %v351, %v345
      %v430 = vpack.c.b16 %v352, %v346
      %v431 = vpack.c.b16 %v353, %v347
      %v432 = vpack.c.b16 %v354, %v348
      %v433 = vpack.c.b16 %v355, %v349
      %v434 = vpack.c.b16 %v356, %v350
      %v435 = vpack.c.b16 %v363, %v357
      %v436 = vpack.c.b16 %v364, %v358
      %v437 = vpack.c.b16 %v365, %v359
      %v438 = vpack.c.b16 %v366, %v360
      %v439 = vpack.c.b16 %v367, %v361
      %v440 = vpack.c.b16 %v368, %v362
      %v441 = vpack.c.b16 %v375, %v369
      %v442 = vpack.c.b16 %v376, %v370
      %v443 = vpack.c.b16 %v377, %v371
      %v444 = vpack.c.b16 %v378, %v372
      %v445 = vpack.c.b16 %v379, %v373
      %v446 = vpack.c.b16 %v380, %v374
      %v447 = vpack.c.b16 %v387, %v381
      %v448 = vpack.c.b16 %v388, %v382
      %v449 = vpack.c.b16 %v389, %v383
      %v450 = vpack.c.b16 %v390, %v384
      %v451 = vpack.c.b16 %v391, %v385
      %v452 = vpack.c.b16 %v392, %v386
      %v453 = vpack.c.b16 %v399, %v393
      %v454 = vpack.c.b16 %v400, %v394
      %v455 = vpack.c.b16 %v401, %v395
      %v456 = vpack.c.b16 %v402, %v396
      %v457 = vpack.c.b16 %v403, %v397
      %v458 = vpack.c.b16 %v404, %v398
      %vm513 = vcmask 130048
      %v515 = vsel %vm513, %v241, 0
      %517 = vmatprep.subr.bf16.mxu0 %v406
      %518 = vmatpush1.bf16.msra.mxu0 %v405
      %519 = vmatprep.subr.bf16.mxu0 %v412
      %520 = vmatpush1.bf16.msra.mxu0 %v411
      %521 = vmatprep.subr.bf16.mxu0 %v418
      %522 = vmatpush1.bf16.msra.mxu0 %v417
      %523 = vmatprep.subr.bf16.mxu0 %v424
      %524 = vmatpush1.bf16.msra.mxu0 %v423
      %525 = vmatprep.subr.bf16.mxu0 %v430
      %526 = vmatpush1.bf16.msra.mxu0 %v429
      %527 = vmatprep.subr.bf16.mxu0 %v436
      %528 = vmatpush1.bf16.msra.mxu0 %v435
      %529 = vmatprep.subr.bf16.mxu0 %v442
      %530 = vmatpush1.bf16.msra.mxu0 %v441
      %531 = vmatprep.subr.bf16.mxu0 %v448
      %532 = vmatpush1.bf16.msra.mxu0 %v447
      %533 = vmatprep.subr.bf16.mxu0 %v454
      %534 = vmatpush1.bf16.msra.mxu0 %v453
      %535 = vmatprep.subr.bf16.mxu0 0
      %536 = vmatpush1.bf16.msra.mxu0 0
      %537 = vmatprep.subr.bf16.mxu0 0
      %538 = vmatpush1.bf16.msra.mxu0 0
      %539 = vmatprep.subr.bf16.mxu0 0
      %540 = vmatpush1.bf16.msra.mxu0 0
      %541 = vmatprep.subr.bf16.mxu0 0
      %542 = vmatpush1.bf16.msra.mxu0 0
      %543 = vmatprep.subr.bf16.mxu0 0
      %544 = vmatpush1.bf16.msra.mxu0 0
      %545 = vmatprep.subr.bf16.mxu0 0
      %546 = vmatpush1.bf16.msra.mxu0 0
      %547 = vmatprep.subr.bf16.mxu0 0
      %548 = vmatpush1.bf16.msra.mxu0 0
      %549 = vmatprep.mubr.bf16.mxu0 %v515
      %550 = vmatmul.mubr.bf16.gmra.mrb[0].mxu0 %v240
      %v551 = vpop.f32.mrb[0].mxu0
      %v552 = vadd.f32 0.0, %v551
      %v553 = vpop.f32.mrb[0].mxu0
      %v554 = vadd.f32 0.0, %v553
      %v555 = vpop.f32.mrb[0].mxu0
      %v556 = vadd.f32 0.0, %v555
      %v557 = vpop.f32.mrb[0].mxu0
      %v558 = vadd.f32 0.0, %v557
      %559 = vdwg.mxu0
      %560 = vmatprep.subr.bf16.mxu0 %v408
      %561 = vmatpush1.bf16.msra.mxu0 %v407
      %562 = vmatprep.subr.bf16.mxu0 %v414
      %563 = vmatpush1.bf16.msra.mxu0 %v413
      %564 = vmatprep.subr.bf16.mxu0 %v420
      %565 = vmatpush1.bf16.msra.mxu0 %v419
      %566 = vmatprep.subr.bf16.mxu0 %v426
      %567 = vmatpush1.bf16.msra.mxu0 %v425
      %568 = vmatprep.subr.bf16.mxu0 %v432
      %569 = vmatpush1.bf16.msra.mxu0 %v431
      %570 = vmatprep.subr.bf16.mxu0 %v438
      %571 = vmatpush1.bf16.msra.mxu0 %v437
      %572 = vmatprep.subr.bf16.mxu0 %v444
      %573 = vmatpush1.bf16.msra.mxu0 %v443
      %574 = vmatprep.subr.bf16.mxu0 %v450
      %575 = vmatpush1.bf16.msra.mxu0 %v449
      %576 = vmatprep.subr.bf16.mxu0 %v456
      %577 = vmatpush1.bf16.msra.mxu0 %v455
      %578 = vmatprep.subr.bf16.mxu0 0
      %579 = vmatpush1.bf16.msra.mxu0 0
      %580 = vmatprep.subr.bf16.mxu0 0
      %581 = vmatpush1.bf16.msra.mxu0 0
      %582 = vmatprep.subr.bf16.mxu0 0
      %583 = vmatpush1.bf16.msra.mxu0 0
      %584 = vmatprep.subr.bf16.mxu0 0
      %585 = vmatpush1.bf16.msra.mxu0 0
      %586 = vmatprep.subr.bf16.mxu0 0
      %587 = vmatpush1.bf16.msra.mxu0 0
      %588 = vmatprep.subr.bf16.mxu0 0
      %589 = vmatpush1.bf16.msra.mxu0 0
      %590 = vmatprep.subr.bf16.mxu0 0
      %591 = vmatpush1.bf16.msra.mxu0 0
      %592 = vmatprep.mubr.bf16.mxu0 %v515
      %593 = vmatmul.mubr.bf16.gmra.mrb[0].mxu0 %v240
      %v594 = vpop.f32.mrb[0].mxu0
      %v595 = vadd.f32 0.0, %v594
      %v596 = vpop.f32.mrb[0].mxu0
      %v597 = vadd.f32 0.0, %v596
      %v598 = vpop.f32.mrb[0].mxu0
      %v599 = vadd.f32 0.0, %v598
      %v600 = vpop.f32.mrb[0].mxu0
      %v601 = vadd.f32 0.0, %v600
      %602 = vdwg.mxu0
      %603 = vmatprep.subr.bf16.mxu0 %v410
      %604 = vmatpush1.bf16.msra.mxu0 %v409
      %605 = vmatprep.subr.bf16.mxu0 %v416
      %606 = vmatpush1.bf16.msra.mxu0 %v415
      %607 = vmatprep.subr.bf16.mxu0 %v422
      %608 = vmatpush1.bf16.msra.mxu0 %v421
      %609 = vmatprep.subr.bf16.mxu0 %v428
      %610 = vmatpush1.bf16.msra.mxu0 %v427
      %611 = vmatprep.subr.bf16.mxu0 %v434
      %612 = vmatpush1.bf16.msra.mxu0 %v433
      %613 = vmatprep.subr.bf16.mxu0 %v440
      %614 = vmatpush1.bf16.msra.mxu0 %v439
      %615 = vmatprep.subr.bf16.mxu0 %v446
      %616 = vmatpush1.bf16.msra.mxu0 %v445
      %617 = vmatprep.subr.bf16.mxu0 %v452
      %618 = vmatpush1.bf16.msra.mxu0 %v451
      %619 = vmatprep.subr.bf16.mxu0 %v458
      %620 = vmatpush1.bf16.msra.mxu0 %v457
      %621 = vmatprep.subr.bf16.mxu0 0
      %622 = vmatpush1.bf16.msra.mxu0 0
      %623 = vmatprep.subr.bf16.mxu0 0
      %624 = vmatpush1.bf16.msra.mxu0 0
      %625 = vmatprep.subr.bf16.mxu0 0
      %626 = vmatpush1.bf16.msra.mxu0 0
      %627 = vmatprep.subr.bf16.mxu0 0
      %628 = vmatpush1.bf16.msra.mxu0 0
      %629 = vmatprep.subr.bf16.mxu0 0
      %630 = vmatpush1.bf16.msra.mxu0 0
      %631 = vmatprep.subr.bf16.mxu0 0
      %632 = vmatpush1.bf16.msra.mxu0 0
      %633 = vmatprep.subr.bf16.mxu0 0
      %634 = vmatpush1.bf16.msra.mxu0 0
      %635 = vmatprep.mubr.bf16.mxu0 %v515
      %636 = vmatmul.mubr.bf16.gmra.mrb[0].mxu0 %v240
      %v637 = vpop.f32.mrb[0].mxu0
      %v638 = vadd.f32 0.0, %v637
      %v639 = vpop.f32.mrb[0].mxu0
      %v640 = vadd.f32 0.0, %v639
      %v641 = vpop.f32.mrb[0].mxu0
      %v642 = vadd.f32 0.0, %v641
      %v643 = vpop.f32.mrb[0].mxu0
      %v644 = vadd.f32 0.0, %v643
      %645 = vdwg.mxu0
      %v646 = vadd.f32 %v166, %v552
      %v647 = vadd.f32 %v167, %v554
      %v648 = vadd.f32 %v168, %v595
      %v649 = vadd.f32 %v169, %v597
      %v650 = vadd.f32 %v170, %v638
      %v651 = vadd.f32 %v171, %v640
      %v652 = vadd.f32 %v172, %v556
      %v653 = vadd.f32 %v173, %v558
      %v654 = vadd.f32 %v174, %v599
      %v655 = vadd.f32 %v175, %v601
      %v656 = vadd.f32 %v176, %v642
      %v657 = vadd.f32 %v177, %v644
      %658 = vst [vmem:[#allocation2] sm:$0xff] %v646
      %659 = vst [vmem:[#allocation2 + $0x8] sm:$0xff] %v647
      %660 = vst [vmem:[#allocation2 + $0x10] sm:$0xff] %v648
      %661 = vst [vmem:[#allocation2 + $0x18] sm:$0xff] %v649
      %662 = vst [vmem:[#allocation2 + $0x20] sm:$0xff] %v650
      %663 = vst [vmem:[#allocation2 + $0x28] sm:$0xff] %v651
      %664 = vst [vmem:[#allocation2 + $0x30] sm:$0xff] %v652
      %665 = vst [vmem:[#allocation2 + $0x38] sm:$0xff] %v653
      %666 = vst [vmem:[#allocation2 + $0x40] sm:$0xff] %v654
      %667 = vst [vmem:[#allocation2 + $0x48] sm:$0xff] %v655
      %668 = vst [vmem:[#allocation2 + $0x50] sm:$0xff] %v656
      %669 = vst [vmem:[#allocation2 + $0x58] sm:$0xff] %v657
      %p670 = scmp.eq.s32.totalorder %s13, 2
      // Predicated region
      $region33: #{ae_forward.9} parent=27 // pred_check
        %p671 = pneg %p670
      $region34: #{ae_forward.9} parent=27 // pred_check_branch
        %673 = sbr.rel (%p671) target = $region36
      $region35: #{ae_forward.9} parent=27 // pred_region
        %v674 = vld [vmem:[#allocation2] sm:$0xff]
        %v675 = vld [vmem:[#allocation2 + $0x8] sm:$0xff]
        %v676 = vld [vmem:[#allocation2 + $0x10] sm:$0xff]
        %v677 = vld [vmem:[#allocation2 + $0x18] sm:$0xff]
        %v678 = vld [vmem:[#allocation2 + $0x20] sm:$0xff]
        %v679 = vld [vmem:[#allocation2 + $0x28] sm:$0xff]
        %v680 = vld [vmem:[#allocation2 + $0x30] sm:$0xff]
        %v681 = vld [vmem:[#allocation2 + $0x38] sm:$0xff]
        %v682 = vld [vmem:[#allocation2 + $0x40] sm:$0xff]
        %v683 = vld [vmem:[#allocation2 + $0x48] sm:$0xff]
        %v684 = vld [vmem:[#allocation2 + $0x50] sm:$0xff]
        %v685 = vld [vmem:[#allocation2 + $0x58] sm:$0xff]
        %v686 = vadd.f32 %v674, %v675
        %v687 = vadd.f32 %v686, %v676
        %v688 = vadd.f32 %v687, %v677
        %v689 = vadd.f32 %v688, %v678
        %v690 = vadd.f32 %v689, %v679
        %691 = vadd.xlane.f32.xlu0 %v690
        %v692 = vpop.xlane.xlu0 %691
        %v693 = vadd.f32 %v680, %v681
        %v694 = vadd.f32 %v693, %v682
        %v695 = vadd.f32 %v694, %v683
        %v696 = vadd.f32 %v695, %v684
        %v697 = vadd.f32 %v696, %v685
        %698 = vadd.xlane.f32.xlu0 %v697
        %v699 = vpop.xlane.xlu0 %698
        %v700 = vmul.f32 %v692, 0.001457726
        %v701 = vmul.f32 %v699, 0.001457726
        %v702 = vmul.f32 %v674, %v674
        %v703 = vmul.f32 %v675, %v675
        %v704 = vmul.f32 %v676, %v676
        %v705 = vmul.f32 %v677, %v677
        %v706 = vmul.f32 %v678, %v678
        %v707 = vmul.f32 %v679, %v679
        %v708 = vmul.f32 %v680, %v680
        %v709 = vmul.f32 %v681, %v681
        %v710 = vmul.f32 %v682, %v682
        %v711 = vmul.f32 %v683, %v683
        %v712 = vmul.f32 %v684, %v684
        %v713 = vmul.f32 %v685, %v685
        %v714 = vadd.f32 %v702, %v703
        %v715 = vadd.f32 %v714, %v704
        %v716 = vadd.f32 %v715, %v705
        %v717 = vadd.f32 %v716, %v706
        %v718 = vadd.f32 %v717, %v707
        %719 = vadd.xlane.f32.xlu0 %v718
        %v720 = vpop.xlane.xlu0 %719
        %v721 = vadd.f32 %v708, %v709
        %v722 = vadd.f32 %v721, %v710
        %v723 = vadd.f32 %v722, %v711
        %v724 = vadd.f32 %v723, %v712
        %v725 = vadd.f32 %v724, %v713
        %726 = vadd.xlane.f32.xlu0 %v725
        %v727 = vpop.xlane.xlu0 %726
        %v728 = vmul.f32 %v720, 0.001457726
        %v729 = vmul.f32 %v727, 0.001457726
        %v730 = vmul.f32 %v700, %v700
        %v731 = vmul.f32 %v701, %v701
        %v732 = vsub.f32 %v728, %v730
        %v733 = vsub.f32 %v729, %v731
        %v734 = vmax.f32 %v732, 0.0
        %v735 = vmax.f32 %v733, 0.0
        %v736 = vsub.f32 %v674, %v700
        %v737 = vsub.f32 %v675, %v700
        %v738 = vsub.f32 %v676, %v700
        %v739 = vsub.f32 %v677, %v700
        %v740 = vsub.f32 %v678, %v700
        %v741 = vsub.f32 %v679, %v700
        %v742 = vsub.f32 %v680, %v701
        %v743 = vsub.f32 %v681, %v701
        %v744 = vsub.f32 %v682, %v701
        %v745 = vsub.f32 %v683, %v701
        %v746 = vsub.f32 %v684, %v701
        %v747 = vsub.f32 %v685, %v701
        %v748 = vadd.f32 %v734, 1e-05
        %v749 = vadd.f32 %v735, 1e-05
        %v750 = vrsqrt.pop %v748
        %v751 = vrsqrt.pop %v749
        %v752 = vmul.f32 %v736, %v750
        %v753 = vmul.f32 %v737, %v750
        %v754 = vmul.f32 %v738, %v750
        %v755 = vmul.f32 %v739, %v750
        %v756 = vmul.f32 %v740, %v750
        %v757 = vmul.f32 %v741, %v750
        %v758 = vmul.f32 %v742, %v751
        %v759 = vmul.f32 %v743, %v751
        %v760 = vmul.f32 %v744, %v751
        %v761 = vmul.f32 %v745, %v751
        %v762 = vmul.f32 %v746, %v751
        %v763 = vmul.f32 %v747, %v751
        %v764 = vmax.f32 %v752, 0.0
        %v765 = vmax.f32 %v753, 0.0
        %v766 = vmax.f32 %v754, 0.0
        %v767 = vmax.f32 %v755, 0.0
        %v768 = vmax.f32 %v756, 0.0
        %v769 = vmax.f32 %v757, 0.0
        %v770 = vmax.f32 %v758, 0.0
        %v771 = vmax.f32 %v759, 0.0
        %v772 = vmax.f32 %v760, 0.0
        %v773 = vmax.f32 %v761, 0.0
        %v774 = vmax.f32 %v762, 0.0
        %v775 = vmax.f32 %v763, 0.0
        %776 = vst [vmem:[%s2] sm:$0xff] %v764
        %777 = vst [vmem:[%s2 + $0x8] sm:$0xff] %v765
        %778 = vst [vmem:[%s2 + $0x10] sm:$0xff] %v766
        %779 = vst [vmem:[%s2 + $0x18] sm:$0xff] %v767
        %780 = vst [vmem:[%s2 + $0x20] sm:$0xff] %v768
        %781 = vst [vmem:[%s2 + $0x28] sm:$0xff] %v769
        %782 = vst [vmem:[%s2 + $0x30] sm:$0xff] %v770
        %783 = vst [vmem:[%s2 + $0x38] sm:$0xff] %v771
        %784 = vst [vmem:[%s2 + $0x40] sm:$0xff] %v772
        %785 = vst [vmem:[%s2 + $0x48] sm:$0xff] %v773
        %786 = vst [vmem:[%s2 + $0x50] sm:$0xff] %v774
        %787 = vst [vmem:[%s2 + $0x58] sm:$0xff] %v775
      $region36: #{ae_forward.9} parent=27 // pred_fallthru
        _
      // Predicated region
      $region37: #{ae_forward.9} parent=27 // pred_check
        %p788 = pneg %p78
      $region38: #{ae_forward.9} parent=27 // pred_check_branch
        %790 = sbr.rel (%p788) target = $region40
      $region39: #{ae_forward.9} parent=27 // pred_region
        _
      $region40: #{ae_forward.9} parent=27 // pred_fallthru
        _
      // Predicated region
      $region41: #{ae_forward.9} parent=27 // pred_check
        %p791 = pneg %p78
      $region42: #{ae_forward.9} parent=27 // pred_check_branch
        %793 = sbr.rel (%p791) target = $region44
      $region43: #{ae_forward.9} parent=27 // pred_region
        _
      $region44: #{ae_forward.9} parent=27 // pred_fallthru
        _
    $region28: #{ae_forward.9} parent=5 // pred_fallthru
      _
    %p794 = scmp.le.s32.totalorder 2, %s8
    // Predicated region
    $region45: #{ae_forward.9} parent=5 // pred_check
      %p795 = pneg %p794
    $region46: #{ae_forward.9} parent=5 // pred_check_branch
      %797 = sbr.rel (%p795) target = $region48
    $region47: #{ae_forward.9} parent=5 // pred_region
      %s798 = ssub.s32 %s8, 2
    $region48: #{ae_forward.9} parent=5 // pred_fallthru
      _
  $region6: #{ae_forward.9} parent=0 // loop_footer
    %s12 = sadd.s32 1, %s8
  $region7: #{ae_forward.9} parent=0 // loop_footer_branch
    %7 = sbr.rel target = $region3
  $region8: #{ae_forward.9} parent=0 // loop_exit
    _

// kernel: ae_forward.10
$region0: #{ae_forward.10}
  #allocation0 [shape = 'u32[]', space=smem, size = 0x4, offset = 0x4, fixed_abs, tag = 'smem constant byte address 0x4 - core index']
  #allocation1 [shape = 'u32[144,128]{1,0:T(1,128)}', space=vmem, size = 0x12000, scoped, tag = 'internal scratch']
  #allocation2 [shape = 'f32[32,256]{1,0:T(8,128)}', space=vmem, size = 0x8000, scoped, tag = 'scratch operand']
  %s0 = inlined_call_operand.vmem [shape: bf16[3,144,256], index: 0, kind: input, shape index: {}]
  %s1 = inlined_call_operand.vmem [shape: bf16[3,32,144], index: 1, kind: input, shape index: {}]
  %s2 = inlined_call_operand.vmem [shape: f32[32,256], index: 2, kind: output, shape index: {}]
  %s3 = sld [smem:[#allocation0]]
  $region49: #{ae_forward.10} parent=0
    _
  %s5 = ssub.s32 1, %s3
  %s6 = scalar_select 0, %s5, %s3
  loop: start=0, step=1, limit=5
  $region2: #{ae_forward.10} parent=0 // loop_pre_header
    _
  $region3: #{ae_forward.10} parent=0 // loop_header
    %s8 = sphi 0, %s12
    %p9 = scmp.ge.s32.totalorder %s8, 5
    %s18 = sphi 0, %s20
    %s21 = sphi 0, %s18
    %s22 = sphi 0, %s21
    %s38 = sphi 0, %s22
    %s44 = sphi 0, %s46
    %s47 = sphi 0, %s44
    %s48 = sphi 0, %s47
    %s64 = sphi 0, %s48
    %s68 = sphi 0, %s68
    %s70 = sphi 0, %s68
    %s71 = sphi 0, %s70
    %s85 = sphi 0, %s71
  $region4: #{ae_forward.10} parent=0 // loop_header_branch
    %11 = sbr.rel (%p9) target = $region8
  $region5: #{ae_forward.10} parent=0 // loop_body
    %s13 = ssub.s32 %s8, 1
    %s14 = ssub.s32 %s8, 2
    %s15 = sadd.s32 %s8, 1
    %s16 = ssub.s32 %s8, %s15
    %p17 = scmp.eq.s32.totalorder %s16, 0
    %s19 = sadd.s32 %s18, 1
    %s20 = scalar_select %p17, %s18, %s19
    %p23 = pneg %p17
    %p24 = scmp.eq.s32.totalorder %s8, 2
    %p25 = por %p23, %p24
    %p26 = scmp.ne.s32.totalorder %s18, %s21
    %p27 = scmp.eq.s32.totalorder %s8, 0
    %p28 = por %p26, %p27
    %p29 = scmp.ne.s32.totalorder %s18, %s21
    %p30 = scmp.eq.s32.totalorder %s13, 2
    %p31 = por %p29, %p30
    %p32 = scmp.ne.s32.totalorder %s21, %s22
    %p33 = scmp.eq.s32.totalorder %s13, 0
    %p34 = por %p32, %p33
    %p35 = scmp.ne.s32.totalorder %s21, %s22
    %p36 = scmp.eq.s32.totalorder %s14, 2
    %p37 = por %p35, %p36
    %p39 = scmp.ne.s32.totalorder %s22, %s38
    %p40 = scmp.eq.s32.totalorder %s14, 0
    %p41 = por %p39, %p40
    %s42 = ssub.s32 %s8, %s15
    %p43 = scmp.eq.s32.totalorder %s42, 0
    %s45 = sadd.s32 %s44, 1
    %s46 = scalar_select %p43, %s44, %s45
    %p49 = pneg %p43
    %p50 = scmp.eq.s32.totalorder %s8, 2
    %p51 = por %p49, %p50
    %p52 = scmp.ne.s32.totalorder %s44, %s47
    %p53 = scmp.eq.s32.totalorder %s8, 0
    %p54 = por %p52, %p53
    %p55 = scmp.ne.s32.totalorder %s44, %s47
    %p56 = scmp.eq.s32.totalorder %s13, 2
    %p57 = por %p55, %p56
    %p58 = scmp.ne.s32.totalorder %s47, %s48
    %p59 = scmp.eq.s32.totalorder %s13, 0
    %p60 = por %p58, %p59
    %p61 = scmp.ne.s32.totalorder %s47, %s48
    %p62 = scmp.eq.s32.totalorder %s14, 2
    %p63 = por %p61, %p62
    %p65 = scmp.ne.s32.totalorder %s48, %s64
    %p66 = scmp.eq.s32.totalorder %s14, 0
    %p67 = por %p65, %p66
    %s69 = sadd.s32 %s68, 1
    %p72 = scmp.eq.s32.totalorder %s8, 2
    %p73 = scmp.ne.s32.totalorder %s68, %s70
    %p74 = scmp.eq.s32.totalorder %s8, 0
    %p75 = por %p73, %p74
    %p76 = scmp.ne.s32.totalorder %s68, %s70
    %p77 = scmp.eq.s32.totalorder %s13, 2
    %p78 = por %p76, %p77
    %p79 = scmp.ne.s32.totalorder %s70, %s71
    %p80 = scmp.eq.s32.totalorder %s13, 0
    %p81 = por %p79, %p80
    %p82 = scmp.ne.s32.totalorder %s70, %s71
    %p83 = scmp.eq.s32.totalorder %s14, 2
    %p84 = por %p82, %p83
    %p86 = scmp.ne.s32.totalorder %s71, %s85
    %p87 = scmp.eq.s32.totalorder %s14, 0
    %p88 = por %p86, %p87
    %p89 = scmp.le.s32.totalorder 1, %s8
    %p90 = scmp.lt.s32.totalorder %s8, 4
    %p91 = pnand %p89, %p90
    %p92 = pneg %p91
    // Predicated region
    $region9: #{ae_forward.10} parent=5 // pred_check
      _
    $region10: #{ae_forward.10} parent=5 // pred_check_branch
      %94 = sbr.rel (%p91) target = $region12
    $region11: #{ae_forward.10} parent=5 // pred_region
      %s95 = ssub.s32 %s8, 1
    $region12: #{ae_forward.10} parent=5 // pred_fallthru
      _
    %p96 = scmp.lt.s32.totalorder %s8, 3
    // Predicated region
    $region13: #{ae_forward.10} parent=5 // pred_check
      %p97 = pneg %p96
    $region14: #{ae_forward.10} parent=5 // pred_check_branch
      %99 = sbr.rel (%p97) target = $region16
    $region15: #{ae_forward.10} parent=5 // pred_region
      // Predicated region
      $region17: #{ae_forward.10} parent=15 // pred_check
        %p100 = pneg %p28
      $region18: #{ae_forward.10} parent=15 // pred_check_branch
        %102 = sbr.rel (%p100) target = $region20
      $region19: #{ae_forward.10} parent=15 // pred_region
        %p103 = scmp.lt.s32.totalorder %s8, 2
        %s104 = scalar_select %p103, %s8, 2
        %s105 = smul.addr %s104, 36
        %s106 = smul.addr %s105, 4
        %s107 = scalar_lea.vmem %s0, %s106
      $region20: #{ae_forward.10} parent=15 // pred_fallthru
        _
      // Predicated region
      $region21: #{ae_forward.10} parent=15 // pred_check
        %p108 = pneg %p54
      $region22: #{ae_forward.10} parent=15 // pred_check_branch
        %110 = sbr.rel (%p108) target = $region24
      $region23: #{ae_forward.10} parent=15 // pred_region
        %p111 = scmp.lt.s32.totalorder %s8, 2
        %s112 = scalar_select %p111, %s8, 2
        %s113 = smul.addr %s112, 8
        %s114 = smul.addr %s113, 4
        %s115 = scalar_lea.vmem %s1, %s114
      $region24: #{ae_forward.10} parent=15 // pred_fallthru
        _
    $region16: #{ae_forward.10} parent=5 // pred_fallthru
      _
    %p116 = scmp.le.s32.totalorder 1, %s8
    %p117 = scmp.lt.s32.totalorder %s8, 4
    %p118 = pnand %p116, %p117
    %p119 = pneg %p118
    // Predicated region
    $region25: #{ae_forward.10} parent=5 // pred_check
      _
    $region26: #{ae_forward.10} parent=5 // pred_check_branch
      %121 = sbr.rel (%p118) target = $region28
    $region27: #{ae_forward.10} parent=5 // pred_region
      %s122 = ssub.s32 %s8, 1
      %p123 = scmp.lt.s32.totalorder %s13, 2
      %s124 = scalar_select %p123, %s13, 2
      %s125 = smul.addr %s124, 36
      %s126 = smul.addr %s125, 4
      %s127 = scalar_lea.vmem %s0, %s126
      %p128 = pneg %p34
      %p129 = pneg %p31
      %p130 = scmp.lt.s32.totalorder %s13, 2
      %s131 = scalar_select %p130, %s13, 2
      %s132 = smul.addr %s131, 8
      %s133 = smul.addr %s132, 4
      %s134 = scalar_lea.vmem %s1, %s133
      %p135 = pneg %p60
      %p136 = pneg %p57
      %p137 = pneg %p81
      %p138 = pneg %p78
      %p139 = scmp.lt.s32.totalorder %s13, 2
      %s140 = scalar_select %p139, %s13, 2
      %s141 = smul.addr %s140, 36
      %s142 = smul.addr %s141, 4
      %s143 = scalar_lea.vmem %s0, %s142
      %p144 = scmp.lt.s32.totalorder %s13, 2
      %s145 = scalar_select %p144, %s13, 2
      %s146 = smul.addr %s145, 8
      %s147 = smul.addr %s146, 4
      %s148 = scalar_lea.vmem %s1, %s147
      %p150 = scmp.eq.s32.totalorder %s13, 0
      // Predicated region
      $region29: #{ae_forward.10} parent=27 // pred_check
        %p151 = pneg %p150
      $region30: #{ae_forward.10} parent=27 // pred_check_branch
        %153 = sbr.rel (%p151) target = $region32
      $region31: #{ae_forward.10} parent=27 // pred_region
        %154 = vst [vmem:[#allocation2] sm:$0xff] 0.0
        %155 = vst [vmem:[#allocation2 + $0x8] sm:$0xff] 0.0
        %156 = vst [vmem:[#allocation2 + $0x10] sm:$0xff] 0.0
        %157 = vst [vmem:[#allocation2 + $0x18] sm:$0xff] 0.0
        %158 = vst [vmem:[#allocation2 + $0x20] sm:$0xff] 0.0
        %159 = vst [vmem:[#allocation2 + $0x28] sm:$0xff] 0.0
        %160 = vst [vmem:[#allocation2 + $0x30] sm:$0xff] 0.0
        %161 = vst [vmem:[#allocation2 + $0x38] sm:$0xff] 0.0
      $region32: #{ae_forward.10} parent=27 // pred_fallthru
        _
      %v162 = vld [vmem:[#allocation2] sm:$0xff]
      %v163 = vld [vmem:[#allocation2 + $0x8] sm:$0xff]
      %v164 = vld [vmem:[#allocation2 + $0x10] sm:$0xff]
      %v165 = vld [vmem:[#allocation2 + $0x18] sm:$0xff]
      %v166 = vld [vmem:[#allocation2 + $0x20] sm:$0xff]
      %v167 = vld [vmem:[#allocation2 + $0x28] sm:$0xff]
      %v168 = vld [vmem:[#allocation2 + $0x30] sm:$0xff]
      %v169 = vld [vmem:[#allocation2 + $0x38] sm:$0xff]
      %v170 = vld [vmem:[%s148] sm:$0xff]
      %v171 = vld [vmem:[%s148 + $0x8] sm:$0xff]
      %v172 = vld [vmem:[%s148 + $0x10] sm:$0xff]
      %v173 = vld [vmem:[%s148 + $0x18] sm:$0xff]
      %v174 = vld [vmem:[%s143] sm:$0xff]
      %v175 = vld [vmem:[%s143 + $0x8] sm:$0xff]
      %v176 = vld [vmem:[%s143 + $0x10] sm:$0xff]
      %v177 = vld [vmem:[%s143 + $0x18] sm:$0xff]
      %v178 = vld [vmem:[%s143 + $0x20] sm:$0xff]
      %v179 = vld [vmem:[%s143 + $0x28] sm:$0xff]
      %v180 = vld [vmem:[%s143 + $0x30] sm:$0xff]
      %v181 = vld [vmem:[%s143 + $0x38] sm:$0xff]
      %v182 = vld [vmem:[%s143 + $0x40] sm:$0xff]
      %v183 = vld [vmem:[%s143 + $0x48] sm:$0xff]
      %v184 = vld [vmem:[%s143 + $0x50] sm:$0xff]
      %v185 = vld [vmem:[%s143 + $0x58] sm:$0xff]
      %v186 = vld [vmem:[%s143 + $0x60] sm:$0xff]
      %v187 = vld [vmem:[%s143 + $0x68] sm:$0xff]
      %v188 = vld [vmem:[%s143 + $0x70] sm:$0xff]
      %v189 = vld [vmem:[%s143 + $0x78] sm:$0xff]
      %v190 = vld [vmem:[%s143 + $0x80] sm:$0xff]
      %v191 = vld [vmem:[%s143 + $0x88] sm:$0xff]
      %v196 = vunpack.c.l.b16 %v170
      %v197 = vunpack.c.h.b16 %v170
      %v198 = vunpack.c.l.b16 %v171
      %v199 = vunpack.c.h.b16 %v171
      %v200 = vunpack.c.l.b16 %v172
      %v201 = vunpack.c.h.b16 %v172
      %v202 = vunpack.c.l.b16 %v173
      %v203 = vunpack.c.h.b16 %v173
      %v204 = vpack.c.b16 %v198, %v196
      %v205 = vpack.c.b16 %v199, %v197
      %v206 = vpack.c.b16 %v202, %v200
      %v207 = vpack.c.b16 %v203, %v201
      %v228 = vunpack.c.l.b16 %v174
      %v229 = vunpack.c.h.b16 %v174
      %v230 = vunpack.c.l.b16 %v175
      %v231 = vunpack.c.h.b16 %v175
      %v232 = vunpack.c.l.b16 %v176
      %v233 = vunpack.c.h.b16 %v176
      %v234 = vunpack.c.l.b16 %v177
      %v235 = vunpack.c.h.b16 %v177
      %v236 = vunpack.c.l.b16 %v178
      %v237 = vunpack.c.h.b16 %v178
      %v238 = vunpack.c.l.b16 %v179
      %v239 = vunpack.c.h.b16 %v179
      %v240 = vunpack.c.l.b16 %v180
      %v241 = vunpack.c.h.b16 %v180
      %v242 = vunpack.c.l.b16 %v181
      %v243 = vunpack.c.h.b16 %v181
      %v244 = vunpack.c.l.b16 %v182
      %v245 = vunpack.c.h.b16 %v182
      %v246 = vunpack.c.l.b16 %v183
      %v247 = vunpack.c.h.b16 %v183
      %v248 = vunpack.c.l.b16 %v184
      %v249 = vunpack.c.h.b16 %v184
      %v250 = vunpack.c.l.b16 %v185
      %v251 = vunpack.c.h.b16 %v185
      %v252 = vunpack.c.l.b16 %v186
      %v253 = vunpack.c.h.b16 %v186
      %v254 = vunpack.c.l.b16 %v187
      %v255 = vunpack.c.h.b16 %v187
      %v256 = vunpack.c.l.b16 %v188
      %v257 = vunpack.c.h.b16 %v188
      %v258 = vunpack.c.l.b16 %v189
      %v259 = vunpack.c.h.b16 %v189
      %v260 = vunpack.c.l.b16 %v190
      %v261 = vunpack.c.h.b16 %v190
      %v262 = vunpack.c.l.b16 %v191
      %v263 = vunpack.c.h.b16 %v191
      %v264 = vpack.c.b16 %v230, %v228
      %v265 = vpack.c.b16 %v231, %v229
      %v266 = vpack.c.b16 %v234, %v232
      %v267 = vpack.c.b16 %v235, %v233
      %v268 = vpack.c.b16 %v238, %v236
      %v269 = vpack.c.b16 %v239, %v237
      %v270 = vpack.c.b16 %v242, %v240
      %v271 = vpack.c.b16 %v243, %v241
      %v272 = vpack.c.b16 %v246, %v244
      %v273 = vpack.c.b16 %v247, %v245
      %v274 = vpack.c.b16 %v250, %v248
      %v275 = vpack.c.b16 %v251, %v249
      %v276 = vpack.c.b16 %v254, %v252
      %v277 = vpack.c.b16 %v255, %v253
      %v278 = vpack.c.b16 %v258, %v256
      %v279 = vpack.c.b16 %v259, %v257
      %v280 = vpack.c.b16 %v262, %v260
      %v281 = vpack.c.b16 %v263, %v261
      %vm300 = vcmask 130048
      %v302 = vsel %vm300, %v205, 0
      %v305 = vsel %vm300, %v207, 0
      %307 = vmatprep.subr.bf16.mxu0 %v265
      %308 = vmatpush1.bf16.msra.mxu0 %v264
      %309 = vmatprep.subr.bf16.mxu0 %v267
      %310 = vmatpush1.bf16.msra.mxu0 %v266
      %311 = vmatprep.subr.bf16.mxu0 %v269
      %312 = vmatpush1.bf16.msra.mxu0 %v268
      %313 = vmatprep.subr.bf16.mxu0 %v271
      %314 = vmatpush1.bf16.msra.mxu0 %v270
      %315 = vmatprep.subr.bf16.mxu0 %v273
      %316 = vmatpush1.bf16.msra.mxu0 %v272
      %317 = vmatprep.subr.bf16.mxu0 %v275
      %318 = vmatpush1.bf16.msra.mxu0 %v274
      %319 = vmatprep.subr.bf16.mxu0 %v277
      %320 = vmatpush1.bf16.msra.mxu0 %v276
      %321 = vmatprep.subr.bf16.mxu0 %v279
      %322 = vmatpush1.bf16.msra.mxu0 %v278
      %323 = vmatprep.subr.bf16.mxu0 %v281
      %324 = vmatpush1.bf16.msra.mxu0 %v280
      %325 = vmatprep.subr.bf16.mxu0 0
      %326 = vmatpush1.bf16.msra.mxu0 0
      %327 = vmatprep.subr.bf16.mxu0 0
      %328 = vmatpush1.bf16.msra.mxu0 0
      %329 = vmatprep.subr.bf16.mxu0 0
      %330 = vmatpush1.bf16.msra.mxu0 0
      %331 = vmatprep.subr.bf16.mxu0 0
      %332 = vmatpush1.bf16.msra.mxu0 0
      %333 = vmatprep.subr.bf16.mxu0 0
      %334 = vmatpush1.bf16.msra.mxu0 0
      %335 = vmatprep.subr.bf16.mxu0 0
      %336 = vmatpush1.bf16.msra.mxu0 0
      %337 = vmatprep.subr.bf16.mxu0 0
      %338 = vmatpush1.bf16.msra.mxu0 0
      %339 = vmatprep.mubr.bf16.mxu0 %v302
      %340 = vmatmul.mubr.bf16.gmra.mrb[0].mxu0 %v204
      %v341 = vpop.f32.mrb[0].mxu0
      %v342 = vadd.f32 0.0, %v341
      %v343 = vpop.f32.mrb[0].mxu0
      %v344 = vadd.f32 0.0, %v343
      %v345 = vpop.f32.mrb[0].mxu0
      %v346 = vadd.f32 0.0, %v345
      %v347 = vpop.f32.mrb[0].mxu0
      %v348 = vadd.f32 0.0, %v347
      %349 = vmatprep.mubr.bf16.mxu0 %v305
      %350 = vmatmul.mubr.bf16.gmra.mrb[0].mxu0 %v206
      %v351 = vpop.f32.mrb[0].mxu0
      %v352 = vadd.f32 0.0, %v351
      %v353 = vpop.f32.mrb[0].mxu0
      %v354 = vadd.f32 0.0, %v353
      %v355 = vpop.f32.mrb[0].mxu0
      %v356 = vadd.f32 0.0, %v355
      %v357 = vpop.f32.mrb[0].mxu0
      %v358 = vadd.f32 0.0, %v357
      %359 = vdwg.mxu0
      %v360 = vadd.f32 %v162, %v342
      %v361 = vadd.f32 %v163, %v344
      %v362 = vadd.f32 %v164, %v346
      %v363 = vadd.f32 %v165, %v348
      %v364 = vadd.f32 %v166, %v352
      %v365 = vadd.f32 %v167, %v354
      %v366 = vadd.f32 %v168, %v356
      %v367 = vadd.f32 %v169, %v358
      %368 = vst [vmem:[#allocation2] sm:$0xff] %v360
      %369 = vst [vmem:[#allocation2 + $0x8] sm:$0xff] %v361
      %370 = vst [vmem:[#allocation2 + $0x10] sm:$0xff] %v362
      %371 = vst [vmem:[#allocation2 + $0x18] sm:$0xff] %v363
      %372 = vst [vmem:[#allocation2 + $0x20] sm:$0xff] %v364
      %373 = vst [vmem:[#allocation2 + $0x28] sm:$0xff] %v365
      %374 = vst [vmem:[#allocation2 + $0x30] sm:$0xff] %v366
      %375 = vst [vmem:[#allocation2 + $0x38] sm:$0xff] %v367
      %p376 = scmp.eq.s32.totalorder %s13, 2
      // Predicated region
      $region33: #{ae_forward.10} parent=27 // pred_check
        %p377 = pneg %p376
      $region34: #{ae_forward.10} parent=27 // pred_check_branch
        %379 = sbr.rel (%p377) target = $region36
      $region35: #{ae_forward.10} parent=27 // pred_region
        %v380 = vld [vmem:[#allocation2] sm:$0xff]
        %v381 = vld [vmem:[#allocation2 + $0x8] sm:$0xff]
        %v382 = vld [vmem:[#allocation2 + $0x10] sm:$0xff]
        %v383 = vld [vmem:[#allocation2 + $0x18] sm:$0xff]
        %v384 = vld [vmem:[#allocation2 + $0x20] sm:$0xff]
        %v385 = vld [vmem:[#allocation2 + $0x28] sm:$0xff]
        %v386 = vld [vmem:[#allocation2 + $0x30] sm:$0xff]
        %v387 = vld [vmem:[#allocation2 + $0x38] sm:$0xff]
        %v388 = vadd.f32 %v380, %v381
        %389 = vadd.xlane.f32.xlu0 %v388
        %v390 = vpop.xlane.xlu0 %389
        %v391 = vadd.f32 %v382, %v383
        %392 = vadd.xlane.f32.xlu0 %v391
        %v393 = vpop.xlane.xlu0 %392
        %v394 = vadd.f32 %v384, %v385
        %395 = vadd.xlane.f32.xlu0 %v394
        %v396 = vpop.xlane.xlu0 %395
        %v397 = vadd.f32 %v386, %v387
        %398 = vadd.xlane.f32.xlu0 %v397
        %v399 = vpop.xlane.xlu0 %398
        %v400 = vmul.f32 %v390, 0.004
        %v401 = vmul.f32 %v393, 0.004
        %v402 = vmul.f32 %v396, 0.004
        %v403 = vmul.f32 %v399, 0.004
        %v404 = vmul.f32 %v380, %v380
        %v405 = vmul.f32 %v381, %v381
        %v406 = vmul.f32 %v382, %v382
        %v407 = vmul.f32 %v383, %v383
        %v408 = vmul.f32 %v384, %v384
        %v409 = vmul.f32 %v385, %v385
        %v410 = vmul.f32 %v386, %v386
        %v411 = vmul.f32 %v387, %v387
        %v412 = vadd.f32 %v404, %v405
        %413 = vadd.xlane.f32.xlu0 %v412
        %v414 = vpop.xlane.xlu0 %413
        %v415 = vadd.f32 %v406, %v407
        %416 = vadd.xlane.f32.xlu0 %v415
        %v417 = vpop.xlane.xlu0 %416
        %v418 = vadd.f32 %v408, %v409
        %419 = vadd.xlane.f32.xlu0 %v418
        %v420 = vpop.xlane.xlu0 %419
        %v421 = vadd.f32 %v410, %v411
        %422 = vadd.xlane.f32.xlu0 %v421
        %v423 = vpop.xlane.xlu0 %422
        %v424 = vmul.f32 %v414, 0.004
        %v425 = vmul.f32 %v417, 0.004
        %v426 = vmul.f32 %v420, 0.004
        %v427 = vmul.f32 %v423, 0.004
        %v428 = vmul.f32 %v400, %v400
        %v429 = vmul.f32 %v401, %v401
        %v430 = vmul.f32 %v402, %v402
        %v431 = vmul.f32 %v403, %v403
        %v432 = vsub.f32 %v424, %v428
        %v433 = vsub.f32 %v425, %v429
        %v434 = vsub.f32 %v426, %v430
        %v435 = vsub.f32 %v427, %v431
        %v436 = vmax.f32 %v432, 0.0
        %v437 = vmax.f32 %v433, 0.0
        %v438 = vmax.f32 %v434, 0.0
        %v439 = vmax.f32 %v435, 0.0
        %v440 = vsub.f32 %v380, %v400
        %v441 = vsub.f32 %v381, %v400
        %v442 = vsub.f32 %v382, %v401
        %v443 = vsub.f32 %v383, %v401
        %v444 = vsub.f32 %v384, %v402
        %v445 = vsub.f32 %v385, %v402
        %v446 = vsub.f32 %v386, %v403
        %v447 = vsub.f32 %v387, %v403
        %v448 = vadd.f32 %v436, 1e-05
        %v449 = vadd.f32 %v437, 1e-05
        %v450 = vadd.f32 %v438, 1e-05
        %v451 = vadd.f32 %v439, 1e-05
        %v452 = vrsqrt.pop %v448
        %v453 = vrsqrt.pop %v449
        %v454 = vrsqrt.pop %v450
        %v455 = vrsqrt.pop %v451
        %v456 = vmul.f32 %v440, %v452
        %v457 = vmul.f32 %v441, %v452
        %v458 = vmul.f32 %v442, %v453
        %v459 = vmul.f32 %v443, %v453
        %v460 = vmul.f32 %v444, %v454
        %v461 = vmul.f32 %v445, %v454
        %v462 = vmul.f32 %v446, %v455
        %v463 = vmul.f32 %v447, %v455
        %v464 = vmax.f32 %v456, 0.0
        %v465 = vmax.f32 %v457, 0.0
        %v466 = vmax.f32 %v458, 0.0
        %v467 = vmax.f32 %v459, 0.0
        %v468 = vmax.f32 %v460, 0.0
        %v469 = vmax.f32 %v461, 0.0
        %v470 = vmax.f32 %v462, 0.0
        %v471 = vmax.f32 %v463, 0.0
        %472 = vst [vmem:[%s2] sm:$0xff] %v464
        %473 = vst [vmem:[%s2 + $0x8] sm:$0xff] %v465
        %474 = vst [vmem:[%s2 + $0x10] sm:$0xff] %v466
        %475 = vst [vmem:[%s2 + $0x18] sm:$0xff] %v467
        %476 = vst [vmem:[%s2 + $0x20] sm:$0xff] %v468
        %477 = vst [vmem:[%s2 + $0x28] sm:$0xff] %v469
        %478 = vst [vmem:[%s2 + $0x30] sm:$0xff] %v470
        %479 = vst [vmem:[%s2 + $0x38] sm:$0xff] %v471
      $region36: #{ae_forward.10} parent=27 // pred_fallthru
        _
      // Predicated region
      $region37: #{ae_forward.10} parent=27 // pred_check
        %p480 = pneg %p78
      $region38: #{ae_forward.10} parent=27 // pred_check_branch
        %482 = sbr.rel (%p480) target = $region40
      $region39: #{ae_forward.10} parent=27 // pred_region
        _
      $region40: #{ae_forward.10} parent=27 // pred_fallthru
        _
      // Predicated region
      $region41: #{ae_forward.10} parent=27 // pred_check
        %p483 = pneg %p78
      $region42: #{ae_forward.10} parent=27 // pred_check_branch
        %485 = sbr.rel (%p483) target = $region44
      $region43: #{ae_forward.10} parent=27 // pred_region
        _
      $region44: #{ae_forward.10} parent=27 // pred_fallthru
        _
    $region28: #{ae_forward.10} parent=5 // pred_fallthru
      _
    %p486 = scmp.le.s32.totalorder 2, %s8
    // Predicated region
    $region45: #{ae_forward.10} parent=5 // pred_check
      %p487 = pneg %p486
    $region46: #{ae_forward.10} parent=5 // pred_check_branch
      %489 = sbr.rel (%p487) target = $region48
    $region47: #{ae_forward.10} parent=5 // pred_region
      %s490 = ssub.s32 %s8, 2
    $region48: #{ae_forward.10} parent=5 // pred_fallthru
      _
  $region6: #{ae_forward.10} parent=0 // loop_footer
    %s12 = sadd.s32 1, %s8
  $region7: #{ae_forward.10} parent=0 // loop_footer_branch
    %7 = sbr.rel target = $region3
  $region8: #{ae_forward.10} parent=0 // loop_exit
    _

// kernel: ae_forward.11
$region0: #{ae_forward.11}
  #allocation0 [shape = 'u32[]', space=smem, size = 0x4, offset = 0x4, fixed_abs, tag = 'smem constant byte address 0x4 - core index']
  #allocation1 [shape = 'u32[144,128]{1,0:T(1,128)}', space=vmem, size = 0x12000, scoped, tag = 'internal scratch']
  #allocation2 [shape = 'f32[64,128]{1,0:T(8,128)}', space=vmem, size = 0x8000, scoped, tag = 'scratch operand']
  %s0 = inlined_call_operand.vmem [shape: bf16[3,288,128], index: 0, kind: input, shape index: {}]
  %s1 = inlined_call_operand.vmem [shape: bf16[3,64,288], index: 1, kind: input, shape index: {}]
  %s2 = inlined_call_operand.vmem [shape: f32[64,128], index: 2, kind: output, shape index: {}]
  %s3 = sld [smem:[#allocation0]]
  $region49: #{ae_forward.11} parent=0
    _
  %s5 = ssub.s32 1, %s3
  %s6 = scalar_select 0, %s5, %s3
  loop: start=0, step=1, limit=5
  $region2: #{ae_forward.11} parent=0 // loop_pre_header
    _
  $region3: #{ae_forward.11} parent=0 // loop_header
    %s8 = sphi 0, %s12
    %p9 = scmp.ge.s32.totalorder %s8, 5
    %s18 = sphi 0, %s20
    %s21 = sphi 0, %s18
    %s22 = sphi 0, %s21
    %s38 = sphi 0, %s22
    %s44 = sphi 0, %s46
    %s47 = sphi 0, %s44
    %s48 = sphi 0, %s47
    %s64 = sphi 0, %s48
    %s68 = sphi 0, %s68
    %s70 = sphi 0, %s68
    %s71 = sphi 0, %s70
    %s85 = sphi 0, %s71
  $region4: #{ae_forward.11} parent=0 // loop_header_branch
    %11 = sbr.rel (%p9) target = $region8
  $region5: #{ae_forward.11} parent=0 // loop_body
    %s13 = ssub.s32 %s8, 1
    %s14 = ssub.s32 %s8, 2
    %s15 = sadd.s32 %s8, 1
    %s16 = ssub.s32 %s8, %s15
    %p17 = scmp.eq.s32.totalorder %s16, 0
    %s19 = sadd.s32 %s18, 1
    %s20 = scalar_select %p17, %s18, %s19
    %p23 = pneg %p17
    %p24 = scmp.eq.s32.totalorder %s8, 2
    %p25 = por %p23, %p24
    %p26 = scmp.ne.s32.totalorder %s18, %s21
    %p27 = scmp.eq.s32.totalorder %s8, 0
    %p28 = por %p26, %p27
    %p29 = scmp.ne.s32.totalorder %s18, %s21
    %p30 = scmp.eq.s32.totalorder %s13, 2
    %p31 = por %p29, %p30
    %p32 = scmp.ne.s32.totalorder %s21, %s22
    %p33 = scmp.eq.s32.totalorder %s13, 0
    %p34 = por %p32, %p33
    %p35 = scmp.ne.s32.totalorder %s21, %s22
    %p36 = scmp.eq.s32.totalorder %s14, 2
    %p37 = por %p35, %p36
    %p39 = scmp.ne.s32.totalorder %s22, %s38
    %p40 = scmp.eq.s32.totalorder %s14, 0
    %p41 = por %p39, %p40
    %s42 = ssub.s32 %s8, %s15
    %p43 = scmp.eq.s32.totalorder %s42, 0
    %s45 = sadd.s32 %s44, 1
    %s46 = scalar_select %p43, %s44, %s45
    %p49 = pneg %p43
    %p50 = scmp.eq.s32.totalorder %s8, 2
    %p51 = por %p49, %p50
    %p52 = scmp.ne.s32.totalorder %s44, %s47
    %p53 = scmp.eq.s32.totalorder %s8, 0
    %p54 = por %p52, %p53
    %p55 = scmp.ne.s32.totalorder %s44, %s47
    %p56 = scmp.eq.s32.totalorder %s13, 2
    %p57 = por %p55, %p56
    %p58 = scmp.ne.s32.totalorder %s47, %s48
    %p59 = scmp.eq.s32.totalorder %s13, 0
    %p60 = por %p58, %p59
    %p61 = scmp.ne.s32.totalorder %s47, %s48
    %p62 = scmp.eq.s32.totalorder %s14, 2
    %p63 = por %p61, %p62
    %p65 = scmp.ne.s32.totalorder %s48, %s64
    %p66 = scmp.eq.s32.totalorder %s14, 0
    %p67 = por %p65, %p66
    %s69 = sadd.s32 %s68, 1
    %p72 = scmp.eq.s32.totalorder %s8, 2
    %p73 = scmp.ne.s32.totalorder %s68, %s70
    %p74 = scmp.eq.s32.totalorder %s8, 0
    %p75 = por %p73, %p74
    %p76 = scmp.ne.s32.totalorder %s68, %s70
    %p77 = scmp.eq.s32.totalorder %s13, 2
    %p78 = por %p76, %p77
    %p79 = scmp.ne.s32.totalorder %s70, %s71
    %p80 = scmp.eq.s32.totalorder %s13, 0
    %p81 = por %p79, %p80
    %p82 = scmp.ne.s32.totalorder %s70, %s71
    %p83 = scmp.eq.s32.totalorder %s14, 2
    %p84 = por %p82, %p83
    %p86 = scmp.ne.s32.totalorder %s71, %s85
    %p87 = scmp.eq.s32.totalorder %s14, 0
    %p88 = por %p86, %p87
    %p89 = scmp.le.s32.totalorder 1, %s8
    %p90 = scmp.lt.s32.totalorder %s8, 4
    %p91 = pnand %p89, %p90
    %p92 = pneg %p91
    // Predicated region
    $region9: #{ae_forward.11} parent=5 // pred_check
      _
    $region10: #{ae_forward.11} parent=5 // pred_check_branch
      %94 = sbr.rel (%p91) target = $region12
    $region11: #{ae_forward.11} parent=5 // pred_region
      %s95 = ssub.s32 %s8, 1
    $region12: #{ae_forward.11} parent=5 // pred_fallthru
      _
    %p96 = scmp.lt.s32.totalorder %s8, 3
    // Predicated region
    $region13: #{ae_forward.11} parent=5 // pred_check
      %p97 = pneg %p96
    $region14: #{ae_forward.11} parent=5 // pred_check_branch
      %99 = sbr.rel (%p97) target = $region16
    $region15: #{ae_forward.11} parent=5 // pred_region
      // Predicated region
      $region17: #{ae_forward.11} parent=15 // pred_check
        %p100 = pneg %p28
      $region18: #{ae_forward.11} parent=15 // pred_check_branch
        %102 = sbr.rel (%p100) target = $region20
      $region19: #{ae_forward.11} parent=15 // pred_region
        %p103 = scmp.lt.s32.totalorder %s8, 2
        %s104 = scalar_select %p103, %s8, 2
        %s105 = smul.addr %s104, 36
        %s106 = smul.addr %s105, 4
        %s107 = scalar_lea.vmem %s0, %s106
      $region20: #{ae_forward.11} parent=15 // pred_fallthru
        _
      // Predicated region
      $region21: #{ae_forward.11} parent=15 // pred_check
        %p108 = pneg %p54
      $region22: #{ae_forward.11} parent=15 // pred_check_branch
        %110 = sbr.rel (%p108) target = $region24
      $region23: #{ae_forward.11} parent=15 // pred_region
        %p111 = scmp.lt.s32.totalorder %s8, 2
        %s112 = scalar_select %p111, %s8, 2
        %s113 = smul.addr %s112, 24
        %s114 = smul.addr %s113, 4
        %s115 = scalar_lea.vmem %s1, %s114
      $region24: #{ae_forward.11} parent=15 // pred_fallthru
        _
    $region16: #{ae_forward.11} parent=5 // pred_fallthru
      _
    %p116 = scmp.le.s32.totalorder 1, %s8
    %p117 = scmp.lt.s32.totalorder %s8, 4
    %p118 = pnand %p116, %p117
    %p119 = pneg %p118
    // Predicated region
    $region25: #{ae_forward.11} parent=5 // pred_check
      _
    $region26: #{ae_forward.11} parent=5 // pred_check_branch
      %121 = sbr.rel (%p118) target = $region28
    $region27: #{ae_forward.11} parent=5 // pred_region
      %s122 = ssub.s32 %s8, 1
      %p123 = scmp.lt.s32.totalorder %s13, 2
      %s124 = scalar_select %p123, %s13, 2
      %s125 = smul.addr %s124, 36
      %s126 = smul.addr %s125, 4
      %s127 = scalar_lea.vmem %s0, %s126
      %p128 = pneg %p34
      %p129 = pneg %p31
      %p130 = scmp.lt.s32.totalorder %s13, 2
      %s131 = scalar_select %p130, %s13, 2
      %s132 = smul.addr %s131, 24
      %s133 = smul.addr %s132, 4
      %s134 = scalar_lea.vmem %s1, %s133
      %p135 = pneg %p60
      %p136 = pneg %p57
      %p137 = pneg %p81
      %p138 = pneg %p78
      %p139 = scmp.lt.s32.totalorder %s13, 2
      %s140 = scalar_select %p139, %s13, 2
      %s141 = smul.addr %s140, 36
      %s142 = smul.addr %s141, 4
      %s143 = scalar_lea.vmem %s0, %s142
      %p144 = scmp.lt.s32.totalorder %s13, 2
      %s145 = scalar_select %p144, %s13, 2
      %s146 = smul.addr %s145, 24
      %s147 = smul.addr %s146, 4
      %s148 = scalar_lea.vmem %s1, %s147
      %p150 = scmp.eq.s32.totalorder %s13, 0
      // Predicated region
      $region29: #{ae_forward.11} parent=27 // pred_check
        %p151 = pneg %p150
      $region30: #{ae_forward.11} parent=27 // pred_check_branch
        %153 = sbr.rel (%p151) target = $region32
      $region31: #{ae_forward.11} parent=27 // pred_region
        %154 = vst [vmem:[#allocation2] sm:$0xff] 0.0
        %155 = vst [vmem:[#allocation2 + $0x8] sm:$0xff] 0.0
        %156 = vst [vmem:[#allocation2 + $0x10] sm:$0xff] 0.0
        %157 = vst [vmem:[#allocation2 + $0x18] sm:$0xff] 0.0
        %158 = vst [vmem:[#allocation2 + $0x20] sm:$0xff] 0.0
        %159 = vst [vmem:[#allocation2 + $0x28] sm:$0xff] 0.0
        %160 = vst [vmem:[#allocation2 + $0x30] sm:$0xff] 0.0
        %161 = vst [vmem:[#allocation2 + $0x38] sm:$0xff] 0.0
      $region32: #{ae_forward.11} parent=27 // pred_fallthru
        _
      %v162 = vld [vmem:[#allocation2] sm:$0xff]
      %v163 = vld [vmem:[#allocation2 + $0x8] sm:$0xff]
      %v164 = vld [vmem:[#allocation2 + $0x10] sm:$0xff]
      %v165 = vld [vmem:[#allocation2 + $0x18] sm:$0xff]
      %v166 = vld [vmem:[#allocation2 + $0x20] sm:$0xff]
      %v167 = vld [vmem:[#allocation2 + $0x28] sm:$0xff]
      %v168 = vld [vmem:[#allocation2 + $0x30] sm:$0xff]
      %v169 = vld [vmem:[#allocation2 + $0x38] sm:$0xff]
      %v170 = vld [vmem:[%s148] sm:$0xff]
      %v171 = vld [vmem:[%s148 + $0x8] sm:$0xf]
      %v172 = vld [vmem:[%s148 + $0xc] sm:$0xff]
      %v173 = vld [vmem:[%s148 + $0x14] sm:$0xf]
      %v174 = vld [vmem:[%s148 + $0x18] sm:$0xff]
      %v175 = vld [vmem:[%s148 + $0x20] sm:$0xf]
      %v176 = vld [vmem:[%s148 + $0x24] sm:$0xff]
      %v177 = vld [vmem:[%s148 + $0x2c] sm:$0xf]
      %v178 = vld [vmem:[%s148 + $0x30] sm:$0xff]
      %v179 = vld [vmem:[%s148 + $0x38] sm:$0xf]
      %v180 = vld [vmem:[%s148 + $0x3c] sm:$0xff]
      %v181 = vld [vmem:[%s148 + $0x44] sm:$0xf]
      %v182 = vld [vmem:[%s148 + $0x48] sm:$0xff]
      %v183 = vld [vmem:[%s148 + $0x50] sm:$0xf]
      %v184 = vld [vmem:[%s148 + $0x54] sm:$0xff]
      %v185 = vld [vmem:[%s148 + $0x5c] sm:$0xf]
      %v186 = vld [vmem:[%s143] sm:$0xf]
      %v187 = vld [vmem:[%s143 + $0x4] sm:$0xf]
      %v188 = vld [vmem:[%s143 + $0x8] sm:$0xf]
      %v189 = vld [vmem:[%s143 + $0xc] sm:$0xf]
      %v190 = vld [vmem:[%s143 + $0x10] sm:$0xf]
      %v191 = vld [vmem:[%s143 + $0x14] sm:$0xf]
      %v192 = vld [vmem:[%s143 + $0x18] sm:$0xf]
      %v193 = vld [vmem:[%s143 + $0x1c] sm:$0xf]
      %v194 = vld [vmem:[%s143 + $0x20] sm:$0xf]
      %v195 = vld [vmem:[%s143 + $0x24] sm:$0xf]
      %v196 = vld [vmem:[%s143 + $0x28] sm:$0xf]
      %v197 = vld [vmem:[%s143 + $0x2c] sm:$0xf]
      %v198 = vld [vmem:[%s143 + $0x30] sm:$0xf]
      %v199 = vld [vmem:[%s143 + $0x34] sm:$0xf]
      %v200 = vld [vmem:[%s143 + $0x38] sm:$0xf]
      %v201 = vld [vmem:[%s143 + $0x3c] sm:$0xf]
      %v202 = vld [vmem:[%s143 + $0x40] sm:$0xf]
      %v203 = vld [vmem:[%s143 + $0x44] sm:$0xf]
      %v204 = vld [vmem:[%s143 + $0x48] sm:$0xf]
      %v205 = vld [vmem:[%s143 + $0x4c] sm:$0xf]
      %v206 = vld [vmem:[%s143 + $0x50] sm:$0xf]
      %v207 = vld [vmem:[%s143 + $0x54] sm:$0xf]
      %v208 = vld [vmem:[%s143 + $0x58] sm:$0xf]
      %v209 = vld [vmem:[%s143 + $0x5c] sm:$0xf]
      %v210 = vld [vmem:[%s143 + $0x60] sm:$0xf]
      %v211 = vld [vmem:[%s143 + $0x64] sm:$0xf]
      %v212 = vld [vmem:[%s143 + $0x68] sm:$0xf]
      %v213 = vld [vmem:[%s143 + $0x6c] sm:$0xf]
      %v214 = vld [vmem:[%s143 + $0x70] sm:$0xf]
      %v215 = vld [vmem:[%s143 + $0x74] sm:$0xf]
      %v216 = vld [vmem:[%s143 + $0x78] sm:$0xf]
      %v217 = vld [vmem:[%s143 + $0x7c] sm:$0xf]
      %v218 = vld [vmem:[%s143 + $0x80] sm:$0xf]
      %v219 = vld [vmem:[%s143 + $0x84] sm:$0xf]
      %v220 = vld [vmem:[%s143 + $0x88] sm:$0xf]
      %v221 = vld [vmem:[%s143 + $0x8c] sm:$0xf]
      %v238 = vunpack.c.l.b16 %v170
      %v239 = vunpack.c.h.b16 %v170
      %v240 = vunpack.c.l.b16 %v171
      %v241 = vunpack.c.l.b16 %v172
      %v242 = vunpack.c.h.b16 %v172
      %v243 = vunpack.c.l.b16 %v173
      %v244 = vunpack.c.l.b16 %v174
      %v245 = vunpack.c.h.b16 %v174
      %v246 = vunpack.c.l.b16 %v175
      %v247 = vunpack.c.l.b16 %v176
      %v248 = vunpack.c.h.b16 %v176
      %v249 = vunpack.c.l.b16 %v177
      %v250 = vunpack.c.l.b16 %v178
      %v251 = vunpack.c.h.b16 %v178
      %v252 = vunpack.c.l.b16 %v179
      %v253 = vunpack.c.l.b16 %v180
      %v254 = vunpack.c.h.b16 %v180
      %v255 = vunpack.c.l.b16 %v181
      %v256 = vunpack.c.l.b16 %v182
      %v257 = vunpack.c.h.b16 %v182
      %v258 = vunpack.c.l.b16 %v183
      %v259 = vunpack.c.l.b16 %v184
      %v260 = vunpack.c.h.b16 %v184
      %v261 = vunpack.c.l.b16 %v185
      %v262 = vpack.c.b16 %v241, %v238
      %v263 = vpack.c.b16 %v242, %v239
      %v264 = vpack.c.b16 %v243, %v240
      %v265 = vpack.c.b16 %v247, %v244
      %v266 = vpack.c.b16 %v248, %v245
      %v267 = vpack.c.b16 %v249, %v246
      %v268 = vpack.c.b16 %v253, %v250
      %v269 = vpack.c.b16 %v254, %v251
      %v270 = vpack.c.b16 %v255, %v252
      %v271 = vpack.c.b16 %v259, %v256
      %v272 = vpack.c.b16 %v260, %v257
      %v273 = vpack.c.b16 %v261, %v258
      %v318 = vunpack.c.l.b16 %v186
      %v319 = vunpack.c.l.b16 %v187
      %v320 = vunpack.c.l.b16 %v188
      %v321 = vunpack.c.l.b16 %v189
      %v322 = vunpack.c.l.b16 %v190
      %v323 = vunpack.c.l.b16 %v191
      %v324 = vunpack.c.l.b16 %v192
      %v325 = vunpack.c.l.b16 %v193
      %v326 = vunpack.c.l.b16 %v194
      %v327 = vunpack.c.l.b16 %v195
      %v328 = vunpack.c.l.b16 %v196
      %v329 = vunpack.c.l.b16 %v197
      %v330 = vunpack.c.l.b16 %v198
      %v331 = vunpack.c.l.b16 %v199
      %v332 = vunpack.c.l.b16 %v200
      %v333 = vunpack.c.l.b16 %v201
      %v334 = vunpack.c.l.b16 %v202
      %v335 = vunpack.c.l.b16 %v203
      %v336 = vunpack.c.l.b16 %v204
      %v337 = vunpack.c.l.b16 %v205
      %v338 = vunpack.c.l.b16 %v206
      %v339 = vunpack.c.l.b16 %v207
      %v340 = vunpack.c.l.b16 %v208
      %v341 = vunpack.c.l.b16 %v209
      %v342 = vunpack.c.l.b16 %v210
      %v343 = vunpack.c.l.b16 %v211
      %v344 = vunpack.c.l.b16 %v212
      %v345 = vunpack.c.l.b16 %v213
      %v346 = vunpack.c.l.b16 %v214
      %v347 = vunpack.c.l.b16 %v215
      %v348 = vunpack.c.l.b16 %v216
      %v349 = vunpack.c.l.b16 %v217
      %v350 = vunpack.c.l.b16 %v218
      %v351 = vunpack.c.l.b16 %v219
      %v352 = vunpack.c.l.b16 %v220
      %v353 = vunpack.c.l.b16 %v221
      %v354 = vpack.c.b16 %v319, %v318
      %v355 = vpack.c.b16 %v321, %v320
      %v356 = vpack.c.b16 %v323, %v322
      %v357 = vpack.c.b16 %v325, %v324
      %v358 = vpack.c.b16 %v327, %v326
      %v359 = vpack.c.b16 %v329, %v328
      %v360 = vpack.c.b16 %v331, %v330
      %v361 = vpack.c.b16 %v333, %v332
      %v362 = vpack.c.b16 %v335, %v334
      %v363 = vpack.c.b16 %v337, %v336
      %v364 = vpack.c.b16 %v339, %v338
      %v365 = vpack.c.b16 %v341, %v340
      %v366 = vpack.c.b16 %v343, %v342
      %v367 = vpack.c.b16 %v345, %v344
      %v368 = vpack.c.b16 %v347, %v346
      %v369 = vpack.c.b16 %v349, %v348
      %v370 = vpack.c.b16 %v351, %v350
      %v371 = vpack.c.b16 %v353, %v352
      %vm390 = vcmask 261120
      %v392 = vsel %vm390, %v264, 0
      %v395 = vsel %vm390, %v267, 0
      %v398 = vsel %vm390, %v270, 0
      %v401 = vsel %vm390, %v273, 0
      %403 = vmatprep.subr.bf16.mxu0 0
      %404 = vmatpush1.bf16.msra.mxu0 %v354
      %405 = vmatprep.subr.bf16.mxu0 0
      %406 = vmatpush1.bf16.msra.mxu0 %v355
      %407 = vmatprep.subr.bf16.mxu0 0
      %408 = vmatpush1.bf16.msra.mxu0 %v356
      %409 = vmatprep.subr.bf16.mxu0 0
      %410 = vmatpush1.bf16.msra.mxu0 %v357
      %411 = vmatprep.subr.bf16.mxu0 0
      %412 = vmatpush1.bf16.msra.mxu0 %v358
      %413 = vmatprep.subr.bf16.mxu0 0
      %414 = vmatpush1.bf16.msra.mxu0 %v359
      %415 = vmatprep.subr.bf16.mxu0 0
      %416 = vmatpush1.bf16.msra.mxu0 %v360
      %417 = vmatprep.subr.bf16.mxu0 0
      %418 = vmatpush1.bf16.msra.mxu0 %v361
      %419 = vmatprep.subr.bf16.mxu0 0
      %420 = vmatpush1.bf16.msra.mxu0 %v362
      %421 = vmatprep.subr.bf16.mxu0 0
      %422 = vmatpush1.bf16.msra.mxu0 %v363
      %423 = vmatprep.subr.bf16.mxu0 0
      %424 = vmatpush1.bf16.msra.mxu0 %v364
      %425 = vmatprep.subr.bf16.mxu0 0
      %426 = vmatpush1.bf16.msra.mxu0 %v365
      %427 = vmatprep.subr.bf16.mxu0 0
      %428 = vmatpush1.bf16.msra.mxu0 %v366
      %429 = vmatprep.subr.bf16.mxu0 0
      %430 = vmatpush1.bf16.msra.mxu0 %v367
      %431 = vmatprep.subr.bf16.mxu0 0
      %432 = vmatpush1.bf16.msra.mxu0 %v368
      %433 = vmatprep.subr.bf16.mxu0 0
      %434 = vmatpush1.bf16.msra.mxu0 %v369
      %435 = vmatprep.mubr.bf16.mxu0 %v263
      %436 = vmatmul.mubr.bf16.gmra.mrb[0].mxu0 %v262
      %v437 = vpop.f32.mrb[0].mxu0
      %v438 = vadd.f32 0.0, %v437
      %v439 = vpop.f32.mrb[0].mxu0
      %v440 = vpop.f32.mrb[0].mxu0
      %v441 = vadd.f32 0.0, %v440
      %v442 = vpop.f32.mrb[0].mxu0
      %443 = vmatprep.mubr.bf16.mxu0 %v266
      %444 = vmatmul.mubr.bf16.gmra.mrb[0].mxu0 %v265
      %v445 = vpop.f32.mrb[0].mxu0
      %v446 = vadd.f32 0.0, %v445
      %v447 = vpop.f32.mrb[0].mxu0
      %v448 = vpop.f32.mrb[0].mxu0
      %v449 = vadd.f32 0.0, %v448
      %v450 = vpop.f32.mrb[0].mxu0
      %451 = vmatprep.mubr.bf16.mxu0 %v269
      %452 = vmatmul.mubr.bf16.gmra.mrb[0].mxu0 %v268
      %v453 = vpop.f32.mrb[0].mxu0
      %v454 = vadd.f32 0.0, %v453
      %v455 = vpop.f32.mrb[0].mxu0
      %v456 = vpop.f32.mrb[0].mxu0
      %v457 = vadd.f32 0.0, %v456
      %v458 = vpop.f32.mrb[0].mxu0
      %459 = vmatprep.mubr.bf16.mxu0 %v272
      %460 = vmatmul.mubr.bf16.gmra.mrb[0].mxu0 %v271
      %v461 = vpop.f32.mrb[0].mxu0
      %v462 = vadd.f32 0.0, %v461
      %v463 = vpop.f32.mrb[0].mxu0
      %v464 = vpop.f32.mrb[0].mxu0
      %v465 = vadd.f32 0.0, %v464
      %v466 = vpop.f32.mrb[0].mxu0
      %467 = vdwg.mxu0
      %468 = vmatprep.subr.bf16.mxu0 0
      %469 = vmatpush1.bf16.msra.mxu0 %v370
      %470 = vmatprep.subr.bf16.mxu0 0
      %471 = vmatpush1.bf16.msra.mxu0 %v371
      %472 = vmatprep.subr.bf16.mxu0 0
      %473 = vmatpush1.bf16.msra.mxu0 0
      %474 = vmatprep.subr.bf16.mxu0 0
      %475 = vmatpush1.bf16.msra.mxu0 0
      %476 = vmatprep.subr.bf16.mxu0 0
      %477 = vmatpush1.bf16.msra.mxu0 0
      %478 = vmatprep.subr.bf16.mxu0 0
      %479 = vmatpush1.bf16.msra.mxu0 0
      %480 = vmatprep.subr.bf16.mxu0 0
      %481 = vmatpush1.bf16.msra.mxu0 0
      %482 = vmatprep.subr.bf16.mxu0 0
      %483 = vmatpush1.bf16.msra.mxu0 0
      %484 = vmatprep.subr.bf16.mxu0 0
      %485 = vmatpush1.bf16.msra.mxu0 0
      %486 = vmatprep.subr.bf16.mxu0 0
      %487 = vmatpush1.bf16.msra.mxu0 0
      %488 = vmatprep.subr.bf16.mxu0 0
      %489 = vmatpush1.bf16.msra.mxu0 0
      %490 = vmatprep.subr.bf16.mxu0 0
      %491 = vmatpush1.bf16.msra.mxu0 0
      %492 = vmatprep.subr.bf16.mxu0 0
      %493 = vmatpush1.bf16.msra.mxu0 0
      %494 = vmatprep.subr.bf16.mxu0 0
      %495 = vmatpush1.bf16.msra.mxu0 0
      %496 = vmatprep.subr.bf16.mxu0 0
      %497 = vmatpush1.bf16.msra.mxu0 0
      %498 = vmatprep.subr.bf16.mxu0 0
      %499 = vmatpush1.bf16.msra.mxu0 0
      %500 = vmatprep.mubr.bf16.mxu0 0
      %501 = vmatmul.mubr.bf16.gmra.mrb[0].mxu0 %v392
      %v502 = vpop.f32.mrb[0].mxu0
      %v503 = vadd.f32 %v438, %v502
      %v504 = vpop.f32.mrb[0].mxu0
      %v505 = vpop.f32.mrb[0].mxu0
      %v506 = vadd.f32 %v441, %v505
      %v507 = vpop.f32.mrb[0].mxu0
      %508 = vmatprep.mubr.bf16.mxu0 0
      %509 = vmatmul.mubr.bf16.gmra.mrb[0].mxu0 %v395
      %v510 = vpop.f32.mrb[0].mxu0
      %v511 = vadd.f32 %v446, %v510
      %v512 = vpop.f32.mrb[0].mxu0
      %v513 = vpop.f32.mrb[0].mxu0
      %v514 = vadd.f32 %v449, %v513
      %v515 = vpop.f32.mrb[0].mxu0
      %516 = vmatprep.mubr.bf16.mxu0 0
      %517 = vmatmul.mubr.bf16.gmra.mrb[0].mxu0 %v398
      %v518 = vpop.f32.mrb[0].mxu0
      %v519 = vadd.f32 %v454, %v518
      %v520 = vpop.f32.mrb[0].mxu0
      %v521 = vpop.f32.mrb[0].mxu0
      %v522 = vadd.f32 %v457, %v521
      %v523 = vpop.f32.mrb[0].mxu0
      %524 = vmatprep.mubr.bf16.mxu0 0
      %525 = vmatmul.mubr.bf16.gmra.mrb[0].mxu0 %v401
      %v526 = vpop.f32.mrb[0].mxu0
      %v527 = vadd.f32 %v462, %v526
      %v528 = vpop.f32.mrb[0].mxu0
      %v529 = vpop.f32.mrb[0].mxu0
      %v530 = vadd.f32 %v465, %v529
      %v531 = vpop.f32.mrb[0].mxu0
      %532 = vdwg.mxu0
      %v533 = vadd.f32 %v162, %v503
      %v534 = vadd.f32 %v163, %v506
      %v535 = vadd.f32 %v164, %v511
      %v536 = vadd.f32 %v165, %v514
      %v537 = vadd.f32 %v166, %v519
      %v538 = vadd.f32 %v167, %v522
      %v539 = vadd.f32 %v168, %v527
      %v540 = vadd.f32 %v169, %v530
      %541 = vst [vmem:[#allocation2] sm:$0xff] %v533
      %542 = vst [vmem:[#allocation2 + $0x8] sm:$0xff] %v534
      %543 = vst [vmem:[#allocation2 + $0x10] sm:$0xff] %v535
      %544 = vst [vmem:[#allocation2 + $0x18] sm:$0xff] %v536
      %545 = vst [vmem:[#allocation2 + $0x20] sm:$0xff] %v537
      %546 = vst [vmem:[#allocation2 + $0x28] sm:$0xff] %v538
      %547 = vst [vmem:[#allocation2 + $0x30] sm:$0xff] %v539
      %548 = vst [vmem:[#allocation2 + $0x38] sm:$0xff] %v540
      %p549 = scmp.eq.s32.totalorder %s13, 2
      // Predicated region
      $region33: #{ae_forward.11} parent=27 // pred_check
        %p550 = pneg %p549
      $region34: #{ae_forward.11} parent=27 // pred_check_branch
        %552 = sbr.rel (%p550) target = $region36
      $region35: #{ae_forward.11} parent=27 // pred_region
        %v553 = vld [vmem:[#allocation2] sm:$0xff]
        %v554 = vld [vmem:[#allocation2 + $0x8] sm:$0xff]
        %v555 = vld [vmem:[#allocation2 + $0x10] sm:$0xff]
        %v556 = vld [vmem:[#allocation2 + $0x18] sm:$0xff]
        %v557 = vld [vmem:[#allocation2 + $0x20] sm:$0xff]
        %v558 = vld [vmem:[#allocation2 + $0x28] sm:$0xff]
        %v559 = vld [vmem:[#allocation2 + $0x30] sm:$0xff]
        %v560 = vld [vmem:[#allocation2 + $0x38] sm:$0xff]
        %561 = vadd.xlane.f32.xlu0 %v553
        %v562 = vpop.xlane.xlu0 %561
        %563 = vadd.xlane.f32.xlu0 %v554
        %v564 = vpop.xlane.xlu0 %563
        %565 = vadd.xlane.f32.xlu0 %v555
        %v566 = vpop.xlane.xlu0 %565
        %567 = vadd.xlane.f32.xlu0 %v556
        %v568 = vpop.xlane.xlu0 %567
        %569 = vadd.xlane.f32.xlu0 %v557
        %v570 = vpop.xlane.xlu0 %569
        %571 = vadd.xlane.f32.xlu0 %v558
        %v572 = vpop.xlane.xlu0 %571
        %573 = vadd.xlane.f32.xlu0 %v559
        %v574 = vpop.xlane.xlu0 %573
        %575 = vadd.xlane.f32.xlu0 %v560
        %v576 = vpop.xlane.xlu0 %575
        %v577 = vmul.f32 %v562, 0.018518519
        %v578 = vmul.f32 %v564, 0.018518519
        %v579 = vmul.f32 %v566, 0.018518519
        %v580 = vmul.f32 %v568, 0.018518519
        %v581 = vmul.f32 %v570, 0.018518519
        %v582 = vmul.f32 %v572, 0.018518519
        %v583 = vmul.f32 %v574, 0.018518519
        %v584 = vmul.f32 %v576, 0.018518519
        %v585 = vmul.f32 %v553, %v553
        %v586 = vmul.f32 %v554, %v554
        %v587 = vmul.f32 %v555, %v555
        %v588 = vmul.f32 %v556, %v556
        %v589 = vmul.f32 %v557, %v557
        %v590 = vmul.f32 %v558, %v558
        %v591 = vmul.f32 %v559, %v559
        %v592 = vmul.f32 %v560, %v560
        %593 = vadd.xlane.f32.xlu0 %v585
        %v594 = vpop.xlane.xlu0 %593
        %595 = vadd.xlane.f32.xlu0 %v586
        %v596 = vpop.xlane.xlu0 %595
        %597 = vadd.xlane.f32.xlu0 %v587
        %v598 = vpop.xlane.xlu0 %597
        %599 = vadd.xlane.f32.xlu0 %v588
        %v600 = vpop.xlane.xlu0 %599
        %601 = vadd.xlane.f32.xlu0 %v589
        %v602 = vpop.xlane.xlu0 %601
        %603 = vadd.xlane.f32.xlu0 %v590
        %v604 = vpop.xlane.xlu0 %603
        %605 = vadd.xlane.f32.xlu0 %v591
        %v606 = vpop.xlane.xlu0 %605
        %607 = vadd.xlane.f32.xlu0 %v592
        %v608 = vpop.xlane.xlu0 %607
        %v609 = vmul.f32 %v594, 0.018518519
        %v610 = vmul.f32 %v596, 0.018518519
        %v611 = vmul.f32 %v598, 0.018518519
        %v612 = vmul.f32 %v600, 0.018518519
        %v613 = vmul.f32 %v602, 0.018518519
        %v614 = vmul.f32 %v604, 0.018518519
        %v615 = vmul.f32 %v606, 0.018518519
        %v616 = vmul.f32 %v608, 0.018518519
        %v617 = vmul.f32 %v577, %v577
        %v618 = vmul.f32 %v578, %v578
        %v619 = vmul.f32 %v579, %v579
        %v620 = vmul.f32 %v580, %v580
        %v621 = vmul.f32 %v581, %v581
        %v622 = vmul.f32 %v582, %v582
        %v623 = vmul.f32 %v583, %v583
        %v624 = vmul.f32 %v584, %v584
        %v625 = vsub.f32 %v609, %v617
        %v626 = vsub.f32 %v610, %v618
        %v627 = vsub.f32 %v611, %v619
        %v628 = vsub.f32 %v612, %v620
        %v629 = vsub.f32 %v613, %v621
        %v630 = vsub.f32 %v614, %v622
        %v631 = vsub.f32 %v615, %v623
        %v632 = vsub.f32 %v616, %v624
        %v633 = vmax.f32 %v625, 0.0
        %v634 = vmax.f32 %v626, 0.0
        %v635 = vmax.f32 %v627, 0.0
        %v636 = vmax.f32 %v628, 0.0
        %v637 = vmax.f32 %v629, 0.0
        %v638 = vmax.f32 %v630, 0.0
        %v639 = vmax.f32 %v631, 0.0
        %v640 = vmax.f32 %v632, 0.0
        %v641 = vsub.f32 %v553, %v577
        %v642 = vsub.f32 %v554, %v578
        %v643 = vsub.f32 %v555, %v579
        %v644 = vsub.f32 %v556, %v580
        %v645 = vsub.f32 %v557, %v581
        %v646 = vsub.f32 %v558, %v582
        %v647 = vsub.f32 %v559, %v583
        %v648 = vsub.f32 %v560, %v584
        %v649 = vadd.f32 %v633, 1e-05
        %v650 = vadd.f32 %v634, 1e-05
        %v651 = vadd.f32 %v635, 1e-05
        %v652 = vadd.f32 %v636, 1e-05
        %v653 = vadd.f32 %v637, 1e-05
        %v654 = vadd.f32 %v638, 1e-05
        %v655 = vadd.f32 %v639, 1e-05
        %v656 = vadd.f32 %v640, 1e-05
        %v657 = vrsqrt.pop %v649
        %v658 = vrsqrt.pop %v650
        %v659 = vrsqrt.pop %v651
        %v660 = vrsqrt.pop %v652
        %v661 = vrsqrt.pop %v653
        %v662 = vrsqrt.pop %v654
        %v663 = vrsqrt.pop %v655
        %v664 = vrsqrt.pop %v656
        %v665 = vmul.f32 %v641, %v657
        %v666 = vmul.f32 %v642, %v658
        %v667 = vmul.f32 %v643, %v659
        %v668 = vmul.f32 %v644, %v660
        %v669 = vmul.f32 %v645, %v661
        %v670 = vmul.f32 %v646, %v662
        %v671 = vmul.f32 %v647, %v663
        %v672 = vmul.f32 %v648, %v664
        %v673 = vmax.f32 %v665, 0.0
        %v674 = vmax.f32 %v666, 0.0
        %v675 = vmax.f32 %v667, 0.0
        %v676 = vmax.f32 %v668, 0.0
        %v677 = vmax.f32 %v669, 0.0
        %v678 = vmax.f32 %v670, 0.0
        %v679 = vmax.f32 %v671, 0.0
        %v680 = vmax.f32 %v672, 0.0
        %681 = vst [vmem:[%s2] sm:$0xff] %v673
        %682 = vst [vmem:[%s2 + $0x8] sm:$0xff] %v674
        %683 = vst [vmem:[%s2 + $0x10] sm:$0xff] %v675
        %684 = vst [vmem:[%s2 + $0x18] sm:$0xff] %v676
        %685 = vst [vmem:[%s2 + $0x20] sm:$0xff] %v677
        %686 = vst [vmem:[%s2 + $0x28] sm:$0xff] %v678
        %687 = vst [vmem:[%s2 + $0x30] sm:$0xff] %v679
        %688 = vst [vmem:[%s2 + $0x38] sm:$0xff] %v680
      $region36: #{ae_forward.11} parent=27 // pred_fallthru
        _
      // Predicated region
      $region37: #{ae_forward.11} parent=27 // pred_check
        %p689 = pneg %p78
      $region38: #{ae_forward.11} parent=27 // pred_check_branch
        %691 = sbr.rel (%p689) target = $region40
      $region39: #{ae_forward.11} parent=27 // pred_region
        _
      $region40: #{ae_forward.11} parent=27 // pred_fallthru
        _
      // Predicated region
      $region41: #{ae_forward.11} parent=27 // pred_check
        %p692 = pneg %p78
      $region42: #{ae_forward.11} parent=27 // pred_check_branch
        %694 = sbr.rel (%p692) target = $region44
      $region43: #{ae_forward.11} parent=27 // pred_region
        _
      $region44: #{ae_forward.11} parent=27 // pred_fallthru
        _
    $region28: #{ae_forward.11} parent=5 // pred_fallthru
      _
    %p695 = scmp.le.s32.totalorder 2, %s8
    // Predicated region
    $region45: #{ae_forward.11} parent=5 // pred_check
      %p696 = pneg %p695
    $region46: #{ae_forward.11} parent=5 // pred_check_branch
      %698 = sbr.rel (%p696) target = $region48
    $region47: #{ae_forward.11} parent=5 // pred_region
      %s699 = ssub.s32 %s8, 2
    $region48: #{ae_forward.11} parent=5 // pred_fallthru
      _
  $region6: #{ae_forward.11} parent=0 // loop_footer
    %s12 = sadd.s32 1, %s8
  $region7: #{ae_forward.11} parent=0 // loop_footer_branch
    %7 = sbr.rel target = $region3
  $region8: #{ae_forward.11} parent=0 // loop_exit
    _

// kernel: ae_forward.12
$region0: #{ae_forward.12}
  #allocation0 [shape = 'u32[]', space=smem, size = 0x4, offset = 0x4, fixed_abs, tag = 'smem constant byte address 0x4 - core index']
  #allocation1 [shape = 'u32[144,128]{1,0:T(1,128)}', space=vmem, size = 0x12000, scoped, tag = 'internal scratch']
  #allocation2 [shape = 'f32[32,256]{1,0:T(8,128)}', space=vmem, size = 0x8000, scoped, tag = 'scratch operand']
  %s0 = inlined_call_operand.vmem [shape: bf16[3,576,256], index: 0, kind: input, shape index: {}]
  %s1 = inlined_call_operand.vmem [shape: bf16[3,32,576], index: 1, kind: input, shape index: {}]
  %s2 = inlined_call_operand.vmem [shape: f32[32,256], index: 2, kind: output, shape index: {}]
  %s3 = sld [smem:[#allocation0]]
  $region49: #{ae_forward.12} parent=0
    _
  %s5 = ssub.s32 1, %s3
  %s6 = scalar_select 0, %s5, %s3
  loop: start=0, step=1, limit=5
  $region2: #{ae_forward.12} parent=0 // loop_pre_header
    _
  $region3: #{ae_forward.12} parent=0 // loop_header
    %s8 = sphi 0, %s12
    %p9 = scmp.ge.s32.totalorder %s8, 5
    %s18 = sphi 0, %s20
    %s21 = sphi 0, %s18
    %s22 = sphi 0, %s21
    %s38 = sphi 0, %s22
    %s44 = sphi 0, %s46
    %s47 = sphi 0, %s44
    %s48 = sphi 0, %s47
    %s64 = sphi 0, %s48
    %s68 = sphi 0, %s68
    %s70 = sphi 0, %s68
    %s71 = sphi 0, %s70
    %s85 = sphi 0, %s71
  $region4: #{ae_forward.12} parent=0 // loop_header_branch
    %11 = sbr.rel (%p9) target = $region8
  $region5: #{ae_forward.12} parent=0 // loop_body
    %s13 = ssub.s32 %s8, 1
    %s14 = ssub.s32 %s8, 2
    %s15 = sadd.s32 %s8, 1
    %s16 = ssub.s32 %s8, %s15
    %p17 = scmp.eq.s32.totalorder %s16, 0
    %s19 = sadd.s32 %s18, 1
    %s20 = scalar_select %p17, %s18, %s19
    %p23 = pneg %p17
    %p24 = scmp.eq.s32.totalorder %s8, 2
    %p25 = por %p23, %p24
    %p26 = scmp.ne.s32.totalorder %s18, %s21
    %p27 = scmp.eq.s32.totalorder %s8, 0
    %p28 = por %p26, %p27
    %p29 = scmp.ne.s32.totalorder %s18, %s21
    %p30 = scmp.eq.s32.totalorder %s13, 2
    %p31 = por %p29, %p30
    %p32 = scmp.ne.s32.totalorder %s21, %s22
    %p33 = scmp.eq.s32.totalorder %s13, 0
    %p34 = por %p32, %p33
    %p35 = scmp.ne.s32.totalorder %s21, %s22
    %p36 = scmp.eq.s32.totalorder %s14, 2
    %p37 = por %p35, %p36
    %p39 = scmp.ne.s32.totalorder %s22, %s38
    %p40 = scmp.eq.s32.totalorder %s14, 0
    %p41 = por %p39, %p40
    %s42 = ssub.s32 %s8, %s15
    %p43 = scmp.eq.s32.totalorder %s42, 0
    %s45 = sadd.s32 %s44, 1
    %s46 = scalar_select %p43, %s44, %s45
    %p49 = pneg %p43
    %p50 = scmp.eq.s32.totalorder %s8, 2
    %p51 = por %p49, %p50
    %p52 = scmp.ne.s32.totalorder %s44, %s47
    %p53 = scmp.eq.s32.totalorder %s8, 0
    %p54 = por %p52, %p53
    %p55 = scmp.ne.s32.totalorder %s44, %s47
    %p56 = scmp.eq.s32.totalorder %s13, 2
    %p57 = por %p55, %p56
    %p58 = scmp.ne.s32.totalorder %s47, %s48
    %p59 = scmp.eq.s32.totalorder %s13, 0
    %p60 = por %p58, %p59
    %p61 = scmp.ne.s32.totalorder %s47, %s48
    %p62 = scmp.eq.s32.totalorder %s14, 2
    %p63 = por %p61, %p62
    %p65 = scmp.ne.s32.totalorder %s48, %s64
    %p66 = scmp.eq.s32.totalorder %s14, 0
    %p67 = por %p65, %p66
    %s69 = sadd.s32 %s68, 1
    %p72 = scmp.eq.s32.totalorder %s8, 2
    %p73 = scmp.ne.s32.totalorder %s68, %s70
    %p74 = scmp.eq.s32.totalorder %s8, 0
    %p75 = por %p73, %p74
    %p76 = scmp.ne.s32.totalorder %s68, %s70
    %p77 = scmp.eq.s32.totalorder %s13, 2
    %p78 = por %p76, %p77
    %p79 = scmp.ne.s32.totalorder %s70, %s71
    %p80 = scmp.eq.s32.totalorder %s13, 0
    %p81 = por %p79, %p80
    %p82 = scmp.ne.s32.totalorder %s70, %s71
    %p83 = scmp.eq.s32.totalorder %s14, 2
    %p84 = por %p82, %p83
    %p86 = scmp.ne.s32.totalorder %s71, %s85
    %p87 = scmp.eq.s32.totalorder %s14, 0
    %p88 = por %p86, %p87
    %p89 = scmp.le.s32.totalorder 1, %s8
    %p90 = scmp.lt.s32.totalorder %s8, 4
    %p91 = pnand %p89, %p90
    %p92 = pneg %p91
    // Predicated region
    $region9: #{ae_forward.12} parent=5 // pred_check
      _
    $region10: #{ae_forward.12} parent=5 // pred_check_branch
      %94 = sbr.rel (%p91) target = $region12
    $region11: #{ae_forward.12} parent=5 // pred_region
      %s95 = ssub.s32 %s8, 1
    $region12: #{ae_forward.12} parent=5 // pred_fallthru
      _
    %p96 = scmp.lt.s32.totalorder %s8, 3
    // Predicated region
    $region13: #{ae_forward.12} parent=5 // pred_check
      %p97 = pneg %p96
    $region14: #{ae_forward.12} parent=5 // pred_check_branch
      %99 = sbr.rel (%p97) target = $region16
    $region15: #{ae_forward.12} parent=5 // pred_region
      // Predicated region
      $region17: #{ae_forward.12} parent=15 // pred_check
        %p100 = pneg %p28
      $region18: #{ae_forward.12} parent=15 // pred_check_branch
        %102 = sbr.rel (%p100) target = $region20
      $region19: #{ae_forward.12} parent=15 // pred_region
        %p103 = scmp.lt.s32.totalorder %s8, 2
        %s104 = scalar_select %p103, %s8, 2
        %s105 = smul.addr %s104, 144
        %s106 = smul.addr %s105, 4
        %s107 = scalar_lea.vmem %s0, %s106
      $region20: #{ae_forward.12} parent=15 // pred_fallthru
        _
      // Predicated region
      $region21: #{ae_forward.12} parent=15 // pred_check
        %p108 = pneg %p54
      $region22: #{ae_forward.12} parent=15 // pred_check_branch
        %110 = sbr.rel (%p108) target = $region24
      $region23: #{ae_forward.12} parent=15 // pred_region
        %p111 = scmp.lt.s32.totalorder %s8, 2
        %s112 = scalar_select %p111, %s8, 2
        %s113 = smul.addr %s112, 20
        %s114 = smul.addr %s113, 4
        %s115 = scalar_lea.vmem %s1, %s114
      $region24: #{ae_forward.12} parent=15 // pred_fallthru
        _
    $region16: #{ae_forward.12} parent=5 // pred_fallthru
      _
    %p116 = scmp.le.s32.totalorder 1, %s8
    %p117 = scmp.lt.s32.totalorder %s8, 4
    %p118 = pnand %p116, %p117
    %p119 = pneg %p118
    // Predicated region
    $region25: #{ae_forward.12} parent=5 // pred_check
      _
    $region26: #{ae_forward.12} parent=5 // pred_check_branch
      %121 = sbr.rel (%p118) target = $region28
    $region27: #{ae_forward.12} parent=5 // pred_region
      %s122 = ssub.s32 %s8, 1
      %p123 = scmp.lt.s32.totalorder %s13, 2
      %s124 = scalar_select %p123, %s13, 2
      %s125 = smul.addr %s124, 144
      %s126 = smul.addr %s125, 4
      %s127 = scalar_lea.vmem %s0, %s126
      %p128 = pneg %p34
      %p129 = pneg %p31
      %p130 = scmp.lt.s32.totalorder %s13, 2
      %s131 = scalar_select %p130, %s13, 2
      %s132 = smul.addr %s131, 20
      %s133 = smul.addr %s132, 4
      %s134 = scalar_lea.vmem %s1, %s133
      %p135 = pneg %p60
      %p136 = pneg %p57
      %p137 = pneg %p81
      %p138 = pneg %p78
      %p139 = scmp.lt.s32.totalorder %s13, 2
      %s140 = scalar_select %p139, %s13, 2
      %s141 = smul.addr %s140, 144
      %s142 = smul.addr %s141, 4
      %s143 = scalar_lea.vmem %s0, %s142
      %p144 = scmp.lt.s32.totalorder %s13, 2
      %s145 = scalar_select %p144, %s13, 2
      %s146 = smul.addr %s145, 20
      %s147 = smul.addr %s146, 4
      %s148 = scalar_lea.vmem %s1, %s147
      %p150 = scmp.eq.s32.totalorder %s13, 0
      // Predicated region
      $region29: #{ae_forward.12} parent=27 // pred_check
        %p151 = pneg %p150
      $region30: #{ae_forward.12} parent=27 // pred_check_branch
        %153 = sbr.rel (%p151) target = $region32
      $region31: #{ae_forward.12} parent=27 // pred_region
        %154 = vst [vmem:[#allocation2] sm:$0xff] 0.0
        %155 = vst [vmem:[#allocation2 + $0x8] sm:$0xff] 0.0
        %156 = vst [vmem:[#allocation2 + $0x10] sm:$0xff] 0.0
        %157 = vst [vmem:[#allocation2 + $0x18] sm:$0xff] 0.0
        %158 = vst [vmem:[#allocation2 + $0x20] sm:$0xff] 0.0
        %159 = vst [vmem:[#allocation2 + $0x28] sm:$0xff] 0.0
        %160 = vst [vmem:[#allocation2 + $0x30] sm:$0xff] 0.0
        %161 = vst [vmem:[#allocation2 + $0x38] sm:$0xff] 0.0
      $region32: #{ae_forward.12} parent=27 // pred_fallthru
        _
      %v162 = vld [vmem:[#allocation2] sm:$0xff]
      %v163 = vld [vmem:[#allocation2 + $0x8] sm:$0xff]
      %v164 = vld [vmem:[#allocation2 + $0x10] sm:$0xff]
      %v165 = vld [vmem:[#allocation2 + $0x18] sm:$0xff]
      %v166 = vld [vmem:[#allocation2 + $0x20] sm:$0xff]
      %v167 = vld [vmem:[#allocation2 + $0x28] sm:$0xff]
      %v168 = vld [vmem:[#allocation2 + $0x30] sm:$0xff]
      %v169 = vld [vmem:[#allocation2 + $0x38] sm:$0xff]
      %v170 = vld [vmem:[%s148] sm:$0xff]
      %v171 = vld [vmem:[%s148 + $0x8] sm:$0xff]
      %v172 = vld [vmem:[%s148 + $0x10] sm:$0xf]
      %v173 = vld [vmem:[%s148 + $0x14] sm:$0xff]
      %v174 = vld [vmem:[%s148 + $0x1c] sm:$0xff]
      %v175 = vld [vmem:[%s148 + $0x24] sm:$0xf]
      %v176 = vld [vmem:[%s148 + $0x28] sm:$0xff]
      %v177 = vld [vmem:[%s148 + $0x30] sm:$0xff]
      %v178 = vld [vmem:[%s148 + $0x38] sm:$0xf]
      %v179 = vld [vmem:[%s148 + $0x3c] sm:$0xff]
      %v180 = vld [vmem:[%s148 + $0x44] sm:$0xff]
      %v181 = vld [vmem:[%s148 + $0x4c] sm:$0xf]
      %v182 = vld [vmem:[%s143] sm:$0xff]
      %v183 = vld [vmem:[%s143 + $0x8] sm:$0xff]
      %v184 = vld [vmem:[%s143 + $0x10] sm:$0xff]
      %v185 = vld [vmem:[%s143 + $0x18] sm:$0xff]
      %v186 = vld [vmem:[%s143 + $0x20] sm:$0xff]
      %v187 = vld [vmem:[%s143 + $0x28] sm:$0xff]
      %v188 = vld [vmem:[%s143 + $0x30] sm:$0xff]
      %v189 = vld [vmem:[%s143 + $0x38] sm:$0xff]
      %v190 = vld [vmem:[%s143 + $0x40] sm:$0xff]
      %v191 = vld [vmem:[%s143 + $0x48] sm:$0xff]
      %v192 = vld [vmem:[%s143 + $0x50] sm:$0xff]
      %v193 = vld [vmem:[%s143 + $0x58] sm:$0xff]
      %v194 = vld [vmem:[%s143 + $0x60] sm:$0xff]
      %v195 = vld [vmem:[%s143 + $0x68] sm:$0xff]
      %v196 = vld [vmem:[%s143 + $0x70] sm:$0xff]
      %v197 = vld [vmem:[%s143 + $0x78] sm:$0xff]
      %v198 = vld [vmem:[%s143 + $0x80] sm:$0xff]
      %v199 = vld [vmem:[%s143 + $0x88] sm:$0xff]
      %v200 = vld [vmem:[%s143 + $0x90] sm:$0xff]
      %v201 = vld [vmem:[%s143 + $0x98] sm:$0xff]
      %v202 = vld [vmem:[%s143 + $0xa0] sm:$0xff]
      %v203 = vld [vmem:[%s143 + $0xa8] sm:$0xff]
      %v204 = vld [vmem:[%s143 + $0xb0] sm:$0xff]
      %v205 = vld [vmem:[%s143 + $0xb8] sm:$0xff]
      %v206 = vld [vmem:[%s143 + $0xc0] sm:$0xff]
      %v207 = vld [vmem:[%s143 + $0xc8] sm:$0xff]
      %v208 = vld [vmem:[%s143 + $0xd0] sm:$0xff]
      %v209 = vld [vmem:[%s143 + $0xd8] sm:$0xff]
      %v210 = vld [vmem:[%s143 + $0xe0] sm:$0xff]
      %v211 = vld [vmem:[%s143 + $0xe8] sm:$0xff]
      %v212 = vld [vmem:[%s143 + $0xf0] sm:$0xff]
      %v213 = vld [vmem:[%s143 + $0xf8] sm:$0xff]
      %v214 = vld [vmem:[%s143 + $0x100] sm:$0xff]
      %v215 = vld [vmem:[%s143 + $0x108] sm:$0xff]
      %v216 = vld [vmem:[%s143 + $0x110] sm:$0xff]
      %v217 = vld [vmem:[%s143 + $0x118] sm:$0xff]
      %v218 = vld [vmem:[%s143 + $0x120] sm:$0xff]
      %v219 = vld [vmem:[%s143 + $0x128] sm:$0xff]
      %v220 = vld [vmem:[%s143 + $0x130] sm:$0xff]
      %v221 = vld [vmem:[%s143 + $0x138] sm:$0xff]
      %v222 = vld [vmem:[%s143 + $0x140] sm:$0xff]
      %v223 = vld [vmem:[%s143 + $0x148] sm:$0xff]
      %v224 = vld [vmem:[%s143 + $0x150] sm:$0xff]
      %v225 = vld [vmem:[%s143 + $0x158] sm:$0xff]
      %v226 = vld [vmem:[%s143 + $0x160] sm:$0xff]
      %v227 = vld [vmem:[%s143 + $0x168] sm:$0xff]
      %v228 = vld [vmem:[%s143 + $0x170] sm:$0xff]
      %v229 = vld [vmem:[%s143 + $0x178] sm:$0xff]
      %v230 = vld [vmem:[%s143 + $0x180] sm:$0xff]
      %v231 = vld [vmem:[%s143 + $0x188] sm:$0xff]
      %v232 = vld [vmem:[%s143 + $0x190] sm:$0xff]
      %v233 = vld [vmem:[%s143 + $0x198] sm:$0xff]
      %v234 = vld [vmem:[%s143 + $0x1a0] sm:$0xff]
      %v235 = vld [vmem:[%s143 + $0x1a8] sm:$0xff]
      %v236 = vld [vmem:[%s143 + $0x1b0] sm:$0xff]
      %v237 = vld [vmem:[%s143 + $0x1b8] sm:$0xff]
      %v238 = vld [vmem:[%s143 + $0x1c0] sm:$0xff]
      %v239 = vld [vmem:[%s143 + $0x1c8] sm:$0xff]
      %v240 = vld [vmem:[%s143 + $0x1d0] sm:$0xff]
      %v241 = vld [vmem:[%s143 + $0x1d8] sm:$0xff]
      %v242 = vld [vmem:[%s143 + $0x1e0] sm:$0xff]
      %v243 = vld [vmem:[%s143 + $0x1e8] sm:$0xff]
      %v244 = vld [vmem:[%s143 + $0x1f0] sm:$0xff]
      %v245 = vld [vmem:[%s143 + $0x1f8] sm:$0xff]
      %v246 = vld [vmem:[%s143 + $0x200] sm:$0xff]
      %v247 = vld [vmem:[%s143 + $0x208] sm:$0xff]
      %v248 = vld [vmem:[%s143 + $0x210] sm:$0xff]
      %v249 = vld [vmem:[%s143 + $0x218] sm:$0xff]
      %v250 = vld [vmem:[%s143 + $0x220] sm:$0xff]
      %v251 = vld [vmem:[%s143 + $0x228] sm:$0xff]
      %v252 = vld [vmem:[%s143 + $0x230] sm:$0xff]
      %v253 = vld [vmem:[%s143 + $0x238] sm:$0xff]
      %v266 = vunpack.c.l.b16 %v170
      %v267 = vunpack.c.h.b16 %v170
      %v268 = vunpack.c.l.b16 %v171
      %v269 = vunpack.c.h.b16 %v171
      %v270 = vunpack.c.l.b16 %v172
      %v271 = vunpack.c.l.b16 %v173
      %v272 = vunpack.c.h.b16 %v173
      %v273 = vunpack.c.l.b16 %v174
      %v274 = vunpack.c.h.b16 %v174
      %v275 = vunpack.c.l.b16 %v175
      %v276 = vunpack.c.l.b16 %v176
      %v277 = vunpack.c.h.b16 %v176
      %v278 = vunpack.c.l.b16 %v177
      %v279 = vunpack.c.h.b16 %v177
      %v280 = vunpack.c.l.b16 %v178
      %v281 = vunpack.c.l.b16 %v179
      %v282 = vunpack.c.h.b16 %v179
      %v283 = vunpack.c.l.b16 %v180
      %v284 = vunpack.c.h.b16 %v180
      %v285 = vunpack.c.l.b16 %v181
      %v286 = vpack.c.b16 %v271, %v266
      %v287 = vpack.c.b16 %v272, %v267
      %v288 = vpack.c.b16 %v273, %v268
      %v289 = vpack.c.b16 %v274, %v269
      %v290 = vpack.c.b16 %v275, %v270
      %v291 = vpack.c.b16 %v281, %v276
      %v292 = vpack.c.b16 %v282, %v277
      %v293 = vpack.c.b16 %v283, %v278
      %v294 = vpack.c.b16 %v284, %v279
      %v295 = vpack.c.b16 %v285, %v280
      %v376 = vunpack.c.l.b16 %v182
      %v377 = vunpack.c.h.b16 %v182
      %v378 = vunpack.c.l.b16 %v183
      %v379 = vunpack.c.h.b16 %v183
      %v380 = vunpack.c.l.b16 %v184
      %v381 = vunpack.c.h.b16 %v184
      %v382 = vunpack.c.l.b16 %v185
      %v383 = vunpack.c.h.b16 %v185
      %v384 = vunpack.c.l.b16 %v186
      %v385 = vunpack.c.h.b16 %v186
      %v386 = vunpack.c.l.b16 %v187
      %v387 = vunpack.c.h.b16 %v187
      %v388 = vunpack.c.l.b16 %v188
      %v389 = vunpack.c.h.b16 %v188
      %v390 = vunpack.c.l.b16 %v189
      %v391 = vunpack.c.h.b16 %v189
      %v392 = vunpack.c.l.b16 %v190
      %v393 = vunpack.c.h.b16 %v190
      %v394 = vunpack.c.l.b16 %v191
      %v395 = vunpack.c.h.b16 %v191
      %v396 = vunpack.c.l.b16 %v192
      %v397 = vunpack.c.h.b16 %v192
      %v398 = vunpack.c.l.b16 %v193
      %v399 = vunpack.c.h.b16 %v193
      %v400 = vunpack.c.l.b16 %v194
      %v401 = vunpack.c.h.b16 %v194
      %v402 = vunpack.c.l.b16 %v195
      %v403 = vunpack.c.h.b16 %v195
      %v404 = vunpack.c.l.b16 %v196
      %v405 = vunpack.c.h.b16 %v196
      %v406 = vunpack.c.l.b16 %v197
      %v407 = vunpack.c.h.b16 %v197
      %v408 = vunpack.c.l.b16 %v198
      %v409 = vunpack.c.h.b16 %v198
      %v410 = vunpack.c.l.b16 %v199
      %v411 = vunpack.c.h.b16 %v199
      %v412 = vunpack.c.l.b16 %v200
      %v413 = vunpack.c.h.b16 %v200
      %v414 = vunpack.c.l.b16 %v201
      %v415 = vunpack.c.h.b16 %v201
      %v416 = vunpack.c.l.b16 %v202
      %v417 = vunpack.c.h.b16 %v202
      %v418 = vunpack.c.l.b16 %v203
      %v419 = vunpack.c.h.b16 %v203
      %v420 = vunpack.c.l.b16 %v204
      %v421 = vunpack.c.h.b16 %v204
      %v422 = vunpack.c.l.b16 %v205
      %v423 = vunpack.c.h.b16 %v205
      %v424 = vunpack.c.l.b16 %v206
      %v425 = vunpack.c.h.b16 %v206
      %v426 = vunpack.c.l.b16 %v207
      %v427 = vunpack.c.h.b16 %v207
      %v428 = vunpack.c.l.b16 %v208
      %v429 = vunpack.c.h.b16 %v208
      %v430 = vunpack.c.l.b16 %v209
      %v431 = vunpack.c.h.b16 %v209
      %v432 = vunpack.c.l.b16 %v210
      %v433 = vunpack.c.h.b16 %v210
      %v434 = vunpack.c.l.b16 %v211
      %v435 = vunpack.c.h.b16 %v211
      %v436 = vunpack.c.l.b16 %v212
      %v437 = vunpack.c.h.b16 %v212
      %v438 = vunpack.c.l.b16 %v213
      %v439 = vunpack.c.h.b16 %v213
      %v440 = vunpack.c.l.b16 %v214
      %v441 = vunpack.c.h.b16 %v214
      %v442 = vunpack.c.l.b16 %v215
      %v443 = vunpack.c.h.b16 %v215
      %v444 = vunpack.c.l.b16 %v216
      %v445 = vunpack.c.h.b16 %v216
      %v446 = vunpack.c.l.b16 %v217
      %v447 = vunpack.c.h.b16 %v217
      %v448 = vunpack.c.l.b16 %v218
      %v449 = vunpack.c.h.b16 %v218
      %v450 = vunpack.c.l.b16 %v219
      %v451 = vunpack.c.h.b16 %v219
      %v452 = vunpack.c.l.b16 %v220
      %v453 = vunpack.c.h.b16 %v220
      %v454 = vunpack.c.l.b16 %v221
      %v455 = vunpack.c.h.b16 %v221
      %v456 = vunpack.c.l.b16 %v222
      %v457 = vunpack.c.h.b16 %v222
      %v458 = vunpack.c.l.b16 %v223
      %v459 = vunpack.c.h.b16 %v223
      %v460 = vunpack.c.l.b16 %v224
      %v461 = vunpack.c.h.b16 %v224
      %v462 = vunpack.c.l.b16 %v225
      %v463 = vunpack.c.h.b16 %v225
      %v464 = vunpack.c.l.b16 %v226
      %v465 = vunpack.c.h.b16 %v226
      %v466 = vunpack.c.l.b16 %v227
      %v467 = vunpack.c.h.b16 %v227
      %v468 = vunpack.c.l.b16 %v228
      %v469 = vunpack.c.h.b16 %v228
      %v470 = vunpack.c.l.b16 %v229
      %v471 = vunpack.c.h.b16 %v229
      %v472 = vunpack.c.l.b16 %v230
      %v473 = vunpack.c.h.b16 %v230
      %v474 = vunpack.c.l.b16 %v231
      %v475 = vunpack.c.h.b16 %v231
      %v476 = vunpack.c.l.b16 %v232
      %v477 = vunpack.c.h.b16 %v232
      %v478 = vunpack.c.l.b16 %v233
      %v479 = vunpack.c.h.b16 %v233
      %v480 = vunpack.c.l.b16 %v234
      %v481 = vunpack.c.h.b16 %v234
      %v482 = vunpack.c.l.b16 %v235
      %v483 = vunpack.c.h.b16 %v235
      %v484 = vunpack.c.l.b16 %v236
      %v485 = vunpack.c.h.b16 %v236
      %v486 = vunpack.c.l.b16 %v237
      %v487 = vunpack.c.h.b16 %v237
      %v488 = vunpack.c.l.b16 %v238
      %v489 = vunpack.c.h.b16 %v238
      %v490 = vunpack.c.l.b16 %v239
      %v491 = vunpack.c.h.b16 %v239
      %v492 = vunpack.c.l.b16 %v240
      %v493 = vunpack.c.h.b16 %v240
      %v494 = vunpack.c.l.b16 %v241
      %v495 = vunpack.c.h.b16 %v241
      %v496 = vunpack.c.l.b16 %v242
      %v497 = vunpack.c.h.b16 %v242
      %v498 = vunpack.c.l.b16 %v243
      %v499 = vunpack.c.h.b16 %v243
      %v500 = vunpack.c.l.b16 %v244
      %v501 = vunpack.c.h.b16 %v244
      %v502 = vunpack.c.l.b16 %v245
      %v503 = vunpack.c.h.b16 %v245
      %v504 = vunpack.c.l.b16 %v246
      %v505 = vunpack.c.h.b16 %v246
      %v506 = vunpack.c.l.b16 %v247
      %v507 = vunpack.c.h.b16 %v247
      %v508 = vunpack.c.l.b16 %v248
      %v509 = vunpack.c.h.b16 %v248
      %v510 = vunpack.c.l.b16 %v249
      %v511 = vunpack.c.h.b16 %v249
      %v512 = vunpack.c.l.b16 %v250
      %v513 = vunpack.c.h.b16 %v250
      %v514 = vunpack.c.l.b16 %v251
      %v515 = vunpack.c.h.b16 %v251
      %v516 = vunpack.c.l.b16 %v252
      %v517 = vunpack.c.h.b16 %v252
      %v518 = vunpack.c.l.b16 %v253
      %v519 = vunpack.c.h.b16 %v253
      %v520 = vpack.c.b16 %v378, %v376
      %v521 = vpack.c.b16 %v379, %v377
      %v522 = vpack.c.b16 %v382, %v380
      %v523 = vpack.c.b16 %v383, %v381
      %v524 = vpack.c.b16 %v386, %v384
      %v525 = vpack.c.b16 %v387, %v385
      %v526 = vpack.c.b16 %v390, %v388
      %v527 = vpack.c.b16 %v391, %v389
      %v528 = vpack.c.b16 %v394, %v392
      %v529 = vpack.c.b16 %v395, %v393
      %v530 = vpack.c.b16 %v398, %v396
      %v531 = vpack.c.b16 %v399, %v397
      %v532 = vpack.c.b16 %v402, %v400
      %v533 = vpack.c.b16 %v403, %v401
      %v534 = vpack.c.b16 %v406, %v404
      %v535 = vpack.c.b16 %v407, %v405
      %v536 = vpack.c.b16 %v410, %v408
      %v537 = vpack.c.b16 %v411, %v409
      %v538 = vpack.c.b16 %v414, %v412
      %v539 = vpack.c.b16 %v415, %v413
      %v540 = vpack.c.b16 %v418, %v416
      %v541 = vpack.c.b16 %v419, %v417
      %v542 = vpack.c.b16 %v422, %v420
      %v543 = vpack.c.b16 %v423, %v421
      %v544 = vpack.c.b16 %v426, %v424
      %v545 = vpack.c.b16 %v427, %v425
      %v546 = vpack.c.b16 %v430, %v428
      %v547 = vpack.c.b16 %v431, %v429
      %v548 = vpack.c.b16 %v434, %v432
      %v549 = vpack.c.b16 %v435, %v433
      %v550 = vpack.c.b16 %v438, %v436
      %v551 = vpack.c.b16 %v439, %v437
      %v552 = vpack.c.b16 %v442, %v440
      %v553 = vpack.c.b16 %v443, %v441
      %v554 = vpack.c.b16 %v446, %v444
      %v555 = vpack.c.b16 %v447, %v445
      %v556 = vpack.c.b16 %v450, %v448
      %v557 = vpack.c.b16 %v451, %v449
      %v558 = vpack.c.b16 %v454, %v452
      %v559 = vpack.c.b16 %v455, %v453
      %v560 = vpack.c.b16 %v458, %v456
      %v561 = vpack.c.b16 %v459, %v457
      %v562 = vpack.c.b16 %v462, %v460
      %v563 = vpack.c.b16 %v463, %v461
      %v564 = vpack.c.b16 %v466, %v464
      %v565 = vpack.c.b16 %v467, %v465
      %v566 = vpack.c.b16 %v470, %v468
      %v567 = vpack.c.b16 %v471, %v469
      %v568 = vpack.c.b16 %v474, %v472
      %v569 = vpack.c.b16 %v475, %v473
      %v570 = vpack.c.b16 %v478, %v476
      %v571 = vpack.c.b16 %v479, %v477
      %v572 = vpack.c.b16 %v482, %v480
      %v573 = vpack.c.b16 %v483, %v481
      %v574 = vpack.c.b16 %v486, %v484
      %v575 = vpack.c.b16 %v487, %v485
      %v576 = vpack.c.b16 %v490, %v488
      %v577 = vpack.c.b16 %v491, %v489
      %v578 = vpack.c.b16 %v494, %v492
      %v579 = vpack.c.b16 %v495, %v493
      %v580 = vpack.c.b16 %v498, %v496
      %v581 = vpack.c.b16 %v499, %v497
      %v582 = vpack.c.b16 %v502, %v500
      %v583 = vpack.c.b16 %v503, %v501
      %v584 = vpack.c.b16 %v506, %v504
      %v585 = vpack.c.b16 %v507, %v505
      %v586 = vpack.c.b16 %v510, %v508
      %v587 = vpack.c.b16 %v511, %v509
      %v588 = vpack.c.b16 %v514, %v512
      %v589 = vpack.c.b16 %v515, %v513
      %v590 = vpack.c.b16 %v518, %v516
      %v591 = vpack.c.b16 %v519, %v517
      %vm664 = vcmask 523264
      %v666 = vsel %vm664, %v290, 0
      %v669 = vsel %vm664, %v295, 0
      %671 = vmatprep.subr.bf16.mxu0 %v521
      %672 = vmatpush1.bf16.msra.mxu0 %v520
      %673 = vmatprep.subr.bf16.mxu0 %v523
      %674 = vmatpush1.bf16.msra.mxu0 %v522
      %675 = vmatprep.subr.bf16.mxu0 %v525
      %676 = vmatpush1.bf16.msra.mxu0 %v524
      %677 = vmatprep.subr.bf16.mxu0 %v527
      %678 = vmatpush1.bf16.msra.mxu0 %v526
      %679 = vmatprep.subr.bf16.mxu0 %v529
      %680 = vmatpush1.bf16.msra.mxu0 %v528
      %681 = vmatprep.subr.bf16.mxu0 %v531
      %682 = vmatpush1.bf16.msra.mxu0 %v530
      %683 = vmatprep.subr.bf16.mxu0 %v533
      %684 = vmatpush1.bf16.msra.mxu0 %v532
      %685 = vmatprep.subr.bf16.mxu0 %v535
      %686 = vmatpush1.bf16.msra.mxu0 %v534
      %687 = vmatprep.subr.bf16.mxu0 %v537
      %688 = vmatpush1.bf16.msra.mxu0 %v536
      %689 = vmatprep.subr.bf16.mxu0 %v539
      %690 = vmatpush1.bf16.msra.mxu0 %v538
      %691 = vmatprep.subr.bf16.mxu0 %v541
      %692 = vmatpush1.bf16.msra.mxu0 %v540
      %693 = vmatprep.subr.bf16.mxu0 %v543
      %694 = vmatpush1.bf16.msra.mxu0 %v542
      %695 = vmatprep.subr.bf16.mxu0 %v545
      %696 = vmatpush1.bf16.msra.mxu0 %v544
      %697 = vmatprep.subr.bf16.mxu0 %v547
      %698 = vmatpush1.bf16.msra.mxu0 %v546
      %699 = vmatprep.subr.bf16.mxu0 %v549
      %700 = vmatpush1.bf16.msra.mxu0 %v548
      %701 = vmatprep.subr.bf16.mxu0 %v551
      %702 = vmatpush1.bf16.msra.mxu0 %v550
      %703 = vmatprep.mubr.bf16.mxu0 %v287
      %704 = vmatmul.mubr.bf16.gmra.mrb[0].mxu0 %v286
      %v705 = vpop.f32.mrb[0].mxu0
      %v706 = vadd.f32 0.0, %v705
      %v707 = vpop.f32.mrb[0].mxu0
      %v708 = vadd.f32 0.0, %v707
      %v709 = vpop.f32.mrb[0].mxu0
      %v710 = vadd.f32 0.0, %v709
      %v711 = vpop.f32.mrb[0].mxu0
      %v712 = vadd.f32 0.0, %v711
      %713 = vmatprep.mubr.bf16.mxu0 %v292
      %714 = vmatmul.mubr.bf16.gmra.mrb[0].mxu0 %v291
      %v715 = vpop.f32.mrb[0].mxu0
      %v716 = vadd.f32 0.0, %v715
      %v717 = vpop.f32.mrb[0].mxu0
      %v718 = vadd.f32 0.0, %v717
      %v719 = vpop.f32.mrb[0].mxu0
      %v720 = vadd.f32 0.0, %v719
      %v721 = vpop.f32.mrb[0].mxu0
      %v722 = vadd.f32 0.0, %v721
      %723 = vdwg.mxu0
      %724 = vmatprep.subr.bf16.mxu0 %v553
      %725 = vmatpush1.bf16.msra.mxu0 %v552
      %726 = vmatprep.subr.bf16.mxu0 %v555
      %727 = vmatpush1.bf16.msra.mxu0 %v554
      %728 = vmatprep.subr.bf16.mxu0 %v557
      %729 = vmatpush1.bf16.msra.mxu0 %v556
      %730 = vmatprep.subr.bf16.mxu0 %v559
      %731 = vmatpush1.bf16.msra.mxu0 %v558
      %732 = vmatprep.subr.bf16.mxu0 %v561
      %733 = vmatpush1.bf16.msra.mxu0 %v560
      %734 = vmatprep.subr.bf16.mxu0 %v563
      %735 = vmatpush1.bf16.msra.mxu0 %v562
      %736 = vmatprep.subr.bf16.mxu0 %v565
      %737 = vmatpush1.bf16.msra.mxu0 %v564
      %738 = vmatprep.subr.bf16.mxu0 %v567
      %739 = vmatpush1.bf16.msra.mxu0 %v566
      %740 = vmatprep.subr.bf16.mxu0 %v569
      %741 = vmatpush1.bf16.msra.mxu0 %v568
      %742 = vmatprep.subr.bf16.mxu0 %v571
      %743 = vmatpush1.bf16.msra.mxu0 %v570
      %744 = vmatprep.subr.bf16.mxu0 %v573
      %745 = vmatpush1.bf16.msra.mxu0 %v572
      %746 = vmatprep.subr.bf16.mxu0 %v575
      %747 = vmatpush1.bf16.msra.mxu0 %v574
      %748 = vmatprep.subr.bf16.mxu0 %v577
      %749 = vmatpush1.bf16.msra.mxu0 %v576
      %750 = vmatprep.subr.bf16.mxu0 %v579
      %751 = vmatpush1.bf16.msra.mxu0 %v578
      %752 = vmatprep.subr.bf16.mxu0 %v581
      %753 = vmatpush1.bf16.msra.mxu0 %v580
      %754 = vmatprep.subr.bf16.mxu0 %v583
      %755 = vmatpush1.bf16.msra.mxu0 %v582
      %756 = vmatprep.mubr.bf16.mxu0 %v289
      %757 = vmatmul.mubr.bf16.gmra.mrb[0].mxu0 %v288
      %v758 = vpop.f32.mrb[0].mxu0
      %v759 = vadd.f32 %v706, %v758
      %v760 = vpop.f32.mrb[0].mxu0
      %v761 = vadd.f32 %v708, %v760
      %v762 = vpop.f32.mrb[0].mxu0
      %v763 = vadd.f32 %v710, %v762
      %v764 = vpop.f32.mrb[0].mxu0
      %v765 = vadd.f32 %v712, %v764
      %766 = vmatprep.mubr.bf16.mxu0 %v294
      %767 = vmatmul.mubr.bf16.gmra.mrb[0].mxu0 %v293
      %v768 = vpop.f32.mrb[0].mxu0
      %v769 = vadd.f32 %v716, %v768
      %v770 = vpop.f32.mrb[0].mxu0
      %v771 = vadd.f32 %v718, %v770
      %v772 = vpop.f32.mrb[0].mxu0
      %v773 = vadd.f32 %v720, %v772
      %v774 = vpop.f32.mrb[0].mxu0
      %v775 = vadd.f32 %v722, %v774
      %776 = vdwg.mxu0
      %777 = vmatprep.subr.bf16.mxu0 %v585
      %778 = vmatpush1.bf16.msra.mxu0 %v584
      %779 = vmatprep.subr.bf16.mxu0 %v587
      %780 = vmatpush1.bf16.msra.mxu0 %v586
      %781 = vmatprep.subr.bf16.mxu0 %v589
      %782 = vmatpush1.bf16.msra.mxu0 %v588
      %783 = vmatprep.subr.bf16.mxu0 %v591
      %784 = vmatpush1.bf16.msra.mxu0 %v590
      %785 = vmatprep.subr.bf16.mxu0 0
      %786 = vmatpush1.bf16.msra.mxu0 0
      %787 = vmatprep.subr.bf16.mxu0 0
      %788 = vmatpush1.bf16.msra.mxu0 0
      %789 = vmatprep.subr.bf16.mxu0 0
      %790 = vmatpush1.bf16.msra.mxu0 0
      %791 = vmatprep.subr.bf16.mxu0 0
      %792 = vmatpush1.bf16.msra.mxu0 0
      %793 = vmatprep.subr.bf16.mxu0 0
      %794 = vmatpush1.bf16.msra.mxu0 0
      %795 = vmatprep.subr.bf16.mxu0 0
      %796 = vmatpush1.bf16.msra.mxu0 0
      %797 = vmatprep.subr.bf16.mxu0 0
      %798 = vmatpush1.bf16.msra.mxu0 0
      %799 = vmatprep.subr.bf16.mxu0 0
      %800 = vmatpush1.bf16.msra.mxu0 0
      %801 = vmatprep.subr.bf16.mxu0 0
      %802 = vmatpush1.bf16.msra.mxu0 0
      %803 = vmatprep.subr.bf16.mxu0 0
      %804 = vmatpush1.bf16.msra.mxu0 0
      %805 = vmatprep.subr.bf16.mxu0 0
      %806 = vmatpush1.bf16.msra.mxu0 0
      %807 = vmatprep.subr.bf16.mxu0 0
      %808 = vmatpush1.bf16.msra.mxu0 0
      %809 = vmatprep.mubr.bf16.mxu0 0
      %810 = vmatmul.mubr.bf16.gmra.mrb[0].mxu0 %v666
      %v811 = vpop.f32.mrb[0].mxu0
      %v812 = vadd.f32 %v759, %v811
      %v813 = vpop.f32.mrb[0].mxu0
      %v814 = vadd.f32 %v761, %v813
      %v815 = vpop.f32.mrb[0].mxu0
      %v816 = vadd.f32 %v763, %v815
      %v817 = vpop.f32.mrb[0].mxu0
      %v818 = vadd.f32 %v765, %v817
      %819 = vmatprep.mubr.bf16.mxu0 0
      %820 = vmatmul.mubr.bf16.gmra.mrb[0].mxu0 %v669
      %v821 = vpop.f32.mrb[0].mxu0
      %v822 = vadd.f32 %v769, %v821
      %v823 = vpop.f32.mrb[0].mxu0
      %v824 = vadd.f32 %v771, %v823
      %v825 = vpop.f32.mrb[0].mxu0
      %v826 = vadd.f32 %v773, %v825
      %v827 = vpop.f32.mrb[0].mxu0
      %v828 = vadd.f32 %v775, %v827
      %829 = vdwg.mxu0
      %v830 = vadd.f32 %v162, %v812
      %v831 = vadd.f32 %v163, %v814
      %v832 = vadd.f32 %v164, %v816
      %v833 = vadd.f32 %v165, %v818
      %v834 = vadd.f32 %v166, %v822
      %v835 = vadd.f32 %v167, %v824
      %v836 = vadd.f32 %v168, %v826
      %v837 = vadd.f32 %v169, %v828
      %838 = vst [vmem:[#allocation2] sm:$0xff] %v830
      %839 = vst [vmem:[#allocation2 + $0x8] sm:$0xff] %v831
      %840 = vst [vmem:[#allocation2 + $0x10] sm:$0xff] %v832
      %841 = vst [vmem:[#allocation2 + $0x18] sm:$0xff] %v833
      %842 = vst [vmem:[#allocation2 + $0x20] sm:$0xff] %v834
      %843 = vst [vmem:[#allocation2 + $0x28] sm:$0xff] %v835
      %844 = vst [vmem:[#allocation2 + $0x30] sm:$0xff] %v836
      %845 = vst [vmem:[#allocation2 + $0x38] sm:$0xff] %v837
      %p846 = scmp.eq.s32.totalorder %s13, 2
      // Predicated region
      $region33: #{ae_forward.12} parent=27 // pred_check
        %p847 = pneg %p846
      $region34: #{ae_forward.12} parent=27 // pred_check_branch
        %849 = sbr.rel (%p847) target = $region36
      $region35: #{ae_forward.12} parent=27 // pred_region
        %v850 = vld [vmem:[#allocation2] sm:$0xff]
        %v851 = vld [vmem:[#allocation2 + $0x8] sm:$0xff]
        %v852 = vld [vmem:[#allocation2 + $0x10] sm:$0xff]
        %v853 = vld [vmem:[#allocation2 + $0x18] sm:$0xff]
        %v854 = vld [vmem:[#allocation2 + $0x20] sm:$0xff]
        %v855 = vld [vmem:[#allocation2 + $0x28] sm:$0xff]
        %v856 = vld [vmem:[#allocation2 + $0x30] sm:$0xff]
        %v857 = vld [vmem:[#allocation2 + $0x38] sm:$0xff]
        %v858 = vadd.f32 %v850, %v851
        %859 = vadd.xlane.f32.xlu0 %v858
        %v860 = vpop.xlane.xlu0 %859
        %v861 = vadd.f32 %v852, %v853
        %862 = vadd.xlane.f32.xlu0 %v861
        %v863 = vpop.xlane.xlu0 %862
        %v864 = vadd.f32 %v854, %v855
        %865 = vadd.xlane.f32.xlu0 %v864
        %v866 = vpop.xlane.xlu0 %865
        %v867 = vadd.f32 %v856, %v857
        %868 = vadd.xlane.f32.xlu0 %v867
        %v869 = vpop.xlane.xlu0 %868
        %v870 = vmul.f32 %v860, 0.004
        %v871 = vmul.f32 %v863, 0.004
        %v872 = vmul.f32 %v866, 0.004
        %v873 = vmul.f32 %v869, 0.004
        %v874 = vmul.f32 %v850, %v850
        %v875 = vmul.f32 %v851, %v851
        %v876 = vmul.f32 %v852, %v852
        %v877 = vmul.f32 %v853, %v853
        %v878 = vmul.f32 %v854, %v854
        %v879 = vmul.f32 %v855, %v855
        %v880 = vmul.f32 %v856, %v856
        %v881 = vmul.f32 %v857, %v857
        %v882 = vadd.f32 %v874, %v875
        %883 = vadd.xlane.f32.xlu0 %v882
        %v884 = vpop.xlane.xlu0 %883
        %v885 = vadd.f32 %v876, %v877
        %886 = vadd.xlane.f32.xlu0 %v885
        %v887 = vpop.xlane.xlu0 %886
        %v888 = vadd.f32 %v878, %v879
        %889 = vadd.xlane.f32.xlu0 %v888
        %v890 = vpop.xlane.xlu0 %889
        %v891 = vadd.f32 %v880, %v881
        %892 = vadd.xlane.f32.xlu0 %v891
        %v893 = vpop.xlane.xlu0 %892
        %v894 = vmul.f32 %v884, 0.004
        %v895 = vmul.f32 %v887, 0.004
        %v896 = vmul.f32 %v890, 0.004
        %v897 = vmul.f32 %v893, 0.004
        %v898 = vmul.f32 %v870, %v870
        %v899 = vmul.f32 %v871, %v871
        %v900 = vmul.f32 %v872, %v872
        %v901 = vmul.f32 %v873, %v873
        %v902 = vsub.f32 %v894, %v898
        %v903 = vsub.f32 %v895, %v899
        %v904 = vsub.f32 %v896, %v900
        %v905 = vsub.f32 %v897, %v901
        %v906 = vmax.f32 %v902, 0.0
        %v907 = vmax.f32 %v903, 0.0
        %v908 = vmax.f32 %v904, 0.0
        %v909 = vmax.f32 %v905, 0.0
        %v910 = vsub.f32 %v850, %v870
        %v911 = vsub.f32 %v851, %v870
        %v912 = vsub.f32 %v852, %v871
        %v913 = vsub.f32 %v853, %v871
        %v914 = vsub.f32 %v854, %v872
        %v915 = vsub.f32 %v855, %v872
        %v916 = vsub.f32 %v856, %v873
        %v917 = vsub.f32 %v857, %v873
        %v918 = vadd.f32 %v906, 1e-05
        %v919 = vadd.f32 %v907, 1e-05
        %v920 = vadd.f32 %v908, 1e-05
        %v921 = vadd.f32 %v909, 1e-05
        %v922 = vrsqrt.pop %v918
        %v923 = vrsqrt.pop %v919
        %v924 = vrsqrt.pop %v920
        %v925 = vrsqrt.pop %v921
        %v926 = vmul.f32 %v910, %v922
        %v927 = vmul.f32 %v911, %v922
        %v928 = vmul.f32 %v912, %v923
        %v929 = vmul.f32 %v913, %v923
        %v930 = vmul.f32 %v914, %v924
        %v931 = vmul.f32 %v915, %v924
        %v932 = vmul.f32 %v916, %v925
        %v933 = vmul.f32 %v917, %v925
        %v934 = vmax.f32 %v926, 0.0
        %v935 = vmax.f32 %v927, 0.0
        %v936 = vmax.f32 %v928, 0.0
        %v937 = vmax.f32 %v929, 0.0
        %v938 = vmax.f32 %v930, 0.0
        %v939 = vmax.f32 %v931, 0.0
        %v940 = vmax.f32 %v932, 0.0
        %v941 = vmax.f32 %v933, 0.0
        %942 = vst [vmem:[%s2] sm:$0xff] %v934
        %943 = vst [vmem:[%s2 + $0x8] sm:$0xff] %v935
        %944 = vst [vmem:[%s2 + $0x10] sm:$0xff] %v936
        %945 = vst [vmem:[%s2 + $0x18] sm:$0xff] %v937
        %946 = vst [vmem:[%s2 + $0x20] sm:$0xff] %v938
        %947 = vst [vmem:[%s2 + $0x28] sm:$0xff] %v939
        %948 = vst [vmem:[%s2 + $0x30] sm:$0xff] %v940
        %949 = vst [vmem:[%s2 + $0x38] sm:$0xff] %v941
      $region36: #{ae_forward.12} parent=27 // pred_fallthru
        _
      // Predicated region
      $region37: #{ae_forward.12} parent=27 // pred_check
        %p950 = pneg %p78
      $region38: #{ae_forward.12} parent=27 // pred_check_branch
        %952 = sbr.rel (%p950) target = $region40
      $region39: #{ae_forward.12} parent=27 // pred_region
        _
      $region40: #{ae_forward.12} parent=27 // pred_fallthru
        _
      // Predicated region
      $region41: #{ae_forward.12} parent=27 // pred_check
        %p953 = pneg %p78
      $region42: #{ae_forward.12} parent=27 // pred_check_branch
        %955 = sbr.rel (%p953) target = $region44
      $region43: #{ae_forward.12} parent=27 // pred_region
        _
      $region44: #{ae_forward.12} parent=27 // pred_fallthru
        _
    $region28: #{ae_forward.12} parent=5 // pred_fallthru
      _
    %p956 = scmp.le.s32.totalorder 2, %s8
    // Predicated region
    $region45: #{ae_forward.12} parent=5 // pred_check
      %p957 = pneg %p956
    $region46: #{ae_forward.12} parent=5 // pred_check_branch
      %959 = sbr.rel (%p957) target = $region48
    $region47: #{ae_forward.12} parent=5 // pred_region
      %s960 = ssub.s32 %s8, 2
    $region48: #{ae_forward.12} parent=5 // pred_fallthru
      _
  $region6: #{ae_forward.12} parent=0 // loop_footer
    %s12 = sadd.s32 1, %s8
  $region7: #{ae_forward.12} parent=0 // loop_footer_branch
    %7 = sbr.rel target = $region3
  $region8: #{ae_forward.12} parent=0 // loop_exit
    _

// kernel: ae_forward.13
$region0: #{ae_forward.13}
  #allocation0 [shape = 'u32[]', space=smem, size = 0x4, offset = 0x4, fixed_abs, tag = 'smem constant byte address 0x4 - core index']
  #allocation1 [shape = 'u32[144,128]{1,0:T(1,128)}', space=vmem, size = 0x12000, scoped, tag = 'internal scratch']
  #allocation2 [shape = 'f32[16,768]{1,0:T(8,128)}', space=vmem, size = 0xc000, scoped, tag = 'scratch operand']
  %s0 = inlined_call_operand.vmem [shape: bf16[3,288,768], index: 0, kind: input, shape index: {}]
  %s1 = inlined_call_operand.vmem [shape: bf16[3,16,288], index: 1, kind: input, shape index: {}]
  %s2 = inlined_call_operand.vmem [shape: f32[16,768], index: 2, kind: output, shape index: {}]
  %s3 = sld [smem:[#allocation0]]
  $region49: #{ae_forward.13} parent=0
    _
  %s5 = ssub.s32 1, %s3
  %s6 = scalar_select 0, %s5, %s3
  loop: start=0, step=1, limit=5
  $region2: #{ae_forward.13} parent=0 // loop_pre_header
    _
  $region3: #{ae_forward.13} parent=0 // loop_header
    %s8 = sphi 0, %s12
    %p9 = scmp.ge.s32.totalorder %s8, 5
    %s18 = sphi 0, %s20
    %s21 = sphi 0, %s18
    %s22 = sphi 0, %s21
    %s38 = sphi 0, %s22
    %s44 = sphi 0, %s46
    %s47 = sphi 0, %s44
    %s48 = sphi 0, %s47
    %s64 = sphi 0, %s48
    %s68 = sphi 0, %s68
    %s70 = sphi 0, %s68
    %s71 = sphi 0, %s70
    %s85 = sphi 0, %s71
  $region4: #{ae_forward.13} parent=0 // loop_header_branch
    %11 = sbr.rel (%p9) target = $region8
  $region5: #{ae_forward.13} parent=0 // loop_body
    %s13 = ssub.s32 %s8, 1
    %s14 = ssub.s32 %s8, 2
    %s15 = sadd.s32 %s8, 1
    %s16 = ssub.s32 %s8, %s15
    %p17 = scmp.eq.s32.totalorder %s16, 0
    %s19 = sadd.s32 %s18, 1
    %s20 = scalar_select %p17, %s18, %s19
    %p23 = pneg %p17
    %p24 = scmp.eq.s32.totalorder %s8, 2
    %p25 = por %p23, %p24
    %p26 = scmp.ne.s32.totalorder %s18, %s21
    %p27 = scmp.eq.s32.totalorder %s8, 0
    %p28 = por %p26, %p27
    %p29 = scmp.ne.s32.totalorder %s18, %s21
    %p30 = scmp.eq.s32.totalorder %s13, 2
    %p31 = por %p29, %p30
    %p32 = scmp.ne.s32.totalorder %s21, %s22
    %p33 = scmp.eq.s32.totalorder %s13, 0
    %p34 = por %p32, %p33
    %p35 = scmp.ne.s32.totalorder %s21, %s22
    %p36 = scmp.eq.s32.totalorder %s14, 2
    %p37 = por %p35, %p36
    %p39 = scmp.ne.s32.totalorder %s22, %s38
    %p40 = scmp.eq.s32.totalorder %s14, 0
    %p41 = por %p39, %p40
    %s42 = ssub.s32 %s8, %s15
    %p43 = scmp.eq.s32.totalorder %s42, 0
    %s45 = sadd.s32 %s44, 1
    %s46 = scalar_select %p43, %s44, %s45
    %p49 = pneg %p43
    %p50 = scmp.eq.s32.totalorder %s8, 2
    %p51 = por %p49, %p50
    %p52 = scmp.ne.s32.totalorder %s44, %s47
    %p53 = scmp.eq.s32.totalorder %s8, 0
    %p54 = por %p52, %p53
    %p55 = scmp.ne.s32.totalorder %s44, %s47
    %p56 = scmp.eq.s32.totalorder %s13, 2
    %p57 = por %p55, %p56
    %p58 = scmp.ne.s32.totalorder %s47, %s48
    %p59 = scmp.eq.s32.totalorder %s13, 0
    %p60 = por %p58, %p59
    %p61 = scmp.ne.s32.totalorder %s47, %s48
    %p62 = scmp.eq.s32.totalorder %s14, 2
    %p63 = por %p61, %p62
    %p65 = scmp.ne.s32.totalorder %s48, %s64
    %p66 = scmp.eq.s32.totalorder %s14, 0
    %p67 = por %p65, %p66
    %s69 = sadd.s32 %s68, 1
    %p72 = scmp.eq.s32.totalorder %s8, 2
    %p73 = scmp.ne.s32.totalorder %s68, %s70
    %p74 = scmp.eq.s32.totalorder %s8, 0
    %p75 = por %p73, %p74
    %p76 = scmp.ne.s32.totalorder %s68, %s70
    %p77 = scmp.eq.s32.totalorder %s13, 2
    %p78 = por %p76, %p77
    %p79 = scmp.ne.s32.totalorder %s70, %s71
    %p80 = scmp.eq.s32.totalorder %s13, 0
    %p81 = por %p79, %p80
    %p82 = scmp.ne.s32.totalorder %s70, %s71
    %p83 = scmp.eq.s32.totalorder %s14, 2
    %p84 = por %p82, %p83
    %p86 = scmp.ne.s32.totalorder %s71, %s85
    %p87 = scmp.eq.s32.totalorder %s14, 0
    %p88 = por %p86, %p87
    %p89 = scmp.le.s32.totalorder 1, %s8
    %p90 = scmp.lt.s32.totalorder %s8, 4
    %p91 = pnand %p89, %p90
    %p92 = pneg %p91
    // Predicated region
    $region9: #{ae_forward.13} parent=5 // pred_check
      _
    $region10: #{ae_forward.13} parent=5 // pred_check_branch
      %94 = sbr.rel (%p91) target = $region12
    $region11: #{ae_forward.13} parent=5 // pred_region
      %s95 = ssub.s32 %s8, 1
    $region12: #{ae_forward.13} parent=5 // pred_fallthru
      _
    %p96 = scmp.lt.s32.totalorder %s8, 3
    // Predicated region
    $region13: #{ae_forward.13} parent=5 // pred_check
      %p97 = pneg %p96
    $region14: #{ae_forward.13} parent=5 // pred_check_branch
      %99 = sbr.rel (%p97) target = $region16
    $region15: #{ae_forward.13} parent=5 // pred_region
      // Predicated region
      $region17: #{ae_forward.13} parent=15 // pred_check
        %p100 = pneg %p28
      $region18: #{ae_forward.13} parent=15 // pred_check_branch
        %102 = sbr.rel (%p100) target = $region20
      $region19: #{ae_forward.13} parent=15 // pred_region
        %p103 = scmp.lt.s32.totalorder %s8, 2
        %s104 = scalar_select %p103, %s8, 2
        %s105 = smul.addr %s104, 216
        %s106 = smul.addr %s105, 4
        %s107 = scalar_lea.vmem %s0, %s106
      $region20: #{ae_forward.13} parent=15 // pred_fallthru
        _
      // Predicated region
      $region21: #{ae_forward.13} parent=15 // pred_check
        %p108 = pneg %p54
      $region22: #{ae_forward.13} parent=15 // pred_check_branch
        %110 = sbr.rel (%p108) target = $region24
      $region23: #{ae_forward.13} parent=15 // pred_region
        %p111 = scmp.lt.s32.totalorder %s8, 2
        %s112 = scalar_select %p111, %s8, 2
        %s113 = smul.addr %s112, 6
        %s114 = smul.addr %s113, 4
        %s115 = scalar_lea.vmem %s1, %s114
      $region24: #{ae_forward.13} parent=15 // pred_fallthru
        _
    $region16: #{ae_forward.13} parent=5 // pred_fallthru
      _
    %p116 = scmp.le.s32.totalorder 1, %s8
    %p117 = scmp.lt.s32.totalorder %s8, 4
    %p118 = pnand %p116, %p117
    %p119 = pneg %p118
    // Predicated region
    $region25: #{ae_forward.13} parent=5 // pred_check
      _
    $region26: #{ae_forward.13} parent=5 // pred_check_branch
      %121 = sbr.rel (%p118) target = $region28
    $region27: #{ae_forward.13} parent=5 // pred_region
      %s122 = ssub.s32 %s8, 1
      %p123 = scmp.lt.s32.totalorder %s13, 2
      %s124 = scalar_select %p123, %s13, 2
      %s125 = smul.addr %s124, 216
      %s126 = smul.addr %s125, 4
      %s127 = scalar_lea.vmem %s0, %s126
      %p128 = pneg %p34
      %p129 = pneg %p31
      %p130 = scmp.lt.s32.totalorder %s13, 2
      %s131 = scalar_select %p130, %s13, 2
      %s132 = smul.addr %s131, 6
      %s133 = smul.addr %s132, 4
      %s134 = scalar_lea.vmem %s1, %s133
      %p135 = pneg %p60
      %p136 = pneg %p57
      %p137 = pneg %p81
      %p138 = pneg %p78
      %p139 = scmp.lt.s32.totalorder %s13, 2
      %s140 = scalar_select %p139, %s13, 2
      %s141 = smul.addr %s140, 216
      %s142 = smul.addr %s141, 4
      %s143 = scalar_lea.vmem %s0, %s142
      %p144 = scmp.lt.s32.totalorder %s13, 2
      %s145 = scalar_select %p144, %s13, 2
      %s146 = smul.addr %s145, 6
      %s147 = smul.addr %s146, 4
      %s148 = scalar_lea.vmem %s1, %s147
      %p150 = scmp.eq.s32.totalorder %s13, 0
      // Predicated region
      $region29: #{ae_forward.13} parent=27 // pred_check
        %p151 = pneg %p150
      $region30: #{ae_forward.13} parent=27 // pred_check_branch
        %153 = sbr.rel (%p151) target = $region32
      $region31: #{ae_forward.13} parent=27 // pred_region
        %154 = vst [vmem:[#allocation2] sm:$0xff] 0.0
        %155 = vst [vmem:[#allocation2 + $0x8] sm:$0xff] 0.0
        %156 = vst [vmem:[#allocation2 + $0x10] sm:$0xff] 0.0
        %157 = vst [vmem:[#allocation2 + $0x18] sm:$0xff] 0.0
        %158 = vst [vmem:[#allocation2 + $0x20] sm:$0xff] 0.0
        %159 = vst [vmem:[#allocation2 + $0x28] sm:$0xff] 0.0
        %160 = vst [vmem:[#allocation2 + $0x30] sm:$0xff] 0.0
        %161 = vst [vmem:[#allocation2 + $0x38] sm:$0xff] 0.0
        %162 = vst [vmem:[#allocation2 + $0x40] sm:$0xff] 0.0
        %163 = vst [vmem:[#allocation2 + $0x48] sm:$0xff] 0.0
        %164 = vst [vmem:[#allocation2 + $0x50] sm:$0xff] 0.0
        %165 = vst [vmem:[#allocation2 + $0x58] sm:$0xff] 0.0
      $region32: #{ae_forward.13} parent=27 // pred_fallthru
        _
      %v166 = vld [vmem:[#allocation2] sm:$0xff]
      %v167 = vld [vmem:[#allocation2 + $0x8] sm:$0xff]
      %v168 = vld [vmem:[#allocation2 + $0x10] sm:$0xff]
      %v169 = vld [vmem:[#allocation2 + $0x18] sm:$0xff]
      %v170 = vld [vmem:[#allocation2 + $0x20] sm:$0xff]
      %v171 = vld [vmem:[#allocation2 + $0x28] sm:$0xff]
      %v172 = vld [vmem:[#allocation2 + $0x30] sm:$0xff]
      %v173 = vld [vmem:[#allocation2 + $0x38] sm:$0xff]
      %v174 = vld [vmem:[#allocation2 + $0x40] sm:$0xff]
      %v175 = vld [vmem:[#allocation2 + $0x48] sm:$0xff]
      %v176 = vld [vmem:[#allocation2 + $0x50] sm:$0xff]
      %v177 = vld [vmem:[#allocation2 + $0x58] sm:$0xff]
      %v178 = vld [vmem:[%s148] sm:$0xff]
      %v179 = vld [vmem:[%s148 + $0x8] sm:$0xf]
      %v180 = vld [vmem:[%s148 + $0xc] sm:$0xff]
      %v181 = vld [vmem:[%s148 + $0x14] sm:$0xf]
      %v182 = vld [vmem:[%s143] sm:$0xff]
      %v183 = vld [vmem:[%s143 + $0x8] sm:$0xff]
      %v184 = vld [vmem:[%s143 + $0x10] sm:$0xff]
      %v185 = vld [vmem:[%s143 + $0x18] sm:$0xff]
      %v186 = vld [vmem:[%s143 + $0x20] sm:$0xff]
      %v187 = vld [vmem:[%s143 + $0x28] sm:$0xff]
      %v188 = vld [vmem:[%s143 + $0x30] sm:$0xff]
      %v189 = vld [vmem:[%s143 + $0x38] sm:$0xff]
      %v190 = vld [vmem:[%s143 + $0x40] sm:$0xff]
      %v191 = vld [vmem:[%s143 + $0x48] sm:$0xff]
      %v192 = vld [vmem:[%s143 + $0x50] sm:$0xff]
      %v193 = vld [vmem:[%s143 + $0x58] sm:$0xff]
      %v194 = vld [vmem:[%s143 + $0x60] sm:$0xff]
      %v195 = vld [vmem:[%s143 + $0x68] sm:$0xff]
      %v196 = vld [vmem:[%s143 + $0x70] sm:$0xff]
      %v197 = vld [vmem:[%s143 + $0x78] sm:$0xff]
      %v198 = vld [vmem:[%s143 + $0x80] sm:$0xff]
      %v199 = vld [vmem:[%s143 + $0x88] sm:$0xff]
      %v200 = vld [vmem:[%s143 + $0x90] sm:$0xff]
      %v201 = vld [vmem:[%s143 + $0x98] sm:$0xff]
      %v202 = vld [vmem:[%s143 + $0xa0] sm:$0xff]
      %v203 = vld [vmem:[%s143 + $0xa8] sm:$0xff]
      %v204 = vld [vmem:[%s143 + $0xb0] sm:$0xff]
      %v205 = vld [vmem:[%s143 + $0xb8] sm:$0xff]
      %v206 = vld [vmem:[%s143 + $0xc0] sm:$0xff]
      %v207 = vld [vmem:[%s143 + $0xc8] sm:$0xff]
      %v208 = vld [vmem:[%s143 + $0xd0] sm:$0xff]
      %v209 = vld [vmem:[%s143 + $0xd8] sm:$0xff]
      %v210 = vld [vmem:[%s143 + $0xe0] sm:$0xff]
      %v211 = vld [vmem:[%s143 + $0xe8] sm:$0xff]
      %v212 = vld [vmem:[%s143 + $0xf0] sm:$0xff]
      %v213 = vld [vmem:[%s143 + $0xf8] sm:$0xff]
      %v214 = vld [vmem:[%s143 + $0x100] sm:$0xff]
      %v215 = vld [vmem:[%s143 + $0x108] sm:$0xff]
      %v216 = vld [vmem:[%s143 + $0x110] sm:$0xff]
      %v217 = vld [vmem:[%s143 + $0x118] sm:$0xff]
      %v218 = vld [vmem:[%s143 + $0x120] sm:$0xff]
      %v219 = vld [vmem:[%s143 + $0x128] sm:$0xff]
      %v220 = vld [vmem:[%s143 + $0x130] sm:$0xff]
      %v221 = vld [vmem:[%s143 + $0x138] sm:$0xff]
      %v222 = vld [vmem:[%s143 + $0x140] sm:$0xff]
      %v223 = vld [vmem:[%s143 + $0x148] sm:$0xff]
      %v224 = vld [vmem:[%s143 + $0x150] sm:$0xff]
      %v225 = vld [vmem:[%s143 + $0x158] sm:$0xff]
      %v226 = vld [vmem:[%s143 + $0x160] sm:$0xff]
      %v227 = vld [vmem:[%s143 + $0x168] sm:$0xff]
      %v228 = vld [vmem:[%s143 + $0x170] sm:$0xff]
      %v229 = vld [vmem:[%s143 + $0x178] sm:$0xff]
      %v230 = vld [vmem:[%s143 + $0x180] sm:$0xff]
      %v231 = vld [vmem:[%s143 + $0x188] sm:$0xff]
      %v232 = vld [vmem:[%s143 + $0x190] sm:$0xff]
      %v233 = vld [vmem:[%s143 + $0x198] sm:$0xff]
      %v234 = vld [vmem:[%s143 + $0x1a0] sm:$0xff]
      %v235 = vld [vmem:[%s143 + $0x1a8] sm:$0xff]
      %v236 = vld [vmem:[%s143 + $0x1b0] sm:$0xff]
      %v237 = vld [vmem:[%s143 + $0x1b8] sm:$0xff]
      %v238 = vld [vmem:[%s143 + $0x1c0] sm:$0xff]
      %v239 = vld [vmem:[%s143 + $0x1c8] sm:$0xff]
      %v240 = vld [vmem:[%s143 + $0x1d0] sm:$0xff]
      %v241 = vld [vmem:[%s143 + $0x1d8] sm:$0xff]
      %v242 = vld [vmem:[%s143 + $0x1e0] sm:$0xff]
      %v243 = vld [vmem:[%s143 + $0x1e8] sm:$0xff]
      %v244 = vld [vmem:[%s143 + $0x1f0] sm:$0xff]
      %v245 = vld [vmem:[%s143 + $0x1f8] sm:$0xff]
      %v246 = vld [vmem:[%s143 + $0x200] sm:$0xff]
      %v247 = vld [vmem:[%s143 + $0x208] sm:$0xff]
      %v248 = vld [vmem:[%s143 + $0x210] sm:$0xff]
      %v249 = vld [vmem:[%s143 + $0x218] sm:$0xff]
      %v250 = vld [vmem:[%s143 + $0x220] sm:$0xff]
      %v251 = vld [vmem:[%s143 + $0x228] sm:$0xff]
      %v252 = vld [vmem:[%s143 + $0x230] sm:$0xff]
      %v253 = vld [vmem:[%s143 + $0x238] sm:$0xff]
      %v254 = vld [vmem:[%s143 + $0x240] sm:$0xff]
      %v255 = vld [vmem:[%s143 + $0x248] sm:$0xff]
      %v256 = vld [vmem:[%s143 + $0x250] sm:$0xff]
      %v257 = vld [vmem:[%s143 + $0x258] sm:$0xff]
      %v258 = vld [vmem:[%s143 + $0x260] sm:$0xff]
      %v259 = vld [vmem:[%s143 + $0x268] sm:$0xff]
      %v260 = vld [vmem:[%s143 + $0x270] sm:$0xff]
      %v261 = vld [vmem:[%s143 + $0x278] sm:$0xff]
      %v262 = vld [vmem:[%s143 + $0x280] sm:$0xff]
      %v263 = vld [vmem:[%s143 + $0x288] sm:$0xff]
      %v264 = vld [vmem:[%s143 + $0x290] sm:$0xff]
      %v265 = vld [vmem:[%s143 + $0x298] sm:$0xff]
      %v266 = vld [vmem:[%s143 + $0x2a0] sm:$0xff]
      %v267 = vld [vmem:[%s143 + $0x2a8] sm:$0xff]
      %v268 = vld [vmem:[%s143 + $0x2b0] sm:$0xff]
      %v269 = vld [vmem:[%s143 + $0x2b8] sm:$0xff]
      %v270 = vld [vmem:[%s143 + $0x2c0] sm:$0xff]
      %v271 = vld [vmem:[%s143 + $0x2c8] sm:$0xff]
      %v272 = vld [vmem:[%s143 + $0x2d0] sm:$0xff]
      %v273 = vld [vmem:[%s143 + $0x2d8] sm:$0xff]
      %v274 = vld [vmem:[%s143 + $0x2e0] sm:$0xff]
      %v275 = vld [vmem:[%s143 + $0x2e8] sm:$0xff]
      %v276 = vld [vmem:[%s143 + $0x2f0] sm:$0xff]
      %v277 = vld [vmem:[%s143 + $0x2f8] sm:$0xff]
      %v278 = vld [vmem:[%s143 + $0x300] sm:$0xff]
      %v279 = vld [vmem:[%s143 + $0x308] sm:$0xff]
      %v280 = vld [vmem:[%s143 + $0x310] sm:$0xff]
      %v281 = vld [vmem:[%s143 + $0x318] sm:$0xff]
      %v282 = vld [vmem:[%s143 + $0x320] sm:$0xff]
      %v283 = vld [vmem:[%s143 + $0x328] sm:$0xff]
      %v284 = vld [vmem:[%s143 + $0x330] sm:$0xff]
      %v285 = vld [vmem:[%s143 + $0x338] sm:$0xff]
      %v286 = vld [vmem:[%s143 + $0x340] sm:$0xff]
      %v287 = vld [vmem:[%s143 + $0x348] sm:$0xff]
      %v288 = vld [vmem:[%s143 + $0x350] sm:$0xff]
      %v289 = vld [vmem:[%s143 + $0x358] sm:$0xff]
      %v294 = vunpack.c.l.b16 %v178
      %v295 = vunpack.c.h.b16 %v178
      %v296 = vunpack.c.l.b16 %v179
      %v297 = vunpack.c.l.b16 %v180
      %v298 = vunpack.c.h.b16 %v180
      %v299 = vunpack.c.l.b16 %v181
      %v300 = vpack.c.b16 %v297, %v294
      %v301 = vpack.c.b16 %v298, %v295
      %v302 = vpack.c.b16 %v299, %v296
      %v413 = vunpack.c.l.b16 %v182
      %v414 = vunpack.c.h.b16 %v182
      %v415 = vunpack.c.l.b16 %v183
      %v416 = vunpack.c.h.b16 %v183
      %v417 = vunpack.c.l.b16 %v184
      %v418 = vunpack.c.h.b16 %v184
      %v419 = vunpack.c.l.b16 %v185
      %v420 = vunpack.c.h.b16 %v185
      %v421 = vunpack.c.l.b16 %v186
      %v422 = vunpack.c.h.b16 %v186
      %v423 = vunpack.c.l.b16 %v187
      %v424 = vunpack.c.h.b16 %v187
      %v425 = vunpack.c.l.b16 %v188
      %v426 = vunpack.c.h.b16 %v188
      %v427 = vunpack.c.l.b16 %v189
      %v428 = vunpack.c.h.b16 %v189
      %v429 = vunpack.c.l.b16 %v190
      %v430 = vunpack.c.h.b16 %v190
      %v431 = vunpack.c.l.b16 %v191
      %v432 = vunpack.c.h.b16 %v191
      %v433 = vunpack.c.l.b16 %v192
      %v434 = vunpack.c.h.b16 %v192
      %v435 = vunpack.c.l.b16 %v193
      %v436 = vunpack.c.h.b16 %v193
      %v437 = vunpack.c.l.b16 %v194
      %v438 = vunpack.c.h.b16 %v194
      %v439 = vunpack.c.l.b16 %v195
      %v440 = vunpack.c.h.b16 %v195
      %v441 = vunpack.c.l.b16 %v196
      %v442 = vunpack.c.h.b16 %v196
      %v443 = vunpack.c.l.b16 %v197
      %v444 = vunpack.c.h.b16 %v197
      %v445 = vunpack.c.l.b16 %v198
      %v446 = vunpack.c.h.b16 %v198
      %v447 = vunpack.c.l.b16 %v199
      %v448 = vunpack.c.h.b16 %v199
      %v449 = vunpack.c.l.b16 %v200
      %v450 = vunpack.c.h.b16 %v200
      %v451 = vunpack.c.l.b16 %v201
      %v452 = vunpack.c.h.b16 %v201
      %v453 = vunpack.c.l.b16 %v202
      %v454 = vunpack.c.h.b16 %v202
      %v455 = vunpack.c.l.b16 %v203
      %v456 = vunpack.c.h.b16 %v203
      %v457 = vunpack.c.l.b16 %v204
      %v458 = vunpack.c.h.b16 %v204
      %v459 = vunpack.c.l.b16 %v205
      %v460 = vunpack.c.h.b16 %v205
      %v461 = vunpack.c.l.b16 %v206
      %v462 = vunpack.c.h.b16 %v206
      %v463 = vunpack.c.l.b16 %v207
      %v464 = vunpack.c.h.b16 %v207
      %v465 = vunpack.c.l.b16 %v208
      %v466 = vunpack.c.h.b16 %v208
      %v467 = vunpack.c.l.b16 %v209
      %v468 = vunpack.c.h.b16 %v209
      %v469 = vunpack.c.l.b16 %v210
      %v470 = vunpack.c.h.b16 %v210
      %v471 = vunpack.c.l.b16 %v211
      %v472 = vunpack.c.h.b16 %v211
      %v473 = vunpack.c.l.b16 %v212
      %v474 = vunpack.c.h.b16 %v212
      %v475 = vunpack.c.l.b16 %v213
      %v476 = vunpack.c.h.b16 %v213
      %v477 = vunpack.c.l.b16 %v214
      %v478 = vunpack.c.h.b16 %v214
      %v479 = vunpack.c.l.b16 %v215
      %v480 = vunpack.c.h.b16 %v215
      %v481 = vunpack.c.l.b16 %v216
      %v482 = vunpack.c.h.b16 %v216
      %v483 = vunpack.c.l.b16 %v217
      %v484 = vunpack.c.h.b16 %v217
      %v485 = vunpack.c.l.b16 %v218
      %v486 = vunpack.c.h.b16 %v218
      %v487 = vunpack.c.l.b16 %v219
      %v488 = vunpack.c.h.b16 %v219
      %v489 = vunpack.c.l.b16 %v220
      %v490 = vunpack.c.h.b16 %v220
      %v491 = vunpack.c.l.b16 %v221
      %v492 = vunpack.c.h.b16 %v221
      %v493 = vunpack.c.l.b16 %v222
      %v494 = vunpack.c.h.b16 %v222
      %v495 = vunpack.c.l.b16 %v223
      %v496 = vunpack.c.h.b16 %v223
      %v497 = vunpack.c.l.b16 %v224
      %v498 = vunpack.c.h.b16 %v224
      %v499 = vunpack.c.l.b16 %v225
      %v500 = vunpack.c.h.b16 %v225
      %v501 = vunpack.c.l.b16 %v226
      %v502 = vunpack.c.h.b16 %v226
      %v503 = vunpack.c.l.b16 %v227
      %v504 = vunpack.c.h.b16 %v227
      %v505 = vunpack.c.l.b16 %v228
      %v506 = vunpack.c.h.b16 %v228
      %v507 = vunpack.c.l.b16 %v229
      %v508 = vunpack.c.h.b16 %v229
      %v509 = vunpack.c.l.b16 %v230
      %v510 = vunpack.c.h.b16 %v230
      %v511 = vunpack.c.l.b16 %v231
      %v512 = vunpack.c.h.b16 %v231
      %v513 = vunpack.c.l.b16 %v232
      %v514 = vunpack.c.h.b16 %v232
      %v515 = vunpack.c.l.b16 %v233
      %v516 = vunpack.c.h.b16 %v233
      %v517 = vunpack.c.l.b16 %v234
      %v518 = vunpack.c.h.b16 %v234
      %v519 = vunpack.c.l.b16 %v235
      %v520 = vunpack.c.h.b16 %v235
      %v521 = vunpack.c.l.b16 %v236
      %v522 = vunpack.c.h.b16 %v236
      %v523 = vunpack.c.l.b16 %v237
      %v524 = vunpack.c.h.b16 %v237
      %v525 = vunpack.c.l.b16 %v238
      %v526 = vunpack.c.h.b16 %v238
      %v527 = vunpack.c.l.b16 %v239
      %v528 = vunpack.c.h.b16 %v239
      %v529 = vunpack.c.l.b16 %v240
      %v530 = vunpack.c.h.b16 %v240
      %v531 = vunpack.c.l.b16 %v241
      %v532 = vunpack.c.h.b16 %v241
      %v533 = vunpack.c.l.b16 %v242
      %v534 = vunpack.c.h.b16 %v242
      %v535 = vunpack.c.l.b16 %v243
      %v536 = vunpack.c.h.b16 %v243
      %v537 = vunpack.c.l.b16 %v244
      %v538 = vunpack.c.h.b16 %v244
      %v539 = vunpack.c.l.b16 %v245
      %v540 = vunpack.c.h.b16 %v245
      %v541 = vunpack.c.l.b16 %v246
      %v542 = vunpack.c.h.b16 %v246
      %v543 = vunpack.c.l.b16 %v247
      %v544 = vunpack.c.h.b16 %v247
      %v545 = vunpack.c.l.b16 %v248
      %v546 = vunpack.c.h.b16 %v248
      %v547 = vunpack.c.l.b16 %v249
      %v548 = vunpack.c.h.b16 %v249
      %v549 = vunpack.c.l.b16 %v250
      %v550 = vunpack.c.h.b16 %v250
      %v551 = vunpack.c.l.b16 %v251
      %v552 = vunpack.c.h.b16 %v251
      %v553 = vunpack.c.l.b16 %v252
      %v554 = vunpack.c.h.b16 %v252
      %v555 = vunpack.c.l.b16 %v253
      %v556 = vunpack.c.h.b16 %v253
      %v557 = vunpack.c.l.b16 %v254
      %v558 = vunpack.c.h.b16 %v254
      %v559 = vunpack.c.l.b16 %v255
      %v560 = vunpack.c.h.b16 %v255
      %v561 = vunpack.c.l.b16 %v256
      %v562 = vunpack.c.h.b16 %v256
      %v563 = vunpack.c.l.b16 %v257
      %v564 = vunpack.c.h.b16 %v257
      %v565 = vunpack.c.l.b16 %v258
      %v566 = vunpack.c.h.b16 %v258
      %v567 = vunpack.c.l.b16 %v259
      %v568 = vunpack.c.h.b16 %v259
      %v569 = vunpack.c.l.b16 %v260
      %v570 = vunpack.c.h.b16 %v260
      %v571 = vunpack.c.l.b16 %v261
      %v572 = vunpack.c.h.b16 %v261
      %v573 = vunpack.c.l.b16 %v262
      %v574 = vunpack.c.h.b16 %v262
      %v575 = vunpack.c.l.b16 %v263
      %v576 = vunpack.c.h.b16 %v263
      %v577 = vunpack.c.l.b16 %v264
      %v578 = vunpack.c.h.b16 %v264
      %v579 = vunpack.c.l.b16 %v265
      %v580 = vunpack.c.h.b16 %v265
      %v581 = vunpack.c.l.b16 %v266
      %v582 = vunpack.c.h.b16 %v266
      %v583 = vunpack.c.l.b16 %v267
      %v584 = vunpack.c.h.b16 %v267
      %v585 = vunpack.c.l.b16 %v268
      %v586 = vunpack.c.h.b16 %v268
      %v587 = vunpack.c.l.b16 %v269
      %v588 = vunpack.c.h.b16 %v269
      %v589 = vunpack.c.l.b16 %v270
      %v590 = vunpack.c.h.b16 %v270
      %v591 = vunpack.c.l.b16 %v271
      %v592 = vunpack.c.h.b16 %v271
      %v593 = vunpack.c.l.b16 %v272
      %v594 = vunpack.c.h.b16 %v272
      %v595 = vunpack.c.l.b16 %v273
      %v596 = vunpack.c.h.b16 %v273
      %v597 = vunpack.c.l.b16 %v274
      %v598 = vunpack.c.h.b16 %v274
      %v599 = vunpack.c.l.b16 %v275
      %v600 = vunpack.c.h.b16 %v275
      %v601 = vunpack.c.l.b16 %v276
      %v602 = vunpack.c.h.b16 %v276
      %v603 = vunpack.c.l.b16 %v277
      %v604 = vunpack.c.h.b16 %v277
      %v605 = vunpack.c.l.b16 %v278
      %v606 = vunpack.c.h.b16 %v278
      %v607 = vunpack.c.l.b16 %v279
      %v608 = vunpack.c.h.b16 %v279
      %v609 = vunpack.c.l.b16 %v280
      %v610 = vunpack.c.h.b16 %v280
      %v611 = vunpack.c.l.b16 %v281
      %v612 = vunpack.c.h.b16 %v281
      %v613 = vunpack.c.l.b16 %v282
      %v614 = vunpack.c.h.b16 %v282
      %v615 = vunpack.c.l.b16 %v283
      %v616 = vunpack.c.h.b16 %v283
      %v617 = vunpack.c.l.b16 %v284
      %v618 = vunpack.c.h.b16 %v284
      %v619 = vunpack.c.l.b16 %v285
      %v620 = vunpack.c.h.b16 %v285
      %v621 = vunpack.c.l.b16 %v286
      %v622 = vunpack.c.h.b16 %v286
      %v623 = vunpack.c.l.b16 %v287
      %v624 = vunpack.c.h.b16 %v287
      %v625 = vunpack.c.l.b16 %v288
      %v626 = vunpack.c.h.b16 %v288
      %v627 = vunpack.c.l.b16 %v289
      %v628 = vunpack.c.h.b16 %v289
      %v629 = vpack.c.b16 %v419, %v413
      %v630 = vpack.c.b16 %v420, %v414
      %v631 = vpack.c.b16 %v421, %v415
      %v632 = vpack.c.b16 %v422, %v416
      %v633 = vpack.c.b16 %v423, %v417
      %v634 = vpack.c.b16 %v424, %v418
      %v635 = vpack.c.b16 %v431, %v425
      %v636 = vpack.c.b16 %v432, %v426
      %v637 = vpack.c.b16 %v433, %v427
      %v638 = vpack.c.b16 %v434, %v428
      %v639 = vpack.c.b16 %v435, %v429
      %v640 = vpack.c.b16 %v436, %v430
      %v641 = vpack.c.b16 %v443, %v437
      %v642 = vpack.c.b16 %v444, %v438
      %v643 = vpack.c.b16 %v445, %v439
      %v644 = vpack.c.b16 %v446, %v440
      %v645 = vpack.c.b16 %v447, %v441
      %v646 = vpack.c.b16 %v448, %v442
      %v647 = vpack.c.b16 %v455, %v449
      %v648 = vpack.c.b16 %v456, %v450
      %v649 = vpack.c.b16 %v457, %v451
      %v650 = vpack.c.b16 %v458, %v452
      %v651 = vpack.c.b16 %v459, %v453
      %v652 = vpack.c.b16 %v460, %v454
      %v653 = vpack.c.b16 %v467, %v461
      %v654 = vpack.c.b16 %v468, %v462
      %v655 = vpack.c.b16 %v469, %v463
      %v656 = vpack.c.b16 %v470, %v464
      %v657 = vpack.c.b16 %v471, %v465
      %v658 = vpack.c.b16 %v472, %v466
      %v659 = vpack.c.b16 %v479, %v473
      %v660 = vpack.c.b16 %v480, %v474
      %v661 = vpack.c.b16 %v481, %v475
      %v662 = vpack.c.b16 %v482, %v476
      %v663 = vpack.c.b16 %v483, %v477
      %v664 = vpack.c.b16 %v484, %v478
      %v665 = vpack.c.b16 %v491, %v485
      %v666 = vpack.c.b16 %v492, %v486
      %v667 = vpack.c.b16 %v493, %v487
      %v668 = vpack.c.b16 %v494, %v488
      %v669 = vpack.c.b16 %v495, %v489
      %v670 = vpack.c.b16 %v496, %v490
      %v671 = vpack.c.b16 %v503, %v497
      %v672 = vpack.c.b16 %v504, %v498
      %v673 = vpack.c.b16 %v505, %v499
      %v674 = vpack.c.b16 %v506, %v500
      %v675 = vpack.c.b16 %v507, %v501
      %v676 = vpack.c.b16 %v508, %v502
      %v677 = vpack.c.b16 %v515, %v509
      %v678 = vpack.c.b16 %v516, %v510
      %v679 = vpack.c.b16 %v517, %v511
      %v680 = vpack.c.b16 %v518, %v512
      %v681 = vpack.c.b16 %v519, %v513
      %v682 = vpack.c.b16 %v520, %v514
      %v683 = vpack.c.b16 %v527, %v521
      %v684 = vpack.c.b16 %v528, %v522
      %v685 = vpack.c.b16 %v529, %v523
      %v686 = vpack.c.b16 %v530, %v524
      %v687 = vpack.c.b16 %v531, %v525
      %v688 = vpack.c.b16 %v532, %v526
      %v689 = vpack.c.b16 %v539, %v533
      %v690 = vpack.c.b16 %v540, %v534
      %v691 = vpack.c.b16 %v541, %v535
      %v692 = vpack.c.b16 %v542, %v536
      %v693 = vpack.c.b16 %v543, %v537
      %v694 = vpack.c.b16 %v544, %v538
      %v695 = vpack.c.b16 %v551, %v545
      %v696 = vpack.c.b16 %v552, %v546
      %v697 = vpack.c.b16 %v553, %v547
      %v698 = vpack.c.b16 %v554, %v548
      %v699 = vpack.c.b16 %v555, %v549
      %v700 = vpack.c.b16 %v556, %v550
      %v701 = vpack.c.b16 %v563, %v557
      %v702 = vpack.c.b16 %v564, %v558
      %v703 = vpack.c.b16 %v565, %v559
      %v704 = vpack.c.b16 %v566, %v560
      %v705 = vpack.c.b16 %v567, %v561
      %v706 = vpack.c.b16 %v568, %v562
      %v707 = vpack.c.b16 %v575, %v569
      %v708 = vpack.c.b16 %v576, %v570
      %v709 = vpack.c.b16 %v577, %v571
      %v710 = vpack.c.b16 %v578, %v572
      %v711 = vpack.c.b16 %v579, %v573
      %v712 = vpack.c.b16 %v580, %v574
      %v713 = vpack.c.b16 %v587, %v581
      %v714 = vpack.c.b16 %v588, %v582
      %v715 = vpack.c.b16 %v589, %v583
      %v716 = vpack.c.b16 %v590, %v584
      %v717 = vpack.c.b16 %v591, %v585
      %v718 = vpack.c.b16 %v592, %v586
      %v719 = vpack.c.b16 %v599, %v593
      %v720 = vpack.c.b16 %v600, %v594
      %v721 = vpack.c.b16 %v601, %v595
      %v722 = vpack.c.b16 %v602, %v596
      %v723 = vpack.c.b16 %v603, %v597
      %v724 = vpack.c.b16 %v604, %v598
      %v725 = vpack.c.b16 %v611, %v605
      %v726 = vpack.c.b16 %v612, %v606
      %v727 = vpack.c.b16 %v613, %v607
      %v728 = vpack.c.b16 %v614, %v608
      %v729 = vpack.c.b16 %v615, %v609
      %v730 = vpack.c.b16 %v616, %v610
      %v731 = vpack.c.b16 %v623, %v617
      %v732 = vpack.c.b16 %v624, %v618
      %v733 = vpack.c.b16 %v625, %v619
      %v734 = vpack.c.b16 %v626, %v620
      %v735 = vpack.c.b16 %v627, %v621
      %v736 = vpack.c.b16 %v628, %v622
      %vm845 = vcmask 261120
      %v847 = vsel %vm845, %v302, 0
      %849 = vmatprep.subr.bf16.mxu0 %v630
      %850 = vmatpush1.bf16.msra.mxu0 %v629
      %851 = vmatprep.subr.bf16.mxu0 %v636
      %852 = vmatpush1.bf16.msra.mxu0 %v635
      %853 = vmatprep.subr.bf16.mxu0 %v642
      %854 = vmatpush1.bf16.msra.mxu0 %v641
      %855 = vmatprep.subr.bf16.mxu0 %v648
      %856 = vmatpush1.bf16.msra.mxu0 %v647
      %857 = vmatprep.subr.bf16.mxu0 %v654
      %858 = vmatpush1.bf16.msra.mxu0 %v653
      %859 = vmatprep.subr.bf16.mxu0 %v660
      %860 = vmatpush1.bf16.msra.mxu0 %v659
      %861 = vmatprep.subr.bf16.mxu0 %v666
      %862 = vmatpush1.bf16.msra.mxu0 %v665
      %863 = vmatprep.subr.bf16.mxu0 %v672
      %864 = vmatpush1.bf16.msra.mxu0 %v671
      %865 = vmatprep.subr.bf16.mxu0 %v678
      %866 = vmatpush1.bf16.msra.mxu0 %v677
      %867 = vmatprep.subr.bf16.mxu0 %v684
      %868 = vmatpush1.bf16.msra.mxu0 %v683
      %869 = vmatprep.subr.bf16.mxu0 %v690
      %870 = vmatpush1.bf16.msra.mxu0 %v689
      %871 = vmatprep.subr.bf16.mxu0 %v696
      %872 = vmatpush1.bf16.msra.mxu0 %v695
      %873 = vmatprep.subr.bf16.mxu0 %v702
      %874 = vmatpush1.bf16.msra.mxu0 %v701
      %875 = vmatprep.subr.bf16.mxu0 %v708
      %876 = vmatpush1.bf16.msra.mxu0 %v707
      %877 = vmatprep.subr.bf16.mxu0 %v714
      %878 = vmatpush1.bf16.msra.mxu0 %v713
      %879 = vmatprep.subr.bf16.mxu0 %v720
      %880 = vmatpush1.bf16.msra.mxu0 %v719
      %881 = vmatprep.mubr.bf16.mxu0 %v301
      %882 = vmatmul.mubr.bf16.gmra.mrb[0].mxu0 %v300
      %v883 = vpop.f32.mrb[0].mxu0
      %v884 = vadd.f32 0.0, %v883
      %v885 = vpop.f32.mrb[0].mxu0
      %v886 = vadd.f32 0.0, %v885
      %v887 = vpop.f32.mrb[0].mxu0
      %v888 = vadd.f32 0.0, %v887
      %v889 = vpop.f32.mrb[0].mxu0
      %v890 = vadd.f32 0.0, %v889
      %891 = vdwg.mxu0
      %892 = vmatprep.subr.bf16.mxu0 %v726
      %893 = vmatpush1.bf16.msra.mxu0 %v725
      %894 = vmatprep.subr.bf16.mxu0 %v732
      %895 = vmatpush1.bf16.msra.mxu0 %v731
      %896 = vmatprep.subr.bf16.mxu0 0
      %897 = vmatpush1.bf16.msra.mxu0 0
      %898 = vmatprep.subr.bf16.mxu0 0
      %899 = vmatpush1.bf16.msra.mxu0 0
      %900 = vmatprep.subr.bf16.mxu0 0
      %901 = vmatpush1.bf16.msra.mxu0 0
      %902 = vmatprep.subr.bf16.mxu0 0
      %903 = vmatpush1.bf16.msra.mxu0 0
      %904 = vmatprep.subr.bf16.mxu0 0
      %905 = vmatpush1.bf16.msra.mxu0 0
      %906 = vmatprep.subr.bf16.mxu0 0
      %907 = vmatpush1.bf16.msra.mxu0 0
      %908 = vmatprep.subr.bf16.mxu0 0
      %909 = vmatpush1.bf16.msra.mxu0 0
      %910 = vmatprep.subr.bf16.mxu0 0
      %911 = vmatpush1.bf16.msra.mxu0 0
      %912 = vmatprep.subr.bf16.mxu0 0
      %913 = vmatpush1.bf16.msra.mxu0 0
      %914 = vmatprep.subr.bf16.mxu0 0
      %915 = vmatpush1.bf16.msra.mxu0 0
      %916 = vmatprep.subr.bf16.mxu0 0
      %917 = vmatpush1.bf16.msra.mxu0 0
      %918 = vmatprep.subr.bf16.mxu0 0
      %919 = vmatpush1.bf16.msra.mxu0 0
      %920 = vmatprep.subr.bf16.mxu0 0
      %921 = vmatpush1.bf16.msra.mxu0 0
      %922 = vmatprep.subr.bf16.mxu0 0
      %923 = vmatpush1.bf16.msra.mxu0 0
      %924 = vmatprep.mubr.bf16.mxu0 0
      %925 = vmatmul.mubr.bf16.gmra.mrb[0].mxu0 %v847
      %v926 = vpop.f32.mrb[0].mxu0
      %v927 = vadd.f32 %v884, %v926
      %v928 = vpop.f32.mrb[0].mxu0
      %v929 = vadd.f32 %v886, %v928
      %v930 = vpop.f32.mrb[0].mxu0
      %v931 = vadd.f32 %v888, %v930
      %v932 = vpop.f32.mrb[0].mxu0
      %v933 = vadd.f32 %v890, %v932
      %934 = vdwg.mxu0
      %935 = vmatprep.subr.bf16.mxu0 %v632
      %936 = vmatpush1.bf16.msra.mxu0 %v631
      %937 = vmatprep.subr.bf16.mxu0 %v638
      %938 = vmatpush1.bf16.msra.mxu0 %v637
      %939 = vmatprep.subr.bf16.mxu0 %v644
      %940 = vmatpush1.bf16.msra.mxu0 %v643
      %941 = vmatprep.subr.bf16.mxu0 %v650
      %942 = vmatpush1.bf16.msra.mxu0 %v649
      %943 = vmatprep.subr.bf16.mxu0 %v656
      %944 = vmatpush1.bf16.msra.mxu0 %v655
      %945 = vmatprep.subr.bf16.mxu0 %v662
      %946 = vmatpush1.bf16.msra.mxu0 %v661
      %947 = vmatprep.subr.bf16.mxu0 %v668
      %948 = vmatpush1.bf16.msra.mxu0 %v667
      %949 = vmatprep.subr.bf16.mxu0 %v674
      %950 = vmatpush1.bf16.msra.mxu0 %v673
      %951 = vmatprep.subr.bf16.mxu0 %v680
      %952 = vmatpush1.bf16.msra.mxu0 %v679
      %953 = vmatprep.subr.bf16.mxu0 %v686
      %954 = vmatpush1.bf16.msra.mxu0 %v685
      %955 = vmatprep.subr.bf16.mxu0 %v692
      %956 = vmatpush1.bf16.msra.mxu0 %v691
      %957 = vmatprep.subr.bf16.mxu0 %v698
      %958 = vmatpush1.bf16.msra.mxu0 %v697
      %959 = vmatprep.subr.bf16.mxu0 %v704
      %960 = vmatpush1.bf16.msra.mxu0 %v703
      %961 = vmatprep.subr.bf16.mxu0 %v710
      %962 = vmatpush1.bf16.msra.mxu0 %v709
      %963 = vmatprep.subr.bf16.mxu0 %v716
      %964 = vmatpush1.bf16.msra.mxu0 %v715
      %965 = vmatprep.subr.bf16.mxu0 %v722
      %966 = vmatpush1.bf16.msra.mxu0 %v721
      %967 = vmatprep.mubr.bf16.mxu0 %v301
      %968 = vmatmul.mubr.bf16.gmra.mrb[0].mxu0 %v300
      %v969 = vpop.f32.mrb[0].mxu0
      %v970 = vadd.f32 0.0, %v969
      %v971 = vpop.f32.mrb[0].mxu0
      %v972 = vadd.f32 0.0, %v971
      %v973 = vpop.f32.mrb[0].mxu0
      %v974 = vadd.f32 0.0, %v973
      %v975 = vpop.f32.mrb[0].mxu0
      %v976 = vadd.f32 0.0, %v975
      %977 = vdwg.mxu0
      %978 = vmatprep.subr.bf16.mxu0 %v728
      %979 = vmatpush1.bf16.msra.mxu0 %v727
      %980 = vmatprep.subr.bf16.mxu0 %v734
      %981 = vmatpush1.bf16.msra.mxu0 %v733
      %982 = vmatprep.subr.bf16.mxu0 0
      %983 = vmatpush1.bf16.msra.mxu0 0
      %984 = vmatprep.subr.bf16.mxu0 0
      %985 = vmatpush1.bf16.msra.mxu0 0
      %986 = vmatprep.subr.bf16.mxu0 0
      %987 = vmatpush1.bf16.msra.mxu0 0
      %988 = vmatprep.subr.bf16.mxu0 0
      %989 = vmatpush1.bf16.msra.mxu0 0
      %990 = vmatprep.subr.bf16.mxu0 0
      %991 = vmatpush1.bf16.msra.mxu0 0
      %992 = vmatprep.subr.bf16.mxu0 0
      %993 = vmatpush1.bf16.msra.mxu0 0
      %994 = vmatprep.subr.bf16.mxu0 0
      %995 = vmatpush1.bf16.msra.mxu0 0
      %996 = vmatprep.subr.bf16.mxu0 0
      %997 = vmatpush1.bf16.msra.mxu0 0
      %998 = vmatprep.subr.bf16.mxu0 0
      %999 = vmatpush1.bf16.msra.mxu0 0
      %1000 = vmatprep.subr.bf16.mxu0 0
      %1001 = vmatpush1.bf16.msra.mxu0 0
      %1002 = vmatprep.subr.bf16.mxu0 0
      %1003 = vmatpush1.bf16.msra.mxu0 0
      %1004 = vmatprep.subr.bf16.mxu0 0
      %1005 = vmatpush1.bf16.msra.mxu0 0
      %1006 = vmatprep.subr.bf16.mxu0 0
      %1007 = vmatpush1.bf16.msra.mxu0 0
      %1008 = vmatprep.subr.bf16.mxu0 0
      %1009 = vmatpush1.bf16.msra.mxu0 0
      %1010 = vmatprep.mubr.bf16.mxu0 0
      %1011 = vmatmul.mubr.bf16.gmra.mrb[0].mxu0 %v847
      %v1012 = vpop.f32.mrb[0].mxu0
      %v1013 = vadd.f32 %v970, %v1012
      %v1014 = vpop.f32.mrb[0].mxu0
      %v1015 = vadd.f32 %v972, %v1014
      %v1016 = vpop.f32.mrb[0].mxu0
      %v1017 = vadd.f32 %v974, %v1016
      %v1018 = vpop.f32.mrb[0].mxu0
      %v1019 = vadd.f32 %v976, %v1018
      %1020 = vdwg.mxu0
      %1021 = vmatprep.subr.bf16.mxu0 %v634
      %1022 = vmatpush1.bf16.msra.mxu0 %v633
      %1023 = vmatprep.subr.bf16.mxu0 %v640
      %1024 = vmatpush1.bf16.msra.mxu0 %v639
      %1025 = vmatprep.subr.bf16.mxu0 %v646
      %1026 = vmatpush1.bf16.msra.mxu0 %v645
      %1027 = vmatprep.subr.bf16.mxu0 %v652
      %1028 = vmatpush1.bf16.msra.mxu0 %v651
      %1029 = vmatprep.subr.bf16.mxu0 %v658
      %1030 = vmatpush1.bf16.msra.mxu0 %v657
      %1031 = vmatprep.subr.bf16.mxu0 %v664
      %1032 = vmatpush1.bf16.msra.mxu0 %v663
      %1033 = vmatprep.subr.bf16.mxu0 %v670
      %1034 = vmatpush1.bf16.msra.mxu0 %v669
      %1035 = vmatprep.subr.bf16.mxu0 %v676
      %1036 = vmatpush1.bf16.msra.mxu0 %v675
      %1037 = vmatprep.subr.bf16.mxu0 %v682
      %1038 = vmatpush1.bf16.msra.mxu0 %v681
      %1039 = vmatprep.subr.bf16.mxu0 %v688
      %1040 = vmatpush1.bf16.msra.mxu0 %v687
      %1041 = vmatprep.subr.bf16.mxu0 %v694
      %1042 = vmatpush1.bf16.msra.mxu0 %v693
      %1043 = vmatprep.subr.bf16.mxu0 %v700
      %1044 = vmatpush1.bf16.msra.mxu0 %v699
      %1045 = vmatprep.subr.bf16.mxu0 %v706
      %1046 = vmatpush1.bf16.msra.mxu0 %v705
      %1047 = vmatprep.subr.bf16.mxu0 %v712
      %1048 = vmatpush1.bf16.msra.mxu0 %v711
      %1049 = vmatprep.subr.bf16.mxu0 %v718
      %1050 = vmatpush1.bf16.msra.mxu0 %v717
      %1051 = vmatprep.subr.bf16.mxu0 %v724
      %1052 = vmatpush1.bf16.msra.mxu0 %v723
      %1053 = vmatprep.mubr.bf16.mxu0 %v301
      %1054 = vmatmul.mubr.bf16.gmra.mrb[0].mxu0 %v300
      %v1055 = vpop.f32.mrb[0].mxu0
      %v1056 = vadd.f32 0.0, %v1055
      %v1057 = vpop.f32.mrb[0].mxu0
      %v1058 = vadd.f32 0.0, %v1057
      %v1059 = vpop.f32.mrb[0].mxu0
      %v1060 = vadd.f32 0.0, %v1059
      %v1061 = vpop.f32.mrb[0].mxu0
      %v1062 = vadd.f32 0.0, %v1061
      %1063 = vdwg.mxu0
      %1064 = vmatprep.subr.bf16.mxu0 %v730
      %1065 = vmatpush1.bf16.msra.mxu0 %v729
      %1066 = vmatprep.subr.bf16.mxu0 %v736
      %1067 = vmatpush1.bf16.msra.mxu0 %v735
      %1068 = vmatprep.subr.bf16.mxu0 0
      %1069 = vmatpush1.bf16.msra.mxu0 0
      %1070 = vmatprep.subr.bf16.mxu0 0
      %1071 = vmatpush1.bf16.msra.mxu0 0
      %1072 = vmatprep.subr.bf16.mxu0 0
      %1073 = vmatpush1.bf16.msra.mxu0 0
      %1074 = vmatprep.subr.bf16.mxu0 0
      %1075 = vmatpush1.bf16.msra.mxu0 0
      %1076 = vmatprep.subr.bf16.mxu0 0
      %1077 = vmatpush1.bf16.msra.mxu0 0
      %1078 = vmatprep.subr.bf16.mxu0 0
      %1079 = vmatpush1.bf16.msra.mxu0 0
      %1080 = vmatprep.subr.bf16.mxu0 0
      %1081 = vmatpush1.bf16.msra.mxu0 0
      %1082 = vmatprep.subr.bf16.mxu0 0
      %1083 = vmatpush1.bf16.msra.mxu0 0
      %1084 = vmatprep.subr.bf16.mxu0 0
      %1085 = vmatpush1.bf16.msra.mxu0 0
      %1086 = vmatprep.subr.bf16.mxu0 0
      %1087 = vmatpush1.bf16.msra.mxu0 0
      %1088 = vmatprep.subr.bf16.mxu0 0
      %1089 = vmatpush1.bf16.msra.mxu0 0
      %1090 = vmatprep.subr.bf16.mxu0 0
      %1091 = vmatpush1.bf16.msra.mxu0 0
      %1092 = vmatprep.subr.bf16.mxu0 0
      %1093 = vmatpush1.bf16.msra.mxu0 0
      %1094 = vmatprep.subr.bf16.mxu0 0
      %1095 = vmatpush1.bf16.msra.mxu0 0
      %1096 = vmatprep.mubr.bf16.mxu0 0
      %1097 = vmatmul.mubr.bf16.gmra.mrb[0].mxu0 %v847
      %v1098 = vpop.f32.mrb[0].mxu0
      %v1099 = vadd.f32 %v1056, %v1098
      %v1100 = vpop.f32.mrb[0].mxu0
      %v1101 = vadd.f32 %v1058, %v1100
      %v1102 = vpop.f32.mrb[0].mxu0
      %v1103 = vadd.f32 %v1060, %v1102
      %v1104 = vpop.f32.mrb[0].mxu0
      %v1105 = vadd.f32 %v1062, %v1104
      %1106 = vdwg.mxu0
      %v1107 = vadd.f32 %v166, %v927
      %v1108 = vadd.f32 %v167, %v929
      %v1109 = vadd.f32 %v168, %v1013
      %v1110 = vadd.f32 %v169, %v1015
      %v1111 = vadd.f32 %v170, %v1099
      %v1112 = vadd.f32 %v171, %v1101
      %v1113 = vadd.f32 %v172, %v931
      %v1114 = vadd.f32 %v173, %v933
      %v1115 = vadd.f32 %v174, %v1017
      %v1116 = vadd.f32 %v175, %v1019
      %v1117 = vadd.f32 %v176, %v1103
      %v1118 = vadd.f32 %v177, %v1105
      %1119 = vst [vmem:[#allocation2] sm:$0xff] %v1107
      %1120 = vst [vmem:[#allocation2 + $0x8] sm:$0xff] %v1108
      %1121 = vst [vmem:[#allocation2 + $0x10] sm:$0xff] %v1109
      %1122 = vst [vmem:[#allocation2 + $0x18] sm:$0xff] %v1110
      %1123 = vst [vmem:[#allocation2 + $0x20] sm:$0xff] %v1111
      %1124 = vst [vmem:[#allocation2 + $0x28] sm:$0xff] %v1112
      %1125 = vst [vmem:[#allocation2 + $0x30] sm:$0xff] %v1113
      %1126 = vst [vmem:[#allocation2 + $0x38] sm:$0xff] %v1114
      %1127 = vst [vmem:[#allocation2 + $0x40] sm:$0xff] %v1115
      %1128 = vst [vmem:[#allocation2 + $0x48] sm:$0xff] %v1116
      %1129 = vst [vmem:[#allocation2 + $0x50] sm:$0xff] %v1117
      %1130 = vst [vmem:[#allocation2 + $0x58] sm:$0xff] %v1118
      %p1131 = scmp.eq.s32.totalorder %s13, 2
      // Predicated region
      $region33: #{ae_forward.13} parent=27 // pred_check
        %p1132 = pneg %p1131
      $region34: #{ae_forward.13} parent=27 // pred_check_branch
        %1134 = sbr.rel (%p1132) target = $region36
      $region35: #{ae_forward.13} parent=27 // pred_region
        %v1135 = vld [vmem:[#allocation2] sm:$0xff]
        %v1136 = vld [vmem:[#allocation2 + $0x8] sm:$0xff]
        %v1137 = vld [vmem:[#allocation2 + $0x10] sm:$0xff]
        %v1138 = vld [vmem:[#allocation2 + $0x18] sm:$0xff]
        %v1139 = vld [vmem:[#allocation2 + $0x20] sm:$0xff]
        %v1140 = vld [vmem:[#allocation2 + $0x28] sm:$0xff]
        %v1141 = vld [vmem:[#allocation2 + $0x30] sm:$0xff]
        %v1142 = vld [vmem:[#allocation2 + $0x38] sm:$0xff]
        %v1143 = vld [vmem:[#allocation2 + $0x40] sm:$0xff]
        %v1144 = vld [vmem:[#allocation2 + $0x48] sm:$0xff]
        %v1145 = vld [vmem:[#allocation2 + $0x50] sm:$0xff]
        %v1146 = vld [vmem:[#allocation2 + $0x58] sm:$0xff]
        %v1147 = vadd.f32 %v1135, %v1136
        %v1148 = vadd.f32 %v1147, %v1137
        %v1149 = vadd.f32 %v1148, %v1138
        %v1150 = vadd.f32 %v1149, %v1139
        %v1151 = vadd.f32 %v1150, %v1140
        %1152 = vadd.xlane.f32.xlu0 %v1151
        %v1153 = vpop.xlane.xlu0 %1152
        %v1154 = vadd.f32 %v1141, %v1142
        %v1155 = vadd.f32 %v1154, %v1143
        %v1156 = vadd.f32 %v1155, %v1144
        %v1157 = vadd.f32 %v1156, %v1145
        %v1158 = vadd.f32 %v1157, %v1146
        %1159 = vadd.xlane.f32.xlu0 %v1158
        %v1160 = vpop.xlane.xlu0 %1159
        %v1161 = vmul.f32 %v1153, 0.001457726
        %v1162 = vmul.f32 %v1160, 0.001457726
        %v1163 = vmul.f32 %v1135, %v1135
        %v1164 = vmul.f32 %v1136, %v1136
        %v1165 = vmul.f32 %v1137, %v1137
        %v1166 = vmul.f32 %v1138, %v1138
        %v1167 = vmul.f32 %v1139, %v1139
        %v1168 = vmul.f32 %v1140, %v1140
        %v1169 = vmul.f32 %v1141, %v1141
        %v1170 = vmul.f32 %v1142, %v1142
        %v1171 = vmul.f32 %v1143, %v1143
        %v1172 = vmul.f32 %v1144, %v1144
        %v1173 = vmul.f32 %v1145, %v1145
        %v1174 = vmul.f32 %v1146, %v1146
        %v1175 = vadd.f32 %v1163, %v1164
        %v1176 = vadd.f32 %v1175, %v1165
        %v1177 = vadd.f32 %v1176, %v1166
        %v1178 = vadd.f32 %v1177, %v1167
        %v1179 = vadd.f32 %v1178, %v1168
        %1180 = vadd.xlane.f32.xlu0 %v1179
        %v1181 = vpop.xlane.xlu0 %1180
        %v1182 = vadd.f32 %v1169, %v1170
        %v1183 = vadd.f32 %v1182, %v1171
        %v1184 = vadd.f32 %v1183, %v1172
        %v1185 = vadd.f32 %v1184, %v1173
        %v1186 = vadd.f32 %v1185, %v1174
        %1187 = vadd.xlane.f32.xlu0 %v1186
        %v1188 = vpop.xlane.xlu0 %1187
        %v1189 = vmul.f32 %v1181, 0.001457726
        %v1190 = vmul.f32 %v1188, 0.001457726
        %v1191 = vmul.f32 %v1161, %v1161
        %v1192 = vmul.f32 %v1162, %v1162
        %v1193 = vsub.f32 %v1189, %v1191
        %v1194 = vsub.f32 %v1190, %v1192
        %v1195 = vmax.f32 %v1193, 0.0
        %v1196 = vmax.f32 %v1194, 0.0
        %v1197 = vsub.f32 %v1135, %v1161
        %v1198 = vsub.f32 %v1136, %v1161
        %v1199 = vsub.f32 %v1137, %v1161
        %v1200 = vsub.f32 %v1138, %v1161
        %v1201 = vsub.f32 %v1139, %v1161
        %v1202 = vsub.f32 %v1140, %v1161
        %v1203 = vsub.f32 %v1141, %v1162
        %v1204 = vsub.f32 %v1142, %v1162
        %v1205 = vsub.f32 %v1143, %v1162
        %v1206 = vsub.f32 %v1144, %v1162
        %v1207 = vsub.f32 %v1145, %v1162
        %v1208 = vsub.f32 %v1146, %v1162
        %v1209 = vadd.f32 %v1195, 1e-05
        %v1210 = vadd.f32 %v1196, 1e-05
        %v1211 = vrsqrt.pop %v1209
        %v1212 = vrsqrt.pop %v1210
        %v1213 = vmul.f32 %v1197, %v1211
        %v1214 = vmul.f32 %v1198, %v1211
        %v1215 = vmul.f32 %v1199, %v1211
        %v1216 = vmul.f32 %v1200, %v1211
        %v1217 = vmul.f32 %v1201, %v1211
        %v1218 = vmul.f32 %v1202, %v1211
        %v1219 = vmul.f32 %v1203, %v1212
        %v1220 = vmul.f32 %v1204, %v1212
        %v1221 = vmul.f32 %v1205, %v1212
        %v1222 = vmul.f32 %v1206, %v1212
        %v1223 = vmul.f32 %v1207, %v1212
        %v1224 = vmul.f32 %v1208, %v1212
        %v1225 = vmax.f32 %v1213, 0.0
        %v1226 = vmax.f32 %v1214, 0.0
        %v1227 = vmax.f32 %v1215, 0.0
        %v1228 = vmax.f32 %v1216, 0.0
        %v1229 = vmax.f32 %v1217, 0.0
        %v1230 = vmax.f32 %v1218, 0.0
        %v1231 = vmax.f32 %v1219, 0.0
        %v1232 = vmax.f32 %v1220, 0.0
        %v1233 = vmax.f32 %v1221, 0.0
        %v1234 = vmax.f32 %v1222, 0.0
        %v1235 = vmax.f32 %v1223, 0.0
        %v1236 = vmax.f32 %v1224, 0.0
        %1237 = vst [vmem:[%s2] sm:$0xff] %v1225
        %1238 = vst [vmem:[%s2 + $0x8] sm:$0xff] %v1226
        %1239 = vst [vmem:[%s2 + $0x10] sm:$0xff] %v1227
        %1240 = vst [vmem:[%s2 + $0x18] sm:$0xff] %v1228
        %1241 = vst [vmem:[%s2 + $0x20] sm:$0xff] %v1229
        %1242 = vst [vmem:[%s2 + $0x28] sm:$0xff] %v1230
        %1243 = vst [vmem:[%s2 + $0x30] sm:$0xff] %v1231
        %1244 = vst [vmem:[%s2 + $0x38] sm:$0xff] %v1232
        %1245 = vst [vmem:[%s2 + $0x40] sm:$0xff] %v1233
        %1246 = vst [vmem:[%s2 + $0x48] sm:$0xff] %v1234
        %1247 = vst [vmem:[%s2 + $0x50] sm:$0xff] %v1235
        %1248 = vst [vmem:[%s2 + $0x58] sm:$0xff] %v1236
      $region36: #{ae_forward.13} parent=27 // pred_fallthru
        _
      // Predicated region
      $region37: #{ae_forward.13} parent=27 // pred_check
        %p1249 = pneg %p78
      $region38: #{ae_forward.13} parent=27 // pred_check_branch
        %1251 = sbr.rel (%p1249) target = $region40
      $region39: #{ae_forward.13} parent=27 // pred_region
        _
      $region40: #{ae_forward.13} parent=27 // pred_fallthru
        _
      // Predicated region
      $region41: #{ae_forward.13} parent=27 // pred_check
        %p1252 = pneg %p78
      $region42: #{ae_forward.13} parent=27 // pred_check_branch
        %1254 = sbr.rel (%p1252) target = $region44
      $region43: #{ae_forward.13} parent=27 // pred_region
        _
      $region44: #{ae_forward.13} parent=27 // pred_fallthru
        _
    $region28: #{ae_forward.13} parent=5 // pred_fallthru
      _
    %p1255 = scmp.le.s32.totalorder 2, %s8
    // Predicated region
    $region45: #{ae_forward.13} parent=5 // pred_check
      %p1256 = pneg %p1255
    $region46: #{ae_forward.13} parent=5 // pred_check_branch
      %1258 = sbr.rel (%p1256) target = $region48
    $region47: #{ae_forward.13} parent=5 // pred_region
      %s1259 = ssub.s32 %s8, 2
    $region48: #{ae_forward.13} parent=5 // pred_fallthru
      _
  $region6: #{ae_forward.13} parent=0 // loop_footer
    %s12 = sadd.s32 1, %s8
  $region7: #{ae_forward.13} parent=0 // loop_footer_branch
    %7 = sbr.rel target = $region3
  $region8: #{ae_forward.13} parent=0 // loop_exit
    _

// kernel: ae_forward.14
$region0: #{ae_forward.14}
  #allocation0 [shape = 'u32[]', space=smem, size = 0x4, offset = 0x4, fixed_abs, tag = 'smem constant byte address 0x4 - core index']
  #allocation1 [shape = 'u32[144,128]{1,0:T(1,128)}', space=vmem, size = 0x12000, scoped, tag = 'internal scratch']
  #allocation2 [shape = 'f32[8,1536]{1,0:T(8,128)}', space=vmem, size = 0xc000, scoped, tag = 'scratch operand']
  %s0 = inlined_call_operand.vmem [shape: bf16[3,144,1536], index: 0, kind: input, shape index: {}]
  %s1 = inlined_call_operand.vmem [shape: bf16[3,8,144], index: 1, kind: input, shape index: {}]
  %s2 = inlined_call_operand.vmem [shape: f32[8,1536], index: 2, kind: output, shape index: {}]
  %s3 = sld [smem:[#allocation0]]
  $region49: #{ae_forward.14} parent=0
    _
  %s5 = ssub.s32 1, %s3
  %s6 = scalar_select 0, %s5, %s3
  loop: start=0, step=1, limit=5
  $region2: #{ae_forward.14} parent=0 // loop_pre_header
    _
  $region3: #{ae_forward.14} parent=0 // loop_header
    %s8 = sphi 0, %s12
    %p9 = scmp.ge.s32.totalorder %s8, 5
    %s18 = sphi 0, %s20
    %s21 = sphi 0, %s18
    %s22 = sphi 0, %s21
    %s38 = sphi 0, %s22
    %s44 = sphi 0, %s46
    %s47 = sphi 0, %s44
    %s48 = sphi 0, %s47
    %s64 = sphi 0, %s48
    %s68 = sphi 0, %s68
    %s70 = sphi 0, %s68
    %s71 = sphi 0, %s70
    %s85 = sphi 0, %s71
  $region4: #{ae_forward.14} parent=0 // loop_header_branch
    %11 = sbr.rel (%p9) target = $region8
  $region5: #{ae_forward.14} parent=0 // loop_body
    %s13 = ssub.s32 %s8, 1
    %s14 = ssub.s32 %s8, 2
    %s15 = sadd.s32 %s8, 1
    %s16 = ssub.s32 %s8, %s15
    %p17 = scmp.eq.s32.totalorder %s16, 0
    %s19 = sadd.s32 %s18, 1
    %s20 = scalar_select %p17, %s18, %s19
    %p23 = pneg %p17
    %p24 = scmp.eq.s32.totalorder %s8, 2
    %p25 = por %p23, %p24
    %p26 = scmp.ne.s32.totalorder %s18, %s21
    %p27 = scmp.eq.s32.totalorder %s8, 0
    %p28 = por %p26, %p27
    %p29 = scmp.ne.s32.totalorder %s18, %s21
    %p30 = scmp.eq.s32.totalorder %s13, 2
    %p31 = por %p29, %p30
    %p32 = scmp.ne.s32.totalorder %s21, %s22
    %p33 = scmp.eq.s32.totalorder %s13, 0
    %p34 = por %p32, %p33
    %p35 = scmp.ne.s32.totalorder %s21, %s22
    %p36 = scmp.eq.s32.totalorder %s14, 2
    %p37 = por %p35, %p36
    %p39 = scmp.ne.s32.totalorder %s22, %s38
    %p40 = scmp.eq.s32.totalorder %s14, 0
    %p41 = por %p39, %p40
    %s42 = ssub.s32 %s8, %s15
    %p43 = scmp.eq.s32.totalorder %s42, 0
    %s45 = sadd.s32 %s44, 1
    %s46 = scalar_select %p43, %s44, %s45
    %p49 = pneg %p43
    %p50 = scmp.eq.s32.totalorder %s8, 2
    %p51 = por %p49, %p50
    %p52 = scmp.ne.s32.totalorder %s44, %s47
    %p53 = scmp.eq.s32.totalorder %s8, 0
    %p54 = por %p52, %p53
    %p55 = scmp.ne.s32.totalorder %s44, %s47
    %p56 = scmp.eq.s32.totalorder %s13, 2
    %p57 = por %p55, %p56
    %p58 = scmp.ne.s32.totalorder %s47, %s48
    %p59 = scmp.eq.s32.totalorder %s13, 0
    %p60 = por %p58, %p59
    %p61 = scmp.ne.s32.totalorder %s47, %s48
    %p62 = scmp.eq.s32.totalorder %s14, 2
    %p63 = por %p61, %p62
    %p65 = scmp.ne.s32.totalorder %s48, %s64
    %p66 = scmp.eq.s32.totalorder %s14, 0
    %p67 = por %p65, %p66
    %s69 = sadd.s32 %s68, 1
    %p72 = scmp.eq.s32.totalorder %s8, 2
    %p73 = scmp.ne.s32.totalorder %s68, %s70
    %p74 = scmp.eq.s32.totalorder %s8, 0
    %p75 = por %p73, %p74
    %p76 = scmp.ne.s32.totalorder %s68, %s70
    %p77 = scmp.eq.s32.totalorder %s13, 2
    %p78 = por %p76, %p77
    %p79 = scmp.ne.s32.totalorder %s70, %s71
    %p80 = scmp.eq.s32.totalorder %s13, 0
    %p81 = por %p79, %p80
    %p82 = scmp.ne.s32.totalorder %s70, %s71
    %p83 = scmp.eq.s32.totalorder %s14, 2
    %p84 = por %p82, %p83
    %p86 = scmp.ne.s32.totalorder %s71, %s85
    %p87 = scmp.eq.s32.totalorder %s14, 0
    %p88 = por %p86, %p87
    %p89 = scmp.le.s32.totalorder 1, %s8
    %p90 = scmp.lt.s32.totalorder %s8, 4
    %p91 = pnand %p89, %p90
    %p92 = pneg %p91
    // Predicated region
    $region9: #{ae_forward.14} parent=5 // pred_check
      _
    $region10: #{ae_forward.14} parent=5 // pred_check_branch
      %94 = sbr.rel (%p91) target = $region12
    $region11: #{ae_forward.14} parent=5 // pred_region
      %s95 = ssub.s32 %s8, 1
    $region12: #{ae_forward.14} parent=5 // pred_fallthru
      _
    %p96 = scmp.lt.s32.totalorder %s8, 3
    // Predicated region
    $region13: #{ae_forward.14} parent=5 // pred_check
      %p97 = pneg %p96
    $region14: #{ae_forward.14} parent=5 // pred_check_branch
      %99 = sbr.rel (%p97) target = $region16
    $region15: #{ae_forward.14} parent=5 // pred_region
      // Predicated region
      $region17: #{ae_forward.14} parent=15 // pred_check
        %p100 = pneg %p28
      $region18: #{ae_forward.14} parent=15 // pred_check_branch
        %102 = sbr.rel (%p100) target = $region20
      $region19: #{ae_forward.14} parent=15 // pred_region
        %p103 = scmp.lt.s32.totalorder %s8, 2
        %s104 = scalar_select %p103, %s8, 2
        %s105 = smul.addr %s104, 216
        %s106 = smul.addr %s105, 4
        %s107 = scalar_lea.vmem %s0, %s106
      $region20: #{ae_forward.14} parent=15 // pred_fallthru
        _
      // Predicated region
      $region21: #{ae_forward.14} parent=15 // pred_check
        %p108 = pneg %p54
      $region22: #{ae_forward.14} parent=15 // pred_check_branch
        %110 = sbr.rel (%p108) target = $region24
      $region23: #{ae_forward.14} parent=15 // pred_region
        %p111 = scmp.lt.s32.totalorder %s8, 2
        %s112 = scalar_select %p111, %s8, 2
        %s113 = smul.addr %s112, 2
        %s114 = smul.addr %s113, 4
        %s115 = scalar_lea.vmem %s1, %s114
      $region24: #{ae_forward.14} parent=15 // pred_fallthru
        _
    $region16: #{ae_forward.14} parent=5 // pred_fallthru
      _
    %p116 = scmp.le.s32.totalorder 1, %s8
    %p117 = scmp.lt.s32.totalorder %s8, 4
    %p118 = pnand %p116, %p117
    %p119 = pneg %p118
    // Predicated region
    $region25: #{ae_forward.14} parent=5 // pred_check
      _
    $region26: #{ae_forward.14} parent=5 // pred_check_branch
      %121 = sbr.rel (%p118) target = $region28
    $region27: #{ae_forward.14} parent=5 // pred_region
      %s122 = ssub.s32 %s8, 1
      %p123 = scmp.lt.s32.totalorder %s13, 2
      %s124 = scalar_select %p123, %s13, 2
      %s125 = smul.addr %s124, 216
      %s126 = smul.addr %s125, 4
      %s127 = scalar_lea.vmem %s0, %s126
      %p128 = pneg %p34
      %p129 = pneg %p31
      %p130 = scmp.lt.s32.totalorder %s13, 2
      %s131 = scalar_select %p130, %s13, 2
      %s132 = smul.addr %s131, 2
      %s133 = smul.addr %s132, 4
      %s134 = scalar_lea.vmem %s1, %s133
      %p135 = pneg %p60
      %p136 = pneg %p57
      %p137 = pneg %p81
      %p138 = pneg %p78
      %p139 = scmp.lt.s32.totalorder %s13, 2
      %s140 = scalar_select %p139, %s13, 2
      %s141 = smul.addr %s140, 216
      %s142 = smul.addr %s141, 4
      %s143 = scalar_lea.vmem %s0, %s142
      %p144 = scmp.lt.s32.totalorder %s13, 2
      %s145 = scalar_select %p144, %s13, 2
      %s146 = smul.addr %s145, 2
      %s147 = smul.addr %s146, 4
      %s148 = scalar_lea.vmem %s1, %s147
      %p150 = scmp.eq.s32.totalorder %s13, 0
      // Predicated region
      $region29: #{ae_forward.14} parent=27 // pred_check
        %p151 = pneg %p150
      $region30: #{ae_forward.14} parent=27 // pred_check_branch
        %153 = sbr.rel (%p151) target = $region32
      $region31: #{ae_forward.14} parent=27 // pred_region
        %154 = vst [vmem:[#allocation2] sm:$0xff] 0.0
        %155 = vst [vmem:[#allocation2 + $0x8] sm:$0xff] 0.0
        %156 = vst [vmem:[#allocation2 + $0x10] sm:$0xff] 0.0
        %157 = vst [vmem:[#allocation2 + $0x18] sm:$0xff] 0.0
        %158 = vst [vmem:[#allocation2 + $0x20] sm:$0xff] 0.0
        %159 = vst [vmem:[#allocation2 + $0x28] sm:$0xff] 0.0
        %160 = vst [vmem:[#allocation2 + $0x30] sm:$0xff] 0.0
        %161 = vst [vmem:[#allocation2 + $0x38] sm:$0xff] 0.0
        %162 = vst [vmem:[#allocation2 + $0x40] sm:$0xff] 0.0
        %163 = vst [vmem:[#allocation2 + $0x48] sm:$0xff] 0.0
        %164 = vst [vmem:[#allocation2 + $0x50] sm:$0xff] 0.0
        %165 = vst [vmem:[#allocation2 + $0x58] sm:$0xff] 0.0
      $region32: #{ae_forward.14} parent=27 // pred_fallthru
        _
      %v166 = vld [vmem:[#allocation2] sm:$0xff]
      %v167 = vld [vmem:[#allocation2 + $0x8] sm:$0xff]
      %v168 = vld [vmem:[#allocation2 + $0x10] sm:$0xff]
      %v169 = vld [vmem:[#allocation2 + $0x18] sm:$0xff]
      %v170 = vld [vmem:[#allocation2 + $0x20] sm:$0xff]
      %v171 = vld [vmem:[#allocation2 + $0x28] sm:$0xff]
      %v172 = vld [vmem:[#allocation2 + $0x30] sm:$0xff]
      %v173 = vld [vmem:[#allocation2 + $0x38] sm:$0xff]
      %v174 = vld [vmem:[#allocation2 + $0x40] sm:$0xff]
      %v175 = vld [vmem:[#allocation2 + $0x48] sm:$0xff]
      %v176 = vld [vmem:[#allocation2 + $0x50] sm:$0xff]
      %v177 = vld [vmem:[#allocation2 + $0x58] sm:$0xff]
      %v178 = vld [vmem:[%s148] sm:$0xff]
      %v179 = vld [vmem:[%s143] sm:$0xff]
      %v180 = vld [vmem:[%s143 + $0x8] sm:$0xff]
      %v181 = vld [vmem:[%s143 + $0x10] sm:$0xff]
      %v182 = vld [vmem:[%s143 + $0x18] sm:$0xff]
      %v183 = vld [vmem:[%s143 + $0x20] sm:$0xff]
      %v184 = vld [vmem:[%s143 + $0x28] sm:$0xff]
      %v185 = vld [vmem:[%s143 + $0x30] sm:$0xff]
      %v186 = vld [vmem:[%s143 + $0x38] sm:$0xff]
      %v187 = vld [vmem:[%s143 + $0x40] sm:$0xff]
      %v188 = vld [vmem:[%s143 + $0x48] sm:$0xff]
      %v189 = vld [vmem:[%s143 + $0x50] sm:$0xff]
      %v190 = vld [vmem:[%s143 + $0x58] sm:$0xff]
      %v191 = vld [vmem:[%s143 + $0x60] sm:$0xff]
      %v192 = vld [vmem:[%s143 + $0x68] sm:$0xff]
      %v193 = vld [vmem:[%s143 + $0x70] sm:$0xff]
      %v194 = vld [vmem:[%s143 + $0x78] sm:$0xff]
      %v195 = vld [vmem:[%s143 + $0x80] sm:$0xff]
      %v196 = vld [vmem:[%s143 + $0x88] sm:$0xff]
      %v197 = vld [vmem:[%s143 + $0x90] sm:$0xff]
      %v198 = vld [vmem:[%s143 + $0x98] sm:$0xff]
      %v199 = vld [vmem:[%s143 + $0xa0] sm:$0xff]
      %v200 = vld [vmem:[%s143 + $0xa8] sm:$0xff]
      %v201 = vld [vmem:[%s143 + $0xb0] sm:$0xff]
      %v202 = vld [vmem:[%s143 + $0xb8] sm:$0xff]
      %v203 = vld [vmem:[%s143 + $0xc0] sm:$0xff]
      %v204 = vld [vmem:[%s143 + $0xc8] sm:$0xff]
      %v205 = vld [vmem:[%s143 + $0xd0] sm:$0xff]
      %v206 = vld [vmem:[%s143 + $0xd8] sm:$0xff]
      %v207 = vld [vmem:[%s143 + $0xe0] sm:$0xff]
      %v208 = vld [vmem:[%s143 + $0xe8] sm:$0xff]
      %v209 = vld [vmem:[%s143 + $0xf0] sm:$0xff]
      %v210 = vld [vmem:[%s143 + $0xf8] sm:$0xff]
      %v211 = vld [vmem:[%s143 + $0x100] sm:$0xff]
      %v212 = vld [vmem:[%s143 + $0x108] sm:$0xff]
      %v213 = vld [vmem:[%s143 + $0x110] sm:$0xff]
      %v214 = vld [vmem:[%s143 + $0x118] sm:$0xff]
      %v215 = vld [vmem:[%s143 + $0x120] sm:$0xff]
      %v216 = vld [vmem:[%s143 + $0x128] sm:$0xff]
      %v217 = vld [vmem:[%s143 + $0x130] sm:$0xff]
      %v218 = vld [vmem:[%s143 + $0x138] sm:$0xff]
      %v219 = vld [vmem:[%s143 + $0x140] sm:$0xff]
      %v220 = vld [vmem:[%s143 + $0x148] sm:$0xff]
      %v221 = vld [vmem:[%s143 + $0x150] sm:$0xff]
      %v222 = vld [vmem:[%s143 + $0x158] sm:$0xff]
      %v223 = vld [vmem:[%s143 + $0x160] sm:$0xff]
      %v224 = vld [vmem:[%s143 + $0x168] sm:$0xff]
      %v225 = vld [vmem:[%s143 + $0x170] sm:$0xff]
      %v226 = vld [vmem:[%s143 + $0x178] sm:$0xff]
      %v227 = vld [vmem:[%s143 + $0x180] sm:$0xff]
      %v228 = vld [vmem:[%s143 + $0x188] sm:$0xff]
      %v229 = vld [vmem:[%s143 + $0x190] sm:$0xff]
      %v230 = vld [vmem:[%s143 + $0x198] sm:$0xff]
      %v231 = vld [vmem:[%s143 + $0x1a0] sm:$0xff]
      %v232 = vld [vmem:[%s143 + $0x1a8] sm:$0xff]
      %v233 = vld [vmem:[%s143 + $0x1b0] sm:$0xff]
      %v234 = vld [vmem:[%s143 + $0x1b8] sm:$0xff]
      %v235 = vld [vmem:[%s143 + $0x1c0] sm:$0xff]
      %v236 = vld [vmem:[%s143 + $0x1c8] sm:$0xff]
      %v237 = vld [vmem:[%s143 + $0x1d0] sm:$0xff]
      %v238 = vld [vmem:[%s143 + $0x1d8] sm:$0xff]
      %v239 = vld [vmem:[%s143 + $0x1e0] sm:$0xff]
      %v240 = vld [vmem:[%s143 + $0x1e8] sm:$0xff]
      %v241 = vld [vmem:[%s143 + $0x1f0] sm:$0xff]
      %v242 = vld [vmem:[%s143 + $0x1f8] sm:$0xff]
      %v243 = vld [vmem:[%s143 + $0x200] sm:$0xff]
      %v244 = vld [vmem:[%s143 + $0x208] sm:$0xff]
      %v245 = vld [vmem:[%s143 + $0x210] sm:$0xff]
      %v246 = vld [vmem:[%s143 + $0x218] sm:$0xff]
      %v247 = vld [vmem:[%s143 + $0x220] sm:$0xff]
      %v248 = vld [vmem:[%s143 + $0x228] sm:$0xff]
      %v249 = vld [vmem:[%s143 + $0x230] sm:$0xff]
      %v250 = vld [vmem:[%s143 + $0x238] sm:$0xff]
      %v251 = vld [vmem:[%s143 + $0x240] sm:$0xff]
      %v252 = vld [vmem:[%s143 + $0x248] sm:$0xff]
      %v253 = vld [vmem:[%s143 + $0x250] sm:$0xff]
      %v254 = vld [vmem:[%s143 + $0x258] sm:$0xff]
      %v255 = vld [vmem:[%s143 + $0x260] sm:$0xff]
      %v256 = vld [vmem:[%s143 + $0x268] sm:$0xff]
      %v257 = vld [vmem:[%s143 + $0x270] sm:$0xff]
      %v258 = vld [vmem:[%s143 + $0x278] sm:$0xff]
      %v259 = vld [vmem:[%s143 + $0x280] sm:$0xff]
      %v260 = vld [vmem:[%s143 + $0x288] sm:$0xff]
      %v261 = vld [vmem:[%s143 + $0x290] sm:$0xff]
      %v262 = vld [vmem:[%s143 + $0x298] sm:$0xff]
      %v263 = vld [vmem:[%s143 + $0x2a0] sm:$0xff]
      %v264 = vld [vmem:[%s143 + $0x2a8] sm:$0xff]
      %v265 = vld [vmem:[%s143 + $0x2b0] sm:$0xff]
      %v266 = vld [vmem:[%s143 + $0x2b8] sm:$0xff]
      %v267 = vld [vmem:[%s143 + $0x2c0] sm:$0xff]
      %v268 = vld [vmem:[%s143 + $0x2c8] sm:$0xff]
      %v269 = vld [vmem:[%s143 + $0x2d0] sm:$0xff]
      %v270 = vld [vmem:[%s143 + $0x2d8] sm:$0xff]
      %v271 = vld [vmem:[%s143 + $0x2e0] sm:$0xff]
      %v272 = vld [vmem:[%s143 + $0x2e8] sm:$0xff]
      %v273 = vld [vmem:[%s143 + $0x2f0] sm:$0xff]
      %v274 = vld [vmem:[%s143 + $0x2f8] sm:$0xff]
      %v275 = vld [vmem:[%s143 + $0x300] sm:$0xff]
      %v276 = vld [vmem:[%s143 + $0x308] sm:$0xff]
      %v277 = vld [vmem:[%s143 + $0x310] sm:$0xff]
      %v278 = vld [vmem:[%s143 + $0x318] sm:$0xff]
      %v279 = vld [vmem:[%s143 + $0x320] sm:$0xff]
      %v280 = vld [vmem:[%s143 + $0x328] sm:$0xff]
      %v281 = vld [vmem:[%s143 + $0x330] sm:$0xff]
      %v282 = vld [vmem:[%s143 + $0x338] sm:$0xff]
      %v283 = vld [vmem:[%s143 + $0x340] sm:$0xff]
      %v284 = vld [vmem:[%s143 + $0x348] sm:$0xff]
      %v285 = vld [vmem:[%s143 + $0x350] sm:$0xff]
      %v286 = vld [vmem:[%s143 + $0x358] sm:$0xff]
      %v288 = vunpack.c.l.b16 %v178
      %v289 = vunpack.c.h.b16 %v178
      %v290 = vpack.c.b16 %v288, %v288
      %v291 = vpack.c.b16 %v289, %v289
      %v401 = vunpack.c.l.b16 %v179
      %v402 = vunpack.c.h.b16 %v179
      %v403 = vunpack.c.l.b16 %v180
      %v404 = vunpack.c.h.b16 %v180
      %v405 = vunpack.c.l.b16 %v181
      %v406 = vunpack.c.h.b16 %v181
      %v407 = vunpack.c.l.b16 %v182
      %v408 = vunpack.c.h.b16 %v182
      %v409 = vunpack.c.l.b16 %v183
      %v410 = vunpack.c.h.b16 %v183
      %v411 = vunpack.c.l.b16 %v184
      %v412 = vunpack.c.h.b16 %v184
      %v413 = vunpack.c.l.b16 %v185
      %v414 = vunpack.c.h.b16 %v185
      %v415 = vunpack.c.l.b16 %v186
      %v416 = vunpack.c.h.b16 %v186
      %v417 = vunpack.c.l.b16 %v187
      %v418 = vunpack.c.h.b16 %v187
      %v419 = vunpack.c.l.b16 %v188
      %v420 = vunpack.c.h.b16 %v188
      %v421 = vunpack.c.l.b16 %v189
      %v422 = vunpack.c.h.b16 %v189
      %v423 = vunpack.c.l.b16 %v190
      %v424 = vunpack.c.h.b16 %v190
      %v425 = vunpack.c.l.b16 %v191
      %v426 = vunpack.c.h.b16 %v191
      %v427 = vunpack.c.l.b16 %v192
      %v428 = vunpack.c.h.b16 %v192
      %v429 = vunpack.c.l.b16 %v193
      %v430 = vunpack.c.h.b16 %v193
      %v431 = vunpack.c.l.b16 %v194
      %v432 = vunpack.c.h.b16 %v194
      %v433 = vunpack.c.l.b16 %v195
      %v434 = vunpack.c.h.b16 %v195
      %v435 = vunpack.c.l.b16 %v196
      %v436 = vunpack.c.h.b16 %v196
      %v437 = vunpack.c.l.b16 %v197
      %v438 = vunpack.c.h.b16 %v197
      %v439 = vunpack.c.l.b16 %v198
      %v440 = vunpack.c.h.b16 %v198
      %v441 = vunpack.c.l.b16 %v199
      %v442 = vunpack.c.h.b16 %v199
      %v443 = vunpack.c.l.b16 %v200
      %v444 = vunpack.c.h.b16 %v200
      %v445 = vunpack.c.l.b16 %v201
      %v446 = vunpack.c.h.b16 %v201
      %v447 = vunpack.c.l.b16 %v202
      %v448 = vunpack.c.h.b16 %v202
      %v449 = vunpack.c.l.b16 %v203
      %v450 = vunpack.c.h.b16 %v203
      %v451 = vunpack.c.l.b16 %v204
      %v452 = vunpack.c.h.b16 %v204
      %v453 = vunpack.c.l.b16 %v205
      %v454 = vunpack.c.h.b16 %v205
      %v455 = vunpack.c.l.b16 %v206
      %v456 = vunpack.c.h.b16 %v206
      %v457 = vunpack.c.l.b16 %v207
      %v458 = vunpack.c.h.b16 %v207
      %v459 = vunpack.c.l.b16 %v208
      %v460 = vunpack.c.h.b16 %v208
      %v461 = vunpack.c.l.b16 %v209
      %v462 = vunpack.c.h.b16 %v209
      %v463 = vunpack.c.l.b16 %v210
      %v464 = vunpack.c.h.b16 %v210
      %v465 = vunpack.c.l.b16 %v211
      %v466 = vunpack.c.h.b16 %v211
      %v467 = vunpack.c.l.b16 %v212
      %v468 = vunpack.c.h.b16 %v212
      %v469 = vunpack.c.l.b16 %v213
      %v470 = vunpack.c.h.b16 %v213
      %v471 = vunpack.c.l.b16 %v214
      %v472 = vunpack.c.h.b16 %v214
      %v473 = vunpack.c.l.b16 %v215
      %v474 = vunpack.c.h.b16 %v215
      %v475 = vunpack.c.l.b16 %v216
      %v476 = vunpack.c.h.b16 %v216
      %v477 = vunpack.c.l.b16 %v217
      %v478 = vunpack.c.h.b16 %v217
      %v479 = vunpack.c.l.b16 %v218
      %v480 = vunpack.c.h.b16 %v218
      %v481 = vunpack.c.l.b16 %v219
      %v482 = vunpack.c.h.b16 %v219
      %v483 = vunpack.c.l.b16 %v220
      %v484 = vunpack.c.h.b16 %v220
      %v485 = vunpack.c.l.b16 %v221
      %v486 = vunpack.c.h.b16 %v221
      %v487 = vunpack.c.l.b16 %v222
      %v488 = vunpack.c.h.b16 %v222
      %v489 = vunpack.c.l.b16 %v223
      %v490 = vunpack.c.h.b16 %v223
      %v491 = vunpack.c.l.b16 %v224
      %v492 = vunpack.c.h.b16 %v224
      %v493 = vunpack.c.l.b16 %v225
      %v494 = vunpack.c.h.b16 %v225
      %v495 = vunpack.c.l.b16 %v226
      %v496 = vunpack.c.h.b16 %v226
      %v497 = vunpack.c.l.b16 %v227
      %v498 = vunpack.c.h.b16 %v227
      %v499 = vunpack.c.l.b16 %v228
      %v500 = vunpack.c.h.b16 %v228
      %v501 = vunpack.c.l.b16 %v229
      %v502 = vunpack.c.h.b16 %v229
      %v503 = vunpack.c.l.b16 %v230
      %v504 = vunpack.c.h.b16 %v230
      %v505 = vunpack.c.l.b16 %v231
      %v506 = vunpack.c.h.b16 %v231
      %v507 = vunpack.c.l.b16 %v232
      %v508 = vunpack.c.h.b16 %v232
      %v509 = vunpack.c.l.b16 %v233
      %v510 = vunpack.c.h.b16 %v233
      %v511 = vunpack.c.l.b16 %v234
      %v512 = vunpack.c.h.b16 %v234
      %v513 = vunpack.c.l.b16 %v235
      %v514 = vunpack.c.h.b16 %v235
      %v515 = vunpack.c.l.b16 %v236
      %v516 = vunpack.c.h.b16 %v236
      %v517 = vunpack.c.l.b16 %v237
      %v518 = vunpack.c.h.b16 %v237
      %v519 = vunpack.c.l.b16 %v238
      %v520 = vunpack.c.h.b16 %v238
      %v521 = vunpack.c.l.b16 %v239
      %v522 = vunpack.c.h.b16 %v239
      %v523 = vunpack.c.l.b16 %v240
      %v524 = vunpack.c.h.b16 %v240
      %v525 = vunpack.c.l.b16 %v241
      %v526 = vunpack.c.h.b16 %v241
      %v527 = vunpack.c.l.b16 %v242
      %v528 = vunpack.c.h.b16 %v242
      %v529 = vunpack.c.l.b16 %v243
      %v530 = vunpack.c.h.b16 %v243
      %v531 = vunpack.c.l.b16 %v244
      %v532 = vunpack.c.h.b16 %v244
      %v533 = vunpack.c.l.b16 %v245
      %v534 = vunpack.c.h.b16 %v245
      %v535 = vunpack.c.l.b16 %v246
      %v536 = vunpack.c.h.b16 %v246
      %v537 = vunpack.c.l.b16 %v247
      %v538 = vunpack.c.h.b16 %v247
      %v539 = vunpack.c.l.b16 %v248
      %v540 = vunpack.c.h.b16 %v248
      %v541 = vunpack.c.l.b16 %v249
      %v542 = vunpack.c.h.b16 %v249
      %v543 = vunpack.c.l.b16 %v250
      %v544 = vunpack.c.h.b16 %v250
      %v545 = vunpack.c.l.b16 %v251
      %v546 = vunpack.c.h.b16 %v251
      %v547 = vunpack.c.l.b16 %v252
      %v548 = vunpack.c.h.b16 %v252
      %v549 = vunpack.c.l.b16 %v253
      %v550 = vunpack.c.h.b16 %v253
      %v551 = vunpack.c.l.b16 %v254
      %v552 = vunpack.c.h.b16 %v254
      %v553 = vunpack.c.l.b16 %v255
      %v554 = vunpack.c.h.b16 %v255
      %v555 = vunpack.c.l.b16 %v256
      %v556 = vunpack.c.h.b16 %v256
      %v557 = vunpack.c.l.b16 %v257
      %v558 = vunpack.c.h.b16 %v257
      %v559 = vunpack.c.l.b16 %v258
      %v560 = vunpack.c.h.b16 %v258
      %v561 = vunpack.c.l.b16 %v259
      %v562 = vunpack.c.h.b16 %v259
      %v563 = vunpack.c.l.b16 %v260
      %v564 = vunpack.c.h.b16 %v260
      %v565 = vunpack.c.l.b16 %v261
      %v566 = vunpack.c.h.b16 %v261
      %v567 = vunpack.c.l.b16 %v262
      %v568 = vunpack.c.h.b16 %v262
      %v569 = vunpack.c.l.b16 %v263
      %v570 = vunpack.c.h.b16 %v263
      %v571 = vunpack.c.l.b16 %v264
      %v572 = vunpack.c.h.b16 %v264
      %v573 = vunpack.c.l.b16 %v265
      %v574 = vunpack.c.h.b16 %v265
      %v575 = vunpack.c.l.b16 %v266
      %v576 = vunpack.c.h.b16 %v266
      %v577 = vunpack.c.l.b16 %v267
      %v578 = vunpack.c.h.b16 %v267
      %v579 = vunpack.c.l.b16 %v268
      %v580 = vunpack.c.h.b16 %v268
      %v581 = vunpack.c.l.b16 %v269
      %v582 = vunpack.c.h.b16 %v269
      %v583 = vunpack.c.l.b16 %v270
      %v584 = vunpack.c.h.b16 %v270
      %v585 = vunpack.c.l.b16 %v271
      %v586 = vunpack.c.h.b16 %v271
      %v587 = vunpack.c.l.b16 %v272
      %v588 = vunpack.c.h.b16 %v272
      %v589 = vunpack.c.l.b16 %v273
      %v590 = vunpack.c.h.b16 %v273
      %v591 = vunpack.c.l.b16 %v274
      %v592 = vunpack.c.h.b16 %v274
      %v593 = vunpack.c.l.b16 %v275
      %v594 = vunpack.c.h.b16 %v275
      %v595 = vunpack.c.l.b16 %v276
      %v596 = vunpack.c.h.b16 %v276
      %v597 = vunpack.c.l.b16 %v277
      %v598 = vunpack.c.h.b16 %v277
      %v599 = vunpack.c.l.b16 %v278
      %v600 = vunpack.c.h.b16 %v278
      %v601 = vunpack.c.l.b16 %v279
      %v602 = vunpack.c.h.b16 %v279
      %v603 = vunpack.c.l.b16 %v280
      %v604 = vunpack.c.h.b16 %v280
      %v605 = vunpack.c.l.b16 %v281
      %v606 = vunpack.c.h.b16 %v281
      %v607 = vunpack.c.l.b16 %v282
      %v608 = vunpack.c.h.b16 %v282
      %v609 = vunpack.c.l.b16 %v283
      %v610 = vunpack.c.h.b16 %v283
      %v611 = vunpack.c.l.b16 %v284
      %v612 = vunpack.c.h.b16 %v284
      %v613 = vunpack.c.l.b16 %v285
      %v614 = vunpack.c.h.b16 %v285
      %v615 = vunpack.c.l.b16 %v286
      %v616 = vunpack.c.h.b16 %v286
      %v617 = vpack.c.b16 %v413, %v401
      %v618 = vpack.c.b16 %v414, %v402
      %v619 = vpack.c.b16 %v415, %v403
      %v620 = vpack.c.b16 %v416, %v404
      %v621 = vpack.c.b16 %v417, %v405
      %v622 = vpack.c.b16 %v418, %v406
      %v623 = vpack.c.b16 %v419, %v407
      %v624 = vpack.c.b16 %v420, %v408
      %v625 = vpack.c.b16 %v421, %v409
      %v626 = vpack.c.b16 %v422, %v410
      %v627 = vpack.c.b16 %v423, %v411
      %v628 = vpack.c.b16 %v424, %v412
      %v629 = vpack.c.b16 %v437, %v425
      %v630 = vpack.c.b16 %v438, %v426
      %v631 = vpack.c.b16 %v439, %v427
      %v632 = vpack.c.b16 %v440, %v428
      %v633 = vpack.c.b16 %v441, %v429
      %v634 = vpack.c.b16 %v442, %v430
      %v635 = vpack.c.b16 %v443, %v431
      %v636 = vpack.c.b16 %v444, %v432
      %v637 = vpack.c.b16 %v445, %v433
      %v638 = vpack.c.b16 %v446, %v434
      %v639 = vpack.c.b16 %v447, %v435
      %v640 = vpack.c.b16 %v448, %v436
      %v641 = vpack.c.b16 %v461, %v449
      %v642 = vpack.c.b16 %v462, %v450
      %v643 = vpack.c.b16 %v463, %v451
      %v644 = vpack.c.b16 %v464, %v452
      %v645 = vpack.c.b16 %v465, %v453
      %v646 = vpack.c.b16 %v466, %v454
      %v647 = vpack.c.b16 %v467, %v455
      %v648 = vpack.c.b16 %v468, %v456
      %v649 = vpack.c.b16 %v469, %v457
      %v650 = vpack.c.b16 %v470, %v458
      %v651 = vpack.c.b16 %v471, %v459
      %v652 = vpack.c.b16 %v472, %v460
      %v653 = vpack.c.b16 %v485, %v473
      %v654 = vpack.c.b16 %v486, %v474
      %v655 = vpack.c.b16 %v487, %v475
      %v656 = vpack.c.b16 %v488, %v476
      %v657 = vpack.c.b16 %v489, %v477
      %v658 = vpack.c.b16 %v490, %v478
      %v659 = vpack.c.b16 %v491, %v479
      %v660 = vpack.c.b16 %v492, %v480
      %v661 = vpack.c.b16 %v493, %v481
      %v662 = vpack.c.b16 %v494, %v482
      %v663 = vpack.c.b16 %v495, %v483
      %v664 = vpack.c.b16 %v496, %v484
      %v665 = vpack.c.b16 %v509, %v497
      %v666 = vpack.c.b16 %v510, %v498
      %v667 = vpack.c.b16 %v511, %v499
      %v668 = vpack.c.b16 %v512, %v500
      %v669 = vpack.c.b16 %v513, %v501
      %v670 = vpack.c.b16 %v514, %v502
      %v671 = vpack.c.b16 %v515, %v503
      %v672 = vpack.c.b16 %v516, %v504
      %v673 = vpack.c.b16 %v517, %v505
      %v674 = vpack.c.b16 %v518, %v506
      %v675 = vpack.c.b16 %v519, %v507
      %v676 = vpack.c.b16 %v520, %v508
      %v677 = vpack.c.b16 %v533, %v521
      %v678 = vpack.c.b16 %v534, %v522
      %v679 = vpack.c.b16 %v535, %v523
      %v680 = vpack.c.b16 %v536, %v524
      %v681 = vpack.c.b16 %v537, %v525
      %v682 = vpack.c.b16 %v538, %v526
      %v683 = vpack.c.b16 %v539, %v527
      %v684 = vpack.c.b16 %v540, %v528
      %v685 = vpack.c.b16 %v541, %v529
      %v686 = vpack.c.b16 %v542, %v530
      %v687 = vpack.c.b16 %v543, %v531
      %v688 = vpack.c.b16 %v544, %v532
      %v689 = vpack.c.b16 %v557, %v545
      %v690 = vpack.c.b16 %v558, %v546
      %v691 = vpack.c.b16 %v559, %v547
      %v692 = vpack.c.b16 %v560, %v548
      %v693 = vpack.c.b16 %v561, %v549
      %v694 = vpack.c.b16 %v562, %v550
      %v695 = vpack.c.b16 %v563, %v551
      %v696 = vpack.c.b16 %v564, %v552
      %v697 = vpack.c.b16 %v565, %v553
      %v698 = vpack.c.b16 %v566, %v554
      %v699 = vpack.c.b16 %v567, %v555
      %v700 = vpack.c.b16 %v568, %v556
      %v701 = vpack.c.b16 %v581, %v569
      %v702 = vpack.c.b16 %v582, %v570
      %v703 = vpack.c.b16 %v583, %v571
      %v704 = vpack.c.b16 %v584, %v572
      %v705 = vpack.c.b16 %v585, %v573
      %v706 = vpack.c.b16 %v586, %v574
      %v707 = vpack.c.b16 %v587, %v575
      %v708 = vpack.c.b16 %v588, %v576
      %v709 = vpack.c.b16 %v589, %v577
      %v710 = vpack.c.b16 %v590, %v578
      %v711 = vpack.c.b16 %v591, %v579
      %v712 = vpack.c.b16 %v592, %v580
      %v713 = vpack.c.b16 %v605, %v593
      %v714 = vpack.c.b16 %v606, %v594
      %v715 = vpack.c.b16 %v607, %v595
      %v716 = vpack.c.b16 %v608, %v596
      %v717 = vpack.c.b16 %v609, %v597
      %v718 = vpack.c.b16 %v610, %v598
      %v719 = vpack.c.b16 %v611, %v599
      %v720 = vpack.c.b16 %v612, %v600
      %v721 = vpack.c.b16 %v613, %v601
      %v722 = vpack.c.b16 %v614, %v602
      %v723 = vpack.c.b16 %v615, %v603
      %v724 = vpack.c.b16 %v616, %v604
      %vm833 = vcmask 130048
      %v835 = vsel %vm833, %v291, 0
      %837 = vmatprep.subr.bf16.mxu0 %v618
      %838 = vmatpush1.bf16.msra.mxu0 %v617
      %839 = vmatprep.subr.bf16.mxu0 %v630
      %840 = vmatpush1.bf16.msra.mxu0 %v629
      %841 = vmatprep.subr.bf16.mxu0 %v642
      %842 = vmatpush1.bf16.msra.mxu0 %v641
      %843 = vmatprep.subr.bf16.mxu0 %v654
      %844 = vmatpush1.bf16.msra.mxu0 %v653
      %845 = vmatprep.subr.bf16.mxu0 %v666
      %846 = vmatpush1.bf16.msra.mxu0 %v665
      %847 = vmatprep.subr.bf16.mxu0 %v678
      %848 = vmatpush1.bf16.msra.mxu0 %v677
      %849 = vmatprep.subr.bf16.mxu0 %v690
      %850 = vmatpush1.bf16.msra.mxu0 %v689
      %851 = vmatprep.subr.bf16.mxu0 %v702
      %852 = vmatpush1.bf16.msra.mxu0 %v701
      %853 = vmatprep.subr.bf16.mxu0 %v714
      %854 = vmatpush1.bf16.msra.mxu0 %v713
      %855 = vmatprep.subr.bf16.mxu0 0
      %856 = vmatpush1.bf16.msra.mxu0 0
      %857 = vmatprep.subr.bf16.mxu0 0
      %858 = vmatpush1.bf16.msra.mxu0 0
      %859 = vmatprep.subr.bf16.mxu0 0
      %860 = vmatpush1.bf16.msra.mxu0 0
      %861 = vmatprep.subr.bf16.mxu0 0
      %862 = vmatpush1.bf16.msra.mxu0 0
      %863 = vmatprep.subr.bf16.mxu0 0
      %864 = vmatpush1.bf16.msra.mxu0 0
      %865 = vmatprep.subr.bf16.mxu0 0
      %866 = vmatpush1.bf16.msra.mxu0 0
      %867 = vmatprep.subr.bf16.mxu0 0
      %868 = vmatpush1.bf16.msra.mxu0 0
      %869 = vmatprep.mubr.bf16.mxu0 %v835
      %870 = vmatmul.mubr.bf16.gmra.mrb[0].mxu0 %v290
      %v871 = vpop.f32.mrb[0].mxu0
      %v872 = vadd.f32 0.0, %v871
      %v873 = vpop.f32.mrb[0].mxu0
      %v874 = vadd.f32 0.0, %v873
      %v875 = vpop.f32.mrb[0].mxu0
      %v876 = vpop.f32.mrb[0].mxu0
      %877 = vdwg.mxu0
      %878 = vmatprep.subr.bf16.mxu0 %v620
      %879 = vmatpush1.bf16.msra.mxu0 %v619
      %880 = vmatprep.subr.bf16.mxu0 %v632
      %881 = vmatpush1.bf16.msra.mxu0 %v631
      %882 = vmatprep.subr.bf16.mxu0 %v644
      %883 = vmatpush1.bf16.msra.mxu0 %v643
      %884 = vmatprep.subr.bf16.mxu0 %v656
      %885 = vmatpush1.bf16.msra.mxu0 %v655
      %886 = vmatprep.subr.bf16.mxu0 %v668
      %887 = vmatpush1.bf16.msra.mxu0 %v667
      %888 = vmatprep.subr.bf16.mxu0 %v680
      %889 = vmatpush1.bf16.msra.mxu0 %v679
      %890 = vmatprep.subr.bf16.mxu0 %v692
      %891 = vmatpush1.bf16.msra.mxu0 %v691
      %892 = vmatprep.subr.bf16.mxu0 %v704
      %893 = vmatpush1.bf16.msra.mxu0 %v703
      %894 = vmatprep.subr.bf16.mxu0 %v716
      %895 = vmatpush1.bf16.msra.mxu0 %v715
      %896 = vmatprep.subr.bf16.mxu0 0
      %897 = vmatpush1.bf16.msra.mxu0 0
      %898 = vmatprep.subr.bf16.mxu0 0
      %899 = vmatpush1.bf16.msra.mxu0 0
      %900 = vmatprep.subr.bf16.mxu0 0
      %901 = vmatpush1.bf16.msra.mxu0 0
      %902 = vmatprep.subr.bf16.mxu0 0
      %903 = vmatpush1.bf16.msra.mxu0 0
      %904 = vmatprep.subr.bf16.mxu0 0
      %905 = vmatpush1.bf16.msra.mxu0 0
      %906 = vmatprep.subr.bf16.mxu0 0
      %907 = vmatpush1.bf16.msra.mxu0 0
      %908 = vmatprep.subr.bf16.mxu0 0
      %909 = vmatpush1.bf16.msra.mxu0 0
      %910 = vmatprep.mubr.bf16.mxu0 %v835
      %911 = vmatmul.mubr.bf16.gmra.mrb[0].mxu0 %v290
      %v912 = vpop.f32.mrb[0].mxu0
      %v913 = vadd.f32 0.0, %v912
      %v914 = vpop.f32.mrb[0].mxu0
      %v915 = vadd.f32 0.0, %v914
      %v916 = vpop.f32.mrb[0].mxu0
      %v917 = vpop.f32.mrb[0].mxu0
      %918 = vdwg.mxu0
      %919 = vmatprep.subr.bf16.mxu0 %v622
      %920 = vmatpush1.bf16.msra.mxu0 %v621
      %921 = vmatprep.subr.bf16.mxu0 %v634
      %922 = vmatpush1.bf16.msra.mxu0 %v633
      %923 = vmatprep.subr.bf16.mxu0 %v646
      %924 = vmatpush1.bf16.msra.mxu0 %v645
      %925 = vmatprep.subr.bf16.mxu0 %v658
      %926 = vmatpush1.bf16.msra.mxu0 %v657
      %927 = vmatprep.subr.bf16.mxu0 %v670
      %928 = vmatpush1.bf16.msra.mxu0 %v669
      %929 = vmatprep.subr.bf16.mxu0 %v682
      %930 = vmatpush1.bf16.msra.mxu0 %v681
      %931 = vmatprep.subr.bf16.mxu0 %v694
      %932 = vmatpush1.bf16.msra.mxu0 %v693
      %933 = vmatprep.subr.bf16.mxu0 %v706
      %934 = vmatpush1.bf16.msra.mxu0 %v705
      %935 = vmatprep.subr.bf16.mxu0 %v718
      %936 = vmatpush1.bf16.msra.mxu0 %v717
      %937 = vmatprep.subr.bf16.mxu0 0
      %938 = vmatpush1.bf16.msra.mxu0 0
      %939 = vmatprep.subr.bf16.mxu0 0
      %940 = vmatpush1.bf16.msra.mxu0 0
      %941 = vmatprep.subr.bf16.mxu0 0
      %942 = vmatpush1.bf16.msra.mxu0 0
      %943 = vmatprep.subr.bf16.mxu0 0
      %944 = vmatpush1.bf16.msra.mxu0 0
      %945 = vmatprep.subr.bf16.mxu0 0
      %946 = vmatpush1.bf16.msra.mxu0 0
      %947 = vmatprep.subr.bf16.mxu0 0
      %948 = vmatpush1.bf16.msra.mxu0 0
      %949 = vmatprep.subr.bf16.mxu0 0
      %950 = vmatpush1.bf16.msra.mxu0 0
      %951 = vmatprep.mubr.bf16.mxu0 %v835
      %952 = vmatmul.mubr.bf16.gmra.mrb[0].mxu0 %v290
      %v953 = vpop.f32.mrb[0].mxu0
      %v954 = vadd.f32 0.0, %v953
      %v955 = vpop.f32.mrb[0].mxu0
      %v956 = vadd.f32 0.0, %v955
      %v957 = vpop.f32.mrb[0].mxu0
      %v958 = vpop.f32.mrb[0].mxu0
      %959 = vdwg.mxu0
      %960 = vmatprep.subr.bf16.mxu0 %v624
      %961 = vmatpush1.bf16.msra.mxu0 %v623
      %962 = vmatprep.subr.bf16.mxu0 %v636
      %963 = vmatpush1.bf16.msra.mxu0 %v635
      %964 = vmatprep.subr.bf16.mxu0 %v648
      %965 = vmatpush1.bf16.msra.mxu0 %v647
      %966 = vmatprep.subr.bf16.mxu0 %v660
      %967 = vmatpush1.bf16.msra.mxu0 %v659
      %968 = vmatprep.subr.bf16.mxu0 %v672
      %969 = vmatpush1.bf16.msra.mxu0 %v671
      %970 = vmatprep.subr.bf16.mxu0 %v684
      %971 = vmatpush1.bf16.msra.mxu0 %v683
      %972 = vmatprep.subr.bf16.mxu0 %v696
      %973 = vmatpush1.bf16.msra.mxu0 %v695
      %974 = vmatprep.subr.bf16.mxu0 %v708
      %975 = vmatpush1.bf16.msra.mxu0 %v707
      %976 = vmatprep.subr.bf16.mxu0 %v720
      %977 = vmatpush1.bf16.msra.mxu0 %v719
      %978 = vmatprep.subr.bf16.mxu0 0
      %979 = vmatpush1.bf16.msra.mxu0 0
      %980 = vmatprep.subr.bf16.mxu0 0
      %981 = vmatpush1.bf16.msra.mxu0 0
      %982 = vmatprep.subr.bf16.mxu0 0
      %983 = vmatpush1.bf16.msra.mxu0 0
      %984 = vmatprep.subr.bf16.mxu0 0
      %985 = vmatpush1.bf16.msra.mxu0 0
      %986 = vmatprep.subr.bf16.mxu0 0
      %987 = vmatpush1.bf16.msra.mxu0 0
      %988 = vmatprep.subr.bf16.mxu0 0
      %989 = vmatpush1.bf16.msra.mxu0 0
      %990 = vmatprep.subr.bf16.mxu0 0
      %991 = vmatpush1.bf16.msra.mxu0 0
      %992 = vmatprep.mubr.bf16.mxu0 %v835
      %993 = vmatmul.mubr.bf16.gmra.mrb[0].mxu0 %v290
      %v994 = vpop.f32.mrb[0].mxu0
      %v995 = vadd.f32 0.0, %v994
      %v996 = vpop.f32.mrb[0].mxu0
      %v997 = vadd.f32 0.0, %v996
      %v998 = vpop.f32.mrb[0].mxu0
      %v999 = vpop.f32.mrb[0].mxu0
      %1000 = vdwg.mxu0
      %1001 = vmatprep.subr.bf16.mxu0 %v626
      %1002 = vmatpush1.bf16.msra.mxu0 %v625
      %1003 = vmatprep.subr.bf16.mxu0 %v638
      %1004 = vmatpush1.bf16.msra.mxu0 %v637
      %1005 = vmatprep.subr.bf16.mxu0 %v650
      %1006 = vmatpush1.bf16.msra.mxu0 %v649
      %1007 = vmatprep.subr.bf16.mxu0 %v662
      %1008 = vmatpush1.bf16.msra.mxu0 %v661
      %1009 = vmatprep.subr.bf16.mxu0 %v674
      %1010 = vmatpush1.bf16.msra.mxu0 %v673
      %1011 = vmatprep.subr.bf16.mxu0 %v686
      %1012 = vmatpush1.bf16.msra.mxu0 %v685
      %1013 = vmatprep.subr.bf16.mxu0 %v698
      %1014 = vmatpush1.bf16.msra.mxu0 %v697
      %1015 = vmatprep.subr.bf16.mxu0 %v710
      %1016 = vmatpush1.bf16.msra.mxu0 %v709
      %1017 = vmatprep.subr.bf16.mxu0 %v722
      %1018 = vmatpush1.bf16.msra.mxu0 %v721
      %1019 = vmatprep.subr.bf16.mxu0 0
      %1020 = vmatpush1.bf16.msra.mxu0 0
      %1021 = vmatprep.subr.bf16.mxu0 0
      %1022 = vmatpush1.bf16.msra.mxu0 0
      %1023 = vmatprep.subr.bf16.mxu0 0
      %1024 = vmatpush1.bf16.msra.mxu0 0
      %1025 = vmatprep.subr.bf16.mxu0 0
      %1026 = vmatpush1.bf16.msra.mxu0 0
      %1027 = vmatprep.subr.bf16.mxu0 0
      %1028 = vmatpush1.bf16.msra.mxu0 0
      %1029 = vmatprep.subr.bf16.mxu0 0
      %1030 = vmatpush1.bf16.msra.mxu0 0
      %1031 = vmatprep.subr.bf16.mxu0 0
      %1032 = vmatpush1.bf16.msra.mxu0 0
      %1033 = vmatprep.mubr.bf16.mxu0 %v835
      %1034 = vmatmul.mubr.bf16.gmra.mrb[0].mxu0 %v290
      %v1035 = vpop.f32.mrb[0].mxu0
      %v1036 = vadd.f32 0.0, %v1035
      %v1037 = vpop.f32.mrb[0].mxu0
      %v1038 = vadd.f32 0.0, %v1037
      %v1039 = vpop.f32.mrb[0].mxu0
      %v1040 = vpop.f32.mrb[0].mxu0
      %1041 = vdwg.mxu0
      %1042 = vmatprep.subr.bf16.mxu0 %v628
      %1043 = vmatpush1.bf16.msra.mxu0 %v627
      %1044 = vmatprep.subr.bf16.mxu0 %v640
      %1045 = vmatpush1.bf16.msra.mxu0 %v639
      %1046 = vmatprep.subr.bf16.mxu0 %v652
      %1047 = vmatpush1.bf16.msra.mxu0 %v651
      %1048 = vmatprep.subr.bf16.mxu0 %v664
      %1049 = vmatpush1.bf16.msra.mxu0 %v663
      %1050 = vmatprep.subr.bf16.mxu0 %v676
      %1051 = vmatpush1.bf16.msra.mxu0 %v675
      %1052 = vmatprep.subr.bf16.mxu0 %v688
      %1053 = vmatpush1.bf16.msra.mxu0 %v687
      %1054 = vmatprep.subr.bf16.mxu0 %v700
      %1055 = vmatpush1.bf16.msra.mxu0 %v699
      %1056 = vmatprep.subr.bf16.mxu0 %v712
      %1057 = vmatpush1.bf16.msra.mxu0 %v711
      %1058 = vmatprep.subr.bf16.mxu0 %v724
      %1059 = vmatpush1.bf16.msra.mxu0 %v723
      %1060 = vmatprep.subr.bf16.mxu0 0
      %1061 = vmatpush1.bf16.msra.mxu0 0
      %1062 = vmatprep.subr.bf16.mxu0 0
      %1063 = vmatpush1.bf16.msra.mxu0 0
      %1064 = vmatprep.subr.bf16.mxu0 0
      %1065 = vmatpush1.bf16.msra.mxu0 0
      %1066 = vmatprep.subr.bf16.mxu0 0
      %1067 = vmatpush1.bf16.msra.mxu0 0
      %1068 = vmatprep.subr.bf16.mxu0 0
      %1069 = vmatpush1.bf16.msra.mxu0 0
      %1070 = vmatprep.subr.bf16.mxu0 0
      %1071 = vmatpush1.bf16.msra.mxu0 0
      %1072 = vmatprep.subr.bf16.mxu0 0
      %1073 = vmatpush1.bf16.msra.mxu0 0
      %1074 = vmatprep.mubr.bf16.mxu0 %v835
      %1075 = vmatmul.mubr.bf16.gmra.mrb[0].mxu0 %v290
      %v1076 = vpop.f32.mrb[0].mxu0
      %v1077 = vadd.f32 0.0, %v1076
      %v1078 = vpop.f32.mrb[0].mxu0
      %v1079 = vadd.f32 0.0, %v1078
      %v1080 = vpop.f32.mrb[0].mxu0
      %v1081 = vpop.f32.mrb[0].mxu0
      %1082 = vdwg.mxu0
      %v1083 = vadd.f32 %v166, %v872
      %v1084 = vadd.f32 %v167, %v874
      %v1085 = vadd.f32 %v168, %v913
      %v1086 = vadd.f32 %v169, %v915
      %v1087 = vadd.f32 %v170, %v954
      %v1088 = vadd.f32 %v171, %v956
      %v1089 = vadd.f32 %v172, %v995
      %v1090 = vadd.f32 %v173, %v997
      %v1091 = vadd.f32 %v174, %v1036
      %v1092 = vadd.f32 %v175, %v1038
      %v1093 = vadd.f32 %v176, %v1077
      %v1094 = vadd.f32 %v177, %v1079
      %1095 = vst [vmem:[#allocation2] sm:$0xff] %v1083
      %1096 = vst [vmem:[#allocation2 + $0x8] sm:$0xff] %v1084
      %1097 = vst [vmem:[#allocation2 + $0x10] sm:$0xff] %v1085
      %1098 = vst [vmem:[#allocation2 + $0x18] sm:$0xff] %v1086
      %1099 = vst [vmem:[#allocation2 + $0x20] sm:$0xff] %v1087
      %1100 = vst [vmem:[#allocation2 + $0x28] sm:$0xff] %v1088
      %1101 = vst [vmem:[#allocation2 + $0x30] sm:$0xff] %v1089
      %1102 = vst [vmem:[#allocation2 + $0x38] sm:$0xff] %v1090
      %1103 = vst [vmem:[#allocation2 + $0x40] sm:$0xff] %v1091
      %1104 = vst [vmem:[#allocation2 + $0x48] sm:$0xff] %v1092
      %1105 = vst [vmem:[#allocation2 + $0x50] sm:$0xff] %v1093
      %1106 = vst [vmem:[#allocation2 + $0x58] sm:$0xff] %v1094
      %p1107 = scmp.eq.s32.totalorder %s13, 2
      // Predicated region
      $region33: #{ae_forward.14} parent=27 // pred_check
        %p1108 = pneg %p1107
      $region34: #{ae_forward.14} parent=27 // pred_check_branch
        %1110 = sbr.rel (%p1108) target = $region36
      $region35: #{ae_forward.14} parent=27 // pred_region
        %v1111 = vld [vmem:[#allocation2] sm:$0xff]
        %v1112 = vld [vmem:[#allocation2 + $0x8] sm:$0xff]
        %v1113 = vld [vmem:[#allocation2 + $0x10] sm:$0xff]
        %v1114 = vld [vmem:[#allocation2 + $0x18] sm:$0xff]
        %v1115 = vld [vmem:[#allocation2 + $0x20] sm:$0xff]
        %v1116 = vld [vmem:[#allocation2 + $0x28] sm:$0xff]
        %v1117 = vld [vmem:[#allocation2 + $0x30] sm:$0xff]
        %v1118 = vld [vmem:[#allocation2 + $0x38] sm:$0xff]
        %v1119 = vld [vmem:[#allocation2 + $0x40] sm:$0xff]
        %v1120 = vld [vmem:[#allocation2 + $0x48] sm:$0xff]
        %v1121 = vld [vmem:[#allocation2 + $0x50] sm:$0xff]
        %v1122 = vld [vmem:[#allocation2 + $0x58] sm:$0xff]
        %v1123 = vadd.f32 %v1111, %v1112
        %v1124 = vadd.f32 %v1123, %v1113
        %v1125 = vadd.f32 %v1124, %v1114
        %v1126 = vadd.f32 %v1125, %v1115
        %v1127 = vadd.f32 %v1126, %v1116
        %v1128 = vadd.f32 %v1127, %v1117
        %v1129 = vadd.f32 %v1128, %v1118
        %v1130 = vadd.f32 %v1129, %v1119
        %v1131 = vadd.f32 %v1130, %v1120
        %v1132 = vadd.f32 %v1131, %v1121
        %v1133 = vadd.f32 %v1132, %v1122
        %1134 = vadd.xlane.f32.xlu0 %v1133
        %v1135 = vpop.xlane.xlu0 %1134
        %v1136 = vmul.f32 %v1135, 0.00068587105
        %v1137 = vmul.f32 %v1111, %v1111
        %v1138 = vmul.f32 %v1112, %v1112
        %v1139 = vmul.f32 %v1113, %v1113
        %v1140 = vmul.f32 %v1114, %v1114
        %v1141 = vmul.f32 %v1115, %v1115
        %v1142 = vmul.f32 %v1116, %v1116
        %v1143 = vmul.f32 %v1117, %v1117
        %v1144 = vmul.f32 %v1118, %v1118
        %v1145 = vmul.f32 %v1119, %v1119
        %v1146 = vmul.f32 %v1120, %v1120
        %v1147 = vmul.f32 %v1121, %v1121
        %v1148 = vmul.f32 %v1122, %v1122
        %v1149 = vadd.f32 %v1137, %v1138
        %v1150 = vadd.f32 %v1149, %v1139
        %v1151 = vadd.f32 %v1150, %v1140
        %v1152 = vadd.f32 %v1151, %v1141
        %v1153 = vadd.f32 %v1152, %v1142
        %v1154 = vadd.f32 %v1153, %v1143
        %v1155 = vadd.f32 %v1154, %v1144
        %v1156 = vadd.f32 %v1155, %v1145
        %v1157 = vadd.f32 %v1156, %v1146
        %v1158 = vadd.f32 %v1157, %v1147
        %v1159 = vadd.f32 %v1158, %v1148
        %1160 = vadd.xlane.f32.xlu0 %v1159
        %v1161 = vpop.xlane.xlu0 %1160
        %v1162 = vmul.f32 %v1161, 0.00068587105
        %v1163 = vmul.f32 %v1136, %v1136
        %v1164 = vsub.f32 %v1162, %v1163
        %v1165 = vmax.f32 %v1164, 0.0
        %v1166 = vsub.f32 %v1111, %v1136
        %v1167 = vsub.f32 %v1112, %v1136
        %v1168 = vsub.f32 %v1113, %v1136
        %v1169 = vsub.f32 %v1114, %v1136
        %v1170 = vsub.f32 %v1115, %v1136
        %v1171 = vsub.f32 %v1116, %v1136
        %v1172 = vsub.f32 %v1117, %v1136
        %v1173 = vsub.f32 %v1118, %v1136
        %v1174 = vsub.f32 %v1119, %v1136
        %v1175 = vsub.f32 %v1120, %v1136
        %v1176 = vsub.f32 %v1121, %v1136
        %v1177 = vsub.f32 %v1122, %v1136
        %v1178 = vadd.f32 %v1165, 1e-05
        %v1179 = vrsqrt.pop %v1178
        %v1180 = vmul.f32 %v1166, %v1179
        %v1181 = vmul.f32 %v1167, %v1179
        %v1182 = vmul.f32 %v1168, %v1179
        %v1183 = vmul.f32 %v1169, %v1179
        %v1184 = vmul.f32 %v1170, %v1179
        %v1185 = vmul.f32 %v1171, %v1179
        %v1186 = vmul.f32 %v1172, %v1179
        %v1187 = vmul.f32 %v1173, %v1179
        %v1188 = vmul.f32 %v1174, %v1179
        %v1189 = vmul.f32 %v1175, %v1179
        %v1190 = vmul.f32 %v1176, %v1179
        %v1191 = vmul.f32 %v1177, %v1179
        %v1192 = vmax.f32 %v1180, 0.0
        %v1193 = vmax.f32 %v1181, 0.0
        %v1194 = vmax.f32 %v1182, 0.0
        %v1195 = vmax.f32 %v1183, 0.0
        %v1196 = vmax.f32 %v1184, 0.0
        %v1197 = vmax.f32 %v1185, 0.0
        %v1198 = vmax.f32 %v1186, 0.0
        %v1199 = vmax.f32 %v1187, 0.0
        %v1200 = vmax.f32 %v1188, 0.0
        %v1201 = vmax.f32 %v1189, 0.0
        %v1202 = vmax.f32 %v1190, 0.0
        %v1203 = vmax.f32 %v1191, 0.0
        %1204 = vst [vmem:[%s2] sm:$0xff] %v1192
        %1205 = vst [vmem:[%s2 + $0x8] sm:$0xff] %v1193
        %1206 = vst [vmem:[%s2 + $0x10] sm:$0xff] %v1194
        %1207 = vst [vmem:[%s2 + $0x18] sm:$0xff] %v1195
        %1208 = vst [vmem:[%s2 + $0x20] sm:$0xff] %v1196
        %1209 = vst [vmem:[%s2 + $0x28] sm:$0xff] %v1197
        %1210 = vst [vmem:[%s2 + $0x30] sm:$0xff] %v1198
        %1211 = vst [vmem:[%s2 + $0x38] sm:$0xff] %v1199
        %1212 = vst [vmem:[%s2 + $0x40] sm:$0xff] %v1200
        %1213 = vst [vmem:[%s2 + $0x48] sm:$0xff] %v1201
        %1214 = vst [vmem:[%s2 + $0x50] sm:$0xff] %v1202
        %1215 = vst [vmem:[%s2 + $0x58] sm:$0xff] %v1203
      $region36: #{ae_forward.14} parent=27 // pred_fallthru
        _
      // Predicated region
      $region37: #{ae_forward.14} parent=27 // pred_check
        %p1216 = pneg %p78
      $region38: #{ae_forward.14} parent=27 // pred_check_branch
        %1218 = sbr.rel (%p1216) target = $region40
      $region39: #{ae_forward.14} parent=27 // pred_region
        _
      $region40: #{ae_forward.14} parent=27 // pred_fallthru
        _
      // Predicated region
      $region41: #{ae_forward.14} parent=27 // pred_check
        %p1219 = pneg %p78
      $region42: #{ae_forward.14} parent=27 // pred_check_branch
        %1221 = sbr.rel (%p1219) target = $region44
      $region43: #{ae_forward.14} parent=27 // pred_region
        _
      $region44: #{ae_forward.14} parent=27 // pred_fallthru
        _
    $region28: #{ae_forward.14} parent=5 // pred_fallthru
      _
    %p1222 = scmp.le.s32.totalorder 2, %s8
    // Predicated region
    $region45: #{ae_forward.14} parent=5 // pred_check
      %p1223 = pneg %p1222
    $region46: #{ae_forward.14} parent=5 // pred_check_branch
      %1225 = sbr.rel (%p1223) target = $region48
    $region47: #{ae_forward.14} parent=5 // pred_region
      %s1226 = ssub.s32 %s8, 2
    $region48: #{ae_forward.14} parent=5 // pred_fallthru
      _
  $region6: #{ae_forward.14} parent=0 // loop_footer
    %s12 = sadd.s32 1, %s8
  $region7: #{ae_forward.14} parent=0 // loop_footer_branch
    %7 = sbr.rel target = $region3
  $region8: #{ae_forward.14} parent=0 // loop_exit
    _

// kernel: ae_forward.15
$region0: #{ae_forward.15}
  #allocation0 [shape = 'u32[]', space=smem, size = 0x4, offset = 0x4, fixed_abs, tag = 'smem constant byte address 0x4 - core index']
  #allocation1 [shape = 'u32[144,128]{1,0:T(1,128)}', space=vmem, size = 0x12000, scoped, tag = 'internal scratch']
  #allocation2 [shape = 'f32[8,3456]{1,0:T(8,128)}', space=vmem, size = 0x1b000, scoped, tag = 'scratch operand']
  %s0 = inlined_call_operand.vmem [shape: bf16[4,256,3456], index: 0, kind: input, shape index: {}]
  %s1 = inlined_call_operand.vmem [shape: bf16[4,8,256], index: 1, kind: input, shape index: {}]
  %s2 = inlined_call_operand.vmem [shape: f32[8,3456], index: 2, kind: output, shape index: {}]
  %s3 = sld [smem:[#allocation0]]
  $region49: #{ae_forward.15} parent=0
    _
  %s5 = ssub.s32 1, %s3
  %s6 = scalar_select 0, %s5, %s3
  loop: start=0, step=1, limit=6
  $region2: #{ae_forward.15} parent=0 // loop_pre_header
    _
  $region3: #{ae_forward.15} parent=0 // loop_header
    %s8 = sphi 0, %s12
    %p9 = scmp.ge.s32.totalorder %s8, 6
    %s18 = sphi 0, %s20
    %s21 = sphi 0, %s18
    %s22 = sphi 0, %s21
    %s38 = sphi 0, %s22
    %s44 = sphi 0, %s46
    %s47 = sphi 0, %s44
    %s48 = sphi 0, %s47
    %s64 = sphi 0, %s48
    %s68 = sphi 0, %s68
    %s70 = sphi 0, %s68
    %s71 = sphi 0, %s70
    %s85 = sphi 0, %s71
  $region4: #{ae_forward.15} parent=0 // loop_header_branch
    %11 = sbr.rel (%p9) target = $region8
  $region5: #{ae_forward.15} parent=0 // loop_body
    %s13 = ssub.s32 %s8, 1
    %s14 = ssub.s32 %s8, 2
    %s15 = sadd.s32 %s8, 1
    %s16 = ssub.s32 %s8, %s15
    %p17 = scmp.eq.s32.totalorder %s16, 0
    %s19 = sadd.s32 %s18, 1
    %s20 = scalar_select %p17, %s18, %s19
    %p23 = pneg %p17
    %p24 = scmp.eq.s32.totalorder %s8, 3
    %p25 = por %p23, %p24
    %p26 = scmp.ne.s32.totalorder %s18, %s21
    %p27 = scmp.eq.s32.totalorder %s8, 0
    %p28 = por %p26, %p27
    %p29 = scmp.ne.s32.totalorder %s18, %s21
    %p30 = scmp.eq.s32.totalorder %s13, 3
    %p31 = por %p29, %p30
    %p32 = scmp.ne.s32.totalorder %s21, %s22
    %p33 = scmp.eq.s32.totalorder %s13, 0
    %p34 = por %p32, %p33
    %p35 = scmp.ne.s32.totalorder %s21, %s22
    %p36 = scmp.eq.s32.totalorder %s14, 3
    %p37 = por %p35, %p36
    %p39 = scmp.ne.s32.totalorder %s22, %s38
    %p40 = scmp.eq.s32.totalorder %s14, 0
    %p41 = por %p39, %p40
    %s42 = ssub.s32 %s8, %s15
    %p43 = scmp.eq.s32.totalorder %s42, 0
    %s45 = sadd.s32 %s44, 1
    %s46 = scalar_select %p43, %s44, %s45
    %p49 = pneg %p43
    %p50 = scmp.eq.s32.totalorder %s8, 3
    %p51 = por %p49, %p50
    %p52 = scmp.ne.s32.totalorder %s44, %s47
    %p53 = scmp.eq.s32.totalorder %s8, 0
    %p54 = por %p52, %p53
    %p55 = scmp.ne.s32.totalorder %s44, %s47
    %p56 = scmp.eq.s32.totalorder %s13, 3
    %p57 = por %p55, %p56
    %p58 = scmp.ne.s32.totalorder %s47, %s48
    %p59 = scmp.eq.s32.totalorder %s13, 0
    %p60 = por %p58, %p59
    %p61 = scmp.ne.s32.totalorder %s47, %s48
    %p62 = scmp.eq.s32.totalorder %s14, 3
    %p63 = por %p61, %p62
    %p65 = scmp.ne.s32.totalorder %s48, %s64
    %p66 = scmp.eq.s32.totalorder %s14, 0
    %p67 = por %p65, %p66
    %s69 = sadd.s32 %s68, 1
    %p72 = scmp.eq.s32.totalorder %s8, 3
    %p73 = scmp.ne.s32.totalorder %s68, %s70
    %p74 = scmp.eq.s32.totalorder %s8, 0
    %p75 = por %p73, %p74
    %p76 = scmp.ne.s32.totalorder %s68, %s70
    %p77 = scmp.eq.s32.totalorder %s13, 3
    %p78 = por %p76, %p77
    %p79 = scmp.ne.s32.totalorder %s70, %s71
    %p80 = scmp.eq.s32.totalorder %s13, 0
    %p81 = por %p79, %p80
    %p82 = scmp.ne.s32.totalorder %s70, %s71
    %p83 = scmp.eq.s32.totalorder %s14, 3
    %p84 = por %p82, %p83
    %p86 = scmp.ne.s32.totalorder %s71, %s85
    %p87 = scmp.eq.s32.totalorder %s14, 0
    %p88 = por %p86, %p87
    %p89 = scmp.le.s32.totalorder 1, %s8
    %p90 = scmp.lt.s32.totalorder %s8, 5
    %p91 = pnand %p89, %p90
    %p92 = pneg %p91
    // Predicated region
    $region9: #{ae_forward.15} parent=5 // pred_check
      _
    $region10: #{ae_forward.15} parent=5 // pred_check_branch
      %94 = sbr.rel (%p91) target = $region12
    $region11: #{ae_forward.15} parent=5 // pred_region
      %s95 = ssub.s32 %s8, 1
    $region12: #{ae_forward.15} parent=5 // pred_fallthru
      _
    %p96 = scmp.lt.s32.totalorder %s8, 4
    // Predicated region
    $region13: #{ae_forward.15} parent=5 // pred_check
      %p97 = pneg %p96
    $region14: #{ae_forward.15} parent=5 // pred_check_branch
      %99 = sbr.rel (%p97) target = $region16
    $region15: #{ae_forward.15} parent=5 // pred_region
      // Predicated region
      $region17: #{ae_forward.15} parent=15 // pred_check
        %p100 = pneg %p28
      $region18: #{ae_forward.15} parent=15 // pred_check_branch
        %102 = sbr.rel (%p100) target = $region20
      $region19: #{ae_forward.15} parent=15 // pred_region
        %p103 = scmp.lt.s32.totalorder %s8, 3
        %s104 = scalar_select %p103, %s8, 3
        %s105 = smul.addr %s104, 864
        %s106 = smul.addr %s105, 4
        %s107 = scalar_lea.vmem %s0, %s106
      $region20: #{ae_forward.15} parent=15 // pred_fallthru
        _
      // Predicated region
      $region21: #{ae_forward.15} parent=15 // pred_check
        %p108 = pneg %p54
      $region22: #{ae_forward.15} parent=15 // pred_check_branch
        %110 = sbr.rel (%p108) target = $region24
      $region23: #{ae_forward.15} parent=15 // pred_region
        %p111 = scmp.lt.s32.totalorder %s8, 3
        %s112 = scalar_select %p111, %s8, 3
        %s113 = smul.addr %s112, 2
        %s114 = smul.addr %s113, 4
        %s115 = scalar_lea.vmem %s1, %s114
      $region24: #{ae_forward.15} parent=15 // pred_fallthru
        _
    $region16: #{ae_forward.15} parent=5 // pred_fallthru
      _
    %p116 = scmp.le.s32.totalorder 1, %s8
    %p117 = scmp.lt.s32.totalorder %s8, 5
    %p118 = pnand %p116, %p117
    %p119 = pneg %p118
    // Predicated region
    $region25: #{ae_forward.15} parent=5 // pred_check
      _
    $region26: #{ae_forward.15} parent=5 // pred_check_branch
      %121 = sbr.rel (%p118) target = $region28
    $region27: #{ae_forward.15} parent=5 // pred_region
      %s122 = ssub.s32 %s8, 1
      %p123 = scmp.lt.s32.totalorder %s13, 3
      %s124 = scalar_select %p123, %s13, 3
      %s125 = smul.addr %s124, 864
      %s126 = smul.addr %s125, 4
      %s127 = scalar_lea.vmem %s0, %s126
      %p128 = pneg %p34
      %p129 = pneg %p31
      %p130 = scmp.lt.s32.totalorder %s13, 3
      %s131 = scalar_select %p130, %s13, 3
      %s132 = smul.addr %s131, 2
      %s133 = smul.addr %s132, 4
      %s134 = scalar_lea.vmem %s1, %s133
      %p135 = pneg %p60
      %p136 = pneg %p57
      %p137 = pneg %p81
      %p138 = pneg %p78
      %p139 = scmp.lt.s32.totalorder %s13, 3
      %s140 = scalar_select %p139, %s13, 3
      %s141 = smul.addr %s140, 864
      %s142 = smul.addr %s141, 4
      %s143 = scalar_lea.vmem %s0, %s142
      %p144 = scmp.lt.s32.totalorder %s13, 3
      %s145 = scalar_select %p144, %s13, 3
      %s146 = smul.addr %s145, 2
      %s147 = smul.addr %s146, 4
      %s148 = scalar_lea.vmem %s1, %s147
      %p150 = scmp.eq.s32.totalorder %s13, 0
      // Predicated region
      $region29: #{ae_forward.15} parent=27 // pred_check
        %p151 = pneg %p150
      $region30: #{ae_forward.15} parent=27 // pred_check_branch
        %153 = sbr.rel (%p151) target = $region32
      $region31: #{ae_forward.15} parent=27 // pred_region
        %154 = vst [vmem:[#allocation2] sm:$0xff] 0.0
        %155 = vst [vmem:[#allocation2 + $0x8] sm:$0xff] 0.0
        %156 = vst [vmem:[#allocation2 + $0x10] sm:$0xff] 0.0
        %157 = vst [vmem:[#allocation2 + $0x18] sm:$0xff] 0.0
        %158 = vst [vmem:[#allocation2 + $0x20] sm:$0xff] 0.0
        %159 = vst [vmem:[#allocation2 + $0x28] sm:$0xff] 0.0
        %160 = vst [vmem:[#allocation2 + $0x30] sm:$0xff] 0.0
        %161 = vst [vmem:[#allocation2 + $0x38] sm:$0xff] 0.0
        %162 = vst [vmem:[#allocation2 + $0x40] sm:$0xff] 0.0
        %163 = vst [vmem:[#allocation2 + $0x48] sm:$0xff] 0.0
        %164 = vst [vmem:[#allocation2 + $0x50] sm:$0xff] 0.0
        %165 = vst [vmem:[#allocation2 + $0x58] sm:$0xff] 0.0
        %166 = vst [vmem:[#allocation2 + $0x60] sm:$0xff] 0.0
        %167 = vst [vmem:[#allocation2 + $0x68] sm:$0xff] 0.0
        %168 = vst [vmem:[#allocation2 + $0x70] sm:$0xff] 0.0
        %169 = vst [vmem:[#allocation2 + $0x78] sm:$0xff] 0.0
        %170 = vst [vmem:[#allocation2 + $0x80] sm:$0xff] 0.0
        %171 = vst [vmem:[#allocation2 + $0x88] sm:$0xff] 0.0
        %172 = vst [vmem:[#allocation2 + $0x90] sm:$0xff] 0.0
        %173 = vst [vmem:[#allocation2 + $0x98] sm:$0xff] 0.0
        %174 = vst [vmem:[#allocation2 + $0xa0] sm:$0xff] 0.0
        %175 = vst [vmem:[#allocation2 + $0xa8] sm:$0xff] 0.0
        %176 = vst [vmem:[#allocation2 + $0xb0] sm:$0xff] 0.0
        %177 = vst [vmem:[#allocation2 + $0xb8] sm:$0xff] 0.0
        %178 = vst [vmem:[#allocation2 + $0xc0] sm:$0xff] 0.0
        %179 = vst [vmem:[#allocation2 + $0xc8] sm:$0xff] 0.0
        %180 = vst [vmem:[#allocation2 + $0xd0] sm:$0xff] 0.0
      $region32: #{ae_forward.15} parent=27 // pred_fallthru
        _
      %v181 = vld [vmem:[#allocation2] sm:$0xff]
      %v182 = vld [vmem:[#allocation2 + $0x8] sm:$0xff]
      %v183 = vld [vmem:[#allocation2 + $0x10] sm:$0xff]
      %v184 = vld [vmem:[#allocation2 + $0x18] sm:$0xff]
      %v185 = vld [vmem:[#allocation2 + $0x20] sm:$0xff]
      %v186 = vld [vmem:[#allocation2 + $0x28] sm:$0xff]
      %v187 = vld [vmem:[#allocation2 + $0x30] sm:$0xff]
      %v188 = vld [vmem:[#allocation2 + $0x38] sm:$0xff]
      %v189 = vld [vmem:[#allocation2 + $0x40] sm:$0xff]
      %v190 = vld [vmem:[#allocation2 + $0x48] sm:$0xff]
      %v191 = vld [vmem:[#allocation2 + $0x50] sm:$0xff]
      %v192 = vld [vmem:[#allocation2 + $0x58] sm:$0xff]
      %v193 = vld [vmem:[#allocation2 + $0x60] sm:$0xff]
      %v194 = vld [vmem:[#allocation2 + $0x68] sm:$0xff]
      %v195 = vld [vmem:[#allocation2 + $0x70] sm:$0xff]
      %v196 = vld [vmem:[#allocation2 + $0x78] sm:$0xff]
      %v197 = vld [vmem:[#allocation2 + $0x80] sm:$0xff]
      %v198 = vld [vmem:[#allocation2 + $0x88] sm:$0xff]
      %v199 = vld [vmem:[#allocation2 + $0x90] sm:$0xff]
      %v200 = vld [vmem:[#allocation2 + $0x98] sm:$0xff]
      %v201 = vld [vmem:[#allocation2 + $0xa0] sm:$0xff]
      %v202 = vld [vmem:[#allocation2 + $0xa8] sm:$0xff]
      %v203 = vld [vmem:[#allocation2 + $0xb0] sm:$0xff]
      %v204 = vld [vmem:[#allocation2 + $0xb8] sm:$0xff]
      %v205 = vld [vmem:[#allocation2 + $0xc0] sm:$0xff]
      %v206 = vld [vmem:[#allocation2 + $0xc8] sm:$0xff]
      %v207 = vld [vmem:[#allocation2 + $0xd0] sm:$0xff]
      %v208 = vld [vmem:[%s148] sm:$0xff]
      %v209 = vld [vmem:[%s143] sm:$0xff]
      %v210 = vld [vmem:[%s143 + $0x8] sm:$0xff]
      %v211 = vld [vmem:[%s143 + $0x10] sm:$0xff]
      %v212 = vld [vmem:[%s143 + $0x18] sm:$0xff]
      %v213 = vld [vmem:[%s143 + $0x20] sm:$0xff]
      %v214 = vld [vmem:[%s143 + $0x28] sm:$0xff]
      %v215 = vld [vmem:[%s143 + $0x30] sm:$0xff]
      %v216 = vld [vmem:[%s143 + $0x38] sm:$0xff]
      %v217 = vld [vmem:[%s143 + $0x40] sm:$0xff]
      %v218 = vld [vmem:[%s143 + $0x48] sm:$0xff]
      %v219 = vld [vmem:[%s143 + $0x50] sm:$0xff]
      %v220 = vld [vmem:[%s143 + $0x58] sm:$0xff]
      %v221 = vld [vmem:[%s143 + $0x60] sm:$0xff]
      %v222 = vld [vmem:[%s143 + $0x68] sm:$0xf]
      %v223 = vld [vmem:[%s143 + $0x6c] sm:$0xff]
      %v224 = vld [vmem:[%s143 + $0x74] sm:$0xff]
      %v225 = vld [vmem:[%s143 + $0x7c] sm:$0xff]
      %v226 = vld [vmem:[%s143 + $0x84] sm:$0xff]
      %v227 = vld [vmem:[%s143 + $0x8c] sm:$0xff]
      %v228 = vld [vmem:[%s143 + $0x94] sm:$0xff]
      %v229 = vld [vmem:[%s143 + $0x9c] sm:$0xff]
      %v230 = vld [vmem:[%s143 + $0xa4] sm:$0xff]
      %v231 = vld [vmem:[%s143 + $0xac] sm:$0xff]
      %v232 = vld [vmem:[%s143 + $0xb4] sm:$0xff]
      %v233 = vld [vmem:[%s143 + $0xbc] sm:$0xff]
      %v234 = vld [vmem:[%s143 + $0xc4] sm:$0xff]
      %v235 = vld [vmem:[%s143 + $0xcc] sm:$0xff]
      %v236 = vld [vmem:[%s143 + $0xd4] sm:$0xf]
      %v237 = vld [vmem:[%s143 + $0xd8] sm:$0xff]
      %v238 = vld [vmem:[%s143 + $0xe0] sm:$0xff]
      %v239 = vld [vmem:[%s143 + $0xe8] sm:$0xff]
      %v240 = vld [vmem:[%s143 + $0xf0] sm:$0xff]
      %v241 = vld [vmem:[%s143 + $0xf8] sm:$0xff]
      %v242 = vld [vmem:[%s143 + $0x100] sm:$0xff]
      %v243 = vld [vmem:[%s143 + $0x108] sm:$0xff]
      %v244 = vld [vmem:[%s143 + $0x110] sm:$0xff]
      %v245 = vld [vmem:[%s143 + $0x118] sm:$0xff]
      %v246 = vld [vmem:[%s143 + $0x120] sm:$0xff]
      %v247 = vld [vmem:[%s143 + $0x128] sm:$0xff]
      %v248 = vld [vmem:[%s143 + $0x130] sm:$0xff]
      %v249 = vld [vmem:[%s143 + $0x138] sm:$0xff]
      %v250 = vld [vmem:[%s143 + $0x140] sm:$0xf]
      %v251 = vld [vmem:[%s143 + $0x144] sm:$0xff]
      %v252 = vld [vmem:[%s143 + $0x14c] sm:$0xff]
      %v253 = vld [vmem:[%s143 + $0x154] sm:$0xff]
      %v254 = vld [vmem:[%s143 + $0x15c] sm:$0xff]
      %v255 = vld [vmem:[%s143 + $0x164] sm:$0xff]
      %v256 = vld [vmem:[%s143 + $0x16c] sm:$0xff]
      %v257 = vld [vmem:[%s143 + $0x174] sm:$0xff]
      %v258 = vld [vmem:[%s143 + $0x17c] sm:$0xff]
      %v259 = vld [vmem:[%s143 + $0x184] sm:$0xff]
      %v260 = vld [vmem:[%s143 + $0x18c] sm:$0xff]
      %v261 = vld [vmem:[%s143 + $0x194] sm:$0xff]
      %v262 = vld [vmem:[%s143 + $0x19c] sm:$0xff]
      %v263 = vld [vmem:[%s143 + $0x1a4] sm:$0xff]
      %v264 = vld [vmem:[%s143 + $0x1ac] sm:$0xf]
      %v265 = vld [vmem:[%s143 + $0x1b0] sm:$0xff]
      %v266 = vld [vmem:[%s143 + $0x1b8] sm:$0xff]
      %v267 = vld [vmem:[%s143 + $0x1c0] sm:$0xff]
      %v268 = vld [vmem:[%s143 + $0x1c8] sm:$0xff]
      %v269 = vld [vmem:[%s143 + $0x1d0] sm:$0xff]
      %v270 = vld [vmem:[%s143 + $0x1d8] sm:$0xff]
      %v271 = vld [vmem:[%s143 + $0x1e0] sm:$0xff]
      %v272 = vld [vmem:[%s143 + $0x1e8] sm:$0xff]
      %v273 = vld [vmem:[%s143 + $0x1f0] sm:$0xff]
      %v274 = vld [vmem:[%s143 + $0x1f8] sm:$0xff]
      %v275 = vld [vmem:[%s143 + $0x200] sm:$0xff]
      %v276 = vld [vmem:[%s143 + $0x208] sm:$0xff]
      %v277 = vld [vmem:[%s143 + $0x210] sm:$0xff]
      %v278 = vld [vmem:[%s143 + $0x218] sm:$0xf]
      %v279 = vld [vmem:[%s143 + $0x21c] sm:$0xff]
      %v280 = vld [vmem:[%s143 + $0x224] sm:$0xff]
      %v281 = vld [vmem:[%s143 + $0x22c] sm:$0xff]
      %v282 = vld [vmem:[%s143 + $0x234] sm:$0xff]
      %v283 = vld [vmem:[%s143 + $0x23c] sm:$0xff]
      %v284 = vld [vmem:[%s143 + $0x244] sm:$0xff]
      %v285 = vld [vmem:[%s143 + $0x24c] sm:$0xff]
      %v286 = vld [vmem:[%s143 + $0x254] sm:$0xff]
      %v287 = vld [vmem:[%s143 + $0x25c] sm:$0xff]
      %v288 = vld [vmem:[%s143 + $0x264] sm:$0xff]
      %v289 = vld [vmem:[%s143 + $0x26c] sm:$0xff]
      %v290 = vld [vmem:[%s143 + $0x274] sm:$0xff]
      %v291 = vld [vmem:[%s143 + $0x27c] sm:$0xff]
      %v292 = vld [vmem:[%s143 + $0x284] sm:$0xf]
      %v293 = vld [vmem:[%s143 + $0x288] sm:$0xff]
      %v294 = vld [vmem:[%s143 + $0x290] sm:$0xff]
      %v295 = vld [vmem:[%s143 + $0x298] sm:$0xff]
      %v296 = vld [vmem:[%s143 + $0x2a0] sm:$0xff]
      %v297 = vld [vmem:[%s143 + $0x2a8] sm:$0xff]
      %v298 = vld [vmem:[%s143 + $0x2b0] sm:$0xff]
      %v299 = vld [vmem:[%s143 + $0x2b8] sm:$0xff]
      %v300 = vld [vmem:[%s143 + $0x2c0] sm:$0xff]
      %v301 = vld [vmem:[%s143 + $0x2c8] sm:$0xff]
      %v302 = vld [vmem:[%s143 + $0x2d0] sm:$0xff]
      %v303 = vld [vmem:[%s143 + $0x2d8] sm:$0xff]
      %v304 = vld [vmem:[%s143 + $0x2e0] sm:$0xff]
      %v305 = vld [vmem:[%s143 + $0x2e8] sm:$0xff]
      %v306 = vld [vmem:[%s143 + $0x2f0] sm:$0xf]
      %v307 = vld [vmem:[%s143 + $0x2f4] sm:$0xff]
      %v308 = vld [vmem:[%s143 + $0x2fc] sm:$0xff]
      %v309 = vld [vmem:[%s143 + $0x304] sm:$0xff]
      %v310 = vld [vmem:[%s143 + $0x30c] sm:$0xff]
      %v311 = vld [vmem:[%s143 + $0x314] sm:$0xff]
      %v312 = vld [vmem:[%s143 + $0x31c] sm:$0xff]
      %v313 = vld [vmem:[%s143 + $0x324] sm:$0xff]
      %v314 = vld [vmem:[%s143 + $0x32c] sm:$0xff]
      %v315 = vld [vmem:[%s143 + $0x334] sm:$0xff]
      %v316 = vld [vmem:[%s143 + $0x33c] sm:$0xff]
      %v317 = vld [vmem:[%s143 + $0x344] sm:$0xff]
      %v318 = vld [vmem:[%s143 + $0x34c] sm:$0xff]
      %v319 = vld [vmem:[%s143 + $0x354] sm:$0xff]
      %v320 = vld [vmem:[%s143 + $0x35c] sm:$0xf]
      %v321 = vld [vmem:[%s143 + $0x360] sm:$0xff]
      %v322 = vld [vmem:[%s143 + $0x368] sm:$0xff]
      %v323 = vld [vmem:[%s143 + $0x370] sm:$0xff]
      %v324 = vld [vmem:[%s143 + $0x378] sm:$0xff]
      %v325 = vld [vmem:[%s143 + $0x380] sm:$0xff]
      %v326 = vld [vmem:[%s143 + $0x388] sm:$0xff]
      %v327 = vld [vmem:[%s143 + $0x390] sm:$0xff]
      %v328 = vld [vmem:[%s143 + $0x398] sm:$0xff]
      %v329 = vld [vmem:[%s143 + $0x3a0] sm:$0xff]
      %v330 = vld [vmem:[%s143 + $0x3a8] sm:$0xff]
      %v331 = vld [vmem:[%s143 + $0x3b0] sm:$0xff]
      %v332 = vld [vmem:[%s143 + $0x3b8] sm:$0xff]
      %v333 = vld [vmem:[%s143 + $0x3c0] sm:$0xff]
      %v334 = vld [vmem:[%s143 + $0x3c8] sm:$0xf]
      %v335 = vld [vmem:[%s143 + $0x3cc] sm:$0xff]
      %v336 = vld [vmem:[%s143 + $0x3d4] sm:$0xff]
      %v337 = vld [vmem:[%s143 + $0x3dc] sm:$0xff]
      %v338 = vld [vmem:[%s143 + $0x3e4] sm:$0xff]
      %v339 = vld [vmem:[%s143 + $0x3ec] sm:$0xff]
      %v340 = vld [vmem:[%s143 + $0x3f4] sm:$0xff]
      %v341 = vld [vmem:[%s143 + $0x3fc] sm:$0xff]
      %v342 = vld [vmem:[%s143 + $0x404] sm:$0xff]
      %v343 = vld [vmem:[%s143 + $0x40c] sm:$0xff]
      %v344 = vld [vmem:[%s143 + $0x414] sm:$0xff]
      %v345 = vld [vmem:[%s143 + $0x41c] sm:$0xff]
      %v346 = vld [vmem:[%s143 + $0x424] sm:$0xff]
      %v347 = vld [vmem:[%s143 + $0x42c] sm:$0xff]
      %v348 = vld [vmem:[%s143 + $0x434] sm:$0xf]
      %v349 = vld [vmem:[%s143 + $0x438] sm:$0xff]
      %v350 = vld [vmem:[%s143 + $0x440] sm:$0xff]
      %v351 = vld [vmem:[%s143 + $0x448] sm:$0xff]
      %v352 = vld [vmem:[%s143 + $0x450] sm:$0xff]
      %v353 = vld [vmem:[%s143 + $0x458] sm:$0xff]
      %v354 = vld [vmem:[%s143 + $0x460] sm:$0xff]
      %v355 = vld [vmem:[%s143 + $0x468] sm:$0xff]
      %v356 = vld [vmem:[%s143 + $0x470] sm:$0xff]
      %v357 = vld [vmem:[%s143 + $0x478] sm:$0xff]
      %v358 = vld [vmem:[%s143 + $0x480] sm:$0xff]
      %v359 = vld [vmem:[%s143 + $0x488] sm:$0xff]
      %v360 = vld [vmem:[%s143 + $0x490] sm:$0xff]
      %v361 = vld [vmem:[%s143 + $0x498] sm:$0xff]
      %v362 = vld [vmem:[%s143 + $0x4a0] sm:$0xf]
      %v363 = vld [vmem:[%s143 + $0x4a4] sm:$0xff]
      %v364 = vld [vmem:[%s143 + $0x4ac] sm:$0xff]
      %v365 = vld [vmem:[%s143 + $0x4b4] sm:$0xff]
      %v366 = vld [vmem:[%s143 + $0x4bc] sm:$0xff]
      %v367 = vld [vmem:[%s143 + $0x4c4] sm:$0xff]
      %v368 = vld [vmem:[%s143 + $0x4cc] sm:$0xff]
      %v369 = vld [vmem:[%s143 + $0x4d4] sm:$0xff]
      %v370 = vld [vmem:[%s143 + $0x4dc] sm:$0xff]
      %v371 = vld [vmem:[%s143 + $0x4e4] sm:$0xff]
      %v372 = vld [vmem:[%s143 + $0x4ec] sm:$0xff]
      %v373 = vld [vmem:[%s143 + $0x4f4] sm:$0xff]
      %v374 = vld [vmem:[%s143 + $0x4fc] sm:$0xff]
      %v375 = vld [vmem:[%s143 + $0x504] sm:$0xff]
      %v376 = vld [vmem:[%s143 + $0x50c] sm:$0xf]
      %v377 = vld [vmem:[%s143 + $0x510] sm:$0xff]
      %v378 = vld [vmem:[%s143 + $0x518] sm:$0xff]
      %v379 = vld [vmem:[%s143 + $0x520] sm:$0xff]
      %v380 = vld [vmem:[%s143 + $0x528] sm:$0xff]
      %v381 = vld [vmem:[%s143 + $0x530] sm:$0xff]
      %v382 = vld [vmem:[%s143 + $0x538] sm:$0xff]
      %v383 = vld [vmem:[%s143 + $0x540] sm:$0xff]
      %v384 = vld [vmem:[%s143 + $0x548] sm:$0xff]
      %v385 = vld [vmem:[%s143 + $0x550] sm:$0xff]
      %v386 = vld [vmem:[%s143 + $0x558] sm:$0xff]
      %v387 = vld [vmem:[%s143 + $0x560] sm:$0xff]
      %v388 = vld [vmem:[%s143 + $0x568] sm:$0xff]
      %v389 = vld [vmem:[%s143 + $0x570] sm:$0xff]
      %v390 = vld [vmem:[%s143 + $0x578] sm:$0xf]
      %v391 = vld [vmem:[%s143 + $0x57c] sm:$0xff]
      %v392 = vld [vmem:[%s143 + $0x584] sm:$0xff]
      %v393 = vld [vmem:[%s143 + $0x58c] sm:$0xff]
      %v394 = vld [vmem:[%s143 + $0x594] sm:$0xff]
      %v395 = vld [vmem:[%s143 + $0x59c] sm:$0xff]
      %v396 = vld [vmem:[%s143 + $0x5a4] sm:$0xff]
      %v397 = vld [vmem:[%s143 + $0x5ac] sm:$0xff]
      %v398 = vld [vmem:[%s143 + $0x5b4] sm:$0xff]
      %v399 = vld [vmem:[%s143 + $0x5bc] sm:$0xff]
      %v400 = vld [vmem:[%s143 + $0x5c4] sm:$0xff]
      %v401 = vld [vmem:[%s143 + $0x5cc] sm:$0xff]
      %v402 = vld [vmem:[%s143 + $0x5d4] sm:$0xff]
      %v403 = vld [vmem:[%s143 + $0x5dc] sm:$0xff]
      %v404 = vld [vmem:[%s143 + $0x5e4] sm:$0xf]
      %v405 = vld [vmem:[%s143 + $0x5e8] sm:$0xff]
      %v406 = vld [vmem:[%s143 + $0x5f0] sm:$0xff]
      %v407 = vld [vmem:[%s143 + $0x5f8] sm:$0xff]
      %v408 = vld [vmem:[%s143 + $0x600] sm:$0xff]
      %v409 = vld [vmem:[%s143 + $0x608] sm:$0xff]
      %v410 = vld [vmem:[%s143 + $0x610] sm:$0xff]
      %v411 = vld [vmem:[%s143 + $0x618] sm:$0xff]
      %v412 = vld [vmem:[%s143 + $0x620] sm:$0xff]
      %v413 = vld [vmem:[%s143 + $0x628] sm:$0xff]
      %v414 = vld [vmem:[%s143 + $0x630] sm:$0xff]
      %v415 = vld [vmem:[%s143 + $0x638] sm:$0xff]
      %v416 = vld [vmem:[%s143 + $0x640] sm:$0xff]
      %v417 = vld [vmem:[%s143 + $0x648] sm:$0xff]
      %v418 = vld [vmem:[%s143 + $0x650] sm:$0xf]
      %v419 = vld [vmem:[%s143 + $0x654] sm:$0xff]
      %v420 = vld [vmem:[%s143 + $0x65c] sm:$0xff]
      %v421 = vld [vmem:[%s143 + $0x664] sm:$0xff]
      %v422 = vld [vmem:[%s143 + $0x66c] sm:$0xff]
      %v423 = vld [vmem:[%s143 + $0x674] sm:$0xff]
      %v424 = vld [vmem:[%s143 + $0x67c] sm:$0xff]
      %v425 = vld [vmem:[%s143 + $0x684] sm:$0xff]
      %v426 = vld [vmem:[%s143 + $0x68c] sm:$0xff]
      %v427 = vld [vmem:[%s143 + $0x694] sm:$0xff]
      %v428 = vld [vmem:[%s143 + $0x69c] sm:$0xff]
      %v429 = vld [vmem:[%s143 + $0x6a4] sm:$0xff]
      %v430 = vld [vmem:[%s143 + $0x6ac] sm:$0xff]
      %v431 = vld [vmem:[%s143 + $0x6b4] sm:$0xff]
      %v432 = vld [vmem:[%s143 + $0x6bc] sm:$0xf]
      %v433 = vld [vmem:[%s143 + $0x6c0] sm:$0xff]
      %v434 = vld [vmem:[%s143 + $0x6c8] sm:$0xff]
      %v435 = vld [vmem:[%s143 + $0x6d0] sm:$0xff]
      %v436 = vld [vmem:[%s143 + $0x6d8] sm:$0xff]
      %v437 = vld [vmem:[%s143 + $0x6e0] sm:$0xff]
      %v438 = vld [vmem:[%s143 + $0x6e8] sm:$0xff]
      %v439 = vld [vmem:[%s143 + $0x6f0] sm:$0xff]
      %v440 = vld [vmem:[%s143 + $0x6f8] sm:$0xff]
      %v441 = vld [vmem:[%s143 + $0x700] sm:$0xff]
      %v442 = vld [vmem:[%s143 + $0x708] sm:$0xff]
      %v443 = vld [vmem:[%s143 + $0x710] sm:$0xff]
      %v444 = vld [vmem:[%s143 + $0x718] sm:$0xff]
      %v445 = vld [vmem:[%s143 + $0x720] sm:$0xff]
      %v446 = vld [vmem:[%s143 + $0x728] sm:$0xf]
      %v447 = vld [vmem:[%s143 + $0x72c] sm:$0xff]
      %v448 = vld [vmem:[%s143 + $0x734] sm:$0xff]
      %v449 = vld [vmem:[%s143 + $0x73c] sm:$0xff]
      %v450 = vld [vmem:[%s143 + $0x744] sm:$0xff]
      %v451 = vld [vmem:[%s143 + $0x74c] sm:$0xff]
      %v452 = vld [vmem:[%s143 + $0x754] sm:$0xff]
      %v453 = vld [vmem:[%s143 + $0x75c] sm:$0xff]
      %v454 = vld [vmem:[%s143 + $0x764] sm:$0xff]
      %v455 = vld [vmem:[%s143 + $0x76c] sm:$0xff]
      %v456 = vld [vmem:[%s143 + $0x774] sm:$0xff]
      %v457 = vld [vmem:[%s143 + $0x77c] sm:$0xff]
      %v458 = vld [vmem:[%s143 + $0x784] sm:$0xff]
      %v459 = vld [vmem:[%s143 + $0x78c] sm:$0xff]
      %v460 = vld [vmem:[%s143 + $0x794] sm:$0xf]
      %v461 = vld [vmem:[%s143 + $0x798] sm:$0xff]
      %v462 = vld [vmem:[%s143 + $0x7a0] sm:$0xff]
      %v463 = vld [vmem:[%s143 + $0x7a8] sm:$0xff]
      %v464 = vld [vmem:[%s143 + $0x7b0] sm:$0xff]
      %v465 = vld [vmem:[%s143 + $0x7b8] sm:$0xff]
      %v466 = vld [vmem:[%s143 + $0x7c0] sm:$0xff]
      %v467 = vld [vmem:[%s143 + $0x7c8] sm:$0xff]
      %v468 = vld [vmem:[%s143 + $0x7d0] sm:$0xff]
      %v469 = vld [vmem:[%s143 + $0x7d8] sm:$0xff]
      %v470 = vld [vmem:[%s143 + $0x7e0] sm:$0xff]
      %v471 = vld [vmem:[%s143 + $0x7e8] sm:$0xff]
      %v472 = vld [vmem:[%s143 + $0x7f0] sm:$0xff]
      %v473 = vld [vmem:[%s143 + $0x7f8] sm:$0xff]
      %v474 = vld [vmem:[%s143 + $0x800] sm:$0xf]
      %v475 = vld [vmem:[%s143 + $0x804] sm:$0xff]
      %v476 = vld [vmem:[%s143 + $0x80c] sm:$0xff]
      %v477 = vld [vmem:[%s143 + $0x814] sm:$0xff]
      %v478 = vld [vmem:[%s143 + $0x81c] sm:$0xff]
      %v479 = vld [vmem:[%s143 + $0x824] sm:$0xff]
      %v480 = vld [vmem:[%s143 + $0x82c] sm:$0xff]
      %v481 = vld [vmem:[%s143 + $0x834] sm:$0xff]
      %v482 = vld [vmem:[%s143 + $0x83c] sm:$0xff]
      %v483 = vld [vmem:[%s143 + $0x844] sm:$0xff]
      %v484 = vld [vmem:[%s143 + $0x84c] sm:$0xff]
      %v485 = vld [vmem:[%s143 + $0x854] sm:$0xff]
      %v486 = vld [vmem:[%s143 + $0x85c] sm:$0xff]
      %v487 = vld [vmem:[%s143 + $0x864] sm:$0xff]
      %v488 = vld [vmem:[%s143 + $0x86c] sm:$0xf]
      %v489 = vld [vmem:[%s143 + $0x870] sm:$0xff]
      %v490 = vld [vmem:[%s143 + $0x878] sm:$0xff]
      %v491 = vld [vmem:[%s143 + $0x880] sm:$0xff]
      %v492 = vld [vmem:[%s143 + $0x888] sm:$0xff]
      %v493 = vld [vmem:[%s143 + $0x890] sm:$0xff]
      %v494 = vld [vmem:[%s143 + $0x898] sm:$0xff]
      %v495 = vld [vmem:[%s143 + $0x8a0] sm:$0xff]
      %v496 = vld [vmem:[%s143 + $0x8a8] sm:$0xff]
      %v497 = vld [vmem:[%s143 + $0x8b0] sm:$0xff]
      %v498 = vld [vmem:[%s143 + $0x8b8] sm:$0xff]
      %v499 = vld [vmem:[%s143 + $0x8c0] sm:$0xff]
      %v500 = vld [vmem:[%s143 + $0x8c8] sm:$0xff]
      %v501 = vld [vmem:[%s143 + $0x8d0] sm:$0xff]
      %v502 = vld [vmem:[%s143 + $0x8d8] sm:$0xf]
      %v503 = vld [vmem:[%s143 + $0x8dc] sm:$0xff]
      %v504 = vld [vmem:[%s143 + $0x8e4] sm:$0xff]
      %v505 = vld [vmem:[%s143 + $0x8ec] sm:$0xff]
      %v506 = vld [vmem:[%s143 + $0x8f4] sm:$0xff]
      %v507 = vld [vmem:[%s143 + $0x8fc] sm:$0xff]
      %v508 = vld [vmem:[%s143 + $0x904] sm:$0xff]
      %v509 = vld [vmem:[%s143 + $0x90c] sm:$0xff]
      %v510 = vld [vmem:[%s143 + $0x914] sm:$0xff]
      %v511 = vld [vmem:[%s143 + $0x91c] sm:$0xff]
      %v512 = vld [vmem:[%s143 + $0x924] sm:$0xff]
      %v513 = vld [vmem:[%s143 + $0x92c] sm:$0xff]
      %v514 = vld [vmem:[%s143 + $0x934] sm:$0xff]
      %v515 = vld [vmem:[%s143 + $0x93c] sm:$0xff]
      %v516 = vld [vmem:[%s143 + $0x944] sm:$0xf]
      %v517 = vld [vmem:[%s143 + $0x948] sm:$0xff]
      %v518 = vld [vmem:[%s143 + $0x950] sm:$0xff]
      %v519 = vld [vmem:[%s143 + $0x958] sm:$0xff]
      %v520 = vld [vmem:[%s143 + $0x960] sm:$0xff]
      %v521 = vld [vmem:[%s143 + $0x968] sm:$0xff]
      %v522 = vld [vmem:[%s143 + $0x970] sm:$0xff]
      %v523 = vld [vmem:[%s143 + $0x978] sm:$0xff]
      %v524 = vld [vmem:[%s143 + $0x980] sm:$0xff]
      %v525 = vld [vmem:[%s143 + $0x988] sm:$0xff]
      %v526 = vld [vmem:[%s143 + $0x990] sm:$0xff]
      %v527 = vld [vmem:[%s143 + $0x998] sm:$0xff]
      %v528 = vld [vmem:[%s143 + $0x9a0] sm:$0xff]
      %v529 = vld [vmem:[%s143 + $0x9a8] sm:$0xff]
      %v530 = vld [vmem:[%s143 + $0x9b0] sm:$0xf]
      %v531 = vld [vmem:[%s143 + $0x9b4] sm:$0xff]
      %v532 = vld [vmem:[%s143 + $0x9bc] sm:$0xff]
      %v533 = vld [vmem:[%s143 + $0x9c4] sm:$0xff]
      %v534 = vld [vmem:[%s143 + $0x9cc] sm:$0xff]
      %v535 = vld [vmem:[%s143 + $0x9d4] sm:$0xff]
      %v536 = vld [vmem:[%s143 + $0x9dc] sm:$0xff]
      %v537 = vld [vmem:[%s143 + $0x9e4] sm:$0xff]
      %v538 = vld [vmem:[%s143 + $0x9ec] sm:$0xff]
      %v539 = vld [vmem:[%s143 + $0x9f4] sm:$0xff]
      %v540 = vld [vmem:[%s143 + $0x9fc] sm:$0xff]
      %v541 = vld [vmem:[%s143 + $0xa04] sm:$0xff]
      %v542 = vld [vmem:[%s143 + $0xa0c] sm:$0xff]
      %v543 = vld [vmem:[%s143 + $0xa14] sm:$0xff]
      %v544 = vld [vmem:[%s143 + $0xa1c] sm:$0xf]
      %v545 = vld [vmem:[%s143 + $0xa20] sm:$0xff]
      %v546 = vld [vmem:[%s143 + $0xa28] sm:$0xff]
      %v547 = vld [vmem:[%s143 + $0xa30] sm:$0xff]
      %v548 = vld [vmem:[%s143 + $0xa38] sm:$0xff]
      %v549 = vld [vmem:[%s143 + $0xa40] sm:$0xff]
      %v550 = vld [vmem:[%s143 + $0xa48] sm:$0xff]
      %v551 = vld [vmem:[%s143 + $0xa50] sm:$0xff]
      %v552 = vld [vmem:[%s143 + $0xa58] sm:$0xff]
      %v553 = vld [vmem:[%s143 + $0xa60] sm:$0xff]
      %v554 = vld [vmem:[%s143 + $0xa68] sm:$0xff]
      %v555 = vld [vmem:[%s143 + $0xa70] sm:$0xff]
      %v556 = vld [vmem:[%s143 + $0xa78] sm:$0xff]
      %v557 = vld [vmem:[%s143 + $0xa80] sm:$0xff]
      %v558 = vld [vmem:[%s143 + $0xa88] sm:$0xf]
      %v559 = vld [vmem:[%s143 + $0xa8c] sm:$0xff]
      %v560 = vld [vmem:[%s143 + $0xa94] sm:$0xff]
      %v561 = vld [vmem:[%s143 + $0xa9c] sm:$0xff]
      %v562 = vld [vmem:[%s143 + $0xaa4] sm:$0xff]
      %v563 = vld [vmem:[%s143 + $0xaac] sm:$0xff]
      %v564 = vld [vmem:[%s143 + $0xab4] sm:$0xff]
      %v565 = vld [vmem:[%s143 + $0xabc] sm:$0xff]
      %v566 = vld [vmem:[%s143 + $0xac4] sm:$0xff]
      %v567 = vld [vmem:[%s143 + $0xacc] sm:$0xff]
      %v568 = vld [vmem:[%s143 + $0xad4] sm:$0xff]
      %v569 = vld [vmem:[%s143 + $0xadc] sm:$0xff]
      %v570 = vld [vmem:[%s143 + $0xae4] sm:$0xff]
      %v571 = vld [vmem:[%s143 + $0xaec] sm:$0xff]
      %v572 = vld [vmem:[%s143 + $0xaf4] sm:$0xf]
      %v573 = vld [vmem:[%s143 + $0xaf8] sm:$0xff]
      %v574 = vld [vmem:[%s143 + $0xb00] sm:$0xff]
      %v575 = vld [vmem:[%s143 + $0xb08] sm:$0xff]
      %v576 = vld [vmem:[%s143 + $0xb10] sm:$0xff]
      %v577 = vld [vmem:[%s143 + $0xb18] sm:$0xff]
      %v578 = vld [vmem:[%s143 + $0xb20] sm:$0xff]
      %v579 = vld [vmem:[%s143 + $0xb28] sm:$0xff]
      %v580 = vld [vmem:[%s143 + $0xb30] sm:$0xff]
      %v581 = vld [vmem:[%s143 + $0xb38] sm:$0xff]
      %v582 = vld [vmem:[%s143 + $0xb40] sm:$0xff]
      %v583 = vld [vmem:[%s143 + $0xb48] sm:$0xff]
      %v584 = vld [vmem:[%s143 + $0xb50] sm:$0xff]
      %v585 = vld [vmem:[%s143 + $0xb58] sm:$0xff]
      %v586 = vld [vmem:[%s143 + $0xb60] sm:$0xf]
      %v587 = vld [vmem:[%s143 + $0xb64] sm:$0xff]
      %v588 = vld [vmem:[%s143 + $0xb6c] sm:$0xff]
      %v589 = vld [vmem:[%s143 + $0xb74] sm:$0xff]
      %v590 = vld [vmem:[%s143 + $0xb7c] sm:$0xff]
      %v591 = vld [vmem:[%s143 + $0xb84] sm:$0xff]
      %v592 = vld [vmem:[%s143 + $0xb8c] sm:$0xff]
      %v593 = vld [vmem:[%s143 + $0xb94] sm:$0xff]
      %v594 = vld [vmem:[%s143 + $0xb9c] sm:$0xff]
      %v595 = vld [vmem:[%s143 + $0xba4] sm:$0xff]
      %v596 = vld [vmem:[%s143 + $0xbac] sm:$0xff]
      %v597 = vld [vmem:[%s143 + $0xbb4] sm:$0xff]
      %v598 = vld [vmem:[%s143 + $0xbbc] sm:$0xff]
      %v599 = vld [vmem:[%s143 + $0xbc4] sm:$0xff]
      %v600 = vld [vmem:[%s143 + $0xbcc] sm:$0xf]
      %v601 = vld [vmem:[%s143 + $0xbd0] sm:$0xff]
      %v602 = vld [vmem:[%s143 + $0xbd8] sm:$0xff]
      %v603 = vld [vmem:[%s143 + $0xbe0] sm:$0xff]
      %v604 = vld [vmem:[%s143 + $0xbe8] sm:$0xff]
      %v605 = vld [vmem:[%s143 + $0xbf0] sm:$0xff]
      %v606 = vld [vmem:[%s143 + $0xbf8] sm:$0xff]
      %v607 = vld [vmem:[%s143 + $0xc00] sm:$0xff]
      %v608 = vld [vmem:[%s143 + $0xc08] sm:$0xff]
      %v609 = vld [vmem:[%s143 + $0xc10] sm:$0xff]
      %v610 = vld [vmem:[%s143 + $0xc18] sm:$0xff]
      %v611 = vld [vmem:[%s143 + $0xc20] sm:$0xff]
      %v612 = vld [vmem:[%s143 + $0xc28] sm:$0xff]
      %v613 = vld [vmem:[%s143 + $0xc30] sm:$0xff]
      %v614 = vld [vmem:[%s143 + $0xc38] sm:$0xf]
      %v615 = vld [vmem:[%s143 + $0xc3c] sm:$0xff]
      %v616 = vld [vmem:[%s143 + $0xc44] sm:$0xff]
      %v617 = vld [vmem:[%s143 + $0xc4c] sm:$0xff]
      %v618 = vld [vmem:[%s143 + $0xc54] sm:$0xff]
      %v619 = vld [vmem:[%s143 + $0xc5c] sm:$0xff]
      %v620 = vld [vmem:[%s143 + $0xc64] sm:$0xff]
      %v621 = vld [vmem:[%s143 + $0xc6c] sm:$0xff]
      %v622 = vld [vmem:[%s143 + $0xc74] sm:$0xff]
      %v623 = vld [vmem:[%s143 + $0xc7c] sm:$0xff]
      %v624 = vld [vmem:[%s143 + $0xc84] sm:$0xff]
      %v625 = vld [vmem:[%s143 + $0xc8c] sm:$0xff]
      %v626 = vld [vmem:[%s143 + $0xc94] sm:$0xff]
      %v627 = vld [vmem:[%s143 + $0xc9c] sm:$0xff]
      %v628 = vld [vmem:[%s143 + $0xca4] sm:$0xf]
      %v629 = vld [vmem:[%s143 + $0xca8] sm:$0xff]
      %v630 = vld [vmem:[%s143 + $0xcb0] sm:$0xff]
      %v631 = vld [vmem:[%s143 + $0xcb8] sm:$0xff]
      %v632 = vld [vmem:[%s143 + $0xcc0] sm:$0xff]
      %v633 = vld [vmem:[%s143 + $0xcc8] sm:$0xff]
      %v634 = vld [vmem:[%s143 + $0xcd0] sm:$0xff]
      %v635 = vld [vmem:[%s143 + $0xcd8] sm:$0xff]
      %v636 = vld [vmem:[%s143 + $0xce0] sm:$0xff]
      %v637 = vld [vmem:[%s143 + $0xce8] sm:$0xff]
      %v638 = vld [vmem:[%s143 + $0xcf0] sm:$0xff]
      %v639 = vld [vmem:[%s143 + $0xcf8] sm:$0xff]
      %v640 = vld [vmem:[%s143 + $0xd00] sm:$0xff]
      %v641 = vld [vmem:[%s143 + $0xd08] sm:$0xff]
      %v642 = vld [vmem:[%s143 + $0xd10] sm:$0xf]
      %v643 = vld [vmem:[%s143 + $0xd14] sm:$0xff]
      %v644 = vld [vmem:[%s143 + $0xd1c] sm:$0xff]
      %v645 = vld [vmem:[%s143 + $0xd24] sm:$0xff]
      %v646 = vld [vmem:[%s143 + $0xd2c] sm:$0xff]
      %v647 = vld [vmem:[%s143 + $0xd34] sm:$0xff]
      %v648 = vld [vmem:[%s143 + $0xd3c] sm:$0xff]
      %v649 = vld [vmem:[%s143 + $0xd44] sm:$0xff]
      %v650 = vld [vmem:[%s143 + $0xd4c] sm:$0xff]
      %v651 = vld [vmem:[%s143 + $0xd54] sm:$0xff]
      %v652 = vld [vmem:[%s143 + $0xd5c] sm:$0xff]
      %v653 = vld [vmem:[%s143 + $0xd64] sm:$0xff]
      %v654 = vld [vmem:[%s143 + $0xd6c] sm:$0xff]
      %v655 = vld [vmem:[%s143 + $0xd74] sm:$0xff]
      %v656 = vld [vmem:[%s143 + $0xd7c] sm:$0xf]
      %v658 = vunpack.c.l.b16 %v208
      %v659 = vunpack.c.h.b16 %v208
      %v660 = vpack.c.b16 %v658, %v658
      %v661 = vpack.c.b16 %v659, %v659
      %v1112 = vunpack.c.l.b16 %v209
      %v1113 = vunpack.c.h.b16 %v209
      %v1114 = vunpack.c.l.b16 %v210
      %v1115 = vunpack.c.h.b16 %v210
      %v1116 = vunpack.c.l.b16 %v211
      %v1117 = vunpack.c.h.b16 %v211
      %v1118 = vunpack.c.l.b16 %v212
      %v1119 = vunpack.c.h.b16 %v212
      %v1120 = vunpack.c.l.b16 %v213
      %v1121 = vunpack.c.h.b16 %v213
      %v1122 = vunpack.c.l.b16 %v214
      %v1123 = vunpack.c.h.b16 %v214
      %v1124 = vunpack.c.l.b16 %v215
      %v1125 = vunpack.c.h.b16 %v215
      %v1126 = vunpack.c.l.b16 %v216
      %v1127 = vunpack.c.h.b16 %v216
      %v1128 = vunpack.c.l.b16 %v217
      %v1129 = vunpack.c.h.b16 %v217
      %v1130 = vunpack.c.l.b16 %v218
      %v1131 = vunpack.c.h.b16 %v218
      %v1132 = vunpack.c.l.b16 %v219
      %v1133 = vunpack.c.h.b16 %v219
      %v1134 = vunpack.c.l.b16 %v220
      %v1135 = vunpack.c.h.b16 %v220
      %v1136 = vunpack.c.l.b16 %v221
      %v1137 = vunpack.c.h.b16 %v221
      %v1138 = vunpack.c.l.b16 %v222
      %v1139 = vunpack.c.l.b16 %v223
      %v1140 = vunpack.c.h.b16 %v223
      %v1141 = vunpack.c.l.b16 %v224
      %v1142 = vunpack.c.h.b16 %v224
      %v1143 = vunpack.c.l.b16 %v225
      %v1144 = vunpack.c.h.b16 %v225
      %v1145 = vunpack.c.l.b16 %v226
      %v1146 = vunpack.c.h.b16 %v226
      %v1147 = vunpack.c.l.b16 %v227
      %v1148 = vunpack.c.h.b16 %v227
      %v1149 = vunpack.c.l.b16 %v228
      %v1150 = vunpack.c.h.b16 %v228
      %v1151 = vunpack.c.l.b16 %v229
      %v1152 = vunpack.c.h.b16 %v229
      %v1153 = vunpack.c.l.b16 %v230
      %v1154 = vunpack.c.h.b16 %v230
      %v1155 = vunpack.c.l.b16 %v231
      %v1156 = vunpack.c.h.b16 %v231
      %v1157 = vunpack.c.l.b16 %v232
      %v1158 = vunpack.c.h.b16 %v232
      %v1159 = vunpack.c.l.b16 %v233
      %v1160 = vunpack.c.h.b16 %v233
      %v1161 = vunpack.c.l.b16 %v234
      %v1162 = vunpack.c.h.b16 %v234
      %v1163 = vunpack.c.l.b16 %v235
      %v1164 = vunpack.c.h.b16 %v235
      %v1165 = vunpack.c.l.b16 %v236
      %v1166 = vunpack.c.l.b16 %v237
      %v1167 = vunpack.c.h.b16 %v237
      %v1168 = vunpack.c.l.b16 %v238
      %v1169 = vunpack.c.h.b16 %v238
      %v1170 = vunpack.c.l.b16 %v239
      %v1171 = vunpack.c.h.b16 %v239
      %v1172 = vunpack.c.l.b16 %v240
      %v1173 = vunpack.c.h.b16 %v240
      %v1174 = vunpack.c.l.b16 %v241
      %v1175 = vunpack.c.h.b16 %v241
      %v1176 = vunpack.c.l.b16 %v242
      %v1177 = vunpack.c.h.b16 %v242
      %v1178 = vunpack.c.l.b16 %v243
      %v1179 = vunpack.c.h.b16 %v243
      %v1180 = vunpack.c.l.b16 %v244
      %v1181 = vunpack.c.h.b16 %v244
      %v1182 = vunpack.c.l.b16 %v245
      %v1183 = vunpack.c.h.b16 %v245
      %v1184 = vunpack.c.l.b16 %v246
      %v1185 = vunpack.c.h.b16 %v246
      %v1186 = vunpack.c.l.b16 %v247
      %v1187 = vunpack.c.h.b16 %v247
      %v1188 = vunpack.c.l.b16 %v248
      %v1189 = vunpack.c.h.b16 %v248
      %v1190 = vunpack.c.l.b16 %v249
      %v1191 = vunpack.c.h.b16 %v249
      %v1192 = vunpack.c.l.b16 %v250
      %v1193 = vunpack.c.l.b16 %v251
      %v1194 = vunpack.c.h.b16 %v251
      %v1195 = vunpack.c.l.b16 %v252
      %v1196 = vunpack.c.h.b16 %v252
      %v1197 = vunpack.c.l.b16 %v253
      %v1198 = vunpack.c.h.b16 %v253
      %v1199 = vunpack.c.l.b16 %v254
      %v1200 = vunpack.c.h.b16 %v254
      %v1201 = vunpack.c.l.b16 %v255
      %v1202 = vunpack.c.h.b16 %v255
      %v1203 = vunpack.c.l.b16 %v256
      %v1204 = vunpack.c.h.b16 %v256
      %v1205 = vunpack.c.l.b16 %v257
      %v1206 = vunpack.c.h.b16 %v257
      %v1207 = vunpack.c.l.b16 %v258
      %v1208 = vunpack.c.h.b16 %v258
      %v1209 = vunpack.c.l.b16 %v259
      %v1210 = vunpack.c.h.b16 %v259
      %v1211 = vunpack.c.l.b16 %v260
      %v1212 = vunpack.c.h.b16 %v260
      %v1213 = vunpack.c.l.b16 %v261
      %v1214 = vunpack.c.h.b16 %v261
      %v1215 = vunpack.c.l.b16 %v262
      %v1216 = vunpack.c.h.b16 %v262
      %v1217 = vunpack.c.l.b16 %v263
      %v1218 = vunpack.c.h.b16 %v263
      %v1219 = vunpack.c.l.b16 %v264
      %v1220 = vunpack.c.l.b16 %v265
      %v1221 = vunpack.c.h.b16 %v265
      %v1222 = vunpack.c.l.b16 %v266
      %v1223 = vunpack.c.h.b16 %v266
      %v1224 = vunpack.c.l.b16 %v267
      %v1225 = vunpack.c.h.b16 %v267
      %v1226 = vunpack.c.l.b16 %v268
      %v1227 = vunpack.c.h.b16 %v268
      %v1228 = vunpack.c.l.b16 %v269
      %v1229 = vunpack.c.h.b16 %v269
      %v1230 = vunpack.c.l.b16 %v270
      %v1231 = vunpack.c.h.b16 %v270
      %v1232 = vunpack.c.l.b16 %v271
      %v1233 = vunpack.c.h.b16 %v271
      %v1234 = vunpack.c.l.b16 %v272
      %v1235 = vunpack.c.h.b16 %v272
      %v1236 = vunpack.c.l.b16 %v273
      %v1237 = vunpack.c.h.b16 %v273
      %v1238 = vunpack.c.l.b16 %v274
      %v1239 = vunpack.c.h.b16 %v274
      %v1240 = vunpack.c.l.b16 %v275
      %v1241 = vunpack.c.h.b16 %v275
      %v1242 = vunpack.c.l.b16 %v276
      %v1243 = vunpack.c.h.b16 %v276
      %v1244 = vunpack.c.l.b16 %v277
      %v1245 = vunpack.c.h.b16 %v277
      %v1246 = vunpack.c.l.b16 %v278
      %v1247 = vunpack.c.l.b16 %v279
      %v1248 = vunpack.c.h.b16 %v279
      %v1249 = vunpack.c.l.b16 %v280
      %v1250 = vunpack.c.h.b16 %v280
      %v1251 = vunpack.c.l.b16 %v281
      %v1252 = vunpack.c.h.b16 %v281
      %v1253 = vunpack.c.l.b16 %v282
      %v1254 = vunpack.c.h.b16 %v282
      %v1255 = vunpack.c.l.b16 %v283
      %v1256 = vunpack.c.h.b16 %v283
      %v1257 = vunpack.c.l.b16 %v284
      %v1258 = vunpack.c.h.b16 %v284
      %v1259 = vunpack.c.l.b16 %v285
      %v1260 = vunpack.c.h.b16 %v285
      %v1261 = vunpack.c.l.b16 %v286
      %v1262 = vunpack.c.h.b16 %v286
      %v1263 = vunpack.c.l.b16 %v287
      %v1264 = vunpack.c.h.b16 %v287
      %v1265 = vunpack.c.l.b16 %v288
      %v1266 = vunpack.c.h.b16 %v288
      %v1267 = vunpack.c.l.b16 %v289
      %v1268 = vunpack.c.h.b16 %v289
      %v1269 = vunpack.c.l.b16 %v290
      %v1270 = vunpack.c.h.b16 %v290
      %v1271 = vunpack.c.l.b16 %v291
      %v1272 = vunpack.c.h.b16 %v291
      %v1273 = vunpack.c.l.b16 %v292
      %v1274 = vunpack.c.l.b16 %v293
      %v1275 = vunpack.c.h.b16 %v293
      %v1276 = vunpack.c.l.b16 %v294
      %v1277 = vunpack.c.h.b16 %v294
      %v1278 = vunpack.c.l.b16 %v295
      %v1279 = vunpack.c.h.b16 %v295
      %v1280 = vunpack.c.l.b16 %v296
      %v1281 = vunpack.c.h.b16 %v296
      %v1282 = vunpack.c.l.b16 %v297
      %v1283 = vunpack.c.h.b16 %v297
      %v1284 = vunpack.c.l.b16 %v298
      %v1285 = vunpack.c.h.b16 %v298
      %v1286 = vunpack.c.l.b16 %v299
      %v1287 = vunpack.c.h.b16 %v299
      %v1288 = vunpack.c.l.b16 %v300
      %v1289 = vunpack.c.h.b16 %v300
      %v1290 = vunpack.c.l.b16 %v301
      %v1291 = vunpack.c.h.b16 %v301
      %v1292 = vunpack.c.l.b16 %v302
      %v1293 = vunpack.c.h.b16 %v302
      %v1294 = vunpack.c.l.b16 %v303
      %v1295 = vunpack.c.h.b16 %v303
      %v1296 = vunpack.c.l.b16 %v304
      %v1297 = vunpack.c.h.b16 %v304
      %v1298 = vunpack.c.l.b16 %v305
      %v1299 = vunpack.c.h.b16 %v305
      %v1300 = vunpack.c.l.b16 %v306
      %v1301 = vunpack.c.l.b16 %v307
      %v1302 = vunpack.c.h.b16 %v307
      %v1303 = vunpack.c.l.b16 %v308
      %v1304 = vunpack.c.h.b16 %v308
      %v1305 = vunpack.c.l.b16 %v309
      %v1306 = vunpack.c.h.b16 %v309
      %v1307 = vunpack.c.l.b16 %v310
      %v1308 = vunpack.c.h.b16 %v310
      %v1309 = vunpack.c.l.b16 %v311
      %v1310 = vunpack.c.h.b16 %v311
      %v1311 = vunpack.c.l.b16 %v312
      %v1312 = vunpack.c.h.b16 %v312
      %v1313 = vunpack.c.l.b16 %v313
      %v1314 = vunpack.c.h.b16 %v313
      %v1315 = vunpack.c.l.b16 %v314
      %v1316 = vunpack.c.h.b16 %v314
      %v1317 = vunpack.c.l.b16 %v315
      %v1318 = vunpack.c.h.b16 %v315
      %v1319 = vunpack.c.l.b16 %v316
      %v1320 = vunpack.c.h.b16 %v316
      %v1321 = vunpack.c.l.b16 %v317
      %v1322 = vunpack.c.h.b16 %v317
      %v1323 = vunpack.c.l.b16 %v318
      %v1324 = vunpack.c.h.b16 %v318
      %v1325 = vunpack.c.l.b16 %v319
      %v1326 = vunpack.c.h.b16 %v319
      %v1327 = vunpack.c.l.b16 %v320
      %v1328 = vunpack.c.l.b16 %v321
      %v1329 = vunpack.c.h.b16 %v321
      %v1330 = vunpack.c.l.b16 %v322
      %v1331 = vunpack.c.h.b16 %v322
      %v1332 = vunpack.c.l.b16 %v323
      %v1333 = vunpack.c.h.b16 %v323
      %v1334 = vunpack.c.l.b16 %v324
      %v1335 = vunpack.c.h.b16 %v324
      %v1336 = vunpack.c.l.b16 %v325
      %v1337 = vunpack.c.h.b16 %v325
      %v1338 = vunpack.c.l.b16 %v326
      %v1339 = vunpack.c.h.b16 %v326
      %v1340 = vunpack.c.l.b16 %v327
      %v1341 = vunpack.c.h.b16 %v327
      %v1342 = vunpack.c.l.b16 %v328
      %v1343 = vunpack.c.h.b16 %v328
      %v1344 = vunpack.c.l.b16 %v329
      %v1345 = vunpack.c.h.b16 %v329
      %v1346 = vunpack.c.l.b16 %v330
      %v1347 = vunpack.c.h.b16 %v330
      %v1348 = vunpack.c.l.b16 %v331
      %v1349 = vunpack.c.h.b16 %v331
      %v1350 = vunpack.c.l.b16 %v332
      %v1351 = vunpack.c.h.b16 %v332
      %v1352 = vunpack.c.l.b16 %v333
      %v1353 = vunpack.c.h.b16 %v333
      %v1354 = vunpack.c.l.b16 %v334
      %v1355 = vunpack.c.l.b16 %v335
      %v1356 = vunpack.c.h.b16 %v335
      %v1357 = vunpack.c.l.b16 %v336
      %v1358 = vunpack.c.h.b16 %v336
      %v1359 = vunpack.c.l.b16 %v337
      %v1360 = vunpack.c.h.b16 %v337
      %v1361 = vunpack.c.l.b16 %v338
      %v1362 = vunpack.c.h.b16 %v338
      %v1363 = vunpack.c.l.b16 %v339
      %v1364 = vunpack.c.h.b16 %v339
      %v1365 = vunpack.c.l.b16 %v340
      %v1366 = vunpack.c.h.b16 %v340
      %v1367 = vunpack.c.l.b16 %v341
      %v1368 = vunpack.c.h.b16 %v341
      %v1369 = vunpack.c.l.b16 %v342
      %v1370 = vunpack.c.h.b16 %v342
      %v1371 = vunpack.c.l.b16 %v343
      %v1372 = vunpack.c.h.b16 %v343
      %v1373 = vunpack.c.l.b16 %v344
      %v1374 = vunpack.c.h.b16 %v344
      %v1375 = vunpack.c.l.b16 %v345
      %v1376 = vunpack.c.h.b16 %v345
      %v1377 = vunpack.c.l.b16 %v346
      %v1378 = vunpack.c.h.b16 %v346
      %v1379 = vunpack.c.l.b16 %v347
      %v1380 = vunpack.c.h.b16 %v347
      %v1381 = vunpack.c.l.b16 %v348
      %v1382 = vunpack.c.l.b16 %v349
      %v1383 = vunpack.c.h.b16 %v349
      %v1384 = vunpack.c.l.b16 %v350
      %v1385 = vunpack.c.h.b16 %v350
      %v1386 = vunpack.c.l.b16 %v351
      %v1387 = vunpack.c.h.b16 %v351
      %v1388 = vunpack.c.l.b16 %v352
      %v1389 = vunpack.c.h.b16 %v352
      %v1390 = vunpack.c.l.b16 %v353
      %v1391 = vunpack.c.h.b16 %v353
      %v1392 = vunpack.c.l.b16 %v354
      %v1393 = vunpack.c.h.b16 %v354
      %v1394 = vunpack.c.l.b16 %v355
      %v1395 = vunpack.c.h.b16 %v355
      %v1396 = vunpack.c.l.b16 %v356
      %v1397 = vunpack.c.h.b16 %v356
      %v1398 = vunpack.c.l.b16 %v357
      %v1399 = vunpack.c.h.b16 %v357
      %v1400 = vunpack.c.l.b16 %v358
      %v1401 = vunpack.c.h.b16 %v358
      %v1402 = vunpack.c.l.b16 %v359
      %v1403 = vunpack.c.h.b16 %v359
      %v1404 = vunpack.c.l.b16 %v360
      %v1405 = vunpack.c.h.b16 %v360
      %v1406 = vunpack.c.l.b16 %v361
      %v1407 = vunpack.c.h.b16 %v361
      %v1408 = vunpack.c.l.b16 %v362
      %v1409 = vunpack.c.l.b16 %v363
      %v1410 = vunpack.c.h.b16 %v363
      %v1411 = vunpack.c.l.b16 %v364
      %v1412 = vunpack.c.h.b16 %v364
      %v1413 = vunpack.c.l.b16 %v365
      %v1414 = vunpack.c.h.b16 %v365
      %v1415 = vunpack.c.l.b16 %v366
      %v1416 = vunpack.c.h.b16 %v366
      %v1417 = vunpack.c.l.b16 %v367
      %v1418 = vunpack.c.h.b16 %v367
      %v1419 = vunpack.c.l.b16 %v368
      %v1420 = vunpack.c.h.b16 %v368
      %v1421 = vunpack.c.l.b16 %v369
      %v1422 = vunpack.c.h.b16 %v369
      %v1423 = vunpack.c.l.b16 %v370
      %v1424 = vunpack.c.h.b16 %v370
      %v1425 = vunpack.c.l.b16 %v371
      %v1426 = vunpack.c.h.b16 %v371
      %v1427 = vunpack.c.l.b16 %v372
      %v1428 = vunpack.c.h.b16 %v372
      %v1429 = vunpack.c.l.b16 %v373
      %v1430 = vunpack.c.h.b16 %v373
      %v1431 = vunpack.c.l.b16 %v374
      %v1432 = vunpack.c.h.b16 %v374
      %v1433 = vunpack.c.l.b16 %v375
      %v1434 = vunpack.c.h.b16 %v375
      %v1435 = vunpack.c.l.b16 %v376
      %v1436 = vunpack.c.l.b16 %v377
      %v1437 = vunpack.c.h.b16 %v377
      %v1438 = vunpack.c.l.b16 %v378
      %v1439 = vunpack.c.h.b16 %v378
      %v1440 = vunpack.c.l.b16 %v379
      %v1441 = vunpack.c.h.b16 %v379
      %v1442 = vunpack.c.l.b16 %v380
      %v1443 = vunpack.c.h.b16 %v380
      %v1444 = vunpack.c.l.b16 %v381
      %v1445 = vunpack.c.h.b16 %v381
      %v1446 = vunpack.c.l.b16 %v382
      %v1447 = vunpack.c.h.b16 %v382
      %v1448 = vunpack.c.l.b16 %v383
      %v1449 = vunpack.c.h.b16 %v383
      %v1450 = vunpack.c.l.b16 %v384
      %v1451 = vunpack.c.h.b16 %v384
      %v1452 = vunpack.c.l.b16 %v385
      %v1453 = vunpack.c.h.b16 %v385
      %v1454 = vunpack.c.l.b16 %v386
      %v1455 = vunpack.c.h.b16 %v386
      %v1456 = vunpack.c.l.b16 %v387
      %v1457 = vunpack.c.h.b16 %v387
      %v1458 = vunpack.c.l.b16 %v388
      %v1459 = vunpack.c.h.b16 %v388
      %v1460 = vunpack.c.l.b16 %v389
      %v1461 = vunpack.c.h.b16 %v389
      %v1462 = vunpack.c.l.b16 %v390
      %v1463 = vunpack.c.l.b16 %v391
      %v1464 = vunpack.c.h.b16 %v391
      %v1465 = vunpack.c.l.b16 %v392
      %v1466 = vunpack.c.h.b16 %v392
      %v1467 = vunpack.c.l.b16 %v393
      %v1468 = vunpack.c.h.b16 %v393
      %v1469 = vunpack.c.l.b16 %v394
      %v1470 = vunpack.c.h.b16 %v394
      %v1471 = vunpack.c.l.b16 %v395
      %v1472 = vunpack.c.h.b16 %v395
      %v1473 = vunpack.c.l.b16 %v396
      %v1474 = vunpack.c.h.b16 %v396
      %v1475 = vunpack.c.l.b16 %v397
      %v1476 = vunpack.c.h.b16 %v397
      %v1477 = vunpack.c.l.b16 %v398
      %v1478 = vunpack.c.h.b16 %v398
      %v1479 = vunpack.c.l.b16 %v399
      %v1480 = vunpack.c.h.b16 %v399
      %v1481 = vunpack.c.l.b16 %v400
      %v1482 = vunpack.c.h.b16 %v400
      %v1483 = vunpack.c.l.b16 %v401
      %v1484 = vunpack.c.h.b16 %v401
      %v1485 = vunpack.c.l.b16 %v402
      %v1486 = vunpack.c.h.b16 %v402
      %v1487 = vunpack.c.l.b16 %v403
      %v1488 = vunpack.c.h.b16 %v403
      %v1489 = vunpack.c.l.b16 %v404
      %v1490 = vunpack.c.l.b16 %v405
      %v1491 = vunpack.c.h.b16 %v405
      %v1492 = vunpack.c.l.b16 %v406
      %v1493 = vunpack.c.h.b16 %v406
      %v1494 = vunpack.c.l.b16 %v407
      %v1495 = vunpack.c.h.b16 %v407
      %v1496 = vunpack.c.l.b16 %v408
      %v1497 = vunpack.c.h.b16 %v408
      %v1498 = vunpack.c.l.b16 %v409
      %v1499 = vunpack.c.h.b16 %v409
      %v1500 = vunpack.c.l.b16 %v410
      %v1501 = vunpack.c.h.b16 %v410
      %v1502 = vunpack.c.l.b16 %v411
      %v1503 = vunpack.c.h.b16 %v411
      %v1504 = vunpack.c.l.b16 %v412
      %v1505 = vunpack.c.h.b16 %v412
      %v1506 = vunpack.c.l.b16 %v413
      %v1507 = vunpack.c.h.b16 %v413
      %v1508 = vunpack.c.l.b16 %v414
      %v1509 = vunpack.c.h.b16 %v414
      %v1510 = vunpack.c.l.b16 %v415
      %v1511 = vunpack.c.h.b16 %v415
      %v1512 = vunpack.c.l.b16 %v416
      %v1513 = vunpack.c.h.b16 %v416
      %v1514 = vunpack.c.l.b16 %v417
      %v1515 = vunpack.c.h.b16 %v417
      %v1516 = vunpack.c.l.b16 %v418
      %v1517 = vunpack.c.l.b16 %v419
      %v1518 = vunpack.c.h.b16 %v419
      %v1519 = vunpack.c.l.b16 %v420
      %v1520 = vunpack.c.h.b16 %v420
      %v1521 = vunpack.c.l.b16 %v421
      %v1522 = vunpack.c.h.b16 %v421
      %v1523 = vunpack.c.l.b16 %v422
      %v1524 = vunpack.c.h.b16 %v422
      %v1525 = vunpack.c.l.b16 %v423
      %v1526 = vunpack.c.h.b16 %v423
      %v1527 = vunpack.c.l.b16 %v424
      %v1528 = vunpack.c.h.b16 %v424
      %v1529 = vunpack.c.l.b16 %v425
      %v1530 = vunpack.c.h.b16 %v425
      %v1531 = vunpack.c.l.b16 %v426
      %v1532 = vunpack.c.h.b16 %v426
      %v1533 = vunpack.c.l.b16 %v427
      %v1534 = vunpack.c.h.b16 %v427
      %v1535 = vunpack.c.l.b16 %v428
      %v1536 = vunpack.c.h.b16 %v428
      %v1537 = vunpack.c.l.b16 %v429
      %v1538 = vunpack.c.h.b16 %v429
      %v1539 = vunpack.c.l.b16 %v430
      %v1540 = vunpack.c.h.b16 %v430
      %v1541 = vunpack.c.l.b16 %v431
      %v1542 = vunpack.c.h.b16 %v431
      %v1543 = vunpack.c.l.b16 %v432
      %v1544 = vunpack.c.l.b16 %v433
      %v1545 = vunpack.c.h.b16 %v433
      %v1546 = vunpack.c.l.b16 %v434
      %v1547 = vunpack.c.h.b16 %v434
      %v1548 = vunpack.c.l.b16 %v435
      %v1549 = vunpack.c.h.b16 %v435
      %v1550 = vunpack.c.l.b16 %v436
      %v1551 = vunpack.c.h.b16 %v436
      %v1552 = vunpack.c.l.b16 %v437
      %v1553 = vunpack.c.h.b16 %v437
      %v1554 = vunpack.c.l.b16 %v438
      %v1555 = vunpack.c.h.b16 %v438
      %v1556 = vunpack.c.l.b16 %v439
      %v1557 = vunpack.c.h.b16 %v439
      %v1558 = vunpack.c.l.b16 %v440
      %v1559 = vunpack.c.h.b16 %v440
      %v1560 = vunpack.c.l.b16 %v441
      %v1561 = vunpack.c.h.b16 %v441
      %v1562 = vunpack.c.l.b16 %v442
      %v1563 = vunpack.c.h.b16 %v442
      %v1564 = vunpack.c.l.b16 %v443
      %v1565 = vunpack.c.h.b16 %v443
      %v1566 = vunpack.c.l.b16 %v444
      %v1567 = vunpack.c.h.b16 %v444
      %v1568 = vunpack.c.l.b16 %v445
      %v1569 = vunpack.c.h.b16 %v445
      %v1570 = vunpack.c.l.b16 %v446
      %v1571 = vunpack.c.l.b16 %v447
      %v1572 = vunpack.c.h.b16 %v447
      %v1573 = vunpack.c.l.b16 %v448
      %v1574 = vunpack.c.h.b16 %v448
      %v1575 = vunpack.c.l.b16 %v449
      %v1576 = vunpack.c.h.b16 %v449
      %v1577 = vunpack.c.l.b16 %v450
      %v1578 = vunpack.c.h.b16 %v450
      %v1579 = vunpack.c.l.b16 %v451
      %v1580 = vunpack.c.h.b16 %v451
      %v1581 = vunpack.c.l.b16 %v452
      %v1582 = vunpack.c.h.b16 %v452
      %v1583 = vunpack.c.l.b16 %v453
      %v1584 = vunpack.c.h.b16 %v453
      %v1585 = vunpack.c.l.b16 %v454
      %v1586 = vunpack.c.h.b16 %v454
      %v1587 = vunpack.c.l.b16 %v455
      %v1588 = vunpack.c.h.b16 %v455
      %v1589 = vunpack.c.l.b16 %v456
      %v1590 = vunpack.c.h.b16 %v456
      %v1591 = vunpack.c.l.b16 %v457
      %v1592 = vunpack.c.h.b16 %v457
      %v1593 = vunpack.c.l.b16 %v458
      %v1594 = vunpack.c.h.b16 %v458
      %v1595 = vunpack.c.l.b16 %v459
      %v1596 = vunpack.c.h.b16 %v459
      %v1597 = vunpack.c.l.b16 %v460
      %v1598 = vunpack.c.l.b16 %v461
      %v1599 = vunpack.c.h.b16 %v461
      %v1600 = vunpack.c.l.b16 %v462
      %v1601 = vunpack.c.h.b16 %v462
      %v1602 = vunpack.c.l.b16 %v463
      %v1603 = vunpack.c.h.b16 %v463
      %v1604 = vunpack.c.l.b16 %v464
      %v1605 = vunpack.c.h.b16 %v464
      %v1606 = vunpack.c.l.b16 %v465
      %v1607 = vunpack.c.h.b16 %v465
      %v1608 = vunpack.c.l.b16 %v466
      %v1609 = vunpack.c.h.b16 %v466
      %v1610 = vunpack.c.l.b16 %v467
      %v1611 = vunpack.c.h.b16 %v467
      %v1612 = vunpack.c.l.b16 %v468
      %v1613 = vunpack.c.h.b16 %v468
      %v1614 = vunpack.c.l.b16 %v469
      %v1615 = vunpack.c.h.b16 %v469
      %v1616 = vunpack.c.l.b16 %v470
      %v1617 = vunpack.c.h.b16 %v470
      %v1618 = vunpack.c.l.b16 %v471
      %v1619 = vunpack.c.h.b16 %v471
      %v1620 = vunpack.c.l.b16 %v472
      %v1621 = vunpack.c.h.b16 %v472
      %v1622 = vunpack.c.l.b16 %v473
      %v1623 = vunpack.c.h.b16 %v473
      %v1624 = vunpack.c.l.b16 %v474
      %v1625 = vunpack.c.l.b16 %v475
      %v1626 = vunpack.c.h.b16 %v475
      %v1627 = vunpack.c.l.b16 %v476
      %v1628 = vunpack.c.h.b16 %v476
      %v1629 = vunpack.c.l.b16 %v477
      %v1630 = vunpack.c.h.b16 %v477
      %v1631 = vunpack.c.l.b16 %v478
      %v1632 = vunpack.c.h.b16 %v478
      %v1633 = vunpack.c.l.b16 %v479
      %v1634 = vunpack.c.h.b16 %v479
      %v1635 = vunpack.c.l.b16 %v480
      %v1636 = vunpack.c.h.b16 %v480
      %v1637 = vunpack.c.l.b16 %v481
      %v1638 = vunpack.c.h.b16 %v481
      %v1639 = vunpack.c.l.b16 %v482
      %v1640 = vunpack.c.h.b16 %v482
      %v1641 = vunpack.c.l.b16 %v483
      %v1642 = vunpack.c.h.b16 %v483
      %v1643 = vunpack.c.l.b16 %v484
      %v1644 = vunpack.c.h.b16 %v484
      %v1645 = vunpack.c.l.b16 %v485
      %v1646 = vunpack.c.h.b16 %v485
      %v1647 = vunpack.c.l.b16 %v486
      %v1648 = vunpack.c.h.b16 %v486
      %v1649 = vunpack.c.l.b16 %v487
      %v1650 = vunpack.c.h.b16 %v487
      %v1651 = vunpack.c.l.b16 %v488
      %v1652 = vunpack.c.l.b16 %v489
      %v1653 = vunpack.c.h.b16 %v489
      %v1654 = vunpack.c.l.b16 %v490
      %v1655 = vunpack.c.h.b16 %v490
      %v1656 = vunpack.c.l.b16 %v491
      %v1657 = vunpack.c.h.b16 %v491
      %v1658 = vunpack.c.l.b16 %v492
      %v1659 = vunpack.c.h.b16 %v492
      %v1660 = vunpack.c.l.b16 %v493
      %v1661 = vunpack.c.h.b16 %v493
      %v1662 = vunpack.c.l.b16 %v494
      %v1663 = vunpack.c.h.b16 %v494
      %v1664 = vunpack.c.l.b16 %v495
      %v1665 = vunpack.c.h.b16 %v495
      %v1666 = vunpack.c.l.b16 %v496
      %v1667 = vunpack.c.h.b16 %v496
      %v1668 = vunpack.c.l.b16 %v497
      %v1669 = vunpack.c.h.b16 %v497
      %v1670 = vunpack.c.l.b16 %v498
      %v1671 = vunpack.c.h.b16 %v498
      %v1672 = vunpack.c.l.b16 %v499
      %v1673 = vunpack.c.h.b16 %v499
      %v1674 = vunpack.c.l.b16 %v500
      %v1675 = vunpack.c.h.b16 %v500
      %v1676 = vunpack.c.l.b16 %v501
      %v1677 = vunpack.c.h.b16 %v501
      %v1678 = vunpack.c.l.b16 %v502
      %v1679 = vunpack.c.l.b16 %v503
      %v1680 = vunpack.c.h.b16 %v503
      %v1681 = vunpack.c.l.b16 %v504
      %v1682 = vunpack.c.h.b16 %v504
      %v1683 = vunpack.c.l.b16 %v505
      %v1684 = vunpack.c.h.b16 %v505
      %v1685 = vunpack.c.l.b16 %v506
      %v1686 = vunpack.c.h.b16 %v506
      %v1687 = vunpack.c.l.b16 %v507
      %v1688 = vunpack.c.h.b16 %v507
      %v1689 = vunpack.c.l.b16 %v508
      %v1690 = vunpack.c.h.b16 %v508
      %v1691 = vunpack.c.l.b16 %v509
      %v1692 = vunpack.c.h.b16 %v509
      %v1693 = vunpack.c.l.b16 %v510
      %v1694 = vunpack.c.h.b16 %v510
      %v1695 = vunpack.c.l.b16 %v511
      %v1696 = vunpack.c.h.b16 %v511
      %v1697 = vunpack.c.l.b16 %v512
      %v1698 = vunpack.c.h.b16 %v512
      %v1699 = vunpack.c.l.b16 %v513
      %v1700 = vunpack.c.h.b16 %v513
      %v1701 = vunpack.c.l.b16 %v514
      %v1702 = vunpack.c.h.b16 %v514
      %v1703 = vunpack.c.l.b16 %v515
      %v1704 = vunpack.c.h.b16 %v515
      %v1705 = vunpack.c.l.b16 %v516
      %v1706 = vunpack.c.l.b16 %v517
      %v1707 = vunpack.c.h.b16 %v517
      %v1708 = vunpack.c.l.b16 %v518
      %v1709 = vunpack.c.h.b16 %v518
      %v1710 = vunpack.c.l.b16 %v519
      %v1711 = vunpack.c.h.b16 %v519
      %v1712 = vunpack.c.l.b16 %v520
      %v1713 = vunpack.c.h.b16 %v520
      %v1714 = vunpack.c.l.b16 %v521
      %v1715 = vunpack.c.h.b16 %v521
      %v1716 = vunpack.c.l.b16 %v522
      %v1717 = vunpack.c.h.b16 %v522
      %v1718 = vunpack.c.l.b16 %v523
      %v1719 = vunpack.c.h.b16 %v523
      %v1720 = vunpack.c.l.b16 %v524
      %v1721 = vunpack.c.h.b16 %v524
      %v1722 = vunpack.c.l.b16 %v525
      %v1723 = vunpack.c.h.b16 %v525
      %v1724 = vunpack.c.l.b16 %v526
      %v1725 = vunpack.c.h.b16 %v526
      %v1726 = vunpack.c.l.b16 %v527
      %v1727 = vunpack.c.h.b16 %v527
      %v1728 = vunpack.c.l.b16 %v528
      %v1729 = vunpack.c.h.b16 %v528
      %v1730 = vunpack.c.l.b16 %v529
      %v1731 = vunpack.c.h.b16 %v529
      %v1732 = vunpack.c.l.b16 %v530
      %v1733 = vunpack.c.l.b16 %v531
      %v1734 = vunpack.c.h.b16 %v531
      %v1735 = vunpack.c.l.b16 %v532
      %v1736 = vunpack.c.h.b16 %v532
      %v1737 = vunpack.c.l.b16 %v533
      %v1738 = vunpack.c.h.b16 %v533
      %v1739 = vunpack.c.l.b16 %v534
      %v1740 = vunpack.c.h.b16 %v534
      %v1741 = vunpack.c.l.b16 %v535
      %v1742 = vunpack.c.h.b16 %v535
      %v1743 = vunpack.c.l.b16 %v536
      %v1744 = vunpack.c.h.b16 %v536
      %v1745 = vunpack.c.l.b16 %v537
      %v1746 = vunpack.c.h.b16 %v537
      %v1747 = vunpack.c.l.b16 %v538
      %v1748 = vunpack.c.h.b16 %v538
      %v1749 = vunpack.c.l.b16 %v539
      %v1750 = vunpack.c.h.b16 %v539
      %v1751 = vunpack.c.l.b16 %v540
      %v1752 = vunpack.c.h.b16 %v540
      %v1753 = vunpack.c.l.b16 %v541
      %v1754 = vunpack.c.h.b16 %v541
      %v1755 = vunpack.c.l.b16 %v542
      %v1756 = vunpack.c.h.b16 %v542
      %v1757 = vunpack.c.l.b16 %v543
      %v1758 = vunpack.c.h.b16 %v543
      %v1759 = vunpack.c.l.b16 %v544
      %v1760 = vunpack.c.l.b16 %v545
      %v1761 = vunpack.c.h.b16 %v545
      %v1762 = vunpack.c.l.b16 %v546
      %v1763 = vunpack.c.h.b16 %v546
      %v1764 = vunpack.c.l.b16 %v547
      %v1765 = vunpack.c.h.b16 %v547
      %v1766 = vunpack.c.l.b16 %v548
      %v1767 = vunpack.c.h.b16 %v548
      %v1768 = vunpack.c.l.b16 %v549
      %v1769 = vunpack.c.h.b16 %v549
      %v1770 = vunpack.c.l.b16 %v550
      %v1771 = vunpack.c.h.b16 %v550
      %v1772 = vunpack.c.l.b16 %v551
      %v1773 = vunpack.c.h.b16 %v551
      %v1774 = vunpack.c.l.b16 %v552
      %v1775 = vunpack.c.h.b16 %v552
      %v1776 = vunpack.c.l.b16 %v553
      %v1777 = vunpack.c.h.b16 %v553
      %v1778 = vunpack.c.l.b16 %v554
      %v1779 = vunpack.c.h.b16 %v554
      %v1780 = vunpack.c.l.b16 %v555
      %v1781 = vunpack.c.h.b16 %v555
      %v1782 = vunpack.c.l.b16 %v556
      %v1783 = vunpack.c.h.b16 %v556
      %v1784 = vunpack.c.l.b16 %v557
      %v1785 = vunpack.c.h.b16 %v557
      %v1786 = vunpack.c.l.b16 %v558
      %v1787 = vunpack.c.l.b16 %v559
      %v1788 = vunpack.c.h.b16 %v559
      %v1789 = vunpack.c.l.b16 %v560
      %v1790 = vunpack.c.h.b16 %v560
      %v1791 = vunpack.c.l.b16 %v561
      %v1792 = vunpack.c.h.b16 %v561
      %v1793 = vunpack.c.l.b16 %v562
      %v1794 = vunpack.c.h.b16 %v562
      %v1795 = vunpack.c.l.b16 %v563
      %v1796 = vunpack.c.h.b16 %v563
      %v1797 = vunpack.c.l.b16 %v564
      %v1798 = vunpack.c.h.b16 %v564
      %v1799 = vunpack.c.l.b16 %v565
      %v1800 = vunpack.c.h.b16 %v565
      %v1801 = vunpack.c.l.b16 %v566
      %v1802 = vunpack.c.h.b16 %v566
      %v1803 = vunpack.c.l.b16 %v567
      %v1804 = vunpack.c.h.b16 %v567
      %v1805 = vunpack.c.l.b16 %v568
      %v1806 = vunpack.c.h.b16 %v568
      %v1807 = vunpack.c.l.b16 %v569
      %v1808 = vunpack.c.h.b16 %v569
      %v1809 = vunpack.c.l.b16 %v570
      %v1810 = vunpack.c.h.b16 %v570
      %v1811 = vunpack.c.l.b16 %v571
      %v1812 = vunpack.c.h.b16 %v571
      %v1813 = vunpack.c.l.b16 %v572
      %v1814 = vunpack.c.l.b16 %v573
      %v1815 = vunpack.c.h.b16 %v573
      %v1816 = vunpack.c.l.b16 %v574
      %v1817 = vunpack.c.h.b16 %v574
      %v1818 = vunpack.c.l.b16 %v575
      %v1819 = vunpack.c.h.b16 %v575
      %v1820 = vunpack.c.l.b16 %v576
      %v1821 = vunpack.c.h.b16 %v576
      %v1822 = vunpack.c.l.b16 %v577
      %v1823 = vunpack.c.h.b16 %v577
      %v1824 = vunpack.c.l.b16 %v578
      %v1825 = vunpack.c.h.b16 %v578
      %v1826 = vunpack.c.l.b16 %v579
      %v1827 = vunpack.c.h.b16 %v579
      %v1828 = vunpack.c.l.b16 %v580
      %v1829 = vunpack.c.h.b16 %v580
      %v1830 = vunpack.c.l.b16 %v581
      %v1831 = vunpack.c.h.b16 %v581
      %v1832 = vunpack.c.l.b16 %v582
      %v1833 = vunpack.c.h.b16 %v582
      %v1834 = vunpack.c.l.b16 %v583
      %v1835 = vunpack.c.h.b16 %v583
      %v1836 = vunpack.c.l.b16 %v584
      %v1837 = vunpack.c.h.b16 %v584
      %v1838 = vunpack.c.l.b16 %v585
      %v1839 = vunpack.c.h.b16 %v585
      %v1840 = vunpack.c.l.b16 %v586
      %v1841 = vunpack.c.l.b16 %v587
      %v1842 = vunpack.c.h.b16 %v587
      %v1843 = vunpack.c.l.b16 %v588
      %v1844 = vunpack.c.h.b16 %v588
      %v1845 = vunpack.c.l.b16 %v589
      %v1846 = vunpack.c.h.b16 %v589
      %v1847 = vunpack.c.l.b16 %v590
      %v1848 = vunpack.c.h.b16 %v590
      %v1849 = vunpack.c.l.b16 %v591
      %v1850 = vunpack.c.h.b16 %v591
      %v1851 = vunpack.c.l.b16 %v592
      %v1852 = vunpack.c.h.b16 %v592
      %v1853 = vunpack.c.l.b16 %v593
      %v1854 = vunpack.c.h.b16 %v593
      %v1855 = vunpack.c.l.b16 %v594
      %v1856 = vunpack.c.h.b16 %v594
      %v1857 = vunpack.c.l.b16 %v595
      %v1858 = vunpack.c.h.b16 %v595
      %v1859 = vunpack.c.l.b16 %v596
      %v1860 = vunpack.c.h.b16 %v596
      %v1861 = vunpack.c.l.b16 %v597
      %v1862 = vunpack.c.h.b16 %v597
      %v1863 = vunpack.c.l.b16 %v598
      %v1864 = vunpack.c.h.b16 %v598
      %v1865 = vunpack.c.l.b16 %v599
      %v1866 = vunpack.c.h.b16 %v599
      %v1867 = vunpack.c.l.b16 %v600
      %v1868 = vunpack.c.l.b16 %v601
      %v1869 = vunpack.c.h.b16 %v601
      %v1870 = vunpack.c.l.b16 %v602
      %v1871 = vunpack.c.h.b16 %v602
      %v1872 = vunpack.c.l.b16 %v603
      %v1873 = vunpack.c.h.b16 %v603
      %v1874 = vunpack.c.l.b16 %v604
      %v1875 = vunpack.c.h.b16 %v604
      %v1876 = vunpack.c.l.b16 %v605
      %v1877 = vunpack.c.h.b16 %v605
      %v1878 = vunpack.c.l.b16 %v606
      %v1879 = vunpack.c.h.b16 %v606
      %v1880 = vunpack.c.l.b16 %v607
      %v1881 = vunpack.c.h.b16 %v607
      %v1882 = vunpack.c.l.b16 %v608
      %v1883 = vunpack.c.h.b16 %v608
      %v1884 = vunpack.c.l.b16 %v609
      %v1885 = vunpack.c.h.b16 %v609
      %v1886 = vunpack.c.l.b16 %v610
      %v1887 = vunpack.c.h.b16 %v610
      %v1888 = vunpack.c.l.b16 %v611
      %v1889 = vunpack.c.h.b16 %v611
      %v1890 = vunpack.c.l.b16 %v612
      %v1891 = vunpack.c.h.b16 %v612
      %v1892 = vunpack.c.l.b16 %v613
      %v1893 = vunpack.c.h.b16 %v613
      %v1894 = vunpack.c.l.b16 %v614
      %v1895 = vunpack.c.l.b16 %v615
      %v1896 = vunpack.c.h.b16 %v615
      %v1897 = vunpack.c.l.b16 %v616
      %v1898 = vunpack.c.h.b16 %v616
      %v1899 = vunpack.c.l.b16 %v617
      %v1900 = vunpack.c.h.b16 %v617
      %v1901 = vunpack.c.l.b16 %v618
      %v1902 = vunpack.c.h.b16 %v618
      %v1903 = vunpack.c.l.b16 %v619
      %v1904 = vunpack.c.h.b16 %v619
      %v1905 = vunpack.c.l.b16 %v620
      %v1906 = vunpack.c.h.b16 %v620
      %v1907 = vunpack.c.l.b16 %v621
      %v1908 = vunpack.c.h.b16 %v621
      %v1909 = vunpack.c.l.b16 %v622
      %v1910 = vunpack.c.h.b16 %v622
      %v1911 = vunpack.c.l.b16 %v623
      %v1912 = vunpack.c.h.b16 %v623
      %v1913 = vunpack.c.l.b16 %v624
      %v1914 = vunpack.c.h.b16 %v624
      %v1915 = vunpack.c.l.b16 %v625
      %v1916 = vunpack.c.h.b16 %v625
      %v1917 = vunpack.c.l.b16 %v626
      %v1918 = vunpack.c.h.b16 %v626
      %v1919 = vunpack.c.l.b16 %v627
      %v1920 = vunpack.c.h.b16 %v627
      %v1921 = vunpack.c.l.b16 %v628
      %v1922 = vunpack.c.l.b16 %v629
      %v1923 = vunpack.c.h.b16 %v629
      %v1924 = vunpack.c.l.b16 %v630
      %v1925 = vunpack.c.h.b16 %v630
      %v1926 = vunpack.c.l.b16 %v631
      %v1927 = vunpack.c.h.b16 %v631
      %v1928 = vunpack.c.l.b16 %v632
      %v1929 = vunpack.c.h.b16 %v632
      %v1930 = vunpack.c.l.b16 %v633
      %v1931 = vunpack.c.h.b16 %v633
      %v1932 = vunpack.c.l.b16 %v634
      %v1933 = vunpack.c.h.b16 %v634
      %v1934 = vunpack.c.l.b16 %v635
      %v1935 = vunpack.c.h.b16 %v635
      %v1936 = vunpack.c.l.b16 %v636
      %v1937 = vunpack.c.h.b16 %v636
      %v1938 = vunpack.c.l.b16 %v637
      %v1939 = vunpack.c.h.b16 %v637
      %v1940 = vunpack.c.l.b16 %v638
      %v1941 = vunpack.c.h.b16 %v638
      %v1942 = vunpack.c.l.b16 %v639
      %v1943 = vunpack.c.h.b16 %v639
      %v1944 = vunpack.c.l.b16 %v640
      %v1945 = vunpack.c.h.b16 %v640
      %v1946 = vunpack.c.l.b16 %v641
      %v1947 = vunpack.c.h.b16 %v641
      %v1948 = vunpack.c.l.b16 %v642
      %v1949 = vunpack.c.l.b16 %v643
      %v1950 = vunpack.c.h.b16 %v643
      %v1951 = vunpack.c.l.b16 %v644
      %v1952 = vunpack.c.h.b16 %v644
      %v1953 = vunpack.c.l.b16 %v645
      %v1954 = vunpack.c.h.b16 %v645
      %v1955 = vunpack.c.l.b16 %v646
      %v1956 = vunpack.c.h.b16 %v646
      %v1957 = vunpack.c.l.b16 %v647
      %v1958 = vunpack.c.h.b16 %v647
      %v1959 = vunpack.c.l.b16 %v648
      %v1960 = vunpack.c.h.b16 %v648
      %v1961 = vunpack.c.l.b16 %v649
      %v1962 = vunpack.c.h.b16 %v649
      %v1963 = vunpack.c.l.b16 %v650
      %v1964 = vunpack.c.h.b16 %v650
      %v1965 = vunpack.c.l.b16 %v651
      %v1966 = vunpack.c.h.b16 %v651
      %v1967 = vunpack.c.l.b16 %v652
      %v1968 = vunpack.c.h.b16 %v652
      %v1969 = vunpack.c.l.b16 %v653
      %v1970 = vunpack.c.h.b16 %v653
      %v1971 = vunpack.c.l.b16 %v654
      %v1972 = vunpack.c.h.b16 %v654
      %v1973 = vunpack.c.l.b16 %v655
      %v1974 = vunpack.c.h.b16 %v655
      %v1975 = vunpack.c.l.b16 %v656
      %v1976 = vpack.c.b16 %v1139, %v1112
      %v1977 = vpack.c.b16 %v1140, %v1113
      %v1978 = vpack.c.b16 %v1141, %v1114
      %v1979 = vpack.c.b16 %v1142, %v1115
      %v1980 = vpack.c.b16 %v1143, %v1116
      %v1981 = vpack.c.b16 %v1144, %v1117
      %v1982 = vpack.c.b16 %v1145, %v1118
      %v1983 = vpack.c.b16 %v1146, %v1119
      %v1984 = vpack.c.b16 %v1147, %v1120
      %v1985 = vpack.c.b16 %v1148, %v1121
      %v1986 = vpack.c.b16 %v1149, %v1122
      %v1987 = vpack.c.b16 %v1150, %v1123
      %v1988 = vpack.c.b16 %v1151, %v1124
      %v1989 = vpack.c.b16 %v1152, %v1125
      %v1990 = vpack.c.b16 %v1153, %v1126
      %v1991 = vpack.c.b16 %v1154, %v1127
      %v1992 = vpack.c.b16 %v1155, %v1128
      %v1993 = vpack.c.b16 %v1156, %v1129
      %v1994 = vpack.c.b16 %v1157, %v1130
      %v1995 = vpack.c.b16 %v1158, %v1131
      %v1996 = vpack.c.b16 %v1159, %v1132
      %v1997 = vpack.c.b16 %v1160, %v1133
      %v1998 = vpack.c.b16 %v1161, %v1134
      %v1999 = vpack.c.b16 %v1162, %v1135
      %v2000 = vpack.c.b16 %v1163, %v1136
      %v2001 = vpack.c.b16 %v1164, %v1137
      %v2002 = vpack.c.b16 %v1165, %v1138
      %v2003 = vpack.c.b16 %v1193, %v1166
      %v2004 = vpack.c.b16 %v1194, %v1167
      %v2005 = vpack.c.b16 %v1195, %v1168
      %v2006 = vpack.c.b16 %v1196, %v1169
      %v2007 = vpack.c.b16 %v1197, %v1170
      %v2008 = vpack.c.b16 %v1198, %v1171
      %v2009 = vpack.c.b16 %v1199, %v1172
      %v2010 = vpack.c.b16 %v1200, %v1173
      %v2011 = vpack.c.b16 %v1201, %v1174
      %v2012 = vpack.c.b16 %v1202, %v1175
      %v2013 = vpack.c.b16 %v1203, %v1176
      %v2014 = vpack.c.b16 %v1204, %v1177
      %v2015 = vpack.c.b16 %v1205, %v1178
      %v2016 = vpack.c.b16 %v1206, %v1179
      %v2017 = vpack.c.b16 %v1207, %v1180
      %v2018 = vpack.c.b16 %v1208, %v1181
      %v2019 = vpack.c.b16 %v1209, %v1182
      %v2020 = vpack.c.b16 %v1210, %v1183
      %v2021 = vpack.c.b16 %v1211, %v1184
      %v2022 = vpack.c.b16 %v1212, %v1185
      %v2023 = vpack.c.b16 %v1213, %v1186
      %v2024 = vpack.c.b16 %v1214, %v1187
      %v2025 = vpack.c.b16 %v1215, %v1188
      %v2026 = vpack.c.b16 %v1216, %v1189
      %v2027 = vpack.c.b16 %v1217, %v1190
      %v2028 = vpack.c.b16 %v1218, %v1191
      %v2029 = vpack.c.b16 %v1219, %v1192
      %v2030 = vpack.c.b16 %v1247, %v1220
      %v2031 = vpack.c.b16 %v1248, %v1221
      %v2032 = vpack.c.b16 %v1249, %v1222
      %v2033 = vpack.c.b16 %v1250, %v1223
      %v2034 = vpack.c.b16 %v1251, %v1224
      %v2035 = vpack.c.b16 %v1252, %v1225
      %v2036 = vpack.c.b16 %v1253, %v1226
      %v2037 = vpack.c.b16 %v1254, %v1227
      %v2038 = vpack.c.b16 %v1255, %v1228
      %v2039 = vpack.c.b16 %v1256, %v1229
      %v2040 = vpack.c.b16 %v1257, %v1230
      %v2041 = vpack.c.b16 %v1258, %v1231
      %v2042 = vpack.c.b16 %v1259, %v1232
      %v2043 = vpack.c.b16 %v1260, %v1233
      %v2044 = vpack.c.b16 %v1261, %v1234
      %v2045 = vpack.c.b16 %v1262, %v1235
      %v2046 = vpack.c.b16 %v1263, %v1236
      %v2047 = vpack.c.b16 %v1264, %v1237
      %v2048 = vpack.c.b16 %v1265, %v1238
      %v2049 = vpack.c.b16 %v1266, %v1239
      %v2050 = vpack.c.b16 %v1267, %v1240
      %v2051 = vpack.c.b16 %v1268, %v1241
      %v2052 = vpack.c.b16 %v1269, %v1242
      %v2053 = vpack.c.b16 %v1270, %v1243
      %v2054 = vpack.c.b16 %v1271, %v1244
      %v2055 = vpack.c.b16 %v1272, %v1245
      %v2056 = vpack.c.b16 %v1273, %v1246
      %v2057 = vpack.c.b16 %v1301, %v1274
      %v2058 = vpack.c.b16 %v1302, %v1275
      %v2059 = vpack.c.b16 %v1303, %v1276
      %v2060 = vpack.c.b16 %v1304, %v1277
      %v2061 = vpack.c.b16 %v1305, %v1278
      %v2062 = vpack.c.b16 %v1306, %v1279
      %v2063 = vpack.c.b16 %v1307, %v1280
      %v2064 = vpack.c.b16 %v1308, %v1281
      %v2065 = vpack.c.b16 %v1309, %v1282
      %v2066 = vpack.c.b16 %v1310, %v1283
      %v2067 = vpack.c.b16 %v1311, %v1284
      %v2068 = vpack.c.b16 %v1312, %v1285
      %v2069 = vpack.c.b16 %v1313, %v1286
      %v2070 = vpack.c.b16 %v1314, %v1287
      %v2071 = vpack.c.b16 %v1315, %v1288
      %v2072 = vpack.c.b16 %v1316, %v1289
      %v2073 = vpack.c.b16 %v1317, %v1290
      %v2074 = vpack.c.b16 %v1318, %v1291
      %v2075 = vpack.c.b16 %v1319, %v1292
      %v2076 = vpack.c.b16 %v1320, %v1293
      %v2077 = vpack.c.b16 %v1321, %v1294
      %v2078 = vpack.c.b16 %v1322, %v1295
      %v2079 = vpack.c.b16 %v1323, %v1296
      %v2080 = vpack.c.b16 %v1324, %v1297
      %v2081 = vpack.c.b16 %v1325, %v1298
      %v2082 = vpack.c.b16 %v1326, %v1299
      %v2083 = vpack.c.b16 %v1327, %v1300
      %v2084 = vpack.c.b16 %v1355, %v1328
      %v2085 = vpack.c.b16 %v1356, %v1329
      %v2086 = vpack.c.b16 %v1357, %v1330
      %v2087 = vpack.c.b16 %v1358, %v1331
      %v2088 = vpack.c.b16 %v1359, %v1332
      %v2089 = vpack.c.b16 %v1360, %v1333
      %v2090 = vpack.c.b16 %v1361, %v1334
      %v2091 = vpack.c.b16 %v1362, %v1335
      %v2092 = vpack.c.b16 %v1363, %v1336
      %v2093 = vpack.c.b16 %v1364, %v1337
      %v2094 = vpack.c.b16 %v1365, %v1338
      %v2095 = vpack.c.b16 %v1366, %v1339
      %v2096 = vpack.c.b16 %v1367, %v1340
      %v2097 = vpack.c.b16 %v1368, %v1341
      %v2098 = vpack.c.b16 %v1369, %v1342
      %v2099 = vpack.c.b16 %v1370, %v1343
      %v2100 = vpack.c.b16 %v1371, %v1344
      %v2101 = vpack.c.b16 %v1372, %v1345
      %v2102 = vpack.c.b16 %v1373, %v1346
      %v2103 = vpack.c.b16 %v1374, %v1347
      %v2104 = vpack.c.b16 %v1375, %v1348
      %v2105 = vpack.c.b16 %v1376, %v1349
      %v2106 = vpack.c.b16 %v1377, %v1350
      %v2107 = vpack.c.b16 %v1378, %v1351
      %v2108 = vpack.c.b16 %v1379, %v1352
      %v2109 = vpack.c.b16 %v1380, %v1353
      %v2110 = vpack.c.b16 %v1381, %v1354
      %v2111 = vpack.c.b16 %v1409, %v1382
      %v2112 = vpack.c.b16 %v1410, %v1383
      %v2113 = vpack.c.b16 %v1411, %v1384
      %v2114 = vpack.c.b16 %v1412, %v1385
      %v2115 = vpack.c.b16 %v1413, %v1386
      %v2116 = vpack.c.b16 %v1414, %v1387
      %v2117 = vpack.c.b16 %v1415, %v1388
      %v2118 = vpack.c.b16 %v1416, %v1389
      %v2119 = vpack.c.b16 %v1417, %v1390
      %v2120 = vpack.c.b16 %v1418, %v1391
      %v2121 = vpack.c.b16 %v1419, %v1392
      %v2122 = vpack.c.b16 %v1420, %v1393
      %v2123 = vpack.c.b16 %v1421, %v1394
      %v2124 = vpack.c.b16 %v1422, %v1395
      %v2125 = vpack.c.b16 %v1423, %v1396
      %v2126 = vpack.c.b16 %v1424, %v1397
      %v2127 = vpack.c.b16 %v1425, %v1398
      %v2128 = vpack.c.b16 %v1426, %v1399
      %v2129 = vpack.c.b16 %v1427, %v1400
      %v2130 = vpack.c.b16 %v1428, %v1401
      %v2131 = vpack.c.b16 %v1429, %v1402
      %v2132 = vpack.c.b16 %v1430, %v1403
      %v2133 = vpack.c.b16 %v1431, %v1404
      %v2134 = vpack.c.b16 %v1432, %v1405
      %v2135 = vpack.c.b16 %v1433, %v1406
      %v2136 = vpack.c.b16 %v1434, %v1407
      %v2137 = vpack.c.b16 %v1435, %v1408
      %v2138 = vpack.c.b16 %v1463, %v1436
      %v2139 = vpack.c.b16 %v1464, %v1437
      %v2140 = vpack.c.b16 %v1465, %v1438
      %v2141 = vpack.c.b16 %v1466, %v1439
      %v2142 = vpack.c.b16 %v1467, %v1440
      %v2143 = vpack.c.b16 %v1468, %v1441
      %v2144 = vpack.c.b16 %v1469, %v1442
      %v2145 = vpack.c.b16 %v1470, %v1443
      %v2146 = vpack.c.b16 %v1471, %v1444
      %v2147 = vpack.c.b16 %v1472, %v1445
      %v2148 = vpack.c.b16 %v1473, %v1446
      %v2149 = vpack.c.b16 %v1474, %v1447
      %v2150 = vpack.c.b16 %v1475, %v1448
      %v2151 = vpack.c.b16 %v1476, %v1449
      %v2152 = vpack.c.b16 %v1477, %v1450
      %v2153 = vpack.c.b16 %v1478, %v1451
      %v2154 = vpack.c.b16 %v1479, %v1452
      %v2155 = vpack.c.b16 %v1480, %v1453
      %v2156 = vpack.c.b16 %v1481, %v1454
      %v2157 = vpack.c.b16 %v1482, %v1455
      %v2158 = vpack.c.b16 %v1483, %v1456
      %v2159 = vpack.c.b16 %v1484, %v1457
      %v2160 = vpack.c.b16 %v1485, %v1458
      %v2161 = vpack.c.b16 %v1486, %v1459
      %v2162 = vpack.c.b16 %v1487, %v1460
      %v2163 = vpack.c.b16 %v1488, %v1461
      %v2164 = vpack.c.b16 %v1489, %v1462
      %v2165 = vpack.c.b16 %v1517, %v1490
      %v2166 = vpack.c.b16 %v1518, %v1491
      %v2167 = vpack.c.b16 %v1519, %v1492
      %v2168 = vpack.c.b16 %v1520, %v1493
      %v2169 = vpack.c.b16 %v1521, %v1494
      %v2170 = vpack.c.b16 %v1522, %v1495
      %v2171 = vpack.c.b16 %v1523, %v1496
      %v2172 = vpack.c.b16 %v1524, %v1497
      %v2173 = vpack.c.b16 %v1525, %v1498
      %v2174 = vpack.c.b16 %v1526, %v1499
      %v2175 = vpack.c.b16 %v1527, %v1500
      %v2176 = vpack.c.b16 %v1528, %v1501
      %v2177 = vpack.c.b16 %v1529, %v1502
      %v2178 = vpack.c.b16 %v1530, %v1503
      %v2179 = vpack.c.b16 %v1531, %v1504
      %v2180 = vpack.c.b16 %v1532, %v1505
      %v2181 = vpack.c.b16 %v1533, %v1506
      %v2182 = vpack.c.b16 %v1534, %v1507
      %v2183 = vpack.c.b16 %v1535, %v1508
      %v2184 = vpack.c.b16 %v1536, %v1509
      %v2185 = vpack.c.b16 %v1537, %v1510
      %v2186 = vpack.c.b16 %v1538, %v1511
      %v2187 = vpack.c.b16 %v1539, %v1512
      %v2188 = vpack.c.b16 %v1540, %v1513
      %v2189 = vpack.c.b16 %v1541, %v1514
      %v2190 = vpack.c.b16 %v1542, %v1515
      %v2191 = vpack.c.b16 %v1543, %v1516
      %v2192 = vpack.c.b16 %v1571, %v1544
      %v2193 = vpack.c.b16 %v1572, %v1545
      %v2194 = vpack.c.b16 %v1573, %v1546
      %v2195 = vpack.c.b16 %v1574, %v1547
      %v2196 = vpack.c.b16 %v1575, %v1548
      %v2197 = vpack.c.b16 %v1576, %v1549
      %v2198 = vpack.c.b16 %v1577, %v1550
      %v2199 = vpack.c.b16 %v1578, %v1551
      %v2200 = vpack.c.b16 %v1579, %v1552
      %v2201 = vpack.c.b16 %v1580, %v1553
      %v2202 = vpack.c.b16 %v1581, %v1554
      %v2203 = vpack.c.b16 %v1582, %v1555
      %v2204 = vpack.c.b16 %v1583, %v1556
      %v2205 = vpack.c.b16 %v1584, %v1557
      %v2206 = vpack.c.b16 %v1585, %v1558
      %v2207 = vpack.c.b16 %v1586, %v1559
      %v2208 = vpack.c.b16 %v1587, %v1560
      %v2209 = vpack.c.b16 %v1588, %v1561
      %v2210 = vpack.c.b16 %v1589, %v1562
      %v2211 = vpack.c.b16 %v1590, %v1563
      %v2212 = vpack.c.b16 %v1591, %v1564
      %v2213 = vpack.c.b16 %v1592, %v1565
      %v2214 = vpack.c.b16 %v1593, %v1566
      %v2215 = vpack.c.b16 %v1594, %v1567
      %v2216 = vpack.c.b16 %v1595, %v1568
      %v2217 = vpack.c.b16 %v1596, %v1569
      %v2218 = vpack.c.b16 %v1597, %v1570
      %v2219 = vpack.c.b16 %v1625, %v1598
      %v2220 = vpack.c.b16 %v1626, %v1599
      %v2221 = vpack.c.b16 %v1627, %v1600
      %v2222 = vpack.c.b16 %v1628, %v1601
      %v2223 = vpack.c.b16 %v1629, %v1602
      %v2224 = vpack.c.b16 %v1630, %v1603
      %v2225 = vpack.c.b16 %v1631, %v1604
      %v2226 = vpack.c.b16 %v1632, %v1605
      %v2227 = vpack.c.b16 %v1633, %v1606
      %v2228 = vpack.c.b16 %v1634, %v1607
      %v2229 = vpack.c.b16 %v1635, %v1608
      %v2230 = vpack.c.b16 %v1636, %v1609
      %v2231 = vpack.c.b16 %v1637, %v1610
      %v2232 = vpack.c.b16 %v1638, %v1611
      %v2233 = vpack.c.b16 %v1639, %v1612
      %v2234 = vpack.c.b16 %v1640, %v1613
      %v2235 = vpack.c.b16 %v1641, %v1614
      %v2236 = vpack.c.b16 %v1642, %v1615
      %v2237 = vpack.c.b16 %v1643, %v1616
      %v2238 = vpack.c.b16 %v1644, %v1617
      %v2239 = vpack.c.b16 %v1645, %v1618
      %v2240 = vpack.c.b16 %v1646, %v1619
      %v2241 = vpack.c.b16 %v1647, %v1620
      %v2242 = vpack.c.b16 %v1648, %v1621
      %v2243 = vpack.c.b16 %v1649, %v1622
      %v2244 = vpack.c.b16 %v1650, %v1623
      %v2245 = vpack.c.b16 %v1651, %v1624
      %v2246 = vpack.c.b16 %v1679, %v1652
      %v2247 = vpack.c.b16 %v1680, %v1653
      %v2248 = vpack.c.b16 %v1681, %v1654
      %v2249 = vpack.c.b16 %v1682, %v1655
      %v2250 = vpack.c.b16 %v1683, %v1656
      %v2251 = vpack.c.b16 %v1684, %v1657
      %v2252 = vpack.c.b16 %v1685, %v1658
      %v2253 = vpack.c.b16 %v1686, %v1659
      %v2254 = vpack.c.b16 %v1687, %v1660
      %v2255 = vpack.c.b16 %v1688, %v1661
      %v2256 = vpack.c.b16 %v1689, %v1662
      %v2257 = vpack.c.b16 %v1690, %v1663
      %v2258 = vpack.c.b16 %v1691, %v1664
      %v2259 = vpack.c.b16 %v1692, %v1665
      %v2260 = vpack.c.b16 %v1693, %v1666
      %v2261 = vpack.c.b16 %v1694, %v1667
      %v2262 = vpack.c.b16 %v1695, %v1668
      %v2263 = vpack.c.b16 %v1696, %v1669
      %v2264 = vpack.c.b16 %v1697, %v1670
      %v2265 = vpack.c.b16 %v1698, %v1671
      %v2266 = vpack.c.b16 %v1699, %v1672
      %v2267 = vpack.c.b16 %v1700, %v1673
      %v2268 = vpack.c.b16 %v1701, %v1674
      %v2269 = vpack.c.b16 %v1702, %v1675
      %v2270 = vpack.c.b16 %v1703, %v1676
      %v2271 = vpack.c.b16 %v1704, %v1677
      %v2272 = vpack.c.b16 %v1705, %v1678
      %v2273 = vpack.c.b16 %v1733, %v1706
      %v2274 = vpack.c.b16 %v1734, %v1707
      %v2275 = vpack.c.b16 %v1735, %v1708
      %v2276 = vpack.c.b16 %v1736, %v1709
      %v2277 = vpack.c.b16 %v1737, %v1710
      %v2278 = vpack.c.b16 %v1738, %v1711
      %v2279 = vpack.c.b16 %v1739, %v1712
      %v2280 = vpack.c.b16 %v1740, %v1713
      %v2281 = vpack.c.b16 %v1741, %v1714
      %v2282 = vpack.c.b16 %v1742, %v1715
      %v2283 = vpack.c.b16 %v1743, %v1716
      %v2284 = vpack.c.b16 %v1744, %v1717
      %v2285 = vpack.c.b16 %v1745, %v1718
      %v2286 = vpack.c.b16 %v1746, %v1719
      %v2287 = vpack.c.b16 %v1747, %v1720
      %v2288 = vpack.c.b16 %v1748, %v1721
      %v2289 = vpack.c.b16 %v1749, %v1722
      %v2290 = vpack.c.b16 %v1750, %v1723
      %v2291 = vpack.c.b16 %v1751, %v1724
      %v2292 = vpack.c.b16 %v1752, %v1725
      %v2293 = vpack.c.b16 %v1753, %v1726
      %v2294 = vpack.c.b16 %v1754, %v1727
      %v2295 = vpack.c.b16 %v1755, %v1728
      %v2296 = vpack.c.b16 %v1756, %v1729
      %v2297 = vpack.c.b16 %v1757, %v1730
      %v2298 = vpack.c.b16 %v1758, %v1731
      %v2299 = vpack.c.b16 %v1759, %v1732
      %v2300 = vpack.c.b16 %v1787, %v1760
      %v2301 = vpack.c.b16 %v1788, %v1761
      %v2302 = vpack.c.b16 %v1789, %v1762
      %v2303 = vpack.c.b16 %v1790, %v1763
      %v2304 = vpack.c.b16 %v1791, %v1764
      %v2305 = vpack.c.b16 %v1792, %v1765
      %v2306 = vpack.c.b16 %v1793, %v1766
      %v2307 = vpack.c.b16 %v1794, %v1767
      %v2308 = vpack.c.b16 %v1795, %v1768
      %v2309 = vpack.c.b16 %v1796, %v1769
      %v2310 = vpack.c.b16 %v1797, %v1770
      %v2311 = vpack.c.b16 %v1798, %v1771
      %v2312 = vpack.c.b16 %v1799, %v1772
      %v2313 = vpack.c.b16 %v1800, %v1773
      %v2314 = vpack.c.b16 %v1801, %v1774
      %v2315 = vpack.c.b16 %v1802, %v1775
      %v2316 = vpack.c.b16 %v1803, %v1776
      %v2317 = vpack.c.b16 %v1804, %v1777
      %v2318 = vpack.c.b16 %v1805, %v1778
      %v2319 = vpack.c.b16 %v1806, %v1779
      %v2320 = vpack.c.b16 %v1807, %v1780
      %v2321 = vpack.c.b16 %v1808, %v1781
      %v2322 = vpack.c.b16 %v1809, %v1782
      %v2323 = vpack.c.b16 %v1810, %v1783
      %v2324 = vpack.c.b16 %v1811, %v1784
      %v2325 = vpack.c.b16 %v1812, %v1785
      %v2326 = vpack.c.b16 %v1813, %v1786
      %v2327 = vpack.c.b16 %v1841, %v1814
      %v2328 = vpack.c.b16 %v1842, %v1815
      %v2329 = vpack.c.b16 %v1843, %v1816
      %v2330 = vpack.c.b16 %v1844, %v1817
      %v2331 = vpack.c.b16 %v1845, %v1818
      %v2332 = vpack.c.b16 %v1846, %v1819
      %v2333 = vpack.c.b16 %v1847, %v1820
      %v2334 = vpack.c.b16 %v1848, %v1821
      %v2335 = vpack.c.b16 %v1849, %v1822
      %v2336 = vpack.c.b16 %v1850, %v1823
      %v2337 = vpack.c.b16 %v1851, %v1824
      %v2338 = vpack.c.b16 %v1852, %v1825
      %v2339 = vpack.c.b16 %v1853, %v1826
      %v2340 = vpack.c.b16 %v1854, %v1827
      %v2341 = vpack.c.b16 %v1855, %v1828
      %v2342 = vpack.c.b16 %v1856, %v1829
      %v2343 = vpack.c.b16 %v1857, %v1830
      %v2344 = vpack.c.b16 %v1858, %v1831
      %v2345 = vpack.c.b16 %v1859, %v1832
      %v2346 = vpack.c.b16 %v1860, %v1833
      %v2347 = vpack.c.b16 %v1861, %v1834
      %v2348 = vpack.c.b16 %v1862, %v1835
      %v2349 = vpack.c.b16 %v1863, %v1836
      %v2350 = vpack.c.b16 %v1864, %v1837
      %v2351 = vpack.c.b16 %v1865, %v1838
      %v2352 = vpack.c.b16 %v1866, %v1839
      %v2353 = vpack.c.b16 %v1867, %v1840
      %v2354 = vpack.c.b16 %v1895, %v1868
      %v2355 = vpack.c.b16 %v1896, %v1869
      %v2356 = vpack.c.b16 %v1897, %v1870
      %v2357 = vpack.c.b16 %v1898, %v1871
      %v2358 = vpack.c.b16 %v1899, %v1872
      %v2359 = vpack.c.b16 %v1900, %v1873
      %v2360 = vpack.c.b16 %v1901, %v1874
      %v2361 = vpack.c.b16 %v1902, %v1875
      %v2362 = vpack.c.b16 %v1903, %v1876
      %v2363 = vpack.c.b16 %v1904, %v1877
      %v2364 = vpack.c.b16 %v1905, %v1878
      %v2365 = vpack.c.b16 %v1906, %v1879
      %v2366 = vpack.c.b16 %v1907, %v1880
      %v2367 = vpack.c.b16 %v1908, %v1881
      %v2368 = vpack.c.b16 %v1909, %v1882
      %v2369 = vpack.c.b16 %v1910, %v1883
      %v2370 = vpack.c.b16 %v1911, %v1884
      %v2371 = vpack.c.b16 %v1912, %v1885
      %v2372 = vpack.c.b16 %v1913, %v1886
      %v2373 = vpack.c.b16 %v1914, %v1887
      %v2374 = vpack.c.b16 %v1915, %v1888
      %v2375 = vpack.c.b16 %v1916, %v1889
      %v2376 = vpack.c.b16 %v1917, %v1890
      %v2377 = vpack.c.b16 %v1918, %v1891
      %v2378 = vpack.c.b16 %v1919, %v1892
      %v2379 = vpack.c.b16 %v1920, %v1893
      %v2380 = vpack.c.b16 %v1921, %v1894
      %v2381 = vpack.c.b16 %v1949, %v1922
      %v2382 = vpack.c.b16 %v1950, %v1923
      %v2383 = vpack.c.b16 %v1951, %v1924
      %v2384 = vpack.c.b16 %v1952, %v1925
      %v2385 = vpack.c.b16 %v1953, %v1926
      %v2386 = vpack.c.b16 %v1954, %v1927
      %v2387 = vpack.c.b16 %v1955, %v1928
      %v2388 = vpack.c.b16 %v1956, %v1929
      %v2389 = vpack.c.b16 %v1957, %v1930
      %v2390 = vpack.c.b16 %v1958, %v1931
      %v2391 = vpack.c.b16 %v1959, %v1932
      %v2392 = vpack.c.b16 %v1960, %v1933
      %v2393 = vpack.c.b16 %v1961, %v1934
      %v2394 = vpack.c.b16 %v1962, %v1935
      %v2395 = vpack.c.b16 %v1963, %v1936
      %v2396 = vpack.c.b16 %v1964, %v1937
      %v2397 = vpack.c.b16 %v1965, %v1938
      %v2398 = vpack.c.b16 %v1966, %v1939
      %v2399 = vpack.c.b16 %v1967, %v1940
      %v2400 = vpack.c.b16 %v1968, %v1941
      %v2401 = vpack.c.b16 %v1969, %v1942
      %v2402 = vpack.c.b16 %v1970, %v1943
      %v2403 = vpack.c.b16 %v1971, %v1944
      %v2404 = vpack.c.b16 %v1972, %v1945
      %v2405 = vpack.c.b16 %v1973, %v1946
      %v2406 = vpack.c.b16 %v1974, %v1947
      %v2407 = vpack.c.b16 %v1975, %v1948
      %2840 = vmatprep.subr.bf16.mxu0 %v1977
      %2841 = vmatpush1.bf16.msra.mxu0 %v1976
      %2842 = vmatprep.subr.bf16.mxu0 %v2004
      %2843 = vmatpush1.bf16.msra.mxu0 %v2003
      %2844 = vmatprep.subr.bf16.mxu0 %v2031
      %2845 = vmatpush1.bf16.msra.mxu0 %v2030
      %2846 = vmatprep.subr.bf16.mxu0 %v2058
      %2847 = vmatpush1.bf16.msra.mxu0 %v2057
      %2848 = vmatprep.subr.bf16.mxu0 %v2085
      %2849 = vmatpush1.bf16.msra.mxu0 %v2084
      %2850 = vmatprep.subr.bf16.mxu0 %v2112
      %2851 = vmatpush1.bf16.msra.mxu0 %v2111
      %2852 = vmatprep.subr.bf16.mxu0 %v2139
      %2853 = vmatpush1.bf16.msra.mxu0 %v2138
      %2854 = vmatprep.subr.bf16.mxu0 %v2166
      %2855 = vmatpush1.bf16.msra.mxu0 %v2165
      %2856 = vmatprep.subr.bf16.mxu0 %v2193
      %2857 = vmatpush1.bf16.msra.mxu0 %v2192
      %2858 = vmatprep.subr.bf16.mxu0 %v2220
      %2859 = vmatpush1.bf16.msra.mxu0 %v2219
      %2860 = vmatprep.subr.bf16.mxu0 %v2247
      %2861 = vmatpush1.bf16.msra.mxu0 %v2246
      %2862 = vmatprep.subr.bf16.mxu0 %v2274
      %2863 = vmatpush1.bf16.msra.mxu0 %v2273
      %2864 = vmatprep.subr.bf16.mxu0 %v2301
      %2865 = vmatpush1.bf16.msra.mxu0 %v2300
      %2866 = vmatprep.subr.bf16.mxu0 %v2328
      %2867 = vmatpush1.bf16.msra.mxu0 %v2327
      %2868 = vmatprep.subr.bf16.mxu0 %v2355
      %2869 = vmatpush1.bf16.msra.mxu0 %v2354
      %2870 = vmatprep.subr.bf16.mxu0 %v2382
      %2871 = vmatpush1.bf16.msra.mxu0 %v2381
      %2872 = vmatprep.mubr.bf16.mxu0 %v661
      %2873 = vmatmul.mubr.bf16.gmra.mrb[0].mxu0 %v660
      %v2874 = vpop.f32.mrb[0].mxu0
      %v2875 = vadd.f32 0.0, %v2874
      %v2876 = vpop.f32.mrb[0].mxu0
      %v2877 = vadd.f32 0.0, %v2876
      %v2878 = vpop.f32.mrb[0].mxu0
      %v2879 = vpop.f32.mrb[0].mxu0
      %2880 = vdwg.mxu0
      %2881 = vmatprep.subr.bf16.mxu0 %v1979
      %2882 = vmatpush1.bf16.msra.mxu0 %v1978
      %2883 = vmatprep.subr.bf16.mxu0 %v2006
      %2884 = vmatpush1.bf16.msra.mxu0 %v2005
      %2885 = vmatprep.subr.bf16.mxu0 %v2033
      %2886 = vmatpush1.bf16.msra.mxu0 %v2032
      %2887 = vmatprep.subr.bf16.mxu0 %v2060
      %2888 = vmatpush1.bf16.msra.mxu0 %v2059
      %2889 = vmatprep.subr.bf16.mxu0 %v2087
      %2890 = vmatpush1.bf16.msra.mxu0 %v2086
      %2891 = vmatprep.subr.bf16.mxu0 %v2114
      %2892 = vmatpush1.bf16.msra.mxu0 %v2113
      %2893 = vmatprep.subr.bf16.mxu0 %v2141
      %2894 = vmatpush1.bf16.msra.mxu0 %v2140
      %2895 = vmatprep.subr.bf16.mxu0 %v2168
      %2896 = vmatpush1.bf16.msra.mxu0 %v2167
      %2897 = vmatprep.subr.bf16.mxu0 %v2195
      %2898 = vmatpush1.bf16.msra.mxu0 %v2194
      %2899 = vmatprep.subr.bf16.mxu0 %v2222
      %2900 = vmatpush1.bf16.msra.mxu0 %v2221
      %2901 = vmatprep.subr.bf16.mxu0 %v2249
      %2902 = vmatpush1.bf16.msra.mxu0 %v2248
      %2903 = vmatprep.subr.bf16.mxu0 %v2276
      %2904 = vmatpush1.bf16.msra.mxu0 %v2275
      %2905 = vmatprep.subr.bf16.mxu0 %v2303
      %2906 = vmatpush1.bf16.msra.mxu0 %v2302
      %2907 = vmatprep.subr.bf16.mxu0 %v2330
      %2908 = vmatpush1.bf16.msra.mxu0 %v2329
      %2909 = vmatprep.subr.bf16.mxu0 %v2357
      %2910 = vmatpush1.bf16.msra.mxu0 %v2356
      %2911 = vmatprep.subr.bf16.mxu0 %v2384
      %2912 = vmatpush1.bf16.msra.mxu0 %v2383
      %2913 = vmatprep.mubr.bf16.mxu0 %v661
      %2914 = vmatmul.mubr.bf16.gmra.mrb[0].mxu0 %v660
      %v2915 = vpop.f32.mrb[0].mxu0
      %v2916 = vadd.f32 0.0, %v2915
      %v2917 = vpop.f32.mrb[0].mxu0
      %v2918 = vadd.f32 0.0, %v2917
      %v2919 = vpop.f32.mrb[0].mxu0
      %v2920 = vpop.f32.mrb[0].mxu0
      %2921 = vdwg.mxu0
      %2922 = vmatprep.subr.bf16.mxu0 %v1981
      %2923 = vmatpush1.bf16.msra.mxu0 %v1980
      %2924 = vmatprep.subr.bf16.mxu0 %v2008
      %2925 = vmatpush1.bf16.msra.mxu0 %v2007
      %2926 = vmatprep.subr.bf16.mxu0 %v2035
      %2927 = vmatpush1.bf16.msra.mxu0 %v2034
      %2928 = vmatprep.subr.bf16.mxu0 %v2062
      %2929 = vmatpush1.bf16.msra.mxu0 %v2061
      %2930 = vmatprep.subr.bf16.mxu0 %v2089
      %2931 = vmatpush1.bf16.msra.mxu0 %v2088
      %2932 = vmatprep.subr.bf16.mxu0 %v2116
      %2933 = vmatpush1.bf16.msra.mxu0 %v2115
      %2934 = vmatprep.subr.bf16.mxu0 %v2143
      %2935 = vmatpush1.bf16.msra.mxu0 %v2142
      %2936 = vmatprep.subr.bf16.mxu0 %v2170
      %2937 = vmatpush1.bf16.msra.mxu0 %v2169
      %2938 = vmatprep.subr.bf16.mxu0 %v2197
      %2939 = vmatpush1.bf16.msra.mxu0 %v2196
      %2940 = vmatprep.subr.bf16.mxu0 %v2224
      %2941 = vmatpush1.bf16.msra.mxu0 %v2223
      %2942 = vmatprep.subr.bf16.mxu0 %v2251
      %2943 = vmatpush1.bf16.msra.mxu0 %v2250
      %2944 = vmatprep.subr.bf16.mxu0 %v2278
      %2945 = vmatpush1.bf16.msra.mxu0 %v2277
      %2946 = vmatprep.subr.bf16.mxu0 %v2305
      %2947 = vmatpush1.bf16.msra.mxu0 %v2304
      %2948 = vmatprep.subr.bf16.mxu0 %v2332
      %2949 = vmatpush1.bf16.msra.mxu0 %v2331
      %2950 = vmatprep.subr.bf16.mxu0 %v2359
      %2951 = vmatpush1.bf16.msra.mxu0 %v2358
      %2952 = vmatprep.subr.bf16.mxu0 %v2386
      %2953 = vmatpush1.bf16.msra.mxu0 %v2385
      %2954 = vmatprep.mubr.bf16.mxu0 %v661
      %2955 = vmatmul.mubr.bf16.gmra.mrb[0].mxu0 %v660
      %v2956 = vpop.f32.mrb[0].mxu0
      %v2957 = vadd.f32 0.0, %v2956
      %v2958 = vpop.f32.mrb[0].mxu0
      %v2959 = vadd.f32 0.0, %v2958
      %v2960 = vpop.f32.mrb[0].mxu0
      %v2961 = vpop.f32.mrb[0].mxu0
      %2962 = vdwg.mxu0
      %2963 = vmatprep.subr.bf16.mxu0 %v1983
      %2964 = vmatpush1.bf16.msra.mxu0 %v1982
      %2965 = vmatprep.subr.bf16.mxu0 %v2010
      %2966 = vmatpush1.bf16.msra.mxu0 %v2009
      %2967 = vmatprep.subr.bf16.mxu0 %v2037
      %2968 = vmatpush1.bf16.msra.mxu0 %v2036
      %2969 = vmatprep.subr.bf16.mxu0 %v2064
      %2970 = vmatpush1.bf16.msra.mxu0 %v2063
      %2971 = vmatprep.subr.bf16.mxu0 %v2091
      %2972 = vmatpush1.bf16.msra.mxu0 %v2090
      %2973 = vmatprep.subr.bf16.mxu0 %v2118
      %2974 = vmatpush1.bf16.msra.mxu0 %v2117
      %2975 = vmatprep.subr.bf16.mxu0 %v2145
      %2976 = vmatpush1.bf16.msra.mxu0 %v2144
      %2977 = vmatprep.subr.bf16.mxu0 %v2172
      %2978 = vmatpush1.bf16.msra.mxu0 %v2171
      %2979 = vmatprep.subr.bf16.mxu0 %v2199
      %2980 = vmatpush1.bf16.msra.mxu0 %v2198
      %2981 = vmatprep.subr.bf16.mxu0 %v2226
      %2982 = vmatpush1.bf16.msra.mxu0 %v2225
      %2983 = vmatprep.subr.bf16.mxu0 %v2253
      %2984 = vmatpush1.bf16.msra.mxu0 %v2252
      %2985 = vmatprep.subr.bf16.mxu0 %v2280
      %2986 = vmatpush1.bf16.msra.mxu0 %v2279
      %2987 = vmatprep.subr.bf16.mxu0 %v2307
      %2988 = vmatpush1.bf16.msra.mxu0 %v2306
      %2989 = vmatprep.subr.bf16.mxu0 %v2334
      %2990 = vmatpush1.bf16.msra.mxu0 %v2333
      %2991 = vmatprep.subr.bf16.mxu0 %v2361
      %2992 = vmatpush1.bf16.msra.mxu0 %v2360
      %2993 = vmatprep.subr.bf16.mxu0 %v2388
      %2994 = vmatpush1.bf16.msra.mxu0 %v2387
      %2995 = vmatprep.mubr.bf16.mxu0 %v661
      %2996 = vmatmul.mubr.bf16.gmra.mrb[0].mxu0 %v660
      %v2997 = vpop.f32.mrb[0].mxu0
      %v2998 = vadd.f32 0.0, %v2997
      %v2999 = vpop.f32.mrb[0].mxu0
      %v3000 = vadd.f32 0.0, %v2999
      %v3001 = vpop.f32.mrb[0].mxu0
      %v3002 = vpop.f32.mrb[0].mxu0
      %3003 = vdwg.mxu0
      %3004 = vmatprep.subr.bf16.mxu0 %v1985
      %3005 = vmatpush1.bf16.msra.mxu0 %v1984
      %3006 = vmatprep.subr.bf16.mxu0 %v2012
      %3007 = vmatpush1.bf16.msra.mxu0 %v2011
      %3008 = vmatprep.subr.bf16.mxu0 %v2039
      %3009 = vmatpush1.bf16.msra.mxu0 %v2038
      %3010 = vmatprep.subr.bf16.mxu0 %v2066
      %3011 = vmatpush1.bf16.msra.mxu0 %v2065
      %3012 = vmatprep.subr.bf16.mxu0 %v2093
      %3013 = vmatpush1.bf16.msra.mxu0 %v2092
      %3014 = vmatprep.subr.bf16.mxu0 %v2120
      %3015 = vmatpush1.bf16.msra.mxu0 %v2119
      %3016 = vmatprep.subr.bf16.mxu0 %v2147
      %3017 = vmatpush1.bf16.msra.mxu0 %v2146
      %3018 = vmatprep.subr.bf16.mxu0 %v2174
      %3019 = vmatpush1.bf16.msra.mxu0 %v2173
      %3020 = vmatprep.subr.bf16.mxu0 %v2201
      %3021 = vmatpush1.bf16.msra.mxu0 %v2200
      %3022 = vmatprep.subr.bf16.mxu0 %v2228
      %3023 = vmatpush1.bf16.msra.mxu0 %v2227
      %3024 = vmatprep.subr.bf16.mxu0 %v2255
      %3025 = vmatpush1.bf16.msra.mxu0 %v2254
      %3026 = vmatprep.subr.bf16.mxu0 %v2282
      %3027 = vmatpush1.bf16.msra.mxu0 %v2281
      %3028 = vmatprep.subr.bf16.mxu0 %v2309
      %3029 = vmatpush1.bf16.msra.mxu0 %v2308
      %3030 = vmatprep.subr.bf16.mxu0 %v2336
      %3031 = vmatpush1.bf16.msra.mxu0 %v2335
      %3032 = vmatprep.subr.bf16.mxu0 %v2363
      %3033 = vmatpush1.bf16.msra.mxu0 %v2362
      %3034 = vmatprep.subr.bf16.mxu0 %v2390
      %3035 = vmatpush1.bf16.msra.mxu0 %v2389
      %3036 = vmatprep.mubr.bf16.mxu0 %v661
      %3037 = vmatmul.mubr.bf16.gmra.mrb[0].mxu0 %v660
      %v3038 = vpop.f32.mrb[0].mxu0
      %v3039 = vadd.f32 0.0, %v3038
      %v3040 = vpop.f32.mrb[0].mxu0
      %v3041 = vadd.f32 0.0, %v3040
      %v3042 = vpop.f32.mrb[0].mxu0
      %v3043 = vpop.f32.mrb[0].mxu0
      %3044 = vdwg.mxu0
      %3045 = vmatprep.subr.bf16.mxu0 %v1987
      %3046 = vmatpush1.bf16.msra.mxu0 %v1986
      %3047 = vmatprep.subr.bf16.mxu0 %v2014
      %3048 = vmatpush1.bf16.msra.mxu0 %v2013
      %3049 = vmatprep.subr.bf16.mxu0 %v2041
      %3050 = vmatpush1.bf16.msra.mxu0 %v2040
      %3051 = vmatprep.subr.bf16.mxu0 %v2068
      %3052 = vmatpush1.bf16.msra.mxu0 %v2067
      %3053 = vmatprep.subr.bf16.mxu0 %v2095
      %3054 = vmatpush1.bf16.msra.mxu0 %v2094
      %3055 = vmatprep.subr.bf16.mxu0 %v2122
      %3056 = vmatpush1.bf16.msra.mxu0 %v2121
      %3057 = vmatprep.subr.bf16.mxu0 %v2149
      %3058 = vmatpush1.bf16.msra.mxu0 %v2148
      %3059 = vmatprep.subr.bf16.mxu0 %v2176
      %3060 = vmatpush1.bf16.msra.mxu0 %v2175
      %3061 = vmatprep.subr.bf16.mxu0 %v2203
      %3062 = vmatpush1.bf16.msra.mxu0 %v2202
      %3063 = vmatprep.subr.bf16.mxu0 %v2230
      %3064 = vmatpush1.bf16.msra.mxu0 %v2229
      %3065 = vmatprep.subr.bf16.mxu0 %v2257
      %3066 = vmatpush1.bf16.msra.mxu0 %v2256
      %3067 = vmatprep.subr.bf16.mxu0 %v2284
      %3068 = vmatpush1.bf16.msra.mxu0 %v2283
      %3069 = vmatprep.subr.bf16.mxu0 %v2311
      %3070 = vmatpush1.bf16.msra.mxu0 %v2310
      %3071 = vmatprep.subr.bf16.mxu0 %v2338
      %3072 = vmatpush1.bf16.msra.mxu0 %v2337
      %3073 = vmatprep.subr.bf16.mxu0 %v2365
      %3074 = vmatpush1.bf16.msra.mxu0 %v2364
      %3075 = vmatprep.subr.bf16.mxu0 %v2392
      %3076 = vmatpush1.bf16.msra.mxu0 %v2391
      %3077 = vmatprep.mubr.bf16.mxu0 %v661
      %3078 = vmatmul.mubr.bf16.gmra.mrb[0].mxu0 %v660
      %v3079 = vpop.f32.mrb[0].mxu0
      %v3080 = vadd.f32 0.0, %v3079
      %v3081 = vpop.f32.mrb[0].mxu0
      %v3082 = vadd.f32 0.0, %v3081
      %v3083 = vpop.f32.mrb[0].mxu0
      %v3084 = vpop.f32.mrb[0].mxu0
      %3085 = vdwg.mxu0
      %3086 = vmatprep.subr.bf16.mxu0 %v1989
      %3087 = vmatpush1.bf16.msra.mxu0 %v1988
      %3088 = vmatprep.subr.bf16.mxu0 %v2016
      %3089 = vmatpush1.bf16.msra.mxu0 %v2015
      %3090 = vmatprep.subr.bf16.mxu0 %v2043
      %3091 = vmatpush1.bf16.msra.mxu0 %v2042
      %3092 = vmatprep.subr.bf16.mxu0 %v2070
      %3093 = vmatpush1.bf16.msra.mxu0 %v2069
      %3094 = vmatprep.subr.bf16.mxu0 %v2097
      %3095 = vmatpush1.bf16.msra.mxu0 %v2096
      %3096 = vmatprep.subr.bf16.mxu0 %v2124
      %3097 = vmatpush1.bf16.msra.mxu0 %v2123
      %3098 = vmatprep.subr.bf16.mxu0 %v2151
      %3099 = vmatpush1.bf16.msra.mxu0 %v2150
      %3100 = vmatprep.subr.bf16.mxu0 %v2178
      %3101 = vmatpush1.bf16.msra.mxu0 %v2177
      %3102 = vmatprep.subr.bf16.mxu0 %v2205
      %3103 = vmatpush1.bf16.msra.mxu0 %v2204
      %3104 = vmatprep.subr.bf16.mxu0 %v2232
      %3105 = vmatpush1.bf16.msra.mxu0 %v2231
      %3106 = vmatprep.subr.bf16.mxu0 %v2259
      %3107 = vmatpush1.bf16.msra.mxu0 %v2258
      %3108 = vmatprep.subr.bf16.mxu0 %v2286
      %3109 = vmatpush1.bf16.msra.mxu0 %v2285
      %3110 = vmatprep.subr.bf16.mxu0 %v2313
      %3111 = vmatpush1.bf16.msra.mxu0 %v2312
      %3112 = vmatprep.subr.bf16.mxu0 %v2340
      %3113 = vmatpush1.bf16.msra.mxu0 %v2339
      %3114 = vmatprep.subr.bf16.mxu0 %v2367
      %3115 = vmatpush1.bf16.msra.mxu0 %v2366
      %3116 = vmatprep.subr.bf16.mxu0 %v2394
      %3117 = vmatpush1.bf16.msra.mxu0 %v2393
      %3118 = vmatprep.mubr.bf16.mxu0 %v661
      %3119 = vmatmul.mubr.bf16.gmra.mrb[0].mxu0 %v660
      %v3120 = vpop.f32.mrb[0].mxu0
      %v3121 = vadd.f32 0.0, %v3120
      %v3122 = vpop.f32.mrb[0].mxu0
      %v3123 = vadd.f32 0.0, %v3122
      %v3124 = vpop.f32.mrb[0].mxu0
      %v3125 = vpop.f32.mrb[0].mxu0
      %3126 = vdwg.mxu0
      %3127 = vmatprep.subr.bf16.mxu0 %v1991
      %3128 = vmatpush1.bf16.msra.mxu0 %v1990
      %3129 = vmatprep.subr.bf16.mxu0 %v2018
      %3130 = vmatpush1.bf16.msra.mxu0 %v2017
      %3131 = vmatprep.subr.bf16.mxu0 %v2045
      %3132 = vmatpush1.bf16.msra.mxu0 %v2044
      %3133 = vmatprep.subr.bf16.mxu0 %v2072
      %3134 = vmatpush1.bf16.msra.mxu0 %v2071
      %3135 = vmatprep.subr.bf16.mxu0 %v2099
      %3136 = vmatpush1.bf16.msra.mxu0 %v2098
      %3137 = vmatprep.subr.bf16.mxu0 %v2126
      %3138 = vmatpush1.bf16.msra.mxu0 %v2125
      %3139 = vmatprep.subr.bf16.mxu0 %v2153
      %3140 = vmatpush1.bf16.msra.mxu0 %v2152
      %3141 = vmatprep.subr.bf16.mxu0 %v2180
      %3142 = vmatpush1.bf16.msra.mxu0 %v2179
      %3143 = vmatprep.subr.bf16.mxu0 %v2207
      %3144 = vmatpush1.bf16.msra.mxu0 %v2206
      %3145 = vmatprep.subr.bf16.mxu0 %v2234
      %3146 = vmatpush1.bf16.msra.mxu0 %v2233
      %3147 = vmatprep.subr.bf16.mxu0 %v2261
      %3148 = vmatpush1.bf16.msra.mxu0 %v2260
      %3149 = vmatprep.subr.bf16.mxu0 %v2288
      %3150 = vmatpush1.bf16.msra.mxu0 %v2287
      %3151 = vmatprep.subr.bf16.mxu0 %v2315
      %3152 = vmatpush1.bf16.msra.mxu0 %v2314
      %3153 = vmatprep.subr.bf16.mxu0 %v2342
      %3154 = vmatpush1.bf16.msra.mxu0 %v2341
      %3155 = vmatprep.subr.bf16.mxu0 %v2369
      %3156 = vmatpush1.bf16.msra.mxu0 %v2368
      %3157 = vmatprep.subr.bf16.mxu0 %v2396
      %3158 = vmatpush1.bf16.msra.mxu0 %v2395
      %3159 = vmatprep.mubr.bf16.mxu0 %v661
      %3160 = vmatmul.mubr.bf16.gmra.mrb[0].mxu0 %v660
      %v3161 = vpop.f32.mrb[0].mxu0
      %v3162 = vadd.f32 0.0, %v3161
      %v3163 = vpop.f32.mrb[0].mxu0
      %v3164 = vadd.f32 0.0, %v3163
      %v3165 = vpop.f32.mrb[0].mxu0
      %v3166 = vpop.f32.mrb[0].mxu0
      %3167 = vdwg.mxu0
      %3168 = vmatprep.subr.bf16.mxu0 %v1993
      %3169 = vmatpush1.bf16.msra.mxu0 %v1992
      %3170 = vmatprep.subr.bf16.mxu0 %v2020
      %3171 = vmatpush1.bf16.msra.mxu0 %v2019
      %3172 = vmatprep.subr.bf16.mxu0 %v2047
      %3173 = vmatpush1.bf16.msra.mxu0 %v2046
      %3174 = vmatprep.subr.bf16.mxu0 %v2074
      %3175 = vmatpush1.bf16.msra.mxu0 %v2073
      %3176 = vmatprep.subr.bf16.mxu0 %v2101
      %3177 = vmatpush1.bf16.msra.mxu0 %v2100
      %3178 = vmatprep.subr.bf16.mxu0 %v2128
      %3179 = vmatpush1.bf16.msra.mxu0 %v2127
      %3180 = vmatprep.subr.bf16.mxu0 %v2155
      %3181 = vmatpush1.bf16.msra.mxu0 %v2154
      %3182 = vmatprep.subr.bf16.mxu0 %v2182
      %3183 = vmatpush1.bf16.msra.mxu0 %v2181
      %3184 = vmatprep.subr.bf16.mxu0 %v2209
      %3185 = vmatpush1.bf16.msra.mxu0 %v2208
      %3186 = vmatprep.subr.bf16.mxu0 %v2236
      %3187 = vmatpush1.bf16.msra.mxu0 %v2235
      %3188 = vmatprep.subr.bf16.mxu0 %v2263
      %3189 = vmatpush1.bf16.msra.mxu0 %v2262
      %3190 = vmatprep.subr.bf16.mxu0 %v2290
      %3191 = vmatpush1.bf16.msra.mxu0 %v2289
      %3192 = vmatprep.subr.bf16.mxu0 %v2317
      %3193 = vmatpush1.bf16.msra.mxu0 %v2316
      %3194 = vmatprep.subr.bf16.mxu0 %v2344
      %3195 = vmatpush1.bf16.msra.mxu0 %v2343
      %3196 = vmatprep.subr.bf16.mxu0 %v2371
      %3197 = vmatpush1.bf16.msra.mxu0 %v2370
      %3198 = vmatprep.subr.bf16.mxu0 %v2398
      %3199 = vmatpush1.bf16.msra.mxu0 %v2397
      %3200 = vmatprep.mubr.bf16.mxu0 %v661
      %3201 = vmatmul.mubr.bf16.gmra.mrb[0].mxu0 %v660
      %v3202 = vpop.f32.mrb[0].mxu0
      %v3203 = vadd.f32 0.0, %v3202
      %v3204 = vpop.f32.mrb[0].mxu0
      %v3205 = vadd.f32 0.0, %v3204
      %v3206 = vpop.f32.mrb[0].mxu0
      %v3207 = vpop.f32.mrb[0].mxu0
      %3208 = vdwg.mxu0
      %3209 = vmatprep.subr.bf16.mxu0 %v1995
      %3210 = vmatpush1.bf16.msra.mxu0 %v1994
      %3211 = vmatprep.subr.bf16.mxu0 %v2022
      %3212 = vmatpush1.bf16.msra.mxu0 %v2021
      %3213 = vmatprep.subr.bf16.mxu0 %v2049
      %3214 = vmatpush1.bf16.msra.mxu0 %v2048
      %3215 = vmatprep.subr.bf16.mxu0 %v2076
      %3216 = vmatpush1.bf16.msra.mxu0 %v2075
      %3217 = vmatprep.subr.bf16.mxu0 %v2103
      %3218 = vmatpush1.bf16.msra.mxu0 %v2102
      %3219 = vmatprep.subr.bf16.mxu0 %v2130
      %3220 = vmatpush1.bf16.msra.mxu0 %v2129
      %3221 = vmatprep.subr.bf16.mxu0 %v2157
      %3222 = vmatpush1.bf16.msra.mxu0 %v2156
      %3223 = vmatprep.subr.bf16.mxu0 %v2184
      %3224 = vmatpush1.bf16.msra.mxu0 %v2183
      %3225 = vmatprep.subr.bf16.mxu0 %v2211
      %3226 = vmatpush1.bf16.msra.mxu0 %v2210
      %3227 = vmatprep.subr.bf16.mxu0 %v2238
      %3228 = vmatpush1.bf16.msra.mxu0 %v2237
      %3229 = vmatprep.subr.bf16.mxu0 %v2265
      %3230 = vmatpush1.bf16.msra.mxu0 %v2264
      %3231 = vmatprep.subr.bf16.mxu0 %v2292
      %3232 = vmatpush1.bf16.msra.mxu0 %v2291
      %3233 = vmatprep.subr.bf16.mxu0 %v2319
      %3234 = vmatpush1.bf16.msra.mxu0 %v2318
      %3235 = vmatprep.subr.bf16.mxu0 %v2346
      %3236 = vmatpush1.bf16.msra.mxu0 %v2345
      %3237 = vmatprep.subr.bf16.mxu0 %v2373
      %3238 = vmatpush1.bf16.msra.mxu0 %v2372
      %3239 = vmatprep.subr.bf16.mxu0 %v2400
      %3240 = vmatpush1.bf16.msra.mxu0 %v2399
      %3241 = vmatprep.mubr.bf16.mxu0 %v661
      %3242 = vmatmul.mubr.bf16.gmra.mrb[0].mxu0 %v660
      %v3243 = vpop.f32.mrb[0].mxu0
      %v3244 = vadd.f32 0.0, %v3243
      %v3245 = vpop.f32.mrb[0].mxu0
      %v3246 = vadd.f32 0.0, %v3245
      %v3247 = vpop.f32.mrb[0].mxu0
      %v3248 = vpop.f32.mrb[0].mxu0
      %3249 = vdwg.mxu0
      %3250 = vmatprep.subr.bf16.mxu0 %v1997
      %3251 = vmatpush1.bf16.msra.mxu0 %v1996
      %3252 = vmatprep.subr.bf16.mxu0 %v2024
      %3253 = vmatpush1.bf16.msra.mxu0 %v2023
      %3254 = vmatprep.subr.bf16.mxu0 %v2051
      %3255 = vmatpush1.bf16.msra.mxu0 %v2050
      %3256 = vmatprep.subr.bf16.mxu0 %v2078
      %3257 = vmatpush1.bf16.msra.mxu0 %v2077
      %3258 = vmatprep.subr.bf16.mxu0 %v2105
      %3259 = vmatpush1.bf16.msra.mxu0 %v2104
      %3260 = vmatprep.subr.bf16.mxu0 %v2132
      %3261 = vmatpush1.bf16.msra.mxu0 %v2131
      %3262 = vmatprep.subr.bf16.mxu0 %v2159
      %3263 = vmatpush1.bf16.msra.mxu0 %v2158
      %3264 = vmatprep.subr.bf16.mxu0 %v2186
      %3265 = vmatpush1.bf16.msra.mxu0 %v2185
      %3266 = vmatprep.subr.bf16.mxu0 %v2213
      %3267 = vmatpush1.bf16.msra.mxu0 %v2212
      %3268 = vmatprep.subr.bf16.mxu0 %v2240
      %3269 = vmatpush1.bf16.msra.mxu0 %v2239
      %3270 = vmatprep.subr.bf16.mxu0 %v2267
      %3271 = vmatpush1.bf16.msra.mxu0 %v2266
      %3272 = vmatprep.subr.bf16.mxu0 %v2294
      %3273 = vmatpush1.bf16.msra.mxu0 %v2293
      %3274 = vmatprep.subr.bf16.mxu0 %v2321
      %3275 = vmatpush1.bf16.msra.mxu0 %v2320
      %3276 = vmatprep.subr.bf16.mxu0 %v2348
      %3277 = vmatpush1.bf16.msra.mxu0 %v2347
      %3278 = vmatprep.subr.bf16.mxu0 %v2375
      %3279 = vmatpush1.bf16.msra.mxu0 %v2374
      %3280 = vmatprep.subr.bf16.mxu0 %v2402
      %3281 = vmatpush1.bf16.msra.mxu0 %v2401
      %3282 = vmatprep.mubr.bf16.mxu0 %v661
      %3283 = vmatmul.mubr.bf16.gmra.mrb[0].mxu0 %v660
      %v3284 = vpop.f32.mrb[0].mxu0
      %v3285 = vadd.f32 0.0, %v3284
      %v3286 = vpop.f32.mrb[0].mxu0
      %v3287 = vadd.f32 0.0, %v3286
      %v3288 = vpop.f32.mrb[0].mxu0
      %v3289 = vpop.f32.mrb[0].mxu0
      %3290 = vdwg.mxu0
      %3291 = vmatprep.subr.bf16.mxu0 %v1999
      %3292 = vmatpush1.bf16.msra.mxu0 %v1998
      %3293 = vmatprep.subr.bf16.mxu0 %v2026
      %3294 = vmatpush1.bf16.msra.mxu0 %v2025
      %3295 = vmatprep.subr.bf16.mxu0 %v2053
      %3296 = vmatpush1.bf16.msra.mxu0 %v2052
      %3297 = vmatprep.subr.bf16.mxu0 %v2080
      %3298 = vmatpush1.bf16.msra.mxu0 %v2079
      %3299 = vmatprep.subr.bf16.mxu0 %v2107
      %3300 = vmatpush1.bf16.msra.mxu0 %v2106
      %3301 = vmatprep.subr.bf16.mxu0 %v2134
      %3302 = vmatpush1.bf16.msra.mxu0 %v2133
      %3303 = vmatprep.subr.bf16.mxu0 %v2161
      %3304 = vmatpush1.bf16.msra.mxu0 %v2160
      %3305 = vmatprep.subr.bf16.mxu0 %v2188
      %3306 = vmatpush1.bf16.msra.mxu0 %v2187
      %3307 = vmatprep.subr.bf16.mxu0 %v2215
      %3308 = vmatpush1.bf16.msra.mxu0 %v2214
      %3309 = vmatprep.subr.bf16.mxu0 %v2242
      %3310 = vmatpush1.bf16.msra.mxu0 %v2241
      %3311 = vmatprep.subr.bf16.mxu0 %v2269
      %3312 = vmatpush1.bf16.msra.mxu0 %v2268
      %3313 = vmatprep.subr.bf16.mxu0 %v2296
      %3314 = vmatpush1.bf16.msra.mxu0 %v2295
      %3315 = vmatprep.subr.bf16.mxu0 %v2323
      %3316 = vmatpush1.bf16.msra.mxu0 %v2322
      %3317 = vmatprep.subr.bf16.mxu0 %v2350
      %3318 = vmatpush1.bf16.msra.mxu0 %v2349
      %3319 = vmatprep.subr.bf16.mxu0 %v2377
      %3320 = vmatpush1.bf16.msra.mxu0 %v2376
      %3321 = vmatprep.subr.bf16.mxu0 %v2404
      %3322 = vmatpush1.bf16.msra.mxu0 %v2403
      %3323 = vmatprep.mubr.bf16.mxu0 %v661
      %3324 = vmatmul.mubr.bf16.gmra.mrb[0].mxu0 %v660
      %v3325 = vpop.f32.mrb[0].mxu0
      %v3326 = vadd.f32 0.0, %v3325
      %v3327 = vpop.f32.mrb[0].mxu0
      %v3328 = vadd.f32 0.0, %v3327
      %v3329 = vpop.f32.mrb[0].mxu0
      %v3330 = vpop.f32.mrb[0].mxu0
      %3331 = vdwg.mxu0
      %3332 = vmatprep.subr.bf16.mxu0 %v2001
      %3333 = vmatpush1.bf16.msra.mxu0 %v2000
      %3334 = vmatprep.subr.bf16.mxu0 %v2028
      %3335 = vmatpush1.bf16.msra.mxu0 %v2027
      %3336 = vmatprep.subr.bf16.mxu0 %v2055
      %3337 = vmatpush1.bf16.msra.mxu0 %v2054
      %3338 = vmatprep.subr.bf16.mxu0 %v2082
      %3339 = vmatpush1.bf16.msra.mxu0 %v2081
      %3340 = vmatprep.subr.bf16.mxu0 %v2109
      %3341 = vmatpush1.bf16.msra.mxu0 %v2108
      %3342 = vmatprep.subr.bf16.mxu0 %v2136
      %3343 = vmatpush1.bf16.msra.mxu0 %v2135
      %3344 = vmatprep.subr.bf16.mxu0 %v2163
      %3345 = vmatpush1.bf16.msra.mxu0 %v2162
      %3346 = vmatprep.subr.bf16.mxu0 %v2190
      %3347 = vmatpush1.bf16.msra.mxu0 %v2189
      %3348 = vmatprep.subr.bf16.mxu0 %v2217
      %3349 = vmatpush1.bf16.msra.mxu0 %v2216
      %3350 = vmatprep.subr.bf16.mxu0 %v2244
      %3351 = vmatpush1.bf16.msra.mxu0 %v2243
      %3352 = vmatprep.subr.bf16.mxu0 %v2271
      %3353 = vmatpush1.bf16.msra.mxu0 %v2270
      %3354 = vmatprep.subr.bf16.mxu0 %v2298
      %3355 = vmatpush1.bf16.msra.mxu0 %v2297
      %3356 = vmatprep.subr.bf16.mxu0 %v2325
      %3357 = vmatpush1.bf16.msra.mxu0 %v2324
      %3358 = vmatprep.subr.bf16.mxu0 %v2352
      %3359 = vmatpush1.bf16.msra.mxu0 %v2351
      %3360 = vmatprep.subr.bf16.mxu0 %v2379
      %3361 = vmatpush1.bf16.msra.mxu0 %v2378
      %3362 = vmatprep.subr.bf16.mxu0 %v2406
      %3363 = vmatpush1.bf16.msra.mxu0 %v2405
      %3364 = vmatprep.mubr.bf16.mxu0 %v661
      %3365 = vmatmul.mubr.bf16.gmra.mrb[0].mxu0 %v660
      %v3366 = vpop.f32.mrb[0].mxu0
      %v3367 = vadd.f32 0.0, %v3366
      %v3368 = vpop.f32.mrb[0].mxu0
      %v3369 = vadd.f32 0.0, %v3368
      %v3370 = vpop.f32.mrb[0].mxu0
      %v3371 = vpop.f32.mrb[0].mxu0
      %3372 = vdwg.mxu0
      %3373 = vmatprep.subr.bf16.mxu0 0
      %3374 = vmatpush1.bf16.msra.mxu0 %v2002
      %3375 = vmatprep.subr.bf16.mxu0 0
      %3376 = vmatpush1.bf16.msra.mxu0 %v2029
      %3377 = vmatprep.subr.bf16.mxu0 0
      %3378 = vmatpush1.bf16.msra.mxu0 %v2056
      %3379 = vmatprep.subr.bf16.mxu0 0
      %3380 = vmatpush1.bf16.msra.mxu0 %v2083
      %3381 = vmatprep.subr.bf16.mxu0 0
      %3382 = vmatpush1.bf16.msra.mxu0 %v2110
      %3383 = vmatprep.subr.bf16.mxu0 0
      %3384 = vmatpush1.bf16.msra.mxu0 %v2137
      %3385 = vmatprep.subr.bf16.mxu0 0
      %3386 = vmatpush1.bf16.msra.mxu0 %v2164
      %3387 = vmatprep.subr.bf16.mxu0 0
      %3388 = vmatpush1.bf16.msra.mxu0 %v2191
      %3389 = vmatprep.subr.bf16.mxu0 0
      %3390 = vmatpush1.bf16.msra.mxu0 %v2218
      %3391 = vmatprep.subr.bf16.mxu0 0
      %3392 = vmatpush1.bf16.msra.mxu0 %v2245
      %3393 = vmatprep.subr.bf16.mxu0 0
      %3394 = vmatpush1.bf16.msra.mxu0 %v2272
      %3395 = vmatprep.subr.bf16.mxu0 0
      %3396 = vmatpush1.bf16.msra.mxu0 %v2299
      %3397 = vmatprep.subr.bf16.mxu0 0
      %3398 = vmatpush1.bf16.msra.mxu0 %v2326
      %3399 = vmatprep.subr.bf16.mxu0 0
      %3400 = vmatpush1.bf16.msra.mxu0 %v2353
      %3401 = vmatprep.subr.bf16.mxu0 0
      %3402 = vmatpush1.bf16.msra.mxu0 %v2380
      %3403 = vmatprep.subr.bf16.mxu0 0
      %3404 = vmatpush1.bf16.msra.mxu0 %v2407
      %3405 = vmatprep.mubr.bf16.mxu0 %v661
      %3406 = vmatmul.mubr.bf16.gmra.mrb[0].mxu0 %v660
      %v3407 = vpop.f32.mrb[0].mxu0
      %v3408 = vadd.f32 0.0, %v3407
      %v3409 = vpop.f32.mrb[0].mxu0
      %v3410 = vpop.f32.mrb[0].mxu0
      %v3411 = vpop.f32.mrb[0].mxu0
      %3412 = vdwg.mxu0
      %v3413 = vadd.f32 %v181, %v2875
      %v3414 = vadd.f32 %v182, %v2877
      %v3415 = vadd.f32 %v183, %v2916
      %v3416 = vadd.f32 %v184, %v2918
      %v3417 = vadd.f32 %v185, %v2957
      %v3418 = vadd.f32 %v186, %v2959
      %v3419 = vadd.f32 %v187, %v2998
      %v3420 = vadd.f32 %v188, %v3000
      %v3421 = vadd.f32 %v189, %v3039
      %v3422 = vadd.f32 %v190, %v3041
      %v3423 = vadd.f32 %v191, %v3080
      %v3424 = vadd.f32 %v192, %v3082
      %v3425 = vadd.f32 %v193, %v3121
      %v3426 = vadd.f32 %v194, %v3123
      %v3427 = vadd.f32 %v195, %v3162
      %v3428 = vadd.f32 %v196, %v3164
      %v3429 = vadd.f32 %v197, %v3203
      %v3430 = vadd.f32 %v198, %v3205
      %v3431 = vadd.f32 %v199, %v3244
      %v3432 = vadd.f32 %v200, %v3246
      %v3433 = vadd.f32 %v201, %v3285
      %v3434 = vadd.f32 %v202, %v3287
      %v3435 = vadd.f32 %v203, %v3326
      %v3436 = vadd.f32 %v204, %v3328
      %v3437 = vadd.f32 %v205, %v3367
      %v3438 = vadd.f32 %v206, %v3369
      %v3439 = vadd.f32 %v207, %v3408
      %3440 = vst [vmem:[#allocation2] sm:$0xff] %v3413
      %3441 = vst [vmem:[#allocation2 + $0x8] sm:$0xff] %v3414
      %3442 = vst [vmem:[#allocation2 + $0x10] sm:$0xff] %v3415
      %3443 = vst [vmem:[#allocation2 + $0x18] sm:$0xff] %v3416
      %3444 = vst [vmem:[#allocation2 + $0x20] sm:$0xff] %v3417
      %3445 = vst [vmem:[#allocation2 + $0x28] sm:$0xff] %v3418
      %3446 = vst [vmem:[#allocation2 + $0x30] sm:$0xff] %v3419
      %3447 = vst [vmem:[#allocation2 + $0x38] sm:$0xff] %v3420
      %3448 = vst [vmem:[#allocation2 + $0x40] sm:$0xff] %v3421
      %3449 = vst [vmem:[#allocation2 + $0x48] sm:$0xff] %v3422
      %3450 = vst [vmem:[#allocation2 + $0x50] sm:$0xff] %v3423
      %3451 = vst [vmem:[#allocation2 + $0x58] sm:$0xff] %v3424
      %3452 = vst [vmem:[#allocation2 + $0x60] sm:$0xff] %v3425
      %3453 = vst [vmem:[#allocation2 + $0x68] sm:$0xff] %v3426
      %3454 = vst [vmem:[#allocation2 + $0x70] sm:$0xff] %v3427
      %3455 = vst [vmem:[#allocation2 + $0x78] sm:$0xff] %v3428
      %3456 = vst [vmem:[#allocation2 + $0x80] sm:$0xff] %v3429
      %3457 = vst [vmem:[#allocation2 + $0x88] sm:$0xff] %v3430
      %3458 = vst [vmem:[#allocation2 + $0x90] sm:$0xff] %v3431
      %3459 = vst [vmem:[#allocation2 + $0x98] sm:$0xff] %v3432
      %3460 = vst [vmem:[#allocation2 + $0xa0] sm:$0xff] %v3433
      %3461 = vst [vmem:[#allocation2 + $0xa8] sm:$0xff] %v3434
      %3462 = vst [vmem:[#allocation2 + $0xb0] sm:$0xff] %v3435
      %3463 = vst [vmem:[#allocation2 + $0xb8] sm:$0xff] %v3436
      %3464 = vst [vmem:[#allocation2 + $0xc0] sm:$0xff] %v3437
      %3465 = vst [vmem:[#allocation2 + $0xc8] sm:$0xff] %v3438
      %3466 = vst [vmem:[#allocation2 + $0xd0] sm:$0xff] %v3439
      %p3467 = scmp.eq.s32.totalorder %s13, 3
      // Predicated region
      $region33: #{ae_forward.15} parent=27 // pred_check
        %p3468 = pneg %p3467
      $region34: #{ae_forward.15} parent=27 // pred_check_branch
        %3470 = sbr.rel (%p3468) target = $region36
      $region35: #{ae_forward.15} parent=27 // pred_region
        %v3471 = vld [vmem:[#allocation2] sm:$0xff]
        %v3472 = vld [vmem:[#allocation2 + $0x8] sm:$0xff]
        %v3473 = vld [vmem:[#allocation2 + $0x10] sm:$0xff]
        %v3474 = vld [vmem:[#allocation2 + $0x18] sm:$0xff]
        %v3475 = vld [vmem:[#allocation2 + $0x20] sm:$0xff]
        %v3476 = vld [vmem:[#allocation2 + $0x28] sm:$0xff]
        %v3477 = vld [vmem:[#allocation2 + $0x30] sm:$0xff]
        %v3478 = vld [vmem:[#allocation2 + $0x38] sm:$0xff]
        %v3479 = vld [vmem:[#allocation2 + $0x40] sm:$0xff]
        %v3480 = vld [vmem:[#allocation2 + $0x48] sm:$0xff]
        %v3481 = vld [vmem:[#allocation2 + $0x50] sm:$0xff]
        %v3482 = vld [vmem:[#allocation2 + $0x58] sm:$0xff]
        %v3483 = vld [vmem:[#allocation2 + $0x60] sm:$0xff]
        %v3484 = vld [vmem:[#allocation2 + $0x68] sm:$0xff]
        %v3485 = vld [vmem:[#allocation2 + $0x70] sm:$0xff]
        %v3486 = vld [vmem:[#allocation2 + $0x78] sm:$0xff]
        %v3487 = vld [vmem:[#allocation2 + $0x80] sm:$0xff]
        %v3488 = vld [vmem:[#allocation2 + $0x88] sm:$0xff]
        %v3489 = vld [vmem:[#allocation2 + $0x90] sm:$0xff]
        %v3490 = vld [vmem:[#allocation2 + $0x98] sm:$0xff]
        %v3491 = vld [vmem:[#allocation2 + $0xa0] sm:$0xff]
        %v3492 = vld [vmem:[#allocation2 + $0xa8] sm:$0xff]
        %v3493 = vld [vmem:[#allocation2 + $0xb0] sm:$0xff]
        %v3494 = vld [vmem:[#allocation2 + $0xb8] sm:$0xff]
        %v3495 = vld [vmem:[#allocation2 + $0xc0] sm:$0xff]
        %v3496 = vld [vmem:[#allocation2 + $0xc8] sm:$0xff]
        %v3497 = vld [vmem:[#allocation2 + $0xd0] sm:$0xff]
        %v3498 = vadd.f32 %v3471, %v3472
        %v3499 = vadd.f32 %v3498, %v3473
        %v3500 = vadd.f32 %v3499, %v3474
        %v3501 = vadd.f32 %v3500, %v3475
        %v3502 = vadd.f32 %v3501, %v3476
        %v3503 = vadd.f32 %v3502, %v3477
        %v3504 = vadd.f32 %v3503, %v3478
        %v3505 = vadd.f32 %v3504, %v3479
        %v3506 = vadd.f32 %v3505, %v3480
        %v3507 = vadd.f32 %v3506, %v3481
        %v3508 = vadd.f32 %v3507, %v3482
        %v3509 = vadd.f32 %v3508, %v3483
        %v3510 = vadd.f32 %v3509, %v3484
        %v3511 = vadd.f32 %v3510, %v3485
        %v3512 = vadd.f32 %v3511, %v3486
        %v3513 = vadd.f32 %v3512, %v3487
        %v3514 = vadd.f32 %v3513, %v3488
        %v3515 = vadd.f32 %v3514, %v3489
        %v3516 = vadd.f32 %v3515, %v3490
        %v3517 = vadd.f32 %v3516, %v3491
        %v3518 = vadd.f32 %v3517, %v3492
        %v3519 = vadd.f32 %v3518, %v3493
        %v3520 = vadd.f32 %v3519, %v3494
        %v3521 = vadd.f32 %v3520, %v3495
        %v3522 = vadd.f32 %v3521, %v3496
        %v3523 = vadd.f32 %v3522, %v3497
        %3524 = vadd.xlane.f32.xlu0 %v3523
        %v3525 = vpop.xlane.xlu0 %3524
        %v3526 = vmul.f32 %v3525, 0.00028935185
        %v3527 = vmul.f32 %v3471, %v3471
        %v3528 = vmul.f32 %v3472, %v3472
        %v3529 = vmul.f32 %v3473, %v3473
        %v3530 = vmul.f32 %v3474, %v3474
        %v3531 = vmul.f32 %v3475, %v3475
        %v3532 = vmul.f32 %v3476, %v3476
        %v3533 = vmul.f32 %v3477, %v3477
        %v3534 = vmul.f32 %v3478, %v3478
        %v3535 = vmul.f32 %v3479, %v3479
        %v3536 = vmul.f32 %v3480, %v3480
        %v3537 = vmul.f32 %v3481, %v3481
        %v3538 = vmul.f32 %v3482, %v3482
        %v3539 = vmul.f32 %v3483, %v3483
        %v3540 = vmul.f32 %v3484, %v3484
        %v3541 = vmul.f32 %v3485, %v3485
        %v3542 = vmul.f32 %v3486, %v3486
        %v3543 = vmul.f32 %v3487, %v3487
        %v3544 = vmul.f32 %v3488, %v3488
        %v3545 = vmul.f32 %v3489, %v3489
        %v3546 = vmul.f32 %v3490, %v3490
        %v3547 = vmul.f32 %v3491, %v3491
        %v3548 = vmul.f32 %v3492, %v3492
        %v3549 = vmul.f32 %v3493, %v3493
        %v3550 = vmul.f32 %v3494, %v3494
        %v3551 = vmul.f32 %v3495, %v3495
        %v3552 = vmul.f32 %v3496, %v3496
        %v3553 = vmul.f32 %v3497, %v3497
        %v3554 = vadd.f32 %v3527, %v3528
        %v3555 = vadd.f32 %v3554, %v3529
        %v3556 = vadd.f32 %v3555, %v3530
        %v3557 = vadd.f32 %v3556, %v3531
        %v3558 = vadd.f32 %v3557, %v3532
        %v3559 = vadd.f32 %v3558, %v3533
        %v3560 = vadd.f32 %v3559, %v3534
        %v3561 = vadd.f32 %v3560, %v3535
        %v3562 = vadd.f32 %v3561, %v3536
        %v3563 = vadd.f32 %v3562, %v3537
        %v3564 = vadd.f32 %v3563, %v3538
        %v3565 = vadd.f32 %v3564, %v3539
        %v3566 = vadd.f32 %v3565, %v3540
        %v3567 = vadd.f32 %v3566, %v3541
        %v3568 = vadd.f32 %v3567, %v3542
        %v3569 = vadd.f32 %v3568, %v3543
        %v3570 = vadd.f32 %v3569, %v3544
        %v3571 = vadd.f32 %v3570, %v3545
        %v3572 = vadd.f32 %v3571, %v3546
        %v3573 = vadd.f32 %v3572, %v3547
        %v3574 = vadd.f32 %v3573, %v3548
        %v3575 = vadd.f32 %v3574, %v3549
        %v3576 = vadd.f32 %v3575, %v3550
        %v3577 = vadd.f32 %v3576, %v3551
        %v3578 = vadd.f32 %v3577, %v3552
        %v3579 = vadd.f32 %v3578, %v3553
        %3580 = vadd.xlane.f32.xlu0 %v3579
        %v3581 = vpop.xlane.xlu0 %3580
        %v3582 = vmul.f32 %v3581, 0.00028935185
        %v3583 = vmul.f32 %v3526, %v3526
        %v3584 = vsub.f32 %v3582, %v3583
        %v3585 = vmax.f32 %v3584, 0.0
        %v3586 = vsub.f32 %v3471, %v3526
        %v3587 = vsub.f32 %v3472, %v3526
        %v3588 = vsub.f32 %v3473, %v3526
        %v3589 = vsub.f32 %v3474, %v3526
        %v3590 = vsub.f32 %v3475, %v3526
        %v3591 = vsub.f32 %v3476, %v3526
        %v3592 = vsub.f32 %v3477, %v3526
        %v3593 = vsub.f32 %v3478, %v3526
        %v3594 = vsub.f32 %v3479, %v3526
        %v3595 = vsub.f32 %v3480, %v3526
        %v3596 = vsub.f32 %v3481, %v3526
        %v3597 = vsub.f32 %v3482, %v3526
        %v3598 = vsub.f32 %v3483, %v3526
        %v3599 = vsub.f32 %v3484, %v3526
        %v3600 = vsub.f32 %v3485, %v3526
        %v3601 = vsub.f32 %v3486, %v3526
        %v3602 = vsub.f32 %v3487, %v3526
        %v3603 = vsub.f32 %v3488, %v3526
        %v3604 = vsub.f32 %v3489, %v3526
        %v3605 = vsub.f32 %v3490, %v3526
        %v3606 = vsub.f32 %v3491, %v3526
        %v3607 = vsub.f32 %v3492, %v3526
        %v3608 = vsub.f32 %v3493, %v3526
        %v3609 = vsub.f32 %v3494, %v3526
        %v3610 = vsub.f32 %v3495, %v3526
        %v3611 = vsub.f32 %v3496, %v3526
        %v3612 = vsub.f32 %v3497, %v3526
        %v3613 = vadd.f32 %v3585, 1e-05
        %v3614 = vrsqrt.pop %v3613
        %v3615 = vmul.f32 %v3586, %v3614
        %v3616 = vmul.f32 %v3587, %v3614
        %v3617 = vmul.f32 %v3588, %v3614
        %v3618 = vmul.f32 %v3589, %v3614
        %v3619 = vmul.f32 %v3590, %v3614
        %v3620 = vmul.f32 %v3591, %v3614
        %v3621 = vmul.f32 %v3592, %v3614
        %v3622 = vmul.f32 %v3593, %v3614
        %v3623 = vmul.f32 %v3594, %v3614
        %v3624 = vmul.f32 %v3595, %v3614
        %v3625 = vmul.f32 %v3596, %v3614
        %v3626 = vmul.f32 %v3597, %v3614
        %v3627 = vmul.f32 %v3598, %v3614
        %v3628 = vmul.f32 %v3599, %v3614
        %v3629 = vmul.f32 %v3600, %v3614
        %v3630 = vmul.f32 %v3601, %v3614
        %v3631 = vmul.f32 %v3602, %v3614
        %v3632 = vmul.f32 %v3603, %v3614
        %v3633 = vmul.f32 %v3604, %v3614
        %v3634 = vmul.f32 %v3605, %v3614
        %v3635 = vmul.f32 %v3606, %v3614
        %v3636 = vmul.f32 %v3607, %v3614
        %v3637 = vmul.f32 %v3608, %v3614
        %v3638 = vmul.f32 %v3609, %v3614
        %v3639 = vmul.f32 %v3610, %v3614
        %v3640 = vmul.f32 %v3611, %v3614
        %v3641 = vmul.f32 %v3612, %v3614
        %v3642 = vmax.f32 %v3615, 0.0
        %v3643 = vmax.f32 %v3616, 0.0
        %v3644 = vmax.f32 %v3617, 0.0
        %v3645 = vmax.f32 %v3618, 0.0
        %v3646 = vmax.f32 %v3619, 0.0
        %v3647 = vmax.f32 %v3620, 0.0
        %v3648 = vmax.f32 %v3621, 0.0
        %v3649 = vmax.f32 %v3622, 0.0
        %v3650 = vmax.f32 %v3623, 0.0
        %v3651 = vmax.f32 %v3624, 0.0
        %v3652 = vmax.f32 %v3625, 0.0
        %v3653 = vmax.f32 %v3626, 0.0
        %v3654 = vmax.f32 %v3627, 0.0
        %v3655 = vmax.f32 %v3628, 0.0
        %v3656 = vmax.f32 %v3629, 0.0
        %v3657 = vmax.f32 %v3630, 0.0
        %v3658 = vmax.f32 %v3631, 0.0
        %v3659 = vmax.f32 %v3632, 0.0
        %v3660 = vmax.f32 %v3633, 0.0
        %v3661 = vmax.f32 %v3634, 0.0
        %v3662 = vmax.f32 %v3635, 0.0
        %v3663 = vmax.f32 %v3636, 0.0
        %v3664 = vmax.f32 %v3637, 0.0
        %v3665 = vmax.f32 %v3638, 0.0
        %v3666 = vmax.f32 %v3639, 0.0
        %v3667 = vmax.f32 %v3640, 0.0
        %v3668 = vmax.f32 %v3641, 0.0
        %v3669 = vxor.u32 %v3642, 2147483648
        %v3670 = vxor.u32 %v3643, 2147483648
        %v3671 = vxor.u32 %v3644, 2147483648
        %v3672 = vxor.u32 %v3645, 2147483648
        %v3673 = vxor.u32 %v3646, 2147483648
        %v3674 = vxor.u32 %v3647, 2147483648
        %v3675 = vxor.u32 %v3648, 2147483648
        %v3676 = vxor.u32 %v3649, 2147483648
        %v3677 = vxor.u32 %v3650, 2147483648
        %v3678 = vxor.u32 %v3651, 2147483648
        %v3679 = vxor.u32 %v3652, 2147483648
        %v3680 = vxor.u32 %v3653, 2147483648
        %v3681 = vxor.u32 %v3654, 2147483648
        %v3682 = vxor.u32 %v3655, 2147483648
        %v3683 = vxor.u32 %v3656, 2147483648
        %v3684 = vxor.u32 %v3657, 2147483648
        %v3685 = vxor.u32 %v3658, 2147483648
        %v3686 = vxor.u32 %v3659, 2147483648
        %v3687 = vxor.u32 %v3660, 2147483648
        %v3688 = vxor.u32 %v3661, 2147483648
        %v3689 = vxor.u32 %v3662, 2147483648
        %v3690 = vxor.u32 %v3663, 2147483648
        %v3691 = vxor.u32 %v3664, 2147483648
        %v3692 = vxor.u32 %v3665, 2147483648
        %v3693 = vxor.u32 %v3666, 2147483648
        %v3694 = vxor.u32 %v3667, 2147483648
        %v3695 = vxor.u32 %v3668, 2147483648
        %v3696 = vmul.f32 %v3669, 1.442695
        %v3697 = vpow.pop %v3696
        %v3698 = vmul.f32 %v3670, 1.442695
        %v3699 = vpow.pop %v3698
        %v3700 = vmul.f32 %v3671, 1.442695
        %v3701 = vpow.pop %v3700
        %v3702 = vmul.f32 %v3672, 1.442695
        %v3703 = vpow.pop %v3702
        %v3704 = vmul.f32 %v3673, 1.442695
        %v3705 = vpow.pop %v3704
        %v3706 = vmul.f32 %v3674, 1.442695
        %v3707 = vpow.pop %v3706
        %v3708 = vmul.f32 %v3675, 1.442695
        %v3709 = vpow.pop %v3708
        %v3710 = vmul.f32 %v3676, 1.442695
        %v3711 = vpow.pop %v3710
        %v3712 = vmul.f32 %v3677, 1.442695
        %v3713 = vpow.pop %v3712
        %v3714 = vmul.f32 %v3678, 1.442695
        %v3715 = vpow.pop %v3714
        %v3716 = vmul.f32 %v3679, 1.442695
        %v3717 = vpow.pop %v3716
        %v3718 = vmul.f32 %v3680, 1.442695
        %v3719 = vpow.pop %v3718
        %v3720 = vmul.f32 %v3681, 1.442695
        %v3721 = vpow.pop %v3720
        %v3722 = vmul.f32 %v3682, 1.442695
        %v3723 = vpow.pop %v3722
        %v3724 = vmul.f32 %v3683, 1.442695
        %v3725 = vpow.pop %v3724
        %v3726 = vmul.f32 %v3684, 1.442695
        %v3727 = vpow.pop %v3726
        %v3728 = vmul.f32 %v3685, 1.442695
        %v3729 = vpow.pop %v3728
        %v3730 = vmul.f32 %v3686, 1.442695
        %v3731 = vpow.pop %v3730
        %v3732 = vmul.f32 %v3687, 1.442695
        %v3733 = vpow.pop %v3732
        %v3734 = vmul.f32 %v3688, 1.442695
        %v3735 = vpow.pop %v3734
        %v3736 = vmul.f32 %v3689, 1.442695
        %v3737 = vpow.pop %v3736
        %v3738 = vmul.f32 %v3690, 1.442695
        %v3739 = vpow.pop %v3738
        %v3740 = vmul.f32 %v3691, 1.442695
        %v3741 = vpow.pop %v3740
        %v3742 = vmul.f32 %v3692, 1.442695
        %v3743 = vpow.pop %v3742
        %v3744 = vmul.f32 %v3693, 1.442695
        %v3745 = vpow.pop %v3744
        %v3746 = vmul.f32 %v3694, 1.442695
        %v3747 = vpow.pop %v3746
        %v3748 = vmul.f32 %v3695, 1.442695
        %v3749 = vpow.pop %v3748
        %v3750 = vadd.f32 %v3697, 1.0
        %v3751 = vadd.f32 %v3699, 1.0
        %v3752 = vadd.f32 %v3701, 1.0
        %v3753 = vadd.f32 %v3703, 1.0
        %v3754 = vadd.f32 %v3705, 1.0
        %v3755 = vadd.f32 %v3707, 1.0
        %v3756 = vadd.f32 %v3709, 1.0
        %v3757 = vadd.f32 %v3711, 1.0
        %v3758 = vadd.f32 %v3713, 1.0
        %v3759 = vadd.f32 %v3715, 1.0
        %v3760 = vadd.f32 %v3717, 1.0
        %v3761 = vadd.f32 %v3719, 1.0
        %v3762 = vadd.f32 %v3721, 1.0
        %v3763 = vadd.f32 %v3723, 1.0
        %v3764 = vadd.f32 %v3725, 1.0
        %v3765 = vadd.f32 %v3727, 1.0
        %v3766 = vadd.f32 %v3729, 1.0
        %v3767 = vadd.f32 %v3731, 1.0
        %v3768 = vadd.f32 %v3733, 1.0
        %v3769 = vadd.f32 %v3735, 1.0
        %v3770 = vadd.f32 %v3737, 1.0
        %v3771 = vadd.f32 %v3739, 1.0
        %v3772 = vadd.f32 %v3741, 1.0
        %v3773 = vadd.f32 %v3743, 1.0
        %v3774 = vadd.f32 %v3745, 1.0
        %v3775 = vadd.f32 %v3747, 1.0
        %v3776 = vadd.f32 %v3749, 1.0
        %v3777 = vrcp.pop %v3750
        %v3778 = vmul.f32 1.0, %v3777
        %v3779 = vrcp.pop %v3751
        %v3780 = vmul.f32 1.0, %v3779
        %v3781 = vrcp.pop %v3752
        %v3782 = vmul.f32 1.0, %v3781
        %v3783 = vrcp.pop %v3753
        %v3784 = vmul.f32 1.0, %v3783
        %v3785 = vrcp.pop %v3754
        %v3786 = vmul.f32 1.0, %v3785
        %v3787 = vrcp.pop %v3755
        %v3788 = vmul.f32 1.0, %v3787
        %v3789 = vrcp.pop %v3756
        %v3790 = vmul.f32 1.0, %v3789
        %v3791 = vrcp.pop %v3757
        %v3792 = vmul.f32 1.0, %v3791
        %v3793 = vrcp.pop %v3758
        %v3794 = vmul.f32 1.0, %v3793
        %v3795 = vrcp.pop %v3759
        %v3796 = vmul.f32 1.0, %v3795
        %v3797 = vrcp.pop %v3760
        %v3798 = vmul.f32 1.0, %v3797
        %v3799 = vrcp.pop %v3761
        %v3800 = vmul.f32 1.0, %v3799
        %v3801 = vrcp.pop %v3762
        %v3802 = vmul.f32 1.0, %v3801
        %v3803 = vrcp.pop %v3763
        %v3804 = vmul.f32 1.0, %v3803
        %v3805 = vrcp.pop %v3764
        %v3806 = vmul.f32 1.0, %v3805
        %v3807 = vrcp.pop %v3765
        %v3808 = vmul.f32 1.0, %v3807
        %v3809 = vrcp.pop %v3766
        %v3810 = vmul.f32 1.0, %v3809
        %v3811 = vrcp.pop %v3767
        %v3812 = vmul.f32 1.0, %v3811
        %v3813 = vrcp.pop %v3768
        %v3814 = vmul.f32 1.0, %v3813
        %v3815 = vrcp.pop %v3769
        %v3816 = vmul.f32 1.0, %v3815
        %v3817 = vrcp.pop %v3770
        %v3818 = vmul.f32 1.0, %v3817
        %v3819 = vrcp.pop %v3771
        %v3820 = vmul.f32 1.0, %v3819
        %v3821 = vrcp.pop %v3772
        %v3822 = vmul.f32 1.0, %v3821
        %v3823 = vrcp.pop %v3773
        %v3824 = vmul.f32 1.0, %v3823
        %v3825 = vrcp.pop %v3774
        %v3826 = vmul.f32 1.0, %v3825
        %v3827 = vrcp.pop %v3775
        %v3828 = vmul.f32 1.0, %v3827
        %v3829 = vrcp.pop %v3776
        %v3830 = vmul.f32 1.0, %v3829
        %3831 = vst [vmem:[%s2] sm:$0xff] %v3778
        %3832 = vst [vmem:[%s2 + $0x8] sm:$0xff] %v3780
        %3833 = vst [vmem:[%s2 + $0x10] sm:$0xff] %v3782
        %3834 = vst [vmem:[%s2 + $0x18] sm:$0xff] %v3784
        %3835 = vst [vmem:[%s2 + $0x20] sm:$0xff] %v3786
        %3836 = vst [vmem:[%s2 + $0x28] sm:$0xff] %v3788
        %3837 = vst [vmem:[%s2 + $0x30] sm:$0xff] %v3790
        %3838 = vst [vmem:[%s2 + $0x38] sm:$0xff] %v3792
        %3839 = vst [vmem:[%s2 + $0x40] sm:$0xff] %v3794
        %3840 = vst [vmem:[%s2 + $0x48] sm:$0xff] %v3796
        %3841 = vst [vmem:[%s2 + $0x50] sm:$0xff] %v3798
        %3842 = vst [vmem:[%s2 + $0x58] sm:$0xff] %v3800
        %3843 = vst [vmem:[%s2 + $0x60] sm:$0xff] %v3802
        %3844 = vst [vmem:[%s2 + $0x68] sm:$0xff] %v3804
        %3845 = vst [vmem:[%s2 + $0x70] sm:$0xff] %v3806
        %3846 = vst [vmem:[%s2 + $0x78] sm:$0xff] %v3808
        %3847 = vst [vmem:[%s2 + $0x80] sm:$0xff] %v3810
        %3848 = vst [vmem:[%s2 + $0x88] sm:$0xff] %v3812
        %3849 = vst [vmem:[%s2 + $0x90] sm:$0xff] %v3814
        %3850 = vst [vmem:[%s2 + $0x98] sm:$0xff] %v3816
        %3851 = vst [vmem:[%s2 + $0xa0] sm:$0xff] %v3818
        %3852 = vst [vmem:[%s2 + $0xa8] sm:$0xff] %v3820
        %3853 = vst [vmem:[%s2 + $0xb0] sm:$0xff] %v3822
        %3854 = vst [vmem:[%s2 + $0xb8] sm:$0xff] %v3824
        %3855 = vst [vmem:[%s2 + $0xc0] sm:$0xff] %v3826
        %3856 = vst [vmem:[%s2 + $0xc8] sm:$0xff] %v3828
        %3857 = vst [vmem:[%s2 + $0xd0] sm:$0xff] %v3830
      $region36: #{ae_forward.15} parent=27 // pred_fallthru
        _
      // Predicated region
      $region37: #{ae_forward.15} parent=27 // pred_check
        %p3858 = pneg %p78
      $region38: #{ae_forward.15} parent=27 // pred_check_branch
        %3860 = sbr.rel (%p3858) target = $region40
      $region39: #{ae_forward.15} parent=27 // pred_region
        _
      $region40: #{ae_forward.15} parent=27 // pred_fallthru
        _
      // Predicated region
      $region41: #{ae_forward.15} parent=27 // pred_check
        %p3861 = pneg %p78
      $region42: #{ae_forward.15} parent=27 // pred_check_branch
        %3863 = sbr.rel (%p3861) target = $region44
      $region43: #{ae_forward.15} parent=27 // pred_region
        _
      $region44: #{ae_forward.15} parent=27 // pred_fallthru
        _
    $region28: #{ae_forward.15} parent=5 // pred_fallthru
      _
    %p3864 = scmp.le.s32.totalorder 2, %s8
    // Predicated region
    $region45: #{ae_forward.15} parent=5 // pred_check
      %p3865 = pneg %p3864
    $region46: #{ae_forward.15} parent=5 // pred_check_branch
      %3867 = sbr.rel (%p3865) target = $region48
    $region47: #{ae_forward.15} parent=5 // pred_region
      %s3868 = ssub.s32 %s8, 2
    $region48: #{ae_forward.15} parent=5 // pred_fallthru
      _
  $region6: #{ae_forward.15} parent=0 // loop_footer
    %s12 = sadd.s32 1, %s8
  $region7: #{ae_forward.15} parent=0 // loop_footer_branch
    %7 = sbr.rel target = $region3
  $region8: #{ae_forward.15} parent=0 // loop_exit
    _

</llo_original>
